<compile_context>
chip_gen: v6e
topology: v6e:2x2x1
jax: 0.10.0
libtpu: 0.0.40
codegen_flags: <defaults>
</compile_context>

<pallas_src>
import functools
import math

import jax
import jax.numpy as jnp
from jax.experimental import pallas as pl
from jax.experimental.pallas import tpu as pltpu


_VMEM_LIMIT_BYTES = 48 * 1024 * 1024   # > v5e 16 MiB default scoped VMEM, < v7x 64 MiB


def _round_up(x, m):
    return ((x + m - 1) // m) * m


def _default_max_channel_tile():
    """256-wide channel tiles on v6e/v7x (2x256^2 MXU), 128 on older parts."""
    try:
        kind = jax.devices()[0].device_kind.lower()
    except Exception:
        kind = ""
    if any(v in kind for v in ("v2", "v3", "v4", "v5")):
        return 128
    return 256


def _ch_tile(c, max_tile):
    for t in (256, 128):
        if t <= max_tile and c >= t and c % t == 0:
            return t
    return c


# ---------------------------------------------------------------- kernels --

def _conv_im2col_kernel(x_ref, w_ref, b_ref, y_ref, st_ref, *, Wo, post_lrelu):
    """Tap-packed conv: one MXU dot with K = 16*cin_p (lane-sparse-input path).

    x_ref : (1, th, Wo_p, K)   im2col rows (bf16), K = 16 taps x cin_p channels
    w_ref : (K, tcout)         flattened weights (bf16)
    b_ref : (1, tcout)         conv bias (f32)
    y_ref : (1, th, Wo, tcout) conv output rows
    st_ref: (1, 2, tcout)      per (image, row-tile) [sum, sum_sq] of pre-act output
    """
    th, wo_p, k = x_ref.shape[1], x_ref.shape[2], x_ref.shape[3]
    x = x_ref[0].reshape(th * wo_p, k)                 # free view: wo_p % 16 == 0
    y = jnp.dot(x, w_ref[...], preferred_element_type=jnp.float32) + b_ref[0]
    y3 = y.reshape(th, wo_p, y.shape[-1])[:, :Wo, :]   # drop lane-pad columns
    s = jnp.sum(y3, axis=0)
    sq = jnp.sum(y3 * y3, axis=0)
    st_ref[0, 0:1, :] = jnp.sum(s, axis=0, keepdims=True)
    st_ref[0, 1:2, :] = jnp.sum(sq, axis=0, keepdims=True)
    if post_lrelu:
        y3 = jnp.where(y3 >= 0, y3, 0.2 * y3)
    y_ref[0] = y3.astype(y_ref.dtype)


def _conv_direct_kernel(x_ref, w_ref, b_ref, y_ref, st_ref, acc_ref,
                        *, stride, Ho, Wo, Wo_pad, Hph, post_lrelu):
    """Direct 4x4 conv of one image for one (C_out tile, C_in tile) pair.

    x_ref : (1, S*S*Hph, Wpp, TCin) phase-decomposed zero-padded input slab (bf16)
    w_ref : (16, TCin, TCout)       per-tap weight matrices (bf16)
    b_ref : (1, TCout)              conv bias (f32)
    y_ref : (1, Ho, Wo, TCout)      conv output tile
    st_ref: (1, 2, TCout)           per-channel [sum, sum_sq] of pre-act output
    acc_ref: (Ho*Wo_pad, TCout) f32 VMEM accumulator, persists across C_in steps
    """
    ci = pl.program_id(2)

    @pl.when(ci == 0)
    def _():
        acc_ref[...] = jnp.zeros_like(acc_ref)

    x = x_ref[0]                                       # (S2*Hph, Wpp, TCin), bf16
    n_c0 = 3 // stride + 1                             # 2 (stride 2) or 4 (stride 1)
    for c0 in range(n_c0):
        # hoisted column slice: shared by all taps with kw // stride == c0
        xc = x[:, c0:c0 + Wo_pad, :]                   # (S2*Hph, Wo_pad, TCin)
        for kh in range(4):
            for kw in range(4):
                if kw // stride != c0:
                    continue
                p = (kh % stride) * stride + (kw % stride)   # spatial phase
                r0 = p * Hph + kh // stride
                win = xc[r0:r0 + Ho].reshape(Ho * Wo_pad, xc.shape[-1])
                acc_ref[...] += jnp.dot(win, w_ref[kh * 4 + kw],
                                        preferred_element_type=jnp.float32)

    @pl.when(ci == pl.num_programs(2) - 1)
    def _():
        y = acc_ref[...] + b_ref[0]                    # (Ho*Wo_pad, TCout) f32
        tc = y.shape[-1]
        y3 = y.reshape(Ho, Wo_pad, tc)[:, :Wo, :]      # drop lane-pad columns
        s = jnp.sum(y3, axis=0)
        sq = jnp.sum(y3 * y3, axis=0)
        st_ref[0, 0:1, :] = jnp.sum(s, axis=0, keepdims=True)
        st_ref[0, 1:2, :] = jnp.sum(sq, axis=0, keepdims=True)
        if post_lrelu:
            y3 = jnp.where(y3 >= 0, y3, 0.2 * y3)
        y_ref[0] = y3.astype(y_ref.dtype)


# --------------------------------------------------------------- wrappers --

def _conv_tap_packed(x, w, bias, *, stride, post_lrelu, out_dtype, max_tile):
    """Conv2d(k=4, p=1) with the 16 taps packed into the contraction axis."""
    N, H, W, Cin = x.shape
    Cout = w.shape[0]
    Ho = (H + 2 - 4) // stride + 1
    Wo = (W + 2 - 4) // stride + 1
    assert Ho >= 1 and Wo >= 1
    cin_p = _round_up(Cin, 8)
    cout_p = _round_up(Cout, 8)
    K = 16 * cin_p

    # XLA prep: plain zero pad + gather the 16 taps into the channel axis.
    xp = jnp.pad(x.astype(jnp.bfloat16),
                 ((0, 0), (1, 1), (1, 1), (0, cin_p - Cin)))
    taps = []
    for kh in range(4):
        for kw in range(4):
            taps.append(jax.lax.slice(
                xp, (0, kh, kw, 0),
                (N, kh + stride * (Ho - 1) + 1, kw + stride * (Wo - 1) + 1, cin_p),
                (1, stride, stride, 1)))
    xcol = jnp.concatenate(taps, axis=-1)              # (N, Ho, Wo, 16*cin_p)
    Wo_p = _round_up(Wo, 16)                           # keep in-kernel flatten free
    if Wo_p != Wo:
        xcol = jnp.pad(xcol, ((0, 0), (0, 0), (0, Wo_p - Wo), (0, 0)))

    # weights: (Cout, Cin, 4, 4) -> (16*cin_p, cout_p), matching the tap order above.
    wt = jnp.transpose(w, (2, 3, 1, 0))                # (4, 4, Cin, Cout)
    wt = jnp.pad(wt, ((0, 0), (0, 0), (0, cin_p - Cin), (0, cout_p - Cout)))
    wk = wt.reshape(K, cout_p).astype(jnp.bfloat16)
    bias2 = jnp.zeros((1, cout_p), jnp.float32).at[0, :Cout].set(
        bias.astype(jnp.float32))

    # tile output rows (bounds VMEM, adds grid extent for megacore) and channels.
    budget = max(1, 8192 // Wo_p)
    th = 1
    for d in range(1, Ho + 1):
        if Ho % d == 0 and d <= budget:
            th = d
    n_ho = Ho // th
    tcout = _ch_tile(cout_p, max_tile)
    n_co = cout_p // tcout

    kern = functools.partial(_conv_im2col_kernel, Wo=Wo, post_lrelu=post_lrelu)
    y, stats = pl.pallas_call(
        kern,
        out_shape=(jax.ShapeDtypeStruct((N, Ho, Wo, cout_p), out_dtype),
                   jax.ShapeDtypeStruct((N * n_ho, 2, cout_p), jnp.float32)),
        grid=(N, n_ho, n_co),
        in_specs=[
            pl.BlockSpec((1, th, Wo_p, K), lambda n, h, co: (n, h, 0, 0)),
            pl.BlockSpec((K, tcout), lambda n, h, co: (0, co)),
            pl.BlockSpec((1, tcout), lambda n, h, co: (0, co)),
        ],
        out_specs=(
            pl.BlockSpec((1, th, Wo, tcout), lambda n, h, co: (n, h, 0, co)),
            pl.BlockSpec((1, 2, tcout), lambda n, h, co: (n * n_ho + h, 0, co)),
        ),
        compiler_params=pltpu.CompilerParams(
            dimension_semantics=("parallel", "parallel", "parallel"),
            vmem_limit_bytes=_VMEM_LIMIT_BYTES),
    )(xcol, wk, bias2)

    stats = stats.reshape(N, n_ho, 2, cout_p).sum(axis=1)
    return y[..., :Cout], stats[..., :Cout]


def _conv_direct(x, w, bias, *, stride, post_lrelu, out_dtype, max_tile):
    """Conv2d(k=4, p=1) as 16 accumulating MXU matmuls over shifted windows."""
    N, H, W, Cin = x.shape
    Cout = w.shape[0]
    Ho = (H + 2 - 4) // stride + 1
    Wo = (W + 2 - 4) // stride + 1
    assert Ho >= 1 and Wo >= 1
    if stride == 2:
        assert H % 2 == 0 and W % 2 == 0
    cin_p = _round_up(Cin, 8)
    cout_p = _round_up(Cout, 8)

    # Wo rounded so the in-kernel (Ho, Wo_pad) -> flat reshape is a free bf16 view
    # (<= ~7% extra M at production sizes; only the tiny deep layers see more).
    Wo_pad = _round_up(Wo, 16)
    Hp = H + 2
    Wp = W + 2 + (Wo_pad - Wo) * stride

    # XLA prep: plain zero pad (previous layer's BN/LeakyReLU already applied
    # upstream) + stride-2 phase split so every tap is a contiguous static slice.
    xp = jnp.pad(x.astype(jnp.bfloat16),
                 ((0, 0), (1, Hp - H - 1), (1, Wp - W - 1), (0, cin_p - Cin)))
    if stride == 2:
        Hph, Wpp = Hp // 2, Wp // 2
        xph = xp.reshape(N, Hph, 2, Wpp, 2, cin_p)
        xph = xph.transpose(0, 2, 4, 1, 3, 5).reshape(N, 4 * Hph, Wpp, cin_p)
    else:
        Hph, Wpp = Hp, Wp
        xph = xp
    rows = stride * stride * Hph

    wt = jnp.transpose(w, (2, 3, 1, 0))                # (4, 4, Cin, Cout)
    wt = jnp.pad(wt, ((0, 0), (0, 0), (0, cin_p - Cin), (0, cout_p - Cout)))
    w16 = wt.reshape(16, cin_p, cout_p).astype(jnp.bfloat16)
    bias2 = jnp.zeros((1, cout_p), jnp.float32).at[0, :Cout].set(
        bias.astype(jnp.float32))

    tcin = _ch_tile(cin_p, max_tile)
    tcout = _ch_tile(cout_p, max_tile)
    n_ci = cin_p // tcin
    n_co = cout_p // tcout

    # NOTE: an output-row grid axis (halo'd input blocks) would be needed to fit
    # v7x's 64 MiB VMEM at >=512^2 inputs; current blocks fit v5e/v6e and all
    # shapes used here.
    kern = functools.partial(_conv_direct_kernel, stride=stride, Ho=Ho, Wo=Wo,
                             Wo_pad=Wo_pad, Hph=Hph, post_lrelu=post_lrelu)
    y, stats = pl.pallas_call(
        kern,
        out_shape=(jax.ShapeDtypeStruct((N, Ho, Wo, cout_p), out_dtype),
                   jax.ShapeDtypeStruct((N, 2, cout_p), jnp.float32)),
        grid=(N, n_co, n_ci),
        in_specs=[
            pl.BlockSpec((1, rows, Wpp, tcin), lambda n, co, ci: (n, 0, 0, ci)),
            pl.BlockSpec((16, tcin, tcout), lambda n, co, ci: (0, ci, co)),
            pl.BlockSpec((1, tcout), lambda n, co, ci: (0, co)),
        ],
        out_specs=(
            pl.BlockSpec((1, Ho, Wo, tcout), lambda n, co, ci: (n, 0, 0, co)),
            pl.BlockSpec((1, 2, tcout), lambda n, co, ci: (n, 0, co)),
        ),
        scratch_shapes=[pltpu.VMEM((Ho * Wo_pad, tcout), jnp.float32)],
        compiler_params=pltpu.CompilerParams(
            dimension_semantics=("parallel", "parallel", "arbitrary"),
            vmem_limit_bytes=_VMEM_LIMIT_BYTES),
    )(xph, w16, bias2)

    return y[..., :Cout], stats[..., :Cout]


def conv_block_pallas(x, w, bias, *, stride, post_lrelu, out_dtype=jnp.bfloat16,
                      max_tile=256):
    """One Conv2d(k=4, s=stride, p=1) (+ optional fused LeakyReLU) on NHWC bf16.

    Returns (y, stats): y (N, Ho, Wo, Cout); stats (N, 2, Cout) per-image
    [sum, sum_sq] of the PRE-activation conv output (consumed by BatchNorm).
    """
    cin_p = _round_up(x.shape[-1], 8)
    if 16 * cin_p <= 256:        # lane-sparse input -> pack taps into K (layer 1)
        return _conv_tap_packed(x, w, bias, stride=stride, post_lrelu=post_lrelu,
                                out_dtype=out_dtype, max_tile=max_tile)
    return _conv_direct(x, w, bias, stride=stride, post_lrelu=post_lrelu,
                        out_dtype=out_dtype, max_tile=max_tile)


# ------------------------------------------------------------------- model --

def build_discriminator(key, input_ch, ndf=64, n_layers=3):
    """Mirror NLayerDiscriminator.__init__ (norm_layer=BatchNorm2d => use_bias=False)."""
    use_bias = False  # norm_layer == nn.BatchNorm2d
    specs = [dict(cin=input_ch, cout=ndf, stride=2, bias=True, norm=False, act=True)]
    nf_mult = 1
    n = 1
    for n in range(1, n_layers):
        nf_mult_prev = nf_mult
        nf_mult = min(2 ** n, 8)
        specs.append(dict(cin=ndf * nf_mult_prev, cout=ndf * nf_mult, stride=2,
                          bias=use_bias, norm=True, act=True))
    nf_mult_prev = nf_mult
    # NB: the reference module reuses the leaked loop variable `n` here (not
    # n_layers); reproduce that exactly to match its parameter shapes.
    nf_mult = min(2 ** n, 8)
    specs.append(dict(cin=ndf * nf_mult_prev, cout=ndf * nf_mult, stride=1,
                      bias=use_bias, norm=True, act=True))
    specs.append(dict(cin=ndf * nf_mult, cout=1, stride=1, bias=True, norm=False,
                      act=False))

    params = []
    for s in specs:
        key, kw_, kb_ = jax.random.split(key, 3)
        fan_in = s["cin"] * 16
        bound = 1.0 / math.sqrt(fan_in)
        w = jax.random.uniform(kw_, (s["cout"], s["cin"], 4, 4),
                               minval=-bound, maxval=bound, dtype=jnp.float32)
        if s["bias"]:
            b = jax.random.uniform(kb_, (s["cout"],), minval=-bound, maxval=bound,
                                   dtype=jnp.float32)
        else:
            b = jnp.zeros((s["cout"],), jnp.float32)
        gamma = jnp.ones((s["cout"],), jnp.float32)   # BatchNorm2d default init
        beta = jnp.zeros((s["cout"],), jnp.float32)
        params.append((w, b, gamma, beta))
    return specs, params


def discriminator_forward(x_nchw, specs, params, eps=1e-5):
    """NCHW float32 in -> NCHW float32 patch logits out."""
    # TODO(synk): nn.BatchNorm2d running-stat buffers (eval mode) are not modeled;
    # this forward uses training-mode batch statistics, matching module.train().
    x = jnp.transpose(x_nchw, (0, 2, 3, 1)).astype(jnp.bfloat16)   # NHWC, bf16
    max_tile = _default_max_channel_tile()
    pre_a = pre_b = None
    n_total = len(specs)
    for li, (spec, (w, b, gamma, beta)) in enumerate(zip(specs, params)):
        if pre_a is not None:
            # Previous layer's BatchNorm affine + LeakyReLU(0.2), applied in the XLA
            # prep pass (fuses with the pad / phase-split / tap-gather below).  Conv
            # zero-padding happens AFTER the activation, so a plain zero pad is exact.
            xf = x.astype(jnp.float32) * pre_a + pre_b
            xf = jnp.where(xf >= 0, xf, 0.2 * xf)
            x = xf.astype(jnp.bfloat16)
        last = li == n_total - 1
        y, stats = conv_block_pallas(
            x, w, b, stride=spec["stride"],
            post_lrelu=(spec["act"] and not spec["norm"]),
            out_dtype=jnp.float32 if last else jnp.bfloat16,
            max_tile=max_tile)
        if spec["norm"]:
            # training-mode BatchNorm2d: batch statistics (biased variance) from the
            # kernel's fused per-channel [sum, sum_sq]; E[x^2]-E[x]^2 in f32 with a
            # non-negativity clamp (adequate for these magnitudes/counts).
            N, Ho, Wo, _ = y.shape
            cnt = float(N * Ho * Wo)
            s1 = jnp.sum(stats[:, 0, :], axis=0)
            s2 = jnp.sum(stats[:, 1, :], axis=0)
            mean = s1 / cnt
            var = jnp.maximum(s2 / cnt - mean * mean, 0.0)
            scale = gamma * jax.lax.rsqrt(var + eps)
            pre_a, pre_b = scale, beta - mean * scale
        else:
            pre_a = pre_b = None
        x = y
    return jnp.transpose(x, (0, 3, 1, 2)).astype(jnp.float32)


# --------------------------------------------------------------------- main --

if __name__ == "__main__":
    key = jax.random.PRNGKey(0)
    kx, kp = jax.random.split(key)

    # spatial must be >= 32 so the two stride-1 k=4 convs keep a positive output size
    x = jax.random.normal(kx, (2, 4, 32, 32), dtype=jnp.float32)   # NCHW like PyTorch
    specs, params = build_discriminator(kp, input_ch=4, ndf=8, n_layers=3)

    fwd = jax.jit(lambda xx, pp: discriminator_forward(xx, specs, pp))
    out = jax.block_until_ready(fwd(x, params))

    assert out.shape == (2, 1, 2, 2), out.shape
    assert bool(jnp.all(jnp.isfinite(out)))
    print("KERNEL_OK")
</pallas_src>

<mosaic_0001>
module attributes {stable_mosaic.version = 11 : i64} {
  func.func @_conv_im2col_kernel(%arg0: i32, %arg1: i32, %arg2: i32, %arg3: memref<1x16x16x128xbf16, #tpu.memory_space<vmem>>, %arg4: memref<128x8xbf16, #tpu.memory_space<vmem>>, %arg5: memref<1x8xf32, #tpu.memory_space<vmem>>, %arg6: memref<1x16x16x8xbf16, #tpu.memory_space<vmem>>, %arg7: memref<1x2x8xf32, #tpu.memory_space<vmem>>) attributes {dimension_semantics = [#tpu.dimension_semantics<parallel>, #tpu.dimension_semantics<parallel>, #tpu.dimension_semantics<parallel>], iteration_bounds = array<i64: 2, 1, 1>, scalar_prefetch = 0 : i64, scratch_operands = 0 : i64, tpu.core_type = #tpu.core_type<tc>, window_params = [{transform_indices = @transform_0, window_bounds = array<i64: 1, 16, 16, 128>}, {transform_indices = @transform_1, window_bounds = array<i64: 128, 8>}, {transform_indices = @transform_2, window_bounds = array<i64: 1, 8>}, {transform_indices = @transform_3, window_bounds = array<i64: 1, 16, 16, 8>}, {transform_indices = @transform_4, window_bounds = array<i64: 1, 2, 8>}]} {
    %c0 = arith.constant 0 : index
    %c0_0 = arith.constant 0 : index
    %c0_1 = arith.constant 0 : index
    %c0_2 = arith.constant 0 : index
    %0 = vector.load %arg3[%c0, %c0_0, %c0_1, %c0_2] : memref<1x16x16x128xbf16, #tpu.memory_space<vmem>>, vector<1x16x16x128xbf16>
    %1 = vector.shape_cast %0 : vector<1x16x16x128xbf16> to vector<16x16x128xbf16>
    %2 = vector.shape_cast %1 : vector<16x16x128xbf16> to vector<256x128xbf16>
    %c0_3 = arith.constant 0 : index
    %c0_4 = arith.constant 0 : index
    %3 = vector.load %arg4[%c0_3, %c0_4] : memref<128x8xbf16, #tpu.memory_space<vmem>>, vector<128x8xbf16>
    %cst = arith.constant dense<0.000000e+00> : vector<256x8xf32>
    %4 = tpu.matmul %2, %3, %cst {dimension_numbers = #tpu.dot_dimension_numbers<[1], [0], [0], [1], [0, 0, 1, 1], [], []>} : vector<256x128xbf16>, vector<128x8xbf16>, vector<256x8xf32> -> vector<256x8xf32>
    %c0_5 = arith.constant 0 : index
    %c0_6 = arith.constant 0 : index
    %5 = vector.load %arg5[%c0_5, %c0_6] : memref<1x8xf32, #tpu.memory_space<vmem>>, vector<1x8xf32>
    %6 = vector.shape_cast %5 : vector<1x8xf32> to vector<8xf32>
    %7 = vector.shape_cast %6 : vector<8xf32> to vector<1x8xf32>
    %8 = vector.broadcast %7 : vector<1x8xf32> to vector<256x8xf32>
    %9 = arith.addf %4, %8 : vector<256x8xf32>
    %10 = vector.shape_cast %9 : vector<256x8xf32> to vector<16x16x8xf32>
    %cst_7 = arith.constant dense<0.000000e+00> : vector<16x8xf32>
    %11 = vector.multi_reduction <add>, %10, %cst_7 [0] : vector<16x16x8xf32> to vector<16x8xf32>
    %12 = arith.mulf %10, %10 : vector<16x16x8xf32>
    %cst_8 = arith.constant dense<0.000000e+00> : vector<16x8xf32>
    %13 = vector.multi_reduction <add>, %12, %cst_8 [0] : vector<16x16x8xf32> to vector<16x8xf32>
    %cst_9 = arith.constant dense<0.000000e+00> : vector<8xf32>
    %14 = vector.multi_reduction <add>, %11, %cst_9 [0] : vector<16x8xf32> to vector<8xf32>
    %15 = vector.shape_cast %14 : vector<8xf32> to vector<1x8xf32>
    %c0_10 = arith.constant 0 : index
    %c0_11 = arith.constant 0 : index
    %c0_12 = arith.constant 0 : index
    %16 = vector.load %arg7[%c0_10, %c0_11, %c0_12] : memref<1x2x8xf32, #tpu.memory_space<vmem>>, vector<1x1x8xf32>
    %17 = vector.shape_cast %16 : vector<1x1x8xf32> to vector<1x8xf32>
    %18 = vector.shape_cast %15 : vector<1x8xf32> to vector<1x1x8xf32>
    tpu.vector_store %arg7[%c0_10, %c0_11, %c0_12], %18 {strides = array<i32>} : memref<1x2x8xf32, #tpu.memory_space<vmem>>, vector<1x1x8xf32>,
    %cst_13 = arith.constant dense<0.000000e+00> : vector<8xf32>
    %19 = vector.multi_reduction <add>, %13, %cst_13 [0] : vector<16x8xf32> to vector<8xf32>
    %20 = vector.shape_cast %19 : vector<8xf32> to vector<1x8xf32>
    %c0_14 = arith.constant 0 : index
    %c1 = arith.constant 1 : index
    %c0_15 = arith.constant 0 : index
    %21 = vector.load %arg7[%c0_14, %c1, %c0_15] : memref<1x2x8xf32, #tpu.memory_space<vmem>>, vector<1x1x8xf32>
    %22 = vector.shape_cast %21 : vector<1x1x8xf32> to vector<1x8xf32>
    %23 = vector.shape_cast %20 : vector<1x8xf32> to vector<1x1x8xf32>
    tpu.vector_store %arg7[%c0_14, %c1, %c0_15], %23 {strides = array<i32>} : memref<1x2x8xf32, #tpu.memory_space<vmem>>, vector<1x1x8xf32>,
    %cst_16 = arith.constant 0.000000e+00 : f32
    %24 = vector.broadcast %cst_16 : f32 to vector<16x16x8xf32>
    %25 = arith.cmpf oge, %10, %24 : vector<16x16x8xf32>
    %cst_17 = arith.constant 2.000000e-01 : f32
    %26 = vector.broadcast %cst_17 : f32 to vector<16x16x8xf32>
    %27 = arith.mulf %26, %10 : vector<16x16x8xf32>
    %28 = arith.select %25, %10, %27 : vector<16x16x8xi1>, vector<16x16x8xf32>
    %29 = arith.truncf %28 : vector<16x16x8xf32> to vector<16x16x8xbf16>
    %c0_18 = arith.constant 0 : index
    %c0_19 = arith.constant 0 : index
    %c0_20 = arith.constant 0 : index
    %c0_21 = arith.constant 0 : index
    %30 = vector.load %arg6[%c0_18, %c0_19, %c0_20, %c0_21] : memref<1x16x16x8xbf16, #tpu.memory_space<vmem>>, vector<1x16x16x8xbf16>
    %31 = vector.shape_cast %30 : vector<1x16x16x8xbf16> to vector<16x16x8xbf16>
    %32 = vector.shape_cast %29 : vector<16x16x8xbf16> to vector<1x16x16x8xbf16>
    tpu.vector_store %arg6[%c0_18, %c0_19, %c0_20, %c0_21], %32 {strides = array<i32>} : memref<1x16x16x8xbf16, #tpu.memory_space<vmem>>, vector<1x16x16x8xbf16>,
    return
  }
  func.func @transform_0(%arg0: i32, %arg1: i32, %arg2: i32) -> (i32, i32, i32, i32) {
    %c0_i32 = arith.constant 0 : i32
    %c0_i32_0 = arith.constant 0 : i32
    %c0_i32_1 = arith.constant 0 : i32
    return %arg0, %arg1, %c0_i32, %c0_i32_0 : i32, i32, i32, i32
  }
  func.func @transform_1(%arg0: i32, %arg1: i32, %arg2: i32) -> (i32, i32) {
    %c0_i32 = arith.constant 0 : i32
    %c0_i32_0 = arith.constant 0 : i32
    return %c0_i32, %arg2 : i32, i32
  }
  func.func @transform_2(%arg0: i32, %arg1: i32, %arg2: i32) -> (i32, i32) {
    %c0_i32 = arith.constant 0 : i32
    %c0_i32_0 = arith.constant 0 : i32
    return %c0_i32, %arg2 : i32, i32
  }
  func.func @transform_3(%arg0: i32, %arg1: i32, %arg2: i32) -> (i32, i32, i32, i32) {
    %c0_i32 = arith.constant 0 : i32
    %c0_i32_0 = arith.constant 0 : i32
    return %arg0, %arg1, %c0_i32, %arg2 : i32, i32, i32, i32
  }
  func.func @transform_4(%arg0: i32, %arg1: i32, %arg2: i32) -> (i32, i32, i32) {
    %c1_i32 = arith.constant 1 : i32
    %0 = arith.muli %arg0, %c1_i32 : i32
    %1 = arith.addi %0, %arg1 : i32
    %c0_i32 = arith.constant 0 : i32
    %c0_i32_0 = arith.constant 0 : i32
    return %1, %c0_i32, %arg2 : i32, i32, i32
  }
}

module attributes {stable_mosaic.version = 11 : i64} {
  func.func @_conv_im2col_kernel(%arg0: i32, %arg1: i32, %arg2: i32, %arg3: memref<1x8x16x128xbf16, #tpu.memory_space<vmem>>, %arg4: memref<128x16xbf16, #tpu.memory_space<vmem>>, %arg5: memref<1x16xf32, #tpu.memory_space<vmem>>, %arg6: memref<1x8x8x16xbf16, #tpu.memory_space<vmem>>, %arg7: memref<1x2x16xf32, #tpu.memory_space<vmem>>) attributes {dimension_semantics = [#tpu.dimension_semantics<parallel>, #tpu.dimension_semantics<parallel>, #tpu.dimension_semantics<parallel>], iteration_bounds = array<i64: 2, 1, 1>, scalar_prefetch = 0 : i64, scratch_operands = 0 : i64, tpu.core_type = #tpu.core_type<tc>, window_params = [{transform_indices = @transform_0, window_bounds = array<i64: 1, 8, 16, 128>}, {transform_indices = @transform_1, window_bounds = array<i64: 128, 16>}, {transform_indices = @transform_2, window_bounds = array<i64: 1, 16>}, {transform_indices = @transform_3, window_bounds = array<i64: 1, 8, 8, 16>}, {transform_indices = @transform_4, window_bounds = array<i64: 1, 2, 16>}]} {
    %c0 = arith.constant 0 : index
    %c0_0 = arith.constant 0 : index
    %c0_1 = arith.constant 0 : index
    %c0_2 = arith.constant 0 : index
    %0 = vector.load %arg3[%c0, %c0_0, %c0_1, %c0_2] : memref<1x8x16x128xbf16, #tpu.memory_space<vmem>>, vector<1x8x16x128xbf16>
    %1 = vector.shape_cast %0 : vector<1x8x16x128xbf16> to vector<8x16x128xbf16>
    %2 = vector.shape_cast %1 : vector<8x16x128xbf16> to vector<128x128xbf16>
    %c0_3 = arith.constant 0 : index
    %c0_4 = arith.constant 0 : index
    %3 = vector.load %arg4[%c0_3, %c0_4] : memref<128x16xbf16, #tpu.memory_space<vmem>>, vector<128x16xbf16>
    %cst = arith.constant dense<0.000000e+00> : vector<128x16xf32>
    %4 = tpu.matmul %2, %3, %cst {dimension_numbers = #tpu.dot_dimension_numbers<[1], [0], [0], [1], [0, 0, 1, 1], [], []>} : vector<128x128xbf16>, vector<128x16xbf16>, vector<128x16xf32> -> vector<128x16xf32>
    %c0_5 = arith.constant 0 : index
    %c0_6 = arith.constant 0 : index
    %5 = vector.load %arg5[%c0_5, %c0_6] : memref<1x16xf32, #tpu.memory_space<vmem>>, vector<1x16xf32>
    %6 = vector.shape_cast %5 : vector<1x16xf32> to vector<16xf32>
    %7 = vector.shape_cast %6 : vector<16xf32> to vector<1x16xf32>
    %8 = vector.broadcast %7 : vector<1x16xf32> to vector<128x16xf32>
    %9 = arith.addf %4, %8 : vector<128x16xf32>
    %10 = vector.shape_cast %9 : vector<128x16xf32> to vector<8x16x16xf32>
    %11 = vector.extract_strided_slice %10 {offsets = [0, 0, 0], sizes = [8, 8, 16], strides = [1, 1, 1]} : vector<8x16x16xf32> to vector<8x8x16xf32>
    %cst_7 = arith.constant dense<0.000000e+00> : vector<8x16xf32>
    %12 = vector.multi_reduction <add>, %11, %cst_7 [0] : vector<8x8x16xf32> to vector<8x16xf32>
    %13 = arith.mulf %11, %11 : vector<8x8x16xf32>
    %cst_8 = arith.constant dense<0.000000e+00> : vector<8x16xf32>
    %14 = vector.multi_reduction <add>, %13, %cst_8 [0] : vector<8x8x16xf32> to vector<8x16xf32>
    %cst_9 = arith.constant dense<0.000000e+00> : vector<16xf32>
    %15 = vector.multi_reduction <add>, %12, %cst_9 [0] : vector<8x16xf32> to vector<16xf32>
    %16 = vector.shape_cast %15 : vector<16xf32> to vector<1x16xf32>
    %c0_10 = arith.constant 0 : index
    %c0_11 = arith.constant 0 : index
    %c0_12 = arith.constant 0 : index
    %17 = vector.load %arg7[%c0_10, %c0_11, %c0_12] : memref<1x2x16xf32, #tpu.memory_space<vmem>>, vector<1x1x16xf32>
    %18 = vector.shape_cast %17 : vector<1x1x16xf32> to vector<1x16xf32>
    %19 = vector.shape_cast %16 : vector<1x16xf32> to vector<1x1x16xf32>
    tpu.vector_store %arg7[%c0_10, %c0_11, %c0_12], %19 {strides = array<i32>} : memref<1x2x16xf32, #tpu.memory_space<vmem>>, vector<1x1x16xf32>,
    %cst_13 = arith.constant dense<0.000000e+00> : vector<16xf32>
    %20 = vector.multi_reduction <add>, %14, %cst_13 [0] : vector<8x16xf32> to vector<16xf32>
    %21 = vector.shape_cast %20 : vector<16xf32> to vector<1x16xf32>
    %c0_14 = arith.constant 0 : index
    %c1 = arith.constant 1 : index
    %c0_15 = arith.constant 0 : index
    %22 = vector.load %arg7[%c0_14, %c1, %c0_15] : memref<1x2x16xf32, #tpu.memory_space<vmem>>, vector<1x1x16xf32>
    %23 = vector.shape_cast %22 : vector<1x1x16xf32> to vector<1x16xf32>
    %24 = vector.shape_cast %21 : vector<1x16xf32> to vector<1x1x16xf32>
    tpu.vector_store %arg7[%c0_14, %c1, %c0_15], %24 {strides = array<i32>} : memref<1x2x16xf32, #tpu.memory_space<vmem>>, vector<1x1x16xf32>,
    %25 = arith.truncf %11 : vector<8x8x16xf32> to vector<8x8x16xbf16>
    %c0_16 = arith.constant 0 : index
    %c0_17 = arith.constant 0 : index
    %c0_18 = arith.constant 0 : index
    %c0_19 = arith.constant 0 : index
    %26 = vector.load %arg6[%c0_16, %c0_17, %c0_18, %c0_19] : memref<1x8x8x16xbf16, #tpu.memory_space<vmem>>, vector<1x8x8x16xbf16>
    %27 = vector.shape_cast %26 : vector<1x8x8x16xbf16> to vector<8x8x16xbf16>
    %28 = vector.shape_cast %25 : vector<8x8x16xbf16> to vector<1x8x8x16xbf16>
    tpu.vector_store %arg6[%c0_16, %c0_17, %c0_18, %c0_19], %28 {strides = array<i32>} : memref<1x8x8x16xbf16, #tpu.memory_space<vmem>>, vector<1x8x8x16xbf16>,
    return
  }
  func.func @transform_0(%arg0: i32, %arg1: i32, %arg2: i32) -> (i32, i32, i32, i32) {
    %c0_i32 = arith.constant 0 : i32
    %c0_i32_0 = arith.constant 0 : i32
    %c0_i32_1 = arith.constant 0 : i32
    return %arg0, %arg1, %c0_i32, %c0_i32_0 : i32, i32, i32, i32
  }
  func.func @transform_1(%arg0: i32, %arg1: i32, %arg2: i32) -> (i32, i32) {
    %c0_i32 = arith.constant 0 : i32
    %c0_i32_0 = arith.constant 0 : i32
    return %c0_i32, %arg2 : i32, i32
  }
  func.func @transform_2(%arg0: i32, %arg1: i32, %arg2: i32) -> (i32, i32) {
    %c0_i32 = arith.constant 0 : i32
    %c0_i32_0 = arith.constant 0 : i32
    return %c0_i32, %arg2 : i32, i32
  }
  func.func @transform_3(%arg0: i32, %arg1: i32, %arg2: i32) -> (i32, i32, i32, i32) {
    %c0_i32 = arith.constant 0 : i32
    %c0_i32_0 = arith.constant 0 : i32
    return %arg0, %arg1, %c0_i32, %arg2 : i32, i32, i32, i32
  }
  func.func @transform_4(%arg0: i32, %arg1: i32, %arg2: i32) -> (i32, i32, i32) {
    %c1_i32 = arith.constant 1 : i32
    %0 = arith.muli %arg0, %c1_i32 : i32
    %1 = arith.addi %0, %arg1 : i32
    %c0_i32 = arith.constant 0 : i32
    %c0_i32_0 = arith.constant 0 : i32
    return %1, %c0_i32, %arg2 : i32, i32, i32
  }
}

module attributes {stable_mosaic.version = 11 : i64} {
  func.func @_conv_im2col_kernel(%arg0: i32, %arg1: i32, %arg2: i32, %arg3: memref<1x4x16x256xbf16, #tpu.memory_space<vmem>>, %arg4: memref<256x32xbf16, #tpu.memory_space<vmem>>, %arg5: memref<1x32xf32, #tpu.memory_space<vmem>>, %arg6: memref<1x4x4x32xbf16, #tpu.memory_space<vmem>>, %arg7: memref<1x2x32xf32, #tpu.memory_space<vmem>>) attributes {dimension_semantics = [#tpu.dimension_semantics<parallel>, #tpu.dimension_semantics<parallel>, #tpu.dimension_semantics<parallel>], iteration_bounds = array<i64: 2, 1, 1>, scalar_prefetch = 0 : i64, scratch_operands = 0 : i64, tpu.core_type = #tpu.core_type<tc>, window_params = [{transform_indices = @transform_0, window_bounds = array<i64: 1, 4, 16, 256>}, {transform_indices = @transform_1, window_bounds = array<i64: 256, 32>}, {transform_indices = @transform_2, window_bounds = array<i64: 1, 32>}, {transform_indices = @transform_3, window_bounds = array<i64: 1, 4, 4, 32>}, {transform_indices = @transform_4, window_bounds = array<i64: 1, 2, 32>}]} {
    %c0 = arith.constant 0 : index
    %c0_0 = arith.constant 0 : index
    %c0_1 = arith.constant 0 : index
    %c0_2 = arith.constant 0 : index
    %0 = vector.load %arg3[%c0, %c0_0, %c0_1, %c0_2] : memref<1x4x16x256xbf16, #tpu.memory_space<vmem>>, vector<1x4x16x256xbf16>
    %1 = vector.shape_cast %0 : vector<1x4x16x256xbf16> to vector<4x16x256xbf16>
    %2 = vector.shape_cast %1 : vector<4x16x256xbf16> to vector<64x256xbf16>
    %c0_3 = arith.constant 0 : index
    %c0_4 = arith.constant 0 : index
    %3 = vector.load %arg4[%c0_3, %c0_4] : memref<256x32xbf16, #tpu.memory_space<vmem>>, vector<256x32xbf16>
    %cst = arith.constant dense<0.000000e+00> : vector<64x32xf32>
    %4 = tpu.matmul %2, %3, %cst {dimension_numbers = #tpu.dot_dimension_numbers<[1], [0], [0], [1], [0, 0, 1, 1], [], []>} : vector<64x256xbf16>, vector<256x32xbf16>, vector<64x32xf32> -> vector<64x32xf32>
    %c0_5 = arith.constant 0 : index
    %c0_6 = arith.constant 0 : index
    %5 = vector.load %arg5[%c0_5, %c0_6] : memref<1x32xf32, #tpu.memory_space<vmem>>, vector<1x32xf32>
    %6 = vector.shape_cast %5 : vector<1x32xf32> to vector<32xf32>
    %7 = vector.shape_cast %6 : vector<32xf32> to vector<1x32xf32>
    %8 = vector.broadcast %7 : vector<1x32xf32> to vector<64x32xf32>
    %9 = arith.addf %4, %8 : vector<64x32xf32>
    %10 = vector.shape_cast %9 : vector<64x32xf32> to vector<4x16x32xf32>
    %11 = vector.extract_strided_slice %10 {offsets = [0, 0, 0], sizes = [4, 4, 32], strides = [1, 1, 1]} : vector<4x16x32xf32> to vector<4x4x32xf32>
    %cst_7 = arith.constant dense<0.000000e+00> : vector<4x32xf32>
    %12 = vector.multi_reduction <add>, %11, %cst_7 [0] : vector<4x4x32xf32> to vector<4x32xf32>
    %13 = arith.mulf %11, %11 : vector<4x4x32xf32>
    %cst_8 = arith.constant dense<0.000000e+00> : vector<4x32xf32>
    %14 = vector.multi_reduction <add>, %13, %cst_8 [0] : vector<4x4x32xf32> to vector<4x32xf32>
    %cst_9 = arith.constant dense<0.000000e+00> : vector<32xf32>
    %15 = vector.multi_reduction <add>, %12, %cst_9 [0] : vector<4x32xf32> to vector<32xf32>
    %16 = vector.shape_cast %15 : vector<32xf32> to vector<1x32xf32>
    %c0_10 = arith.constant 0 : index
    %c0_11 = arith.constant 0 : index
    %c0_12 = arith.constant 0 : index
    %17 = vector.load %arg7[%c0_10, %c0_11, %c0_12] : memref<1x2x32xf32, #tpu.memory_space<vmem>>, vector<1x1x32xf32>
    %18 = vector.shape_cast %17 : vector<1x1x32xf32> to vector<1x32xf32>
    %19 = vector.shape_cast %16 : vector<1x32xf32> to vector<1x1x32xf32>
    tpu.vector_store %arg7[%c0_10, %c0_11, %c0_12], %19 {strides = array<i32>} : memref<1x2x32xf32, #tpu.memory_space<vmem>>, vector<1x1x32xf32>,
    %cst_13 = arith.constant dense<0.000000e+00> : vector<32xf32>
    %20 = vector.multi_reduction <add>, %14, %cst_13 [0] : vector<4x32xf32> to vector<32xf32>
    %21 = vector.shape_cast %20 : vector<32xf32> to vector<1x32xf32>
    %c0_14 = arith.constant 0 : index
    %c1 = arith.constant 1 : index
    %c0_15 = arith.constant 0 : index
    %22 = vector.load %arg7[%c0_14, %c1, %c0_15] : memref<1x2x32xf32, #tpu.memory_space<vmem>>, vector<1x1x32xf32>
    %23 = vector.shape_cast %22 : vector<1x1x32xf32> to vector<1x32xf32>
    %24 = vector.shape_cast %21 : vector<1x32xf32> to vector<1x1x32xf32>
    tpu.vector_store %arg7[%c0_14, %c1, %c0_15], %24 {strides = array<i32>} : memref<1x2x32xf32, #tpu.memory_space<vmem>>, vector<1x1x32xf32>,
    %25 = arith.truncf %11 : vector<4x4x32xf32> to vector<4x4x32xbf16>
    %c0_16 = arith.constant 0 : index
    %c0_17 = arith.constant 0 : index
    %c0_18 = arith.constant 0 : index
    %c0_19 = arith.constant 0 : index
    %26 = vector.load %arg6[%c0_16, %c0_17, %c0_18, %c0_19] : memref<1x4x4x32xbf16, #tpu.memory_space<vmem>>, vector<1x4x4x32xbf16>
    %27 = vector.shape_cast %26 : vector<1x4x4x32xbf16> to vector<4x4x32xbf16>
    %28 = vector.shape_cast %25 : vector<4x4x32xbf16> to vector<1x4x4x32xbf16>
    tpu.vector_store %arg6[%c0_16, %c0_17, %c0_18, %c0_19], %28 {strides = array<i32>} : memref<1x4x4x32xbf16, #tpu.memory_space<vmem>>, vector<1x4x4x32xbf16>,
    return
  }
  func.func @transform_0(%arg0: i32, %arg1: i32, %arg2: i32) -> (i32, i32, i32, i32) {
    %c0_i32 = arith.constant 0 : i32
    %c0_i32_0 = arith.constant 0 : i32
    %c0_i32_1 = arith.constant 0 : i32
    return %arg0, %arg1, %c0_i32, %c0_i32_0 : i32, i32, i32, i32
  }
  func.func @transform_1(%arg0: i32, %arg1: i32, %arg2: i32) -> (i32, i32) {
    %c0_i32 = arith.constant 0 : i32
    %c0_i32_0 = arith.constant 0 : i32
    return %c0_i32, %arg2 : i32, i32
  }
  func.func @transform_2(%arg0: i32, %arg1: i32, %arg2: i32) -> (i32, i32) {
    %c0_i32 = arith.constant 0 : i32
    %c0_i32_0 = arith.constant 0 : i32
    return %c0_i32, %arg2 : i32, i32
  }
  func.func @transform_3(%arg0: i32, %arg1: i32, %arg2: i32) -> (i32, i32, i32, i32) {
    %c0_i32 = arith.constant 0 : i32
    %c0_i32_0 = arith.constant 0 : i32
    return %arg0, %arg1, %c0_i32, %arg2 : i32, i32, i32, i32
  }
  func.func @transform_4(%arg0: i32, %arg1: i32, %arg2: i32) -> (i32, i32, i32) {
    %c1_i32 = arith.constant 1 : i32
    %0 = arith.muli %arg0, %c1_i32 : i32
    %1 = arith.addi %0, %arg1 : i32
    %c0_i32 = arith.constant 0 : i32
    %c0_i32_0 = arith.constant 0 : i32
    return %1, %c0_i32, %arg2 : i32, i32, i32
  }
}

module attributes {stable_mosaic.version = 11 : i64} {
  func.func @_conv_direct_kernel(%arg0: i32, %arg1: i32, %arg2: i32, %arg3: memref<1x6x19x32xbf16, #tpu.memory_space<vmem>>, %arg4: memref<16x32x32xbf16, #tpu.memory_space<vmem>>, %arg5: memref<1x32xf32, #tpu.memory_space<vmem>>, %arg6: memref<1x3x3x32xbf16, #tpu.memory_space<vmem>>, %arg7: memref<1x2x32xf32, #tpu.memory_space<vmem>>, %arg8: memref<48x32xf32, #tpu.memory_space<vmem>>) attributes {dimension_semantics = [#tpu.dimension_semantics<parallel>, #tpu.dimension_semantics<parallel>, #tpu.dimension_semantics<arbitrary>], iteration_bounds = array<i64: 2, 1, 1>, scalar_prefetch = 0 : i64, scratch_operands = 1 : i64, tpu.core_type = #tpu.core_type<tc>, window_params = [{transform_indices = @transform_0, window_bounds = array<i64: 1, 6, 19, 32>}, {transform_indices = @transform_1, window_bounds = array<i64: 16, 32, 32>}, {transform_indices = @transform_2, window_bounds = array<i64: 1, 32>}, {transform_indices = @transform_3, window_bounds = array<i64: 1, 3, 3, 32>}, {transform_indices = @transform_4, window_bounds = array<i64: 1, 2, 32>}]} {
    %c0_i32 = arith.constant 0 : i32
    %0 = arith.cmpi eq, %arg2, %c0_i32 : i32
    %1 = arith.extui %0 : i1 to i32
    %c0_i32_0 = arith.constant 0 : i32
    %2 = arith.cmpi ne, %1, %c0_i32_0 : i32
    scf.if %2 {
      %cst_118 = arith.constant 0.000000e+00 : f32
      %140 = vector.broadcast %cst_118 : f32 to vector<48x32xf32>
      %c0_119 = arith.constant 0 : index
      %c0_120 = arith.constant 0 : index
      %141 = vector.load %arg8[%c0_119, %c0_120] : memref<48x32xf32, #tpu.memory_space<vmem>>, vector<48x32xf32>
      tpu.vector_store %arg8[%c0_119, %c0_120], %140 {strides = array<i32>} : memref<48x32xf32, #tpu.memory_space<vmem>>, vector<48x32xf32>,
    } else {
    }
    %c0 = arith.constant 0 : index
    %c0_1 = arith.constant 0 : index
    %c0_2 = arith.constant 0 : index
    %c0_3 = arith.constant 0 : index
    %3 = vector.load %arg3[%c0, %c0_1, %c0_2, %c0_3] : memref<1x6x19x32xbf16, #tpu.memory_space<vmem>>, vector<1x6x19x32xbf16>
    %4 = vector.shape_cast %3 : vector<1x6x19x32xbf16> to vector<6x19x32xbf16>
    %5 = vector.extract_strided_slice %4 {offsets = [0, 0, 0], sizes = [6, 16, 32], strides = [1, 1, 1]} : vector<6x19x32xbf16> to vector<6x16x32xbf16>
    %6 = vector.extract_strided_slice %5 {offsets = [0, 0, 0], sizes = [3, 16, 32], strides = [1, 1, 1]} : vector<6x16x32xbf16> to vector<3x16x32xbf16>
    %7 = vector.shape_cast %6 : vector<3x16x32xbf16> to vector<48x32xbf16>
    %c0_4 = arith.constant 0 : index
    %c0_5 = arith.constant 0 : index
    %8 = vector.load %arg8[%c0_4, %c0_5] : memref<48x32xf32, #tpu.memory_space<vmem>>, vector<48x32xf32>
    %c0_6 = arith.constant 0 : index
    %c0_7 = arith.constant 0 : index
    %c0_8 = arith.constant 0 : index
    %9 = vector.load %arg4[%c0_6, %c0_7, %c0_8] : memref<16x32x32xbf16, #tpu.memory_space<vmem>>, vector<1x32x32xbf16>
    %10 = vector.shape_cast %9 : vector<1x32x32xbf16> to vector<32x32xbf16>
    %cst = arith.constant dense<0.000000e+00> : vector<48x32xf32>
    %11 = tpu.matmul %7, %10, %cst {dimension_numbers = #tpu.dot_dimension_numbers<[1], [0], [0], [1], [0, 0, 1, 1], [], []>} : vector<48x32xbf16>, vector<32x32xbf16>, vector<48x32xf32> -> vector<48x32xf32>
    %12 = arith.addf %8, %11 : vector<48x32xf32>
    %c0_9 = arith.constant 0 : index
    %c0_10 = arith.constant 0 : index
    %13 = vector.load %arg8[%c0_9, %c0_10] : memref<48x32xf32, #tpu.memory_space<vmem>>, vector<48x32xf32>
    tpu.vector_store %arg8[%c0_9, %c0_10], %12 {strides = array<i32>} : memref<48x32xf32, #tpu.memory_space<vmem>>, vector<48x32xf32>,
    %14 = vector.extract_strided_slice %5 {offsets = [1, 0, 0], sizes = [3, 16, 32], strides = [1, 1, 1]} : vector<6x16x32xbf16> to vector<3x16x32xbf16>
    %15 = vector.shape_cast %14 : vector<3x16x32xbf16> to vector<48x32xbf16>
    %c0_11 = arith.constant 0 : index
    %c0_12 = arith.constant 0 : index
    %16 = vector.load %arg8[%c0_11, %c0_12] : memref<48x32xf32, #tpu.memory_space<vmem>>, vector<48x32xf32>
    %c4 = arith.constant 4 : index
    %c0_13 = arith.constant 0 : index
    %c0_14 = arith.constant 0 : index
    %17 = vector.load %arg4[%c4, %c0_13, %c0_14] : memref<16x32x32xbf16, #tpu.memory_space<vmem>>, vector<1x32x32xbf16>
    %18 = vector.shape_cast %17 : vector<1x32x32xbf16> to vector<32x32xbf16>
    %cst_15 = arith.constant dense<0.000000e+00> : vector<48x32xf32>
    %19 = tpu.matmul %15, %18, %cst_15 {dimension_numbers = #tpu.dot_dimension_numbers<[1], [0], [0], [1], [0, 0, 1, 1], [], []>} : vector<48x32xbf16>, vector<32x32xbf16>, vector<48x32xf32> -> vector<48x32xf32>
    %20 = arith.addf %16, %19 : vector<48x32xf32>
    %c0_16 = arith.constant 0 : index
    %c0_17 = arith.constant 0 : index
    %21 = vector.load %arg8[%c0_16, %c0_17] : memref<48x32xf32, #tpu.memory_space<vmem>>, vector<48x32xf32>
    tpu.vector_store %arg8[%c0_16, %c0_17], %20 {strides = array<i32>} : memref<48x32xf32, #tpu.memory_space<vmem>>, vector<48x32xf32>,
    %22 = vector.extract_strided_slice %5 {offsets = [2, 0, 0], sizes = [3, 16, 32], strides = [1, 1, 1]} : vector<6x16x32xbf16> to vector<3x16x32xbf16>
    %23 = vector.shape_cast %22 : vector<3x16x32xbf16> to vector<48x32xbf16>
    %c0_18 = arith.constant 0 : index
    %c0_19 = arith.constant 0 : index
    %24 = vector.load %arg8[%c0_18, %c0_19] : memref<48x32xf32, #tpu.memory_space<vmem>>, vector<48x32xf32>
    %c8 = arith.constant 8 : index
    %c0_20 = arith.constant 0 : index
    %c0_21 = arith.constant 0 : index
    %25 = vector.load %arg4[%c8, %c0_20, %c0_21] : memref<16x32x32xbf16, #tpu.memory_space<vmem>>, vector<1x32x32xbf16>
    %26 = vector.shape_cast %25 : vector<1x32x32xbf16> to vector<32x32xbf16>
    %cst_22 = arith.constant dense<0.000000e+00> : vector<48x32xf32>
    %27 = tpu.matmul %23, %26, %cst_22 {dimension_numbers = #tpu.dot_dimension_numbers<[1], [0], [0], [1], [0, 0, 1, 1], [], []>} : vector<48x32xbf16>, vector<32x32xbf16>, vector<48x32xf32> -> vector<48x32xf32>
    %28 = arith.addf %24, %27 : vector<48x32xf32>
    %c0_23 = arith.constant 0 : index
    %c0_24 = arith.constant 0 : index
    %29 = vector.load %arg8[%c0_23, %c0_24] : memref<48x32xf32, #tpu.memory_space<vmem>>, vector<48x32xf32>
    tpu.vector_store %arg8[%c0_23, %c0_24], %28 {strides = array<i32>} : memref<48x32xf32, #tpu.memory_space<vmem>>, vector<48x32xf32>,
    %30 = vector.extract_strided_slice %5 {offsets = [3, 0, 0], sizes = [3, 16, 32], strides = [1, 1, 1]} : vector<6x16x32xbf16> to vector<3x16x32xbf16>
    %31 = vector.shape_cast %30 : vector<3x16x32xbf16> to vector<48x32xbf16>
    %c0_25 = arith.constant 0 : index
    %c0_26 = arith.constant 0 : index
    %32 = vector.load %arg8[%c0_25, %c0_26] : memref<48x32xf32, #tpu.memory_space<vmem>>, vector<48x32xf32>
    %c12 = arith.constant 12 : index
    %c0_27 = arith.constant 0 : index
    %c0_28 = arith.constant 0 : index
    %33 = vector.load %arg4[%c12, %c0_27, %c0_28] : memref<16x32x32xbf16, #tpu.memory_space<vmem>>, vector<1x32x32xbf16>
    %34 = vector.shape_cast %33 : vector<1x32x32xbf16> to vector<32x32xbf16>
    %cst_29 = arith.constant dense<0.000000e+00> : vector<48x32xf32>
    %35 = tpu.matmul %31, %34, %cst_29 {dimension_numbers = #tpu.dot_dimension_numbers<[1], [0], [0], [1], [0, 0, 1, 1], [], []>} : vector<48x32xbf16>, vector<32x32xbf16>, vector<48x32xf32> -> vector<48x32xf32>
    %36 = arith.addf %32, %35 : vector<48x32xf32>
    %c0_30 = arith.constant 0 : index
    %c0_31 = arith.constant 0 : index
    %37 = vector.load %arg8[%c0_30, %c0_31] : memref<48x32xf32, #tpu.memory_space<vmem>>, vector<48x32xf32>
    tpu.vector_store %arg8[%c0_30, %c0_31], %36 {strides = array<i32>} : memref<48x32xf32, #tpu.memory_space<vmem>>, vector<48x32xf32>,
    %38 = vector.extract_strided_slice %4 {offsets = [0, 1, 0], sizes = [6, 16, 32], strides = [1, 1, 1]} : vector<6x19x32xbf16> to vector<6x16x32xbf16>
    %39 = vector.extract_strided_slice %38 {offsets = [0, 0, 0], sizes = [3, 16, 32], strides = [1, 1, 1]} : vector<6x16x32xbf16> to vector<3x16x32xbf16>
    %40 = vector.shape_cast %39 : vector<3x16x32xbf16> to vector<48x32xbf16>
    %c0_32 = arith.constant 0 : index
    %c0_33 = arith.constant 0 : index
    %41 = vector.load %arg8[%c0_32, %c0_33] : memref<48x32xf32, #tpu.memory_space<vmem>>, vector<48x32xf32>
    %c1 = arith.constant 1 : index
    %c0_34 = arith.constant 0 : index
    %c0_35 = arith.constant 0 : index
    %42 = vector.load %arg4[%c1, %c0_34, %c0_35] : memref<16x32x32xbf16, #tpu.memory_space<vmem>>, vector<1x32x32xbf16>
    %43 = vector.shape_cast %42 : vector<1x32x32xbf16> to vector<32x32xbf16>
    %cst_36 = arith.constant dense<0.000000e+00> : vector<48x32xf32>
    %44 = tpu.matmul %40, %43, %cst_36 {dimension_numbers = #tpu.dot_dimension_numbers<[1], [0], [0], [1], [0, 0, 1, 1], [], []>} : vector<48x32xbf16>, vector<32x32xbf16>, vector<48x32xf32> -> vector<48x32xf32>
    %45 = arith.addf %41, %44 : vector<48x32xf32>
    %c0_37 = arith.constant 0 : index
    %c0_38 = arith.constant 0 : index
    %46 = vector.load %arg8[%c0_37, %c0_38] : memref<48x32xf32, #tpu.memory_space<vmem>>, vector<48x32xf32>
    tpu.vector_store %arg8[%c0_37, %c0_38], %45 {strides = array<i32>} : memref<48x32xf32, #tpu.memory_space<vmem>>, vector<48x32xf32>,
    %47 = vector.extract_strided_slice %38 {offsets = [1, 0, 0], sizes = [3, 16, 32], strides = [1, 1, 1]} : vector<6x16x32xbf16> to vector<3x16x32xbf16>
    %48 = vector.shape_cast %47 : vector<3x16x32xbf16> to vector<48x32xbf16>
    %c0_39 = arith.constant 0 : index
    %c0_40 = arith.constant 0 : index
    %49 = vector.load %arg8[%c0_39, %c0_40] : memref<48x32xf32, #tpu.memory_space<vmem>>, vector<48x32xf32>
    %c5 = arith.constant 5 : index
    %c0_41 = arith.constant 0 : index
    %c0_42 = arith.constant 0 : index
    %50 = vector.load %arg4[%c5, %c0_41, %c0_42] : memref<16x32x32xbf16, #tpu.memory_space<vmem>>, vector<1x32x32xbf16>
    %51 = vector.shape_cast %50 : vector<1x32x32xbf16> to vector<32x32xbf16>
    %cst_43 = arith.constant dense<0.000000e+00> : vector<48x32xf32>
    %52 = tpu.matmul %48, %51, %cst_43 {dimension_numbers = #tpu.dot_dimension_numbers<[1], [0], [0], [1], [0, 0, 1, 1], [], []>} : vector<48x32xbf16>, vector<32x32xbf16>, vector<48x32xf32> -> vector<48x32xf32>
    %53 = arith.addf %49, %52 : vector<48x32xf32>
    %c0_44 = arith.constant 0 : index
    %c0_45 = arith.constant 0 : index
    %54 = vector.load %arg8[%c0_44, %c0_45] : memref<48x32xf32, #tpu.memory_space<vmem>>, vector<48x32xf32>
    tpu.vector_store %arg8[%c0_44, %c0_45], %53 {strides = array<i32>} : memref<48x32xf32, #tpu.memory_space<vmem>>, vector<48x32xf32>,
    %55 = vector.extract_strided_slice %38 {offsets = [2, 0, 0], sizes = [3, 16, 32], strides = [1, 1, 1]} : vector<6x16x32xbf16> to vector<3x16x32xbf16>
    %56 = vector.shape_cast %55 : vector<3x16x32xbf16> to vector<48x32xbf16>
    %c0_46 = arith.constant 0 : index
    %c0_47 = arith.constant 0 : index
    %57 = vector.load %arg8[%c0_46, %c0_47] : memref<48x32xf32, #tpu.memory_space<vmem>>, vector<48x32xf32>
    %c9 = arith.constant 9 : index
    %c0_48 = arith.constant 0 : index
    %c0_49 = arith.constant 0 : index
    %58 = vector.load %arg4[%c9, %c0_48, %c0_49] : memref<16x32x32xbf16, #tpu.memory_space<vmem>>, vector<1x32x32xbf16>
    %59 = vector.shape_cast %58 : vector<1x32x32xbf16> to vector<32x32xbf16>
    %cst_50 = arith.constant dense<0.000000e+00> : vector<48x32xf32>
    %60 = tpu.matmul %56, %59, %cst_50 {dimension_numbers = #tpu.dot_dimension_numbers<[1], [0], [0], [1], [0, 0, 1, 1], [], []>} : vector<48x32xbf16>, vector<32x32xbf16>, vector<48x32xf32> -> vector<48x32xf32>
    %61 = arith.addf %57, %60 : vector<48x32xf32>
    %c0_51 = arith.constant 0 : index
    %c0_52 = arith.constant 0 : index
    %62 = vector.load %arg8[%c0_51, %c0_52] : memref<48x32xf32, #tpu.memory_space<vmem>>, vector<48x32xf32>
    tpu.vector_store %arg8[%c0_51, %c0_52], %61 {strides = array<i32>} : memref<48x32xf32, #tpu.memory_space<vmem>>, vector<48x32xf32>,
    %63 = vector.extract_strided_slice %38 {offsets = [3, 0, 0], sizes = [3, 16, 32], strides = [1, 1, 1]} : vector<6x16x32xbf16> to vector<3x16x32xbf16>
    %64 = vector.shape_cast %63 : vector<3x16x32xbf16> to vector<48x32xbf16>
    %c0_53 = arith.constant 0 : index
    %c0_54 = arith.constant 0 : index
    %65 = vector.load %arg8[%c0_53, %c0_54] : memref<48x32xf32, #tpu.memory_space<vmem>>, vector<48x32xf32>
    %c13 = arith.constant 13 : index
    %c0_55 = arith.constant 0 : index
    %c0_56 = arith.constant 0 : index
    %66 = vector.load %arg4[%c13, %c0_55, %c0_56] : memref<16x32x32xbf16, #tpu.memory_space<vmem>>, vector<1x32x32xbf16>
    %67 = vector.shape_cast %66 : vector<1x32x32xbf16> to vector<32x32xbf16>
    %cst_57 = arith.constant dense<0.000000e+00> : vector<48x32xf32>
    %68 = tpu.matmul %64, %67, %cst_57 {dimension_numbers = #tpu.dot_dimension_numbers<[1], [0], [0], [1], [0, 0, 1, 1], [], []>} : vector<48x32xbf16>, vector<32x32xbf16>, vector<48x32xf32> -> vector<48x32xf32>
    %69 = arith.addf %65, %68 : vector<48x32xf32>
    %c0_58 = arith.constant 0 : index
    %c0_59 = arith.constant 0 : index
    %70 = vector.load %arg8[%c0_58, %c0_59] : memref<48x32xf32, #tpu.memory_space<vmem>>, vector<48x32xf32>
    tpu.vector_store %arg8[%c0_58, %c0_59], %69 {strides = array<i32>} : memref<48x32xf32, #tpu.memory_space<vmem>>, vector<48x32xf32>,
    %71 = vector.extract_strided_slice %4 {offsets = [0, 2, 0], sizes = [6, 16, 32], strides = [1, 1, 1]} : vector<6x19x32xbf16> to vector<6x16x32xbf16>
    %72 = vector.extract_strided_slice %71 {offsets = [0, 0, 0], sizes = [3, 16, 32], strides = [1, 1, 1]} : vector<6x16x32xbf16> to vector<3x16x32xbf16>
    %73 = vector.shape_cast %72 : vector<3x16x32xbf16> to vector<48x32xbf16>
    %c0_60 = arith.constant 0 : index
    %c0_61 = arith.constant 0 : index
    %74 = vector.load %arg8[%c0_60, %c0_61] : memref<48x32xf32, #tpu.memory_space<vmem>>, vector<48x32xf32>
    %c2 = arith.constant 2 : index
    %c0_62 = arith.constant 0 : index
    %c0_63 = arith.constant 0 : index
    %75 = vector.load %arg4[%c2, %c0_62, %c0_63] : memref<16x32x32xbf16, #tpu.memory_space<vmem>>, vector<1x32x32xbf16>
    %76 = vector.shape_cast %75 : vector<1x32x32xbf16> to vector<32x32xbf16>
    %cst_64 = arith.constant dense<0.000000e+00> : vector<48x32xf32>
    %77 = tpu.matmul %73, %76, %cst_64 {dimension_numbers = #tpu.dot_dimension_numbers<[1], [0], [0], [1], [0, 0, 1, 1], [], []>} : vector<48x32xbf16>, vector<32x32xbf16>, vector<48x32xf32> -> vector<48x32xf32>
    %78 = arith.addf %74, %77 : vector<48x32xf32>
    %c0_65 = arith.constant 0 : index
    %c0_66 = arith.constant 0 : index
    %79 = vector.load %arg8[%c0_65, %c0_66] : memref<48x32xf32, #tpu.memory_space<vmem>>, vector<48x32xf32>
    tpu.vector_store %arg8[%c0_65, %c0_66], %78 {strides = array<i32>} : memref<48x32xf32, #tpu.memory_space<vmem>>, vector<48x32xf32>,
    %80 = vector.extract_strided_slice %71 {offsets = [1, 0, 0], sizes = [3, 16, 32], strides = [1, 1, 1]} : vector<6x16x32xbf16> to vector<3x16x32xbf16>
    %81 = vector.shape_cast %80 : vector<3x16x32xbf16> to vector<48x32xbf16>
    %c0_67 = arith.constant 0 : index
    %c0_68 = arith.constant 0 : index
    %82 = vector.load %arg8[%c0_67, %c0_68] : memref<48x32xf32, #tpu.memory_space<vmem>>, vector<48x32xf32>
    %c6 = arith.constant 6 : index
    %c0_69 = arith.constant 0 : index
    %c0_70 = arith.constant 0 : index
    %83 = vector.load %arg4[%c6, %c0_69, %c0_70] : memref<16x32x32xbf16, #tpu.memory_space<vmem>>, vector<1x32x32xbf16>
    %84 = vector.shape_cast %83 : vector<1x32x32xbf16> to vector<32x32xbf16>
    %cst_71 = arith.constant dense<0.000000e+00> : vector<48x32xf32>
    %85 = tpu.matmul %81, %84, %cst_71 {dimension_numbers = #tpu.dot_dimension_numbers<[1], [0], [0], [1], [0, 0, 1, 1], [], []>} : vector<48x32xbf16>, vector<32x32xbf16>, vector<48x32xf32> -> vector<48x32xf32>
    %86 = arith.addf %82, %85 : vector<48x32xf32>
    %c0_72 = arith.constant 0 : index
    %c0_73 = arith.constant 0 : index
    %87 = vector.load %arg8[%c0_72, %c0_73] : memref<48x32xf32, #tpu.memory_space<vmem>>, vector<48x32xf32>
    tpu.vector_store %arg8[%c0_72, %c0_73], %86 {strides = array<i32>} : memref<48x32xf32, #tpu.memory_space<vmem>>, vector<48x32xf32>,
    %88 = vector.extract_strided_slice %71 {offsets = [2, 0, 0], sizes = [3, 16, 32], strides = [1, 1, 1]} : vector<6x16x32xbf16> to vector<3x16x32xbf16>
    %89 = vector.shape_cast %88 : vector<3x16x32xbf16> to vector<48x32xbf16>
    %c0_74 = arith.constant 0 : index
    %c0_75 = arith.constant 0 : index
    %90 = vector.load %arg8[%c0_74, %c0_75] : memref<48x32xf32, #tpu.memory_space<vmem>>, vector<48x32xf32>
    %c10 = arith.constant 10 : index
    %c0_76 = arith.constant 0 : index
    %c0_77 = arith.constant 0 : index
    %91 = vector.load %arg4[%c10, %c0_76, %c0_77] : memref<16x32x32xbf16, #tpu.memory_space<vmem>>, vector<1x32x32xbf16>
    %92 = vector.shape_cast %91 : vector<1x32x32xbf16> to vector<32x32xbf16>
    %cst_78 = arith.constant dense<0.000000e+00> : vector<48x32xf32>
    %93 = tpu.matmul %89, %92, %cst_78 {dimension_numbers = #tpu.dot_dimension_numbers<[1], [0], [0], [1], [0, 0, 1, 1], [], []>} : vector<48x32xbf16>, vector<32x32xbf16>, vector<48x32xf32> -> vector<48x32xf32>
    %94 = arith.addf %90, %93 : vector<48x32xf32>
    %c0_79 = arith.constant 0 : index
    %c0_80 = arith.constant 0 : index
    %95 = vector.load %arg8[%c0_79, %c0_80] : memref<48x32xf32, #tpu.memory_space<vmem>>, vector<48x32xf32>
    tpu.vector_store %arg8[%c0_79, %c0_80], %94 {strides = array<i32>} : memref<48x32xf32, #tpu.memory_space<vmem>>, vector<48x32xf32>,
    %96 = vector.extract_strided_slice %71 {offsets = [3, 0, 0], sizes = [3, 16, 32], strides = [1, 1, 1]} : vector<6x16x32xbf16> to vector<3x16x32xbf16>
    %97 = vector.shape_cast %96 : vector<3x16x32xbf16> to vector<48x32xbf16>
    %c0_81 = arith.constant 0 : index
    %c0_82 = arith.constant 0 : index
    %98 = vector.load %arg8[%c0_81, %c0_82] : memref<48x32xf32, #tpu.memory_space<vmem>>, vector<48x32xf32>
    %c14 = arith.constant 14 : index
    %c0_83 = arith.constant 0 : index
    %c0_84 = arith.constant 0 : index
    %99 = vector.load %arg4[%c14, %c0_83, %c0_84] : memref<16x32x32xbf16, #tpu.memory_space<vmem>>, vector<1x32x32xbf16>
    %100 = vector.shape_cast %99 : vector<1x32x32xbf16> to vector<32x32xbf16>
    %cst_85 = arith.constant dense<0.000000e+00> : vector<48x32xf32>
    %101 = tpu.matmul %97, %100, %cst_85 {dimension_numbers = #tpu.dot_dimension_numbers<[1], [0], [0], [1], [0, 0, 1, 1], [], []>} : vector<48x32xbf16>, vector<32x32xbf16>, vector<48x32xf32> -> vector<48x32xf32>
    %102 = arith.addf %98, %101 : vector<48x32xf32>
    %c0_86 = arith.constant 0 : index
    %c0_87 = arith.constant 0 : index
    %103 = vector.load %arg8[%c0_86, %c0_87] : memref<48x32xf32, #tpu.memory_space<vmem>>, vector<48x32xf32>
    tpu.vector_store %arg8[%c0_86, %c0_87], %102 {strides = array<i32>} : memref<48x32xf32, #tpu.memory_space<vmem>>, vector<48x32xf32>,
    %104 = vector.extract_strided_slice %4 {offsets = [0, 3, 0], sizes = [6, 16, 32], strides = [1, 1, 1]} : vector<6x19x32xbf16> to vector<6x16x32xbf16>
    %105 = vector.extract_strided_slice %104 {offsets = [0, 0, 0], sizes = [3, 16, 32], strides = [1, 1, 1]} : vector<6x16x32xbf16> to vector<3x16x32xbf16>
    %106 = vector.shape_cast %105 : vector<3x16x32xbf16> to vector<48x32xbf16>
    %c0_88 = arith.constant 0 : index
    %c0_89 = arith.constant 0 : index
    %107 = vector.load %arg8[%c0_88, %c0_89] : memref<48x32xf32, #tpu.memory_space<vmem>>, vector<48x32xf32>
    %c3 = arith.constant 3 : index
    %c0_90 = arith.constant 0 : index
    %c0_91 = arith.constant 0 : index
    %108 = vector.load %arg4[%c3, %c0_90, %c0_91] : memref<16x32x32xbf16, #tpu.memory_space<vmem>>, vector<1x32x32xbf16>
    %109 = vector.shape_cast %108 : vector<1x32x32xbf16> to vector<32x32xbf16>
    %cst_92 = arith.constant dense<0.000000e+00> : vector<48x32xf32>
    %110 = tpu.matmul %106, %109, %cst_92 {dimension_numbers = #tpu.dot_dimension_numbers<[1], [0], [0], [1], [0, 0, 1, 1], [], []>} : vector<48x32xbf16>, vector<32x32xbf16>, vector<48x32xf32> -> vector<48x32xf32>
    %111 = arith.addf %107, %110 : vector<48x32xf32>
    %c0_93 = arith.constant 0 : index
    %c0_94 = arith.constant 0 : index
    %112 = vector.load %arg8[%c0_93, %c0_94] : memref<48x32xf32, #tpu.memory_space<vmem>>, vector<48x32xf32>
    tpu.vector_store %arg8[%c0_93, %c0_94], %111 {strides = array<i32>} : memref<48x32xf32, #tpu.memory_space<vmem>>, vector<48x32xf32>,
    %113 = vector.extract_strided_slice %104 {offsets = [1, 0, 0], sizes = [3, 16, 32], strides = [1, 1, 1]} : vector<6x16x32xbf16> to vector<3x16x32xbf16>
    %114 = vector.shape_cast %113 : vector<3x16x32xbf16> to vector<48x32xbf16>
    %c0_95 = arith.constant 0 : index
    %c0_96 = arith.constant 0 : index
    %115 = vector.load %arg8[%c0_95, %c0_96] : memref<48x32xf32, #tpu.memory_space<vmem>>, vector<48x32xf32>
    %c7 = arith.constant 7 : index
    %c0_97 = arith.constant 0 : index
    %c0_98 = arith.constant 0 : index
    %116 = vector.load %arg4[%c7, %c0_97, %c0_98] : memref<16x32x32xbf16, #tpu.memory_space<vmem>>, vector<1x32x32xbf16>
    %117 = vector.shape_cast %116 : vector<1x32x32xbf16> to vector<32x32xbf16>
    %cst_99 = arith.constant dense<0.000000e+00> : vector<48x32xf32>
    %118 = tpu.matmul %114, %117, %cst_99 {dimension_numbers = #tpu.dot_dimension_numbers<[1], [0], [0], [1], [0, 0, 1, 1], [], []>} : vector<48x32xbf16>, vector<32x32xbf16>, vector<48x32xf32> -> vector<48x32xf32>
    %119 = arith.addf %115, %118 : vector<48x32xf32>
    %c0_100 = arith.constant 0 : index
    %c0_101 = arith.constant 0 : index
    %120 = vector.load %arg8[%c0_100, %c0_101] : memref<48x32xf32, #tpu.memory_space<vmem>>, vector<48x32xf32>
    tpu.vector_store %arg8[%c0_100, %c0_101], %119 {strides = array<i32>} : memref<48x32xf32, #tpu.memory_space<vmem>>, vector<48x32xf32>,
    %121 = vector.extract_strided_slice %104 {offsets = [2, 0, 0], sizes = [3, 16, 32], strides = [1, 1, 1]} : vector<6x16x32xbf16> to vector<3x16x32xbf16>
    %122 = vector.shape_cast %121 : vector<3x16x32xbf16> to vector<48x32xbf16>
    %c0_102 = arith.constant 0 : index
    %c0_103 = arith.constant 0 : index
    %123 = vector.load %arg8[%c0_102, %c0_103] : memref<48x32xf32, #tpu.memory_space<vmem>>, vector<48x32xf32>
    %c11 = arith.constant 11 : index
    %c0_104 = arith.constant 0 : index
    %c0_105 = arith.constant 0 : index
    %124 = vector.load %arg4[%c11, %c0_104, %c0_105] : memref<16x32x32xbf16, #tpu.memory_space<vmem>>, vector<1x32x32xbf16>
    %125 = vector.shape_cast %124 : vector<1x32x32xbf16> to vector<32x32xbf16>
    %cst_106 = arith.constant dense<0.000000e+00> : vector<48x32xf32>
    %126 = tpu.matmul %122, %125, %cst_106 {dimension_numbers = #tpu.dot_dimension_numbers<[1], [0], [0], [1], [0, 0, 1, 1], [], []>} : vector<48x32xbf16>, vector<32x32xbf16>, vector<48x32xf32> -> vector<48x32xf32>
    %127 = arith.addf %123, %126 : vector<48x32xf32>
    %c0_107 = arith.constant 0 : index
    %c0_108 = arith.constant 0 : index
    %128 = vector.load %arg8[%c0_107, %c0_108] : memref<48x32xf32, #tpu.memory_space<vmem>>, vector<48x32xf32>
    tpu.vector_store %arg8[%c0_107, %c0_108], %127 {strides = array<i32>} : memref<48x32xf32, #tpu.memory_space<vmem>>, vector<48x32xf32>,
    %129 = vector.extract_strided_slice %104 {offsets = [3, 0, 0], sizes = [3, 16, 32], strides = [1, 1, 1]} : vector<6x16x32xbf16> to vector<3x16x32xbf16>
    %130 = vector.shape_cast %129 : vector<3x16x32xbf16> to vector<48x32xbf16>
    %c0_109 = arith.constant 0 : index
    %c0_110 = arith.constant 0 : index
    %131 = vector.load %arg8[%c0_109, %c0_110] : memref<48x32xf32, #tpu.memory_space<vmem>>, vector<48x32xf32>
    %c15 = arith.constant 15 : index
    %c0_111 = arith.constant 0 : index
    %c0_112 = arith.constant 0 : index
    %132 = vector.load %arg4[%c15, %c0_111, %c0_112] : memref<16x32x32xbf16, #tpu.memory_space<vmem>>, vector<1x32x32xbf16>
    %133 = vector.shape_cast %132 : vector<1x32x32xbf16> to vector<32x32xbf16>
    %cst_113 = arith.constant dense<0.000000e+00> : vector<48x32xf32>
    %134 = tpu.matmul %130, %133, %cst_113 {dimension_numbers = #tpu.dot_dimension_numbers<[1], [0], [0], [1], [0, 0, 1, 1], [], []>} : vector<48x32xbf16>, vector<32x32xbf16>, vector<48x32xf32> -> vector<48x32xf32>
    %135 = arith.addf %131, %134 : vector<48x32xf32>
    %c0_114 = arith.constant 0 : index
    %c0_115 = arith.constant 0 : index
    %136 = vector.load %arg8[%c0_114, %c0_115] : memref<48x32xf32, #tpu.memory_space<vmem>>, vector<48x32xf32>
    tpu.vector_store %arg8[%c0_114, %c0_115], %135 {strides = array<i32>} : memref<48x32xf32, #tpu.memory_space<vmem>>, vector<48x32xf32>,
    %c0_i32_116 = arith.constant 0 : i32
    %137 = arith.cmpi eq, %arg2, %c0_i32_116 : i32
    %138 = arith.extui %137 : i1 to i32
    %c0_i32_117 = arith.constant 0 : i32
    %139 = arith.cmpi ne, %138, %c0_i32_117 : i32
    scf.if %139 {
      %c0_118 = arith.constant 0 : index
      %c0_119 = arith.constant 0 : index
      %140 = vector.load %arg8[%c0_118, %c0_119] : memref<48x32xf32, #tpu.memory_space<vmem>>, vector<48x32xf32>
      %c0_120 = arith.constant 0 : index
      %c0_121 = arith.constant 0 : index
      %141 = vector.load %arg5[%c0_120, %c0_121] : memref<1x32xf32, #tpu.memory_space<vmem>>, vector<1x32xf32>
      %142 = vector.shape_cast %141 : vector<1x32xf32> to vector<32xf32>
      %143 = vector.shape_cast %142 : vector<32xf32> to vector<1x32xf32>
      %144 = vector.broadcast %143 : vector<1x32xf32> to vector<48x32xf32>
      %145 = arith.addf %140, %144 : vector<48x32xf32>
      %146 = vector.shape_cast %145 : vector<48x32xf32> to vector<3x16x32xf32>
      %147 = vector.extract_strided_slice %146 {offsets = [0, 0, 0], sizes = [3, 3, 32], strides = [1, 1, 1]} : vector<3x16x32xf32> to vector<3x3x32xf32>
      %cst_122 = arith.constant dense<0.000000e+00> : vector<3x32xf32>
      %148 = vector.multi_reduction <add>, %147, %cst_122 [0] : vector<3x3x32xf32> to vector<3x32xf32>
      %149 = arith.mulf %147, %147 : vector<3x3x32xf32>
      %cst_123 = arith.constant dense<0.000000e+00> : vector<3x32xf32>
      %150 = vector.multi_reduction <add>, %149, %cst_123 [0] : vector<3x3x32xf32> to vector<3x32xf32>
      %cst_124 = arith.constant dense<0.000000e+00> : vector<32xf32>
      %151 = vector.multi_reduction <add>, %148, %cst_124 [0] : vector<3x32xf32> to vector<32xf32>
      %152 = vector.shape_cast %151 : vector<32xf32> to vector<1x32xf32>
      %c0_125 = arith.constant 0 : index
      %c0_126 = arith.constant 0 : index
      %c0_127 = arith.constant 0 : index
      %153 = vector.load %arg7[%c0_125, %c0_126, %c0_127] : memref<1x2x32xf32, #tpu.memory_space<vmem>>, vector<1x1x32xf32>
      %154 = vector.shape_cast %153 : vector<1x1x32xf32> to vector<1x32xf32>
      %155 = vector.shape_cast %152 : vector<1x32xf32> to vector<1x1x32xf32>
      tpu.vector_store %arg7[%c0_125, %c0_126, %c0_127], %155 {strides = array<i32>} : memref<1x2x32xf32, #tpu.memory_space<vmem>>, vector<1x1x32xf32>,
      %cst_128 = arith.constant dense<0.000000e+00> : vector<32xf32>
      %156 = vector.multi_reduction <add>, %150, %cst_128 [0] : vector<3x32xf32> to vector<32xf32>
      %157 = vector.shape_cast %156 : vector<32xf32> to vector<1x32xf32>
      %c0_129 = arith.constant 0 : index
      %c1_130 = arith.constant 1 : index
      %c0_131 = arith.constant 0 : index
      %158 = vector.load %arg7[%c0_129, %c1_130, %c0_131] : memref<1x2x32xf32, #tpu.memory_space<vmem>>, vector<1x1x32xf32>
      %159 = vector.shape_cast %158 : vector<1x1x32xf32> to vector<1x32xf32>
      %160 = vector.shape_cast %157 : vector<1x32xf32> to vector<1x1x32xf32>
      tpu.vector_store %arg7[%c0_129, %c1_130, %c0_131], %160 {strides = array<i32>} : memref<1x2x32xf32, #tpu.memory_space<vmem>>, vector<1x1x32xf32>,
      %161 = arith.truncf %147 : vector<3x3x32xf32> to vector<3x3x32xbf16>
      %c0_132 = arith.constant 0 : index
      %c0_133 = arith.constant 0 : index
      %c0_134 = arith.constant 0 : index
      %c0_135 = arith.constant 0 : index
      %162 = vector.load %arg6[%c0_132, %c0_133, %c0_134, %c0_135] : memref<1x3x3x32xbf16, #tpu.memory_space<vmem>>, vector<1x3x3x32xbf16>
      %163 = vector.shape_cast %162 : vector<1x3x3x32xbf16> to vector<3x3x32xbf16>
      %164 = vector.shape_cast %161 : vector<3x3x32xbf16> to vector<1x3x3x32xbf16>
      tpu.vector_store %arg6[%c0_132, %c0_133, %c0_134, %c0_135], %164 {strides = array<i32>} : memref<1x3x3x32xbf16, #tpu.memory_space<vmem>>, vector<1x3x3x32xbf16>,
    } else {
    }
    return
  }
  func.func @transform_0(%arg0: i32, %arg1: i32, %arg2: i32) -> (i32, i32, i32, i32) {
    %c0_i32 = arith.constant 0 : i32
    %c0_i32_0 = arith.constant 0 : i32
    %c0_i32_1 = arith.constant 0 : i32
    return %arg0, %c0_i32, %c0_i32_0, %arg2 : i32, i32, i32, i32
  }
  func.func @transform_1(%arg0: i32, %arg1: i32, %arg2: i32) -> (i32, i32, i32) {
    %c0_i32 = arith.constant 0 : i32
    %c0_i32_0 = arith.constant 0 : i32
    return %c0_i32, %arg2, %arg1 : i32, i32, i32
  }
  func.func @transform_2(%arg0: i32, %arg1: i32, %arg2: i32) -> (i32, i32) {
    %c0_i32 = arith.constant 0 : i32
    %c0_i32_0 = arith.constant 0 : i32
    return %c0_i32, %arg1 : i32, i32
  }
  func.func @transform_3(%arg0: i32, %arg1: i32, %arg2: i32) -> (i32, i32, i32, i32) {
    %c0_i32 = arith.constant 0 : i32
    %c0_i32_0 = arith.constant 0 : i32
    %c0_i32_1 = arith.constant 0 : i32
    return %arg0, %c0_i32, %c0_i32_0, %arg1 : i32, i32, i32, i32
  }
  func.func @transform_4(%arg0: i32, %arg1: i32, %arg2: i32) -> (i32, i32, i32) {
    %c0_i32 = arith.constant 0 : i32
    %c0_i32_0 = arith.constant 0 : i32
    return %arg0, %c0_i32, %arg1 : i32, i32, i32
  }
}

module attributes {stable_mosaic.version = 11 : i64} {
  func.func @_conv_direct_kernel(%arg0: i32, %arg1: i32, %arg2: i32, %arg3: memref<1x5x19x32xbf16, #tpu.memory_space<vmem>>, %arg4: memref<16x32x8xbf16, #tpu.memory_space<vmem>>, %arg5: memref<1x8xf32, #tpu.memory_space<vmem>>, %arg6: memref<1x2x2x8xf32, #tpu.memory_space<vmem>>, %arg7: memref<1x2x8xf32, #tpu.memory_space<vmem>>, %arg8: memref<32x8xf32, #tpu.memory_space<vmem>>) attributes {dimension_semantics = [#tpu.dimension_semantics<parallel>, #tpu.dimension_semantics<parallel>, #tpu.dimension_semantics<arbitrary>], iteration_bounds = array<i64: 2, 1, 1>, scalar_prefetch = 0 : i64, scratch_operands = 1 : i64, tpu.core_type = #tpu.core_type<tc>, window_params = [{transform_indices = @transform_0, window_bounds = array<i64: 1, 5, 19, 32>}, {transform_indices = @transform_1, window_bounds = array<i64: 16, 32, 8>}, {transform_indices = @transform_2, window_bounds = array<i64: 1, 8>}, {transform_indices = @transform_3, window_bounds = array<i64: 1, 2, 2, 8>}, {transform_indices = @transform_4, window_bounds = array<i64: 1, 2, 8>}]} {
    %c0_i32 = arith.constant 0 : i32
    %0 = arith.cmpi eq, %arg2, %c0_i32 : i32
    %1 = arith.extui %0 : i1 to i32
    %c0_i32_0 = arith.constant 0 : i32
    %2 = arith.cmpi ne, %1, %c0_i32_0 : i32
    scf.if %2 {
      %cst_118 = arith.constant 0.000000e+00 : f32
      %140 = vector.broadcast %cst_118 : f32 to vector<32x8xf32>
      %c0_119 = arith.constant 0 : index
      %c0_120 = arith.constant 0 : index
      %141 = vector.load %arg8[%c0_119, %c0_120] : memref<32x8xf32, #tpu.memory_space<vmem>>, vector<32x8xf32>
      tpu.vector_store %arg8[%c0_119, %c0_120], %140 {strides = array<i32>} : memref<32x8xf32, #tpu.memory_space<vmem>>, vector<32x8xf32>,
    } else {
    }
    %c0 = arith.constant 0 : index
    %c0_1 = arith.constant 0 : index
    %c0_2 = arith.constant 0 : index
    %c0_3 = arith.constant 0 : index
    %3 = vector.load %arg3[%c0, %c0_1, %c0_2, %c0_3] : memref<1x5x19x32xbf16, #tpu.memory_space<vmem>>, vector<1x5x19x32xbf16>
    %4 = vector.shape_cast %3 : vector<1x5x19x32xbf16> to vector<5x19x32xbf16>
    %5 = vector.extract_strided_slice %4 {offsets = [0, 0, 0], sizes = [5, 16, 32], strides = [1, 1, 1]} : vector<5x19x32xbf16> to vector<5x16x32xbf16>
    %6 = vector.extract_strided_slice %5 {offsets = [0, 0, 0], sizes = [2, 16, 32], strides = [1, 1, 1]} : vector<5x16x32xbf16> to vector<2x16x32xbf16>
    %7 = vector.shape_cast %6 : vector<2x16x32xbf16> to vector<32x32xbf16>
    %c0_4 = arith.constant 0 : index
    %c0_5 = arith.constant 0 : index
    %8 = vector.load %arg8[%c0_4, %c0_5] : memref<32x8xf32, #tpu.memory_space<vmem>>, vector<32x8xf32>
    %c0_6 = arith.constant 0 : index
    %c0_7 = arith.constant 0 : index
    %c0_8 = arith.constant 0 : index
    %9 = vector.load %arg4[%c0_6, %c0_7, %c0_8] : memref<16x32x8xbf16, #tpu.memory_space<vmem>>, vector<1x32x8xbf16>
    %10 = vector.shape_cast %9 : vector<1x32x8xbf16> to vector<32x8xbf16>
    %cst = arith.constant dense<0.000000e+00> : vector<32x8xf32>
    %11 = tpu.matmul %7, %10, %cst {dimension_numbers = #tpu.dot_dimension_numbers<[1], [0], [0], [1], [0, 0, 1, 1], [], []>} : vector<32x32xbf16>, vector<32x8xbf16>, vector<32x8xf32> -> vector<32x8xf32>
    %12 = arith.addf %8, %11 : vector<32x8xf32>
    %c0_9 = arith.constant 0 : index
    %c0_10 = arith.constant 0 : index
    %13 = vector.load %arg8[%c0_9, %c0_10] : memref<32x8xf32, #tpu.memory_space<vmem>>, vector<32x8xf32>
    tpu.vector_store %arg8[%c0_9, %c0_10], %12 {strides = array<i32>} : memref<32x8xf32, #tpu.memory_space<vmem>>, vector<32x8xf32>,
    %14 = vector.extract_strided_slice %5 {offsets = [1, 0, 0], sizes = [2, 16, 32], strides = [1, 1, 1]} : vector<5x16x32xbf16> to vector<2x16x32xbf16>
    %15 = vector.shape_cast %14 : vector<2x16x32xbf16> to vector<32x32xbf16>
    %c0_11 = arith.constant 0 : index
    %c0_12 = arith.constant 0 : index
    %16 = vector.load %arg8[%c0_11, %c0_12] : memref<32x8xf32, #tpu.memory_space<vmem>>, vector<32x8xf32>
    %c4 = arith.constant 4 : index
    %c0_13 = arith.constant 0 : index
    %c0_14 = arith.constant 0 : index
    %17 = vector.load %arg4[%c4, %c0_13, %c0_14] : memref<16x32x8xbf16, #tpu.memory_space<vmem>>, vector<1x32x8xbf16>
    %18 = vector.shape_cast %17 : vector<1x32x8xbf16> to vector<32x8xbf16>
    %cst_15 = arith.constant dense<0.000000e+00> : vector<32x8xf32>
    %19 = tpu.matmul %15, %18, %cst_15 {dimension_numbers = #tpu.dot_dimension_numbers<[1], [0], [0], [1], [0, 0, 1, 1], [], []>} : vector<32x32xbf16>, vector<32x8xbf16>, vector<32x8xf32> -> vector<32x8xf32>
    %20 = arith.addf %16, %19 : vector<32x8xf32>
    %c0_16 = arith.constant 0 : index
    %c0_17 = arith.constant 0 : index
    %21 = vector.load %arg8[%c0_16, %c0_17] : memref<32x8xf32, #tpu.memory_space<vmem>>, vector<32x8xf32>
    tpu.vector_store %arg8[%c0_16, %c0_17], %20 {strides = array<i32>} : memref<32x8xf32, #tpu.memory_space<vmem>>, vector<32x8xf32>,
    %22 = vector.extract_strided_slice %5 {offsets = [2, 0, 0], sizes = [2, 16, 32], strides = [1, 1, 1]} : vector<5x16x32xbf16> to vector<2x16x32xbf16>
    %23 = vector.shape_cast %22 : vector<2x16x32xbf16> to vector<32x32xbf16>
    %c0_18 = arith.constant 0 : index
    %c0_19 = arith.constant 0 : index
    %24 = vector.load %arg8[%c0_18, %c0_19] : memref<32x8xf32, #tpu.memory_space<vmem>>, vector<32x8xf32>
    %c8 = arith.constant 8 : index
    %c0_20 = arith.constant 0 : index
    %c0_21 = arith.constant 0 : index
    %25 = vector.load %arg4[%c8, %c0_20, %c0_21] : memref<16x32x8xbf16, #tpu.memory_space<vmem>>, vector<1x32x8xbf16>
    %26 = vector.shape_cast %25 : vector<1x32x8xbf16> to vector<32x8xbf16>
    %cst_22 = arith.constant dense<0.000000e+00> : vector<32x8xf32>
    %27 = tpu.matmul %23, %26, %cst_22 {dimension_numbers = #tpu.dot_dimension_numbers<[1], [0], [0], [1], [0, 0, 1, 1], [], []>} : vector<32x32xbf16>, vector<32x8xbf16>, vector<32x8xf32> -> vector<32x8xf32>
    %28 = arith.addf %24, %27 : vector<32x8xf32>
    %c0_23 = arith.constant 0 : index
    %c0_24 = arith.constant 0 : index
    %29 = vector.load %arg8[%c0_23, %c0_24] : memref<32x8xf32, #tpu.memory_space<vmem>>, vector<32x8xf32>
    tpu.vector_store %arg8[%c0_23, %c0_24], %28 {strides = array<i32>} : memref<32x8xf32, #tpu.memory_space<vmem>>, vector<32x8xf32>,
    %30 = vector.extract_strided_slice %5 {offsets = [3, 0, 0], sizes = [2, 16, 32], strides = [1, 1, 1]} : vector<5x16x32xbf16> to vector<2x16x32xbf16>
    %31 = vector.shape_cast %30 : vector<2x16x32xbf16> to vector<32x32xbf16>
    %c0_25 = arith.constant 0 : index
    %c0_26 = arith.constant 0 : index
    %32 = vector.load %arg8[%c0_25, %c0_26] : memref<32x8xf32, #tpu.memory_space<vmem>>, vector<32x8xf32>
    %c12 = arith.constant 12 : index
    %c0_27 = arith.constant 0 : index
    %c0_28 = arith.constant 0 : index
    %33 = vector.load %arg4[%c12, %c0_27, %c0_28] : memref<16x32x8xbf16, #tpu.memory_space<vmem>>, vector<1x32x8xbf16>
    %34 = vector.shape_cast %33 : vector<1x32x8xbf16> to vector<32x8xbf16>
    %cst_29 = arith.constant dense<0.000000e+00> : vector<32x8xf32>
    %35 = tpu.matmul %31, %34, %cst_29 {dimension_numbers = #tpu.dot_dimension_numbers<[1], [0], [0], [1], [0, 0, 1, 1], [], []>} : vector<32x32xbf16>, vector<32x8xbf16>, vector<32x8xf32> -> vector<32x8xf32>
    %36 = arith.addf %32, %35 : vector<32x8xf32>
    %c0_30 = arith.constant 0 : index
    %c0_31 = arith.constant 0 : index
    %37 = vector.load %arg8[%c0_30, %c0_31] : memref<32x8xf32, #tpu.memory_space<vmem>>, vector<32x8xf32>
    tpu.vector_store %arg8[%c0_30, %c0_31], %36 {strides = array<i32>} : memref<32x8xf32, #tpu.memory_space<vmem>>, vector<32x8xf32>,
    %38 = vector.extract_strided_slice %4 {offsets = [0, 1, 0], sizes = [5, 16, 32], strides = [1, 1, 1]} : vector<5x19x32xbf16> to vector<5x16x32xbf16>
    %39 = vector.extract_strided_slice %38 {offsets = [0, 0, 0], sizes = [2, 16, 32], strides = [1, 1, 1]} : vector<5x16x32xbf16> to vector<2x16x32xbf16>
    %40 = vector.shape_cast %39 : vector<2x16x32xbf16> to vector<32x32xbf16>
    %c0_32 = arith.constant 0 : index
    %c0_33 = arith.constant 0 : index
    %41 = vector.load %arg8[%c0_32, %c0_33] : memref<32x8xf32, #tpu.memory_space<vmem>>, vector<32x8xf32>
    %c1 = arith.constant 1 : index
    %c0_34 = arith.constant 0 : index
    %c0_35 = arith.constant 0 : index
    %42 = vector.load %arg4[%c1, %c0_34, %c0_35] : memref<16x32x8xbf16, #tpu.memory_space<vmem>>, vector<1x32x8xbf16>
    %43 = vector.shape_cast %42 : vector<1x32x8xbf16> to vector<32x8xbf16>
    %cst_36 = arith.constant dense<0.000000e+00> : vector<32x8xf32>
    %44 = tpu.matmul %40, %43, %cst_36 {dimension_numbers = #tpu.dot_dimension_numbers<[1], [0], [0], [1], [0, 0, 1, 1], [], []>} : vector<32x32xbf16>, vector<32x8xbf16>, vector<32x8xf32> -> vector<32x8xf32>
    %45 = arith.addf %41, %44 : vector<32x8xf32>
    %c0_37 = arith.constant 0 : index
    %c0_38 = arith.constant 0 : index
    %46 = vector.load %arg8[%c0_37, %c0_38] : memref<32x8xf32, #tpu.memory_space<vmem>>, vector<32x8xf32>
    tpu.vector_store %arg8[%c0_37, %c0_38], %45 {strides = array<i32>} : memref<32x8xf32, #tpu.memory_space<vmem>>, vector<32x8xf32>,
    %47 = vector.extract_strided_slice %38 {offsets = [1, 0, 0], sizes = [2, 16, 32], strides = [1, 1, 1]} : vector<5x16x32xbf16> to vector<2x16x32xbf16>
    %48 = vector.shape_cast %47 : vector<2x16x32xbf16> to vector<32x32xbf16>
    %c0_39 = arith.constant 0 : index
    %c0_40 = arith.constant 0 : index
    %49 = vector.load %arg8[%c0_39, %c0_40] : memref<32x8xf32, #tpu.memory_space<vmem>>, vector<32x8xf32>
    %c5 = arith.constant 5 : index
    %c0_41 = arith.constant 0 : index
    %c0_42 = arith.constant 0 : index
    %50 = vector.load %arg4[%c5, %c0_41, %c0_42] : memref<16x32x8xbf16, #tpu.memory_space<vmem>>, vector<1x32x8xbf16>
    %51 = vector.shape_cast %50 : vector<1x32x8xbf16> to vector<32x8xbf16>
    %cst_43 = arith.constant dense<0.000000e+00> : vector<32x8xf32>
    %52 = tpu.matmul %48, %51, %cst_43 {dimension_numbers = #tpu.dot_dimension_numbers<[1], [0], [0], [1], [0, 0, 1, 1], [], []>} : vector<32x32xbf16>, vector<32x8xbf16>, vector<32x8xf32> -> vector<32x8xf32>
    %53 = arith.addf %49, %52 : vector<32x8xf32>
    %c0_44 = arith.constant 0 : index
    %c0_45 = arith.constant 0 : index
    %54 = vector.load %arg8[%c0_44, %c0_45] : memref<32x8xf32, #tpu.memory_space<vmem>>, vector<32x8xf32>
    tpu.vector_store %arg8[%c0_44, %c0_45], %53 {strides = array<i32>} : memref<32x8xf32, #tpu.memory_space<vmem>>, vector<32x8xf32>,
    %55 = vector.extract_strided_slice %38 {offsets = [2, 0, 0], sizes = [2, 16, 32], strides = [1, 1, 1]} : vector<5x16x32xbf16> to vector<2x16x32xbf16>
    %56 = vector.shape_cast %55 : vector<2x16x32xbf16> to vector<32x32xbf16>
    %c0_46 = arith.constant 0 : index
    %c0_47 = arith.constant 0 : index
    %57 = vector.load %arg8[%c0_46, %c0_47] : memref<32x8xf32, #tpu.memory_space<vmem>>, vector<32x8xf32>
    %c9 = arith.constant 9 : index
    %c0_48 = arith.constant 0 : index
    %c0_49 = arith.constant 0 : index
    %58 = vector.load %arg4[%c9, %c0_48, %c0_49] : memref<16x32x8xbf16, #tpu.memory_space<vmem>>, vector<1x32x8xbf16>
    %59 = vector.shape_cast %58 : vector<1x32x8xbf16> to vector<32x8xbf16>
    %cst_50 = arith.constant dense<0.000000e+00> : vector<32x8xf32>
    %60 = tpu.matmul %56, %59, %cst_50 {dimension_numbers = #tpu.dot_dimension_numbers<[1], [0], [0], [1], [0, 0, 1, 1], [], []>} : vector<32x32xbf16>, vector<32x8xbf16>, vector<32x8xf32> -> vector<32x8xf32>
    %61 = arith.addf %57, %60 : vector<32x8xf32>
    %c0_51 = arith.constant 0 : index
    %c0_52 = arith.constant 0 : index
    %62 = vector.load %arg8[%c0_51, %c0_52] : memref<32x8xf32, #tpu.memory_space<vmem>>, vector<32x8xf32>
    tpu.vector_store %arg8[%c0_51, %c0_52], %61 {strides = array<i32>} : memref<32x8xf32, #tpu.memory_space<vmem>>, vector<32x8xf32>,
    %63 = vector.extract_strided_slice %38 {offsets = [3, 0, 0], sizes = [2, 16, 32], strides = [1, 1, 1]} : vector<5x16x32xbf16> to vector<2x16x32xbf16>
    %64 = vector.shape_cast %63 : vector<2x16x32xbf16> to vector<32x32xbf16>
    %c0_53 = arith.constant 0 : index
    %c0_54 = arith.constant 0 : index
    %65 = vector.load %arg8[%c0_53, %c0_54] : memref<32x8xf32, #tpu.memory_space<vmem>>, vector<32x8xf32>
    %c13 = arith.constant 13 : index
    %c0_55 = arith.constant 0 : index
    %c0_56 = arith.constant 0 : index
    %66 = vector.load %arg4[%c13, %c0_55, %c0_56] : memref<16x32x8xbf16, #tpu.memory_space<vmem>>, vector<1x32x8xbf16>
    %67 = vector.shape_cast %66 : vector<1x32x8xbf16> to vector<32x8xbf16>
    %cst_57 = arith.constant dense<0.000000e+00> : vector<32x8xf32>
    %68 = tpu.matmul %64, %67, %cst_57 {dimension_numbers = #tpu.dot_dimension_numbers<[1], [0], [0], [1], [0, 0, 1, 1], [], []>} : vector<32x32xbf16>, vector<32x8xbf16>, vector<32x8xf32> -> vector<32x8xf32>
    %69 = arith.addf %65, %68 : vector<32x8xf32>
    %c0_58 = arith.constant 0 : index
    %c0_59 = arith.constant 0 : index
    %70 = vector.load %arg8[%c0_58, %c0_59] : memref<32x8xf32, #tpu.memory_space<vmem>>, vector<32x8xf32>
    tpu.vector_store %arg8[%c0_58, %c0_59], %69 {strides = array<i32>} : memref<32x8xf32, #tpu.memory_space<vmem>>, vector<32x8xf32>,
    %71 = vector.extract_strided_slice %4 {offsets = [0, 2, 0], sizes = [5, 16, 32], strides = [1, 1, 1]} : vector<5x19x32xbf16> to vector<5x16x32xbf16>
    %72 = vector.extract_strided_slice %71 {offsets = [0, 0, 0], sizes = [2, 16, 32], strides = [1, 1, 1]} : vector<5x16x32xbf16> to vector<2x16x32xbf16>
    %73 = vector.shape_cast %72 : vector<2x16x32xbf16> to vector<32x32xbf16>
    %c0_60 = arith.constant 0 : index
    %c0_61 = arith.constant 0 : index
    %74 = vector.load %arg8[%c0_60, %c0_61] : memref<32x8xf32, #tpu.memory_space<vmem>>, vector<32x8xf32>
    %c2 = arith.constant 2 : index
    %c0_62 = arith.constant 0 : index
    %c0_63 = arith.constant 0 : index
    %75 = vector.load %arg4[%c2, %c0_62, %c0_63] : memref<16x32x8xbf16, #tpu.memory_space<vmem>>, vector<1x32x8xbf16>
    %76 = vector.shape_cast %75 : vector<1x32x8xbf16> to vector<32x8xbf16>
    %cst_64 = arith.constant dense<0.000000e+00> : vector<32x8xf32>
    %77 = tpu.matmul %73, %76, %cst_64 {dimension_numbers = #tpu.dot_dimension_numbers<[1], [0], [0], [1], [0, 0, 1, 1], [], []>} : vector<32x32xbf16>, vector<32x8xbf16>, vector<32x8xf32> -> vector<32x8xf32>
    %78 = arith.addf %74, %77 : vector<32x8xf32>
    %c0_65 = arith.constant 0 : index
    %c0_66 = arith.constant 0 : index
    %79 = vector.load %arg8[%c0_65, %c0_66] : memref<32x8xf32, #tpu.memory_space<vmem>>, vector<32x8xf32>
    tpu.vector_store %arg8[%c0_65, %c0_66], %78 {strides = array<i32>} : memref<32x8xf32, #tpu.memory_space<vmem>>, vector<32x8xf32>,
    %80 = vector.extract_strided_slice %71 {offsets = [1, 0, 0], sizes = [2, 16, 32], strides = [1, 1, 1]} : vector<5x16x32xbf16> to vector<2x16x32xbf16>
    %81 = vector.shape_cast %80 : vector<2x16x32xbf16> to vector<32x32xbf16>
    %c0_67 = arith.constant 0 : index
    %c0_68 = arith.constant 0 : index
    %82 = vector.load %arg8[%c0_67, %c0_68] : memref<32x8xf32, #tpu.memory_space<vmem>>, vector<32x8xf32>
    %c6 = arith.constant 6 : index
    %c0_69 = arith.constant 0 : index
    %c0_70 = arith.constant 0 : index
    %83 = vector.load %arg4[%c6, %c0_69, %c0_70] : memref<16x32x8xbf16, #tpu.memory_space<vmem>>, vector<1x32x8xbf16>
    %84 = vector.shape_cast %83 : vector<1x32x8xbf16> to vector<32x8xbf16>
    %cst_71 = arith.constant dense<0.000000e+00> : vector<32x8xf32>
    %85 = tpu.matmul %81, %84, %cst_71 {dimension_numbers = #tpu.dot_dimension_numbers<[1], [0], [0], [1], [0, 0, 1, 1], [], []>} : vector<32x32xbf16>, vector<32x8xbf16>, vector<32x8xf32> -> vector<32x8xf32>
    %86 = arith.addf %82, %85 : vector<32x8xf32>
    %c0_72 = arith.constant 0 : index
    %c0_73 = arith.constant 0 : index
    %87 = vector.load %arg8[%c0_72, %c0_73] : memref<32x8xf32, #tpu.memory_space<vmem>>, vector<32x8xf32>
    tpu.vector_store %arg8[%c0_72, %c0_73], %86 {strides = array<i32>} : memref<32x8xf32, #tpu.memory_space<vmem>>, vector<32x8xf32>,
    %88 = vector.extract_strided_slice %71 {offsets = [2, 0, 0], sizes = [2, 16, 32], strides = [1, 1, 1]} : vector<5x16x32xbf16> to vector<2x16x32xbf16>
    %89 = vector.shape_cast %88 : vector<2x16x32xbf16> to vector<32x32xbf16>
    %c0_74 = arith.constant 0 : index
    %c0_75 = arith.constant 0 : index
    %90 = vector.load %arg8[%c0_74, %c0_75] : memref<32x8xf32, #tpu.memory_space<vmem>>, vector<32x8xf32>
    %c10 = arith.constant 10 : index
    %c0_76 = arith.constant 0 : index
    %c0_77 = arith.constant 0 : index
    %91 = vector.load %arg4[%c10, %c0_76, %c0_77] : memref<16x32x8xbf16, #tpu.memory_space<vmem>>, vector<1x32x8xbf16>
    %92 = vector.shape_cast %91 : vector<1x32x8xbf16> to vector<32x8xbf16>
    %cst_78 = arith.constant dense<0.000000e+00> : vector<32x8xf32>
    %93 = tpu.matmul %89, %92, %cst_78 {dimension_numbers = #tpu.dot_dimension_numbers<[1], [0], [0], [1], [0, 0, 1, 1], [], []>} : vector<32x32xbf16>, vector<32x8xbf16>, vector<32x8xf32> -> vector<32x8xf32>
    %94 = arith.addf %90, %93 : vector<32x8xf32>
    %c0_79 = arith.constant 0 : index
    %c0_80 = arith.constant 0 : index
    %95 = vector.load %arg8[%c0_79, %c0_80] : memref<32x8xf32, #tpu.memory_space<vmem>>, vector<32x8xf32>
    tpu.vector_store %arg8[%c0_79, %c0_80], %94 {strides = array<i32>} : memref<32x8xf32, #tpu.memory_space<vmem>>, vector<32x8xf32>,
    %96 = vector.extract_strided_slice %71 {offsets = [3, 0, 0], sizes = [2, 16, 32], strides = [1, 1, 1]} : vector<5x16x32xbf16> to vector<2x16x32xbf16>
    %97 = vector.shape_cast %96 : vector<2x16x32xbf16> to vector<32x32xbf16>
    %c0_81 = arith.constant 0 : index
    %c0_82 = arith.constant 0 : index
    %98 = vector.load %arg8[%c0_81, %c0_82] : memref<32x8xf32, #tpu.memory_space<vmem>>, vector<32x8xf32>
    %c14 = arith.constant 14 : index
    %c0_83 = arith.constant 0 : index
    %c0_84 = arith.constant 0 : index
    %99 = vector.load %arg4[%c14, %c0_83, %c0_84] : memref<16x32x8xbf16, #tpu.memory_space<vmem>>, vector<1x32x8xbf16>
    %100 = vector.shape_cast %99 : vector<1x32x8xbf16> to vector<32x8xbf16>
    %cst_85 = arith.constant dense<0.000000e+00> : vector<32x8xf32>
    %101 = tpu.matmul %97, %100, %cst_85 {dimension_numbers = #tpu.dot_dimension_numbers<[1], [0], [0], [1], [0, 0, 1, 1], [], []>} : vector<32x32xbf16>, vector<32x8xbf16>, vector<32x8xf32> -> vector<32x8xf32>
    %102 = arith.addf %98, %101 : vector<32x8xf32>
    %c0_86 = arith.constant 0 : index
    %c0_87 = arith.constant 0 : index
    %103 = vector.load %arg8[%c0_86, %c0_87] : memref<32x8xf32, #tpu.memory_space<vmem>>, vector<32x8xf32>
    tpu.vector_store %arg8[%c0_86, %c0_87], %102 {strides = array<i32>} : memref<32x8xf32, #tpu.memory_space<vmem>>, vector<32x8xf32>,
    %104 = vector.extract_strided_slice %4 {offsets = [0, 3, 0], sizes = [5, 16, 32], strides = [1, 1, 1]} : vector<5x19x32xbf16> to vector<5x16x32xbf16>
    %105 = vector.extract_strided_slice %104 {offsets = [0, 0, 0], sizes = [2, 16, 32], strides = [1, 1, 1]} : vector<5x16x32xbf16> to vector<2x16x32xbf16>
    %106 = vector.shape_cast %105 : vector<2x16x32xbf16> to vector<32x32xbf16>
    %c0_88 = arith.constant 0 : index
    %c0_89 = arith.constant 0 : index
    %107 = vector.load %arg8[%c0_88, %c0_89] : memref<32x8xf32, #tpu.memory_space<vmem>>, vector<32x8xf32>
    %c3 = arith.constant 3 : index
    %c0_90 = arith.constant 0 : index
    %c0_91 = arith.constant 0 : index
    %108 = vector.load %arg4[%c3, %c0_90, %c0_91] : memref<16x32x8xbf16, #tpu.memory_space<vmem>>, vector<1x32x8xbf16>
    %109 = vector.shape_cast %108 : vector<1x32x8xbf16> to vector<32x8xbf16>
    %cst_92 = arith.constant dense<0.000000e+00> : vector<32x8xf32>
    %110 = tpu.matmul %106, %109, %cst_92 {dimension_numbers = #tpu.dot_dimension_numbers<[1], [0], [0], [1], [0, 0, 1, 1], [], []>} : vector<32x32xbf16>, vector<32x8xbf16>, vector<32x8xf32> -> vector<32x8xf32>
    %111 = arith.addf %107, %110 : vector<32x8xf32>
    %c0_93 = arith.constant 0 : index
    %c0_94 = arith.constant 0 : index
    %112 = vector.load %arg8[%c0_93, %c0_94] : memref<32x8xf32, #tpu.memory_space<vmem>>, vector<32x8xf32>
    tpu.vector_store %arg8[%c0_93, %c0_94], %111 {strides = array<i32>} : memref<32x8xf32, #tpu.memory_space<vmem>>, vector<32x8xf32>,
    %113 = vector.extract_strided_slice %104 {offsets = [1, 0, 0], sizes = [2, 16, 32], strides = [1, 1, 1]} : vector<5x16x32xbf16> to vector<2x16x32xbf16>
    %114 = vector.shape_cast %113 : vector<2x16x32xbf16> to vector<32x32xbf16>
    %c0_95 = arith.constant 0 : index
    %c0_96 = arith.constant 0 : index
    %115 = vector.load %arg8[%c0_95, %c0_96] : memref<32x8xf32, #tpu.memory_space<vmem>>, vector<32x8xf32>
    %c7 = arith.constant 7 : index
    %c0_97 = arith.constant 0 : index
    %c0_98 = arith.constant 0 : index
    %116 = vector.load %arg4[%c7, %c0_97, %c0_98] : memref<16x32x8xbf16, #tpu.memory_space<vmem>>, vector<1x32x8xbf16>
    %117 = vector.shape_cast %116 : vector<1x32x8xbf16> to vector<32x8xbf16>
    %cst_99 = arith.constant dense<0.000000e+00> : vector<32x8xf32>
    %118 = tpu.matmul %114, %117, %cst_99 {dimension_numbers = #tpu.dot_dimension_numbers<[1], [0], [0], [1], [0, 0, 1, 1], [], []>} : vector<32x32xbf16>, vector<32x8xbf16>, vector<32x8xf32> -> vector<32x8xf32>
    %119 = arith.addf %115, %118 : vector<32x8xf32>
    %c0_100 = arith.constant 0 : index
    %c0_101 = arith.constant 0 : index
    %120 = vector.load %arg8[%c0_100, %c0_101] : memref<32x8xf32, #tpu.memory_space<vmem>>, vector<32x8xf32>
    tpu.vector_store %arg8[%c0_100, %c0_101], %119 {strides = array<i32>} : memref<32x8xf32, #tpu.memory_space<vmem>>, vector<32x8xf32>,
    %121 = vector.extract_strided_slice %104 {offsets = [2, 0, 0], sizes = [2, 16, 32], strides = [1, 1, 1]} : vector<5x16x32xbf16> to vector<2x16x32xbf16>
    %122 = vector.shape_cast %121 : vector<2x16x32xbf16> to vector<32x32xbf16>
    %c0_102 = arith.constant 0 : index
    %c0_103 = arith.constant 0 : index
    %123 = vector.load %arg8[%c0_102, %c0_103] : memref<32x8xf32, #tpu.memory_space<vmem>>, vector<32x8xf32>
    %c11 = arith.constant 11 : index
    %c0_104 = arith.constant 0 : index
    %c0_105 = arith.constant 0 : index
    %124 = vector.load %arg4[%c11, %c0_104, %c0_105] : memref<16x32x8xbf16, #tpu.memory_space<vmem>>, vector<1x32x8xbf16>
    %125 = vector.shape_cast %124 : vector<1x32x8xbf16> to vector<32x8xbf16>
    %cst_106 = arith.constant dense<0.000000e+00> : vector<32x8xf32>
    %126 = tpu.matmul %122, %125, %cst_106 {dimension_numbers = #tpu.dot_dimension_numbers<[1], [0], [0], [1], [0, 0, 1, 1], [], []>} : vector<32x32xbf16>, vector<32x8xbf16>, vector<32x8xf32> -> vector<32x8xf32>
    %127 = arith.addf %123, %126 : vector<32x8xf32>
    %c0_107 = arith.constant 0 : index
    %c0_108 = arith.constant 0 : index
    %128 = vector.load %arg8[%c0_107, %c0_108] : memref<32x8xf32, #tpu.memory_space<vmem>>, vector<32x8xf32>
    tpu.vector_store %arg8[%c0_107, %c0_108], %127 {strides = array<i32>} : memref<32x8xf32, #tpu.memory_space<vmem>>, vector<32x8xf32>,
    %129 = vector.extract_strided_slice %104 {offsets = [3, 0, 0], sizes = [2, 16, 32], strides = [1, 1, 1]} : vector<5x16x32xbf16> to vector<2x16x32xbf16>
    %130 = vector.shape_cast %129 : vector<2x16x32xbf16> to vector<32x32xbf16>
    %c0_109 = arith.constant 0 : index
    %c0_110 = arith.constant 0 : index
    %131 = vector.load %arg8[%c0_109, %c0_110] : memref<32x8xf32, #tpu.memory_space<vmem>>, vector<32x8xf32>
    %c15 = arith.constant 15 : index
    %c0_111 = arith.constant 0 : index
    %c0_112 = arith.constant 0 : index
    %132 = vector.load %arg4[%c15, %c0_111, %c0_112] : memref<16x32x8xbf16, #tpu.memory_space<vmem>>, vector<1x32x8xbf16>
    %133 = vector.shape_cast %132 : vector<1x32x8xbf16> to vector<32x8xbf16>
    %cst_113 = arith.constant dense<0.000000e+00> : vector<32x8xf32>
    %134 = tpu.matmul %130, %133, %cst_113 {dimension_numbers = #tpu.dot_dimension_numbers<[1], [0], [0], [1], [0, 0, 1, 1], [], []>} : vector<32x32xbf16>, vector<32x8xbf16>, vector<32x8xf32> -> vector<32x8xf32>
    %135 = arith.addf %131, %134 : vector<32x8xf32>
    %c0_114 = arith.constant 0 : index
    %c0_115 = arith.constant 0 : index
    %136 = vector.load %arg8[%c0_114, %c0_115] : memref<32x8xf32, #tpu.memory_space<vmem>>, vector<32x8xf32>
    tpu.vector_store %arg8[%c0_114, %c0_115], %135 {strides = array<i32>} : memref<32x8xf32, #tpu.memory_space<vmem>>, vector<32x8xf32>,
    %c0_i32_116 = arith.constant 0 : i32
    %137 = arith.cmpi eq, %arg2, %c0_i32_116 : i32
    %138 = arith.extui %137 : i1 to i32
    %c0_i32_117 = arith.constant 0 : i32
    %139 = arith.cmpi ne, %138, %c0_i32_117 : i32
    scf.if %139 {
      %c0_118 = arith.constant 0 : index
      %c0_119 = arith.constant 0 : index
      %140 = vector.load %arg8[%c0_118, %c0_119] : memref<32x8xf32, #tpu.memory_space<vmem>>, vector<32x8xf32>
      %c0_120 = arith.constant 0 : index
      %c0_121 = arith.constant 0 : index
      %141 = vector.load %arg5[%c0_120, %c0_121] : memref<1x8xf32, #tpu.memory_space<vmem>>, vector<1x8xf32>
      %142 = vector.shape_cast %141 : vector<1x8xf32> to vector<8xf32>
      %143 = vector.shape_cast %142 : vector<8xf32> to vector<1x8xf32>
      %144 = vector.broadcast %143 : vector<1x8xf32> to vector<32x8xf32>
      %145 = arith.addf %140, %144 : vector<32x8xf32>
      %146 = vector.shape_cast %145 : vector<32x8xf32> to vector<2x16x8xf32>
      %147 = vector.extract_strided_slice %146 {offsets = [0, 0, 0], sizes = [2, 2, 8], strides = [1, 1, 1]} : vector<2x16x8xf32> to vector<2x2x8xf32>
      %cst_122 = arith.constant dense<0.000000e+00> : vector<2x8xf32>
      %148 = vector.multi_reduction <add>, %147, %cst_122 [0] : vector<2x2x8xf32> to vector<2x8xf32>
      %149 = arith.mulf %147, %147 : vector<2x2x8xf32>
      %cst_123 = arith.constant dense<0.000000e+00> : vector<2x8xf32>
      %150 = vector.multi_reduction <add>, %149, %cst_123 [0] : vector<2x2x8xf32> to vector<2x8xf32>
      %cst_124 = arith.constant dense<0.000000e+00> : vector<8xf32>
      %151 = vector.multi_reduction <add>, %148, %cst_124 [0] : vector<2x8xf32> to vector<8xf32>
      %152 = vector.shape_cast %151 : vector<8xf32> to vector<1x8xf32>
      %c0_125 = arith.constant 0 : index
      %c0_126 = arith.constant 0 : index
      %c0_127 = arith.constant 0 : index
      %153 = vector.load %arg7[%c0_125, %c0_126, %c0_127] : memref<1x2x8xf32, #tpu.memory_space<vmem>>, vector<1x1x8xf32>
      %154 = vector.shape_cast %153 : vector<1x1x8xf32> to vector<1x8xf32>
      %155 = vector.shape_cast %152 : vector<1x8xf32> to vector<1x1x8xf32>
      tpu.vector_store %arg7[%c0_125, %c0_126, %c0_127], %155 {strides = array<i32>} : memref<1x2x8xf32, #tpu.memory_space<vmem>>, vector<1x1x8xf32>,
      %cst_128 = arith.constant dense<0.000000e+00> : vector<8xf32>
      %156 = vector.multi_reduction <add>, %150, %cst_128 [0] : vector<2x8xf32> to vector<8xf32>
      %157 = vector.shape_cast %156 : vector<8xf32> to vector<1x8xf32>
      %c0_129 = arith.constant 0 : index
      %c1_130 = arith.constant 1 : index
      %c0_131 = arith.constant 0 : index
      %158 = vector.load %arg7[%c0_129, %c1_130, %c0_131] : memref<1x2x8xf32, #tpu.memory_space<vmem>>, vector<1x1x8xf32>
      %159 = vector.shape_cast %158 : vector<1x1x8xf32> to vector<1x8xf32>
      %160 = vector.shape_cast %157 : vector<1x8xf32> to vector<1x1x8xf32>
      tpu.vector_store %arg7[%c0_129, %c1_130, %c0_131], %160 {strides = array<i32>} : memref<1x2x8xf32, #tpu.memory_space<vmem>>, vector<1x1x8xf32>,
      %c0_132 = arith.constant 0 : index
      %c0_133 = arith.constant 0 : index
      %c0_134 = arith.constant 0 : index
      %c0_135 = arith.constant 0 : index
      %161 = vector.load %arg6[%c0_132, %c0_133, %c0_134, %c0_135] : memref<1x2x2x8xf32, #tpu.memory_space<vmem>>, vector<1x2x2x8xf32>
      %162 = vector.shape_cast %161 : vector<1x2x2x8xf32> to vector<2x2x8xf32>
      %163 = vector.shape_cast %147 : vector<2x2x8xf32> to vector<1x2x2x8xf32>
      tpu.vector_store %arg6[%c0_132, %c0_133, %c0_134, %c0_135], %163 {strides = array<i32>} : memref<1x2x2x8xf32, #tpu.memory_space<vmem>>, vector<1x2x2x8xf32>,
    } else {
    }
    return
  }
  func.func @transform_0(%arg0: i32, %arg1: i32, %arg2: i32) -> (i32, i32, i32, i32) {
    %c0_i32 = arith.constant 0 : i32
    %c0_i32_0 = arith.constant 0 : i32
    %c0_i32_1 = arith.constant 0 : i32
    return %arg0, %c0_i32, %c0_i32_0, %arg2 : i32, i32, i32, i32
  }
  func.func @transform_1(%arg0: i32, %arg1: i32, %arg2: i32) -> (i32, i32, i32) {
    %c0_i32 = arith.constant 0 : i32
    %c0_i32_0 = arith.constant 0 : i32
    return %c0_i32, %arg2, %arg1 : i32, i32, i32
  }
  func.func @transform_2(%arg0: i32, %arg1: i32, %arg2: i32) -> (i32, i32) {
    %c0_i32 = arith.constant 0 : i32
    %c0_i32_0 = arith.constant 0 : i32
    return %c0_i32, %arg1 : i32, i32
  }
  func.func @transform_3(%arg0: i32, %arg1: i32, %arg2: i32) -> (i32, i32, i32, i32) {
    %c0_i32 = arith.constant 0 : i32
    %c0_i32_0 = arith.constant 0 : i32
    %c0_i32_1 = arith.constant 0 : i32
    return %arg0, %c0_i32, %c0_i32_0, %arg1 : i32, i32, i32, i32
  }
  func.func @transform_4(%arg0: i32, %arg1: i32, %arg2: i32) -> (i32, i32, i32) {
    %c0_i32 = arith.constant 0 : i32
    %c0_i32_0 = arith.constant 0 : i32
    return %arg0, %c0_i32, %arg1 : i32, i32, i32
  }
}

</mosaic_0001>

<llo_original>
// kernel: _lambda_.5
$region0: #{_lambda_.5}
  #allocation0 [shape = 'u32[]', space=smem, size = 0x4, offset = 0x4, fixed_abs, tag = 'smem constant byte address 0x4 - core index']
  #allocation1 [shape = 'u32[144,128]{1,0:T(1,128)}', space=vmem, size = 0x12000, scoped, tag = 'internal scratch']
  %s0 = inlined_call_operand.vmem [shape: bf16[2,16,16,128], index: 0, kind: input, shape index: {}]
  %s1 = inlined_call_operand.vmem [shape: bf16[128,8], index: 1, kind: input, shape index: {}]
  %s2 = inlined_call_operand.vmem [shape: f32[1,8], index: 2, kind: input, shape index: {}]
  %s3 = inlined_call_operand.vmem [shape: bf16[2,16,16,8], index: 3, kind: output, shape index: {0}]
  %s4 = inlined_call_operand.hbm [shape: f32[2,2,8], index: 4, kind: output, shape index: {1}]
  %5 = xla_tuple %s3, %s4
  %s6 = sld [smem:[#allocation0]]
  $region53: #{_lambda_.5} parent=0
    _
  %s8 = ssub.s32 1, %s6
  %s9 = scalar_select 0, %s8, %s6
  $region1: #{_lambda_.5} parent=0
    #allocation2 [shape = 'u8[2048]{0}', space=vmem, size = 0x800, scoped, tag = 'output window, operand 1']
    #allocation3 [shape = 's32[2]{0}', space=sflag, size = 0x8, scoped, tag = 'scoped memory for _lambda_.5']
    %10 = vsyncpa [#allocation3], 0
    %s11 = scalar_lea.sflag [#allocation3], 1
    %12 = vsyncpa %s11, 0
    loop: start=0, step=1, limit=4
    $region2: #{_lambda_.5} parent=1 // loop_pre_header
      _
    $region3: #{_lambda_.5} parent=1 // loop_header
      %s14 = sphi 0, %s18
      %p15 = scmp.ge.s32.totalorder %s14, 4
      %s21 = sphi 0, %s40
      %s22 = sphi 0, %s36
      %s23 = sphi 0, %s32
      %s24 = sphi 0, %s21
      %s25 = sphi 0, %s22
      %s26 = sphi 0, %s23
      %s27 = sphi 0, %s24
      %s28 = sphi 0, %s25
      %s29 = sphi 0, %s26
      %s45 = sphi 0, %s47
      %s48 = sphi 0, %s45
      %s49 = sphi 0, %s48
      %s65 = sphi 0, %s49
      %s71 = sphi 0, %s73
      %s74 = sphi 0, %s71
      %s75 = sphi 0, %s74
      %s91 = sphi 0, %s75
      %s97 = sphi 0, %s99
      %s100 = sphi 0, %s97
      %s101 = sphi 0, %s100
      %s117 = sphi 0, %s101
      %s127 = sphi 0, %s129
      %s130 = sphi 0, %s127
      %s131 = sphi 0, %s130
      %s147 = sphi 0, %s131
      %s157 = sphi 0, %s159
      %s160 = sphi 0, %s157
      %s161 = sphi 0, %s160
      %s177 = sphi 0, %s161
    $region4: #{_lambda_.5} parent=1 // loop_header_branch
      %17 = sbr.rel (%p15) target = $region8
    $region5: #{_lambda_.5} parent=1 // loop_body
      %s19 = ssub.s32 %s14, 1
      %s20 = ssub.s32 %s14, 2
      %s30 = sadd.s32 1, %s23
      %p31 = scmp.ge.s32.totalorder %s30, 1
      %s32 = scalar_select %p31, 0, %s30
      %s33 = sadd.s32 1, %s22
      %s34 = scalar_select %p31, %s33, %s22
      %p35 = scmp.ge.s32.totalorder %s34, 1
      %s36 = scalar_select %p35, 0, %s34
      %s37 = sadd.s32 1, %s21
      %s38 = scalar_select %p35, %s37, %s21
      %p39 = scmp.ge.s32.totalorder %s38, 2
      %s40 = scalar_select %p39, 0, %s38
      %s41 = ssub.s32 %s21, %s40
      %s42 = ssub.s32 %s22, %s36
      %s43 = sor.u32 %s41, %s42
      %p44 = scmp.eq.s32.totalorder %s43, 0
      %s46 = sadd.s32 %s45, 1
      %s47 = scalar_select %p44, %s45, %s46
      %p50 = pneg %p44
      %p51 = scmp.eq.s32.totalorder %s14, 1
      %p52 = por %p50, %p51
      %p53 = scmp.ne.s32.totalorder %s45, %s48
      %p54 = scmp.eq.s32.totalorder %s14, 0
      %p55 = por %p53, %p54
      %p56 = scmp.ne.s32.totalorder %s45, %s48
      %p57 = scmp.eq.s32.totalorder %s19, 1
      %p58 = por %p56, %p57
      %p59 = scmp.ne.s32.totalorder %s48, %s49
      %p60 = scmp.eq.s32.totalorder %s19, 0
      %p61 = por %p59, %p60
      %p62 = scmp.ne.s32.totalorder %s48, %s49
      %p63 = scmp.eq.s32.totalorder %s20, 1
      %p64 = por %p62, %p63
      %p66 = scmp.ne.s32.totalorder %s49, %s65
      %p67 = scmp.eq.s32.totalorder %s20, 0
      %p68 = por %p66, %p67
      %s69 = ssub.s32 %s23, %s32
      %p70 = scmp.eq.s32.totalorder %s69, 0
      %s72 = sadd.s32 %s71, 1
      %s73 = scalar_select %p70, %s71, %s72
      %p76 = pneg %p70
      %p77 = scmp.eq.s32.totalorder %s14, 1
      %p78 = por %p76, %p77
      %p79 = scmp.ne.s32.totalorder %s71, %s74
      %p80 = scmp.eq.s32.totalorder %s14, 0
      %p81 = por %p79, %p80
      %p82 = scmp.ne.s32.totalorder %s71, %s74
      %p83 = scmp.eq.s32.totalorder %s19, 1
      %p84 = por %p82, %p83
      %p85 = scmp.ne.s32.totalorder %s74, %s75
      %p86 = scmp.eq.s32.totalorder %s19, 0
      %p87 = por %p85, %p86
      %p88 = scmp.ne.s32.totalorder %s74, %s75
      %p89 = scmp.eq.s32.totalorder %s20, 1
      %p90 = por %p88, %p89
      %p92 = scmp.ne.s32.totalorder %s75, %s91
      %p93 = scmp.eq.s32.totalorder %s20, 0
      %p94 = por %p92, %p93
      %s95 = ssub.s32 %s23, %s32
      %p96 = scmp.eq.s32.totalorder %s95, 0
      %s98 = sadd.s32 %s97, 1
      %s99 = scalar_select %p96, %s97, %s98
      %p102 = pneg %p96
      %p103 = scmp.eq.s32.totalorder %s14, 1
      %p104 = por %p102, %p103
      %p105 = scmp.ne.s32.totalorder %s97, %s100
      %p106 = scmp.eq.s32.totalorder %s14, 0
      %p107 = por %p105, %p106
      %p108 = scmp.ne.s32.totalorder %s97, %s100
      %p109 = scmp.eq.s32.totalorder %s19, 1
      %p110 = por %p108, %p109
      %p111 = scmp.ne.s32.totalorder %s100, %s101
      %p112 = scmp.eq.s32.totalorder %s19, 0
      %p113 = por %p111, %p112
      %p114 = scmp.ne.s32.totalorder %s100, %s101
      %p115 = scmp.eq.s32.totalorder %s20, 1
      %p116 = por %p114, %p115
      %p118 = scmp.ne.s32.totalorder %s101, %s117
      %p119 = scmp.eq.s32.totalorder %s20, 0
      %p120 = por %p118, %p119
      %s121 = ssub.s32 %s21, %s40
      %s122 = ssub.s32 %s22, %s36
      %s123 = sor.u32 %s121, %s122
      %s124 = ssub.s32 %s23, %s32
      %s125 = sor.u32 %s123, %s124
      %p126 = scmp.eq.s32.totalorder %s125, 0
      %s128 = sadd.s32 %s127, 1
      %s129 = scalar_select %p126, %s127, %s128
      %p132 = pneg %p126
      %p133 = scmp.eq.s32.totalorder %s14, 1
      %p134 = por %p132, %p133
      %p135 = scmp.ne.s32.totalorder %s127, %s130
      %p136 = scmp.eq.s32.totalorder %s14, 0
      %p137 = por %p135, %p136
      %p138 = scmp.ne.s32.totalorder %s127, %s130
      %p139 = scmp.eq.s32.totalorder %s19, 1
      %p140 = por %p138, %p139
      %p141 = scmp.ne.s32.totalorder %s130, %s131
      %p142 = scmp.eq.s32.totalorder %s19, 0
      %p143 = por %p141, %p142
      %p144 = scmp.ne.s32.totalorder %s130, %s131
      %p145 = scmp.eq.s32.totalorder %s20, 1
      %p146 = por %p144, %p145
      %p148 = scmp.ne.s32.totalorder %s131, %s147
      %p149 = scmp.eq.s32.totalorder %s20, 0
      %p150 = por %p148, %p149
      %s151 = sadd.s32 %s21, %s22
      %s152 = sadd.s32 %s40, %s36
      %s153 = ssub.s32 %s151, %s152
      %s154 = ssub.s32 %s23, %s32
      %s155 = sor.u32 %s153, %s154
      %p156 = scmp.eq.s32.totalorder %s155, 0
      %s158 = sadd.s32 %s157, 1
      %s159 = scalar_select %p156, %s157, %s158
      %p162 = pneg %p156
      %p163 = scmp.eq.s32.totalorder %s14, 1
      %p164 = por %p162, %p163
      %p165 = scmp.ne.s32.totalorder %s157, %s160
      %p166 = scmp.eq.s32.totalorder %s14, 0
      %p167 = por %p165, %p166
      %p168 = scmp.ne.s32.totalorder %s157, %s160
      %p169 = scmp.eq.s32.totalorder %s19, 1
      %p170 = por %p168, %p169
      %p171 = scmp.ne.s32.totalorder %s160, %s161
      %p172 = scmp.eq.s32.totalorder %s19, 0
      %p173 = por %p171, %p172
      %p174 = scmp.ne.s32.totalorder %s160, %s161
      %p175 = scmp.eq.s32.totalorder %s20, 1
      %p176 = por %p174, %p175
      %p178 = scmp.ne.s32.totalorder %s161, %s177
      %p179 = scmp.eq.s32.totalorder %s20, 0
      %p180 = por %p178, %p179
      %p181 = scmp.le.s32.totalorder 1, %s14
      %p182 = scmp.lt.s32.totalorder %s14, 3
      %p183 = pnand %p181, %p182
      %p184 = pneg %p183
      // Predicated region
      $region9: #{_lambda_.5} parent=5 // pred_check
        _
      $region10: #{_lambda_.5} parent=5 // pred_check_branch
        %186 = sbr.rel (%p183) target = $region12
      $region11: #{_lambda_.5} parent=5 // pred_region
        %s187 = ssub.s32 %s14, 1
        // Predicated region
        $region13: #{_lambda_.5} parent=11 // pred_check
          %p188 = pneg %p87
        $region14: #{_lambda_.5} parent=11 // pred_check_branch
          %190 = sbr.rel (%p188) target = $region16
        $region15: #{_lambda_.5} parent=11 // pred_region
          %p191 = scmp.lt.s32.totalorder %s26, 0
          %s192 = scalar_select %p191, %s26, 0
          %s193 = smul.addr %s192, 4
          %s194 = scalar_lea.vmem %s1, %s193
        $region16: #{_lambda_.5} parent=11 // pred_fallthru
          _
        // Predicated region
        $region17: #{_lambda_.5} parent=11 // pred_check
          %p195 = pneg %p113
        $region18: #{_lambda_.5} parent=11 // pred_check_branch
          %197 = sbr.rel (%p195) target = $region20
        $region19: #{_lambda_.5} parent=11 // pred_region
          %p198 = scmp.lt.s32.totalorder %s26, 0
          %s199 = scalar_select %p198, %s26, 0
          %s200 = scalar_lea.vmem %s2, %s199
        $region20: #{_lambda_.5} parent=11 // pred_fallthru
          _
      $region12: #{_lambda_.5} parent=5 // pred_fallthru
        _
      %p201 = scmp.lt.s32.totalorder %s14, 2
      // Predicated region
      $region21: #{_lambda_.5} parent=5 // pred_check
        %p202 = pneg %p201
      $region22: #{_lambda_.5} parent=5 // pred_check_branch
        %204 = sbr.rel (%p202) target = $region24
      $region23: #{_lambda_.5} parent=5 // pred_region
        // Predicated region
        $region25: #{_lambda_.5} parent=23 // pred_check
          %p205 = pneg %p55
        $region26: #{_lambda_.5} parent=23 // pred_check_branch
          %207 = sbr.rel (%p205) target = $region28
        $region27: #{_lambda_.5} parent=23 // pred_region
          %s208 = smul.u32 16, %s22
          %p209 = scmp.lt.s32.totalorder %s21, 1
          %s210 = scalar_select %p209, %s21, 1
          %p211 = scmp.lt.s32.totalorder %s208, 15
          %s212 = scalar_select %p211, %s208, 15
          %s213 = smul.addr %s212, 2
          %s214 = smul.addr %s210, 32
          %s215 = sadd.s32 %s213, %s214
          %s216 = smul.addr %s215, 4
          %s217 = scalar_lea.vmem %s0, %s216
          %s218 = smul.u32 16, %s22
        $region28: #{_lambda_.5} parent=23 // pred_fallthru
          _
      $region24: #{_lambda_.5} parent=5 // pred_fallthru
        _
      %p219 = scmp.le.s32.totalorder 1, %s14
      %p220 = scmp.lt.s32.totalorder %s14, 3
      %p221 = pnand %p219, %p220
      %p222 = pneg %p221
      // Predicated region
      $region29: #{_lambda_.5} parent=5 // pred_check
        _
      $region30: #{_lambda_.5} parent=5 // pred_check_branch
        %224 = sbr.rel (%p221) target = $region32
      $region31: #{_lambda_.5} parent=5 // pred_region
        %s225 = ssub.s32 %s14, 1
        %s226 = smul.u32 16, %s25
        %p227 = scmp.lt.s32.totalorder %s24, 1
        %s228 = scalar_select %p227, %s24, 1
        %p229 = scmp.lt.s32.totalorder %s226, 15
        %s230 = scalar_select %p229, %s226, 15
        %s231 = smul.addr %s230, 2
        %s232 = smul.addr %s228, 32
        %s233 = sadd.s32 %s231, %s232
        %s234 = smul.addr %s233, 4
        %s235 = scalar_lea.vmem %s0, %s234
        %p236 = pneg %p61
        %p237 = pneg %p58
        %p238 = scmp.lt.s32.totalorder %s26, 0
        %s239 = scalar_select %p238, %s26, 0
        %s240 = smul.addr %s239, 4
        %s241 = scalar_lea.vmem %s1, %s240
        %p242 = pneg %p87
        %p243 = pneg %p84
        %p244 = scmp.lt.s32.totalorder %s26, 0
        %s245 = scalar_select %p244, %s26, 0
        %s246 = scalar_lea.vmem %s2, %s245
        %p247 = pneg %p113
        %p248 = pneg %p110
        %p249 = pneg %p143
        %p250 = pneg %p140
        %s251 = smul.u32 16, %s25
        %p252 = scmp.lt.s32.totalorder %s24, 1
        %s253 = scalar_select %p252, %s24, 1
        %p254 = scmp.lt.s32.totalorder %s251, 15
        %s255 = scalar_select %p254, %s251, 15
        %p256 = scmp.lt.s32.totalorder %s26, 0
        %s257 = scalar_select %p256, %s26, 0
        %s258 = smul.addr %s255, 2
        %s259 = sadd.s32 %s257, %s258
        %s260 = smul.addr %s253, 32
        %s261 = sadd.s32 %s259, %s260
        %s262 = smul.addr %s261, 4
        %s263 = scalar_lea.vmem %s3, %s262
        %p264 = pneg %p173
        %p265 = pneg %p170
        %s266 = sand.u32 %s160, 1
        %s267 = scalar_lea.sflag [#allocation3], %s266
        %s268 = sand.u32 %s160, 1
        %s269 = smul.addr %s268, 2
        %s270 = scalar_lea.vmem [#allocation2], %s269
        %s271 = smul.u32 16, %s25
        %p272 = scmp.lt.s32.totalorder %s24, 1
        %s273 = scalar_select %p272, %s24, 1
        %p274 = scmp.lt.s32.totalorder %s271, 15
        %s275 = scalar_select %p274, %s271, 15
        %s276 = smul.addr %s275, 2
        %s277 = smul.addr %s273, 32
        %s278 = sadd.s32 %s276, %s277
        %s279 = smul.addr %s278, 4
        %s280 = scalar_lea.vmem %s0, %s279
        %s281 = smul.u32 16, %s25
        %p282 = scmp.lt.s32.totalorder %s26, 0
        %s283 = scalar_select %p282, %s26, 0
        %s284 = smul.addr %s283, 4
        %s285 = scalar_lea.vmem %s1, %s284
        %p286 = scmp.lt.s32.totalorder %s26, 0
        %s287 = scalar_select %p286, %s26, 0
        %s288 = scalar_lea.vmem %s2, %s287
        %s289 = smul.u32 16, %s25
        %p290 = scmp.lt.s32.totalorder %s24, 1
        %s291 = scalar_select %p290, %s24, 1
        %p292 = scmp.lt.s32.totalorder %s289, 15
        %s293 = scalar_select %p292, %s289, 15
        %p294 = scmp.lt.s32.totalorder %s26, 0
        %s295 = scalar_select %p294, %s26, 0
        %s296 = smul.addr %s293, 2
        %s297 = sadd.s32 %s295, %s296
        %s298 = smul.addr %s291, 32
        %s299 = sadd.s32 %s297, %s298
        %s300 = smul.addr %s299, 4
        %s301 = scalar_lea.vmem %s3, %s300
        %s302 = smul.u32 16, %s25
        %s303 = sadd.s32 %s24, %s25
        %v305 = vld [vmem:[%s280] sm:$0xf]
        %v306 = vld [vmem:[%s280 + $0x4] sm:$0xf]
        %v307 = vld [vmem:[%s280 + $0x8] sm:$0xf]
        %v308 = vld [vmem:[%s280 + $0xc] sm:$0xf]
        %v309 = vld [vmem:[%s280 + $0x10] sm:$0xf]
        %v310 = vld [vmem:[%s280 + $0x14] sm:$0xf]
        %v311 = vld [vmem:[%s280 + $0x18] sm:$0xf]
        %v312 = vld [vmem:[%s280 + $0x1c] sm:$0xf]
        %v313 = vld [vmem:[%s280 + $0x20] sm:$0xf]
        %v314 = vld [vmem:[%s280 + $0x24] sm:$0xf]
        %v315 = vld [vmem:[%s280 + $0x28] sm:$0xf]
        %v316 = vld [vmem:[%s280 + $0x2c] sm:$0xf]
        %v317 = vld [vmem:[%s280 + $0x30] sm:$0xf]
        %v318 = vld [vmem:[%s280 + $0x34] sm:$0xf]
        %v319 = vld [vmem:[%s280 + $0x38] sm:$0xf]
        %v320 = vld [vmem:[%s280 + $0x3c] sm:$0xf]
        %v321 = vld [vmem:[%s280 + $0x40] sm:$0xf]
        %v322 = vld [vmem:[%s280 + $0x44] sm:$0xf]
        %v323 = vld [vmem:[%s280 + $0x48] sm:$0xf]
        %v324 = vld [vmem:[%s280 + $0x4c] sm:$0xf]
        %v325 = vld [vmem:[%s280 + $0x50] sm:$0xf]
        %v326 = vld [vmem:[%s280 + $0x54] sm:$0xf]
        %v327 = vld [vmem:[%s280 + $0x58] sm:$0xf]
        %v328 = vld [vmem:[%s280 + $0x5c] sm:$0xf]
        %v329 = vld [vmem:[%s280 + $0x60] sm:$0xf]
        %v330 = vld [vmem:[%s280 + $0x64] sm:$0xf]
        %v331 = vld [vmem:[%s280 + $0x68] sm:$0xf]
        %v332 = vld [vmem:[%s280 + $0x6c] sm:$0xf]
        %v333 = vld [vmem:[%s280 + $0x70] sm:$0xf]
        %v334 = vld [vmem:[%s280 + $0x74] sm:$0xf]
        %v335 = vld [vmem:[%s280 + $0x78] sm:$0xf]
        %v336 = vld [vmem:[%s280 + $0x7c] sm:$0xf]
        %v337 = vld [vmem:[%s285] sm:$0xf]
        %v338 = vld [vmem:[%s285 + $0x4] sm:$0xf]
        %v339 = vld [vmem:[%s285 + $0x8] sm:$0xf]
        %v340 = vld [vmem:[%s285 + $0xc] sm:$0xf]
        %v341 = vld [vmem:[%s285 + $0x10] sm:$0xf]
        %v342 = vld [vmem:[%s285 + $0x14] sm:$0xf]
        %v343 = vld [vmem:[%s285 + $0x18] sm:$0xf]
        %v344 = vld [vmem:[%s285 + $0x1c] sm:$0xf]
        %v345 = vld [vmem:[%s285 + $0x20] sm:$0xf]
        %v346 = vld [vmem:[%s285 + $0x24] sm:$0xf]
        %v347 = vld [vmem:[%s285 + $0x28] sm:$0xf]
        %v348 = vld [vmem:[%s285 + $0x2c] sm:$0xf]
        %v349 = vld [vmem:[%s285 + $0x30] sm:$0xf]
        %v350 = vld [vmem:[%s285 + $0x34] sm:$0xf]
        %v351 = vld [vmem:[%s285 + $0x38] sm:$0xf]
        %v352 = vld [vmem:[%s285 + $0x3c] sm:$0xf]
        %v353 = vld [vmem:[%s288] sm:$0x1]
        %v355 = vlaneseq
        %v356 = vshrl.u32 %v355, 7
        %v357 = vsub.s32 0, %v356
        %v358 = vrot.slane %v353, %v357
        %v392 = vunpack.c.l.b16 %v305
        %v393 = vunpack.c.l.b16 %v306
        %v394 = vunpack.c.l.b16 %v307
        %v395 = vunpack.c.l.b16 %v308
        %v396 = vunpack.c.l.b16 %v309
        %v397 = vunpack.c.l.b16 %v310
        %v398 = vunpack.c.l.b16 %v311
        %v399 = vunpack.c.l.b16 %v312
        %v400 = vunpack.c.l.b16 %v313
        %v401 = vunpack.c.l.b16 %v314
        %v402 = vunpack.c.l.b16 %v315
        %v403 = vunpack.c.l.b16 %v316
        %v404 = vunpack.c.l.b16 %v317
        %v405 = vunpack.c.l.b16 %v318
        %v406 = vunpack.c.l.b16 %v319
        %v407 = vunpack.c.l.b16 %v320
        %v408 = vunpack.c.l.b16 %v321
        %v409 = vunpack.c.l.b16 %v322
        %v410 = vunpack.c.l.b16 %v323
        %v411 = vunpack.c.l.b16 %v324
        %v412 = vunpack.c.l.b16 %v325
        %v413 = vunpack.c.l.b16 %v326
        %v414 = vunpack.c.l.b16 %v327
        %v415 = vunpack.c.l.b16 %v328
        %v416 = vunpack.c.l.b16 %v329
        %v417 = vunpack.c.l.b16 %v330
        %v418 = vunpack.c.l.b16 %v331
        %v419 = vunpack.c.l.b16 %v332
        %v420 = vunpack.c.l.b16 %v333
        %v421 = vunpack.c.l.b16 %v334
        %v422 = vunpack.c.l.b16 %v335
        %v423 = vunpack.c.l.b16 %v336
        %v424 = vpack.c.b16 %v393, %v392
        %v425 = vpack.c.b16 %v395, %v394
        %v426 = vpack.c.b16 %v397, %v396
        %v427 = vpack.c.b16 %v399, %v398
        %v428 = vpack.c.b16 %v401, %v400
        %v429 = vpack.c.b16 %v403, %v402
        %v430 = vpack.c.b16 %v405, %v404
        %v431 = vpack.c.b16 %v407, %v406
        %v432 = vpack.c.b16 %v409, %v408
        %v433 = vpack.c.b16 %v411, %v410
        %v434 = vpack.c.b16 %v413, %v412
        %v435 = vpack.c.b16 %v415, %v414
        %v436 = vpack.c.b16 %v417, %v416
        %v437 = vpack.c.b16 %v419, %v418
        %v438 = vpack.c.b16 %v421, %v420
        %v439 = vpack.c.b16 %v423, %v422
        %v472 = vunpack.c.l.b16 %v337
        %v473 = vunpack.c.l.b16 %v338
        %v474 = vunpack.c.l.b16 %v339
        %v475 = vunpack.c.l.b16 %v340
        %v476 = vunpack.c.l.b16 %v341
        %v477 = vunpack.c.l.b16 %v342
        %v478 = vunpack.c.l.b16 %v343
        %v479 = vunpack.c.l.b16 %v344
        %v480 = vunpack.c.l.b16 %v345
        %v481 = vunpack.c.l.b16 %v346
        %v482 = vunpack.c.l.b16 %v347
        %v483 = vunpack.c.l.b16 %v348
        %v484 = vunpack.c.l.b16 %v349
        %v485 = vunpack.c.l.b16 %v350
        %v486 = vunpack.c.l.b16 %v351
        %v487 = vunpack.c.l.b16 %v352
        %v488 = vpack.c.b16 %v473, %v472
        %v489 = vpack.c.b16 %v475, %v474
        %v490 = vpack.c.b16 %v477, %v476
        %v491 = vpack.c.b16 %v479, %v478
        %v492 = vpack.c.b16 %v481, %v480
        %v493 = vpack.c.b16 %v483, %v482
        %v494 = vpack.c.b16 %v485, %v484
        %v495 = vpack.c.b16 %v487, %v486
        %504 = vmatprep.subr.bf16.mxu0 0
        %505 = vmatpush1.bf16.msra.mxu0 %v495
        %506 = vmatprep.subr.bf16.mxu0 0
        %507 = vmatpush1.bf16.msra.mxu0 %v494
        %508 = vmatprep.subr.bf16.mxu0 0
        %509 = vmatpush1.bf16.msra.mxu0 %v493
        %510 = vmatprep.subr.bf16.mxu0 0
        %511 = vmatpush1.bf16.msra.mxu0 %v492
        %512 = vmatprep.subr.bf16.mxu0 0
        %513 = vmatpush1.bf16.msra.mxu0 %v491
        %514 = vmatprep.subr.bf16.mxu0 0
        %515 = vmatpush1.bf16.msra.mxu0 %v490
        %516 = vmatprep.subr.bf16.mxu0 0
        %517 = vmatpush1.bf16.msra.mxu0 %v489
        %518 = vmatprep.subr.bf16.mxu0 0
        %519 = vmatpush1.bf16.msra.mxu0 %v488
        %520 = vmatprep.subr.bf16.mxu0 0
        %521 = vmatpush2.bf16.msra.mxu0 0
        %522 = vmatprep.subr.bf16.mxu0 0
        %523 = vmatpush2.bf16.msra.mxu0 0
        %524 = vmatprep.subr.bf16.mxu0 0
        %525 = vmatpush2.bf16.msra.mxu0 0
        %526 = vmatprep.subr.bf16.mxu0 0
        %527 = vmatpush2.bf16.msra.mxu0 0
        %528 = vmatprep.subr.bf16.mxu0 0
        %529 = vmatpush2.bf16.msra.mxu0 0
        %530 = vmatprep.subr.bf16.mxu0 0
        %531 = vmatpush2.bf16.msra.mxu0 0
        %532 = vmatprep.subr.bf16.mxu0 0
        %533 = vmatpush2.bf16.msra.mxu0 0
        %534 = vmatprep.subr.bf16.mxu0 0
        %535 = vmatpush2.bf16.msra.mxu0 0
        %536 = vmatprep.mubr.bf16.mxu0 0
        %537 = vmatmul.mubr.bf16.gmra.mxu0 %v424
        %v538 = vpop.f32.mrf.mxu0
        %v539 = vadd.f32 %v358, %v538
        %v540 = vpop.f32.mrf.mxu0
        %v541 = vpop.f32.mrf.mxu0
        %v542 = vadd.f32 %v358, %v541
        %v543 = vpop.f32.mrf.mxu0
        %544 = vmatprep.mubr.bf16.mxu0 0
        %545 = vmatmul.mubr.bf16.gmra.mxu0 %v425
        %v546 = vpop.f32.mrf.mxu0
        %v547 = vadd.f32 %v358, %v546
        %v548 = vpop.f32.mrf.mxu0
        %v549 = vpop.f32.mrf.mxu0
        %v550 = vadd.f32 %v358, %v549
        %v551 = vpop.f32.mrf.mxu0
        %552 = vmatprep.mubr.bf16.mxu0 0
        %553 = vmatmul.mubr.bf16.gmra.mxu0 %v426
        %v554 = vpop.f32.mrf.mxu0
        %v555 = vadd.f32 %v358, %v554
        %v556 = vpop.f32.mrf.mxu0
        %v557 = vpop.f32.mrf.mxu0
        %v558 = vadd.f32 %v358, %v557
        %v559 = vpop.f32.mrf.mxu0
        %560 = vmatprep.mubr.bf16.mxu0 0
        %561 = vmatmul.mubr.bf16.gmra.mxu0 %v427
        %v562 = vpop.f32.mrf.mxu0
        %v563 = vadd.f32 %v358, %v562
        %v564 = vpop.f32.mrf.mxu0
        %v565 = vpop.f32.mrf.mxu0
        %v566 = vadd.f32 %v358, %v565
        %v567 = vpop.f32.mrf.mxu0
        %568 = vmatprep.mubr.bf16.mxu0 0
        %569 = vmatmul.mubr.bf16.gmra.mxu0 %v428
        %v570 = vpop.f32.mrf.mxu0
        %v571 = vadd.f32 %v358, %v570
        %v572 = vpop.f32.mrf.mxu0
        %v573 = vpop.f32.mrf.mxu0
        %v574 = vadd.f32 %v358, %v573
        %v575 = vpop.f32.mrf.mxu0
        %576 = vmatprep.mubr.bf16.mxu0 0
        %577 = vmatmul.mubr.bf16.gmra.mxu0 %v429
        %v578 = vpop.f32.mrf.mxu0
        %v579 = vadd.f32 %v358, %v578
        %v580 = vpop.f32.mrf.mxu0
        %v581 = vpop.f32.mrf.mxu0
        %v582 = vadd.f32 %v358, %v581
        %v583 = vpop.f32.mrf.mxu0
        %584 = vmatprep.mubr.bf16.mxu0 0
        %585 = vmatmul.mubr.bf16.gmra.mxu0 %v430
        %v586 = vpop.f32.mrf.mxu0
        %v587 = vadd.f32 %v358, %v586
        %v588 = vpop.f32.mrf.mxu0
        %v589 = vpop.f32.mrf.mxu0
        %v590 = vadd.f32 %v358, %v589
        %v591 = vpop.f32.mrf.mxu0
        %592 = vmatprep.mubr.bf16.mxu0 0
        %593 = vmatmul.mubr.bf16.gmra.mxu0 %v431
        %v594 = vpop.f32.mrf.mxu0
        %v595 = vadd.f32 %v358, %v594
        %v596 = vpop.f32.mrf.mxu0
        %v597 = vpop.f32.mrf.mxu0
        %v598 = vadd.f32 %v358, %v597
        %v599 = vpop.f32.mrf.mxu0
        %600 = vmatprep.mubr.bf16.mxu0 0
        %601 = vmatmul.mubr.bf16.gmra.mxu0 %v432
        %v602 = vpop.f32.mrf.mxu0
        %v603 = vadd.f32 %v358, %v602
        %v604 = vpop.f32.mrf.mxu0
        %v605 = vpop.f32.mrf.mxu0
        %v606 = vadd.f32 %v358, %v605
        %v607 = vpop.f32.mrf.mxu0
        %608 = vmatprep.mubr.bf16.mxu0 0
        %609 = vmatmul.mubr.bf16.gmra.mxu0 %v433
        %v610 = vpop.f32.mrf.mxu0
        %v611 = vadd.f32 %v358, %v610
        %v612 = vpop.f32.mrf.mxu0
        %v613 = vpop.f32.mrf.mxu0
        %v614 = vadd.f32 %v358, %v613
        %v615 = vpop.f32.mrf.mxu0
        %616 = vmatprep.mubr.bf16.mxu0 0
        %617 = vmatmul.mubr.bf16.gmra.mxu0 %v434
        %v618 = vpop.f32.mrf.mxu0
        %v619 = vadd.f32 %v358, %v618
        %v620 = vpop.f32.mrf.mxu0
        %v621 = vpop.f32.mrf.mxu0
        %v622 = vadd.f32 %v358, %v621
        %v623 = vpop.f32.mrf.mxu0
        %624 = vmatprep.mubr.bf16.mxu0 0
        %625 = vmatmul.mubr.bf16.gmra.mxu0 %v435
        %v626 = vpop.f32.mrf.mxu0
        %v627 = vadd.f32 %v358, %v626
        %v628 = vpop.f32.mrf.mxu0
        %v629 = vpop.f32.mrf.mxu0
        %v630 = vadd.f32 %v358, %v629
        %v631 = vpop.f32.mrf.mxu0
        %632 = vmatprep.mubr.bf16.mxu0 0
        %633 = vmatmul.mubr.bf16.gmra.mxu0 %v436
        %v634 = vpop.f32.mrf.mxu0
        %v635 = vadd.f32 %v358, %v634
        %v636 = vpop.f32.mrf.mxu0
        %v637 = vpop.f32.mrf.mxu0
        %v638 = vadd.f32 %v358, %v637
        %v639 = vpop.f32.mrf.mxu0
        %640 = vmatprep.mubr.bf16.mxu0 0
        %641 = vmatmul.mubr.bf16.gmra.mxu0 %v437
        %v642 = vpop.f32.mrf.mxu0
        %v643 = vadd.f32 %v358, %v642
        %v644 = vpop.f32.mrf.mxu0
        %v645 = vpop.f32.mrf.mxu0
        %v646 = vadd.f32 %v358, %v645
        %v647 = vpop.f32.mrf.mxu0
        %648 = vmatprep.mubr.bf16.mxu0 0
        %649 = vmatmul.mubr.bf16.gmra.mxu0 %v438
        %v650 = vpop.f32.mrf.mxu0
        %v651 = vadd.f32 %v358, %v650
        %v652 = vpop.f32.mrf.mxu0
        %v653 = vpop.f32.mrf.mxu0
        %v654 = vadd.f32 %v358, %v653
        %v655 = vpop.f32.mrf.mxu0
        %656 = vmatprep.mubr.bf16.mxu0 0
        %657 = vmatmul.mubr.bf16.gmra.mxu0 %v439
        %v658 = vpop.f32.mrf.mxu0
        %v659 = vadd.f32 %v358, %v658
        %v660 = vpop.f32.mrf.mxu0
        %v661 = vpop.f32.mrf.mxu0
        %v662 = vadd.f32 %v358, %v661
        %v663 = vpop.f32.mrf.mxu0
        %664 = vdwg.mxu0
        %vm665 = vcmask 64512
        %v666 = vsel %vm665, %v539, 0.0
        %v667 = vsel %vm665, %v547, 0.0
        %v668 = vadd.f32 %v666, %v667
        %v669 = vsel %vm665, %v555, 0.0
        %v670 = vadd.f32 %v668, %v669
        %v671 = vsel %vm665, %v563, 0.0
        %v672 = vadd.f32 %v670, %v671
        %v673 = vsel %vm665, %v571, 0.0
        %v674 = vadd.f32 %v672, %v673
        %v675 = vsel %vm665, %v579, 0.0
        %v676 = vadd.f32 %v674, %v675
        %v677 = vsel %vm665, %v587, 0.0
        %v678 = vadd.f32 %v676, %v677
        %v679 = vsel %vm665, %v595, 0.0
        %v680 = vadd.f32 %v678, %v679
        %v681 = vsel %vm665, %v603, 0.0
        %v682 = vadd.f32 %v680, %v681
        %v683 = vsel %vm665, %v611, 0.0
        %v684 = vadd.f32 %v682, %v683
        %v685 = vsel %vm665, %v619, 0.0
        %v686 = vadd.f32 %v684, %v685
        %v687 = vsel %vm665, %v627, 0.0
        %v688 = vadd.f32 %v686, %v687
        %v689 = vsel %vm665, %v635, 0.0
        %v690 = vadd.f32 %v688, %v689
        %v691 = vsel %vm665, %v643, 0.0
        %v692 = vadd.f32 %v690, %v691
        %v693 = vsel %vm665, %v651, 0.0
        %v694 = vadd.f32 %v692, %v693
        %v695 = vsel %vm665, %v659, 0.0
        %v696 = vadd.f32 %v694, %v695
        %v697 = vsel %vm665, %v542, 0.0
        %v698 = vsel %vm665, %v550, 0.0
        %v699 = vadd.f32 %v697, %v698
        %v700 = vsel %vm665, %v558, 0.0
        %v701 = vadd.f32 %v699, %v700
        %v702 = vsel %vm665, %v566, 0.0
        %v703 = vadd.f32 %v701, %v702
        %v704 = vsel %vm665, %v574, 0.0
        %v705 = vadd.f32 %v703, %v704
        %v706 = vsel %vm665, %v582, 0.0
        %v707 = vadd.f32 %v705, %v706
        %v708 = vsel %vm665, %v590, 0.0
        %v709 = vadd.f32 %v707, %v708
        %v710 = vsel %vm665, %v598, 0.0
        %v711 = vadd.f32 %v709, %v710
        %v712 = vsel %vm665, %v606, 0.0
        %v713 = vadd.f32 %v711, %v712
        %v714 = vsel %vm665, %v614, 0.0
        %v715 = vadd.f32 %v713, %v714
        %v716 = vsel %vm665, %v622, 0.0
        %v717 = vadd.f32 %v715, %v716
        %v718 = vsel %vm665, %v630, 0.0
        %v719 = vadd.f32 %v717, %v718
        %v720 = vsel %vm665, %v638, 0.0
        %v721 = vadd.f32 %v719, %v720
        %v722 = vsel %vm665, %v646, 0.0
        %v723 = vadd.f32 %v721, %v722
        %v724 = vsel %vm665, %v654, 0.0
        %v725 = vadd.f32 %v723, %v724
        %v726 = vsel %vm665, %v662, 0.0
        %v727 = vadd.f32 %v725, %v726
        %v728 = vmul.f32 %v539, %v539
        %v729 = vmul.f32 %v542, %v542
        %v730 = vmul.f32 %v547, %v547
        %v731 = vmul.f32 %v550, %v550
        %v732 = vmul.f32 %v555, %v555
        %v733 = vmul.f32 %v558, %v558
        %v734 = vmul.f32 %v563, %v563
        %v735 = vmul.f32 %v566, %v566
        %v736 = vmul.f32 %v571, %v571
        %v737 = vmul.f32 %v574, %v574
        %v738 = vmul.f32 %v579, %v579
        %v739 = vmul.f32 %v582, %v582
        %v740 = vmul.f32 %v587, %v587
        %v741 = vmul.f32 %v590, %v590
        %v742 = vmul.f32 %v595, %v595
        %v743 = vmul.f32 %v598, %v598
        %v744 = vmul.f32 %v603, %v603
        %v745 = vmul.f32 %v606, %v606
        %v746 = vmul.f32 %v611, %v611
        %v747 = vmul.f32 %v614, %v614
        %v748 = vmul.f32 %v619, %v619
        %v749 = vmul.f32 %v622, %v622
        %v750 = vmul.f32 %v627, %v627
        %v751 = vmul.f32 %v630, %v630
        %v752 = vmul.f32 %v635, %v635
        %v753 = vmul.f32 %v638, %v638
        %v754 = vmul.f32 %v643, %v643
        %v755 = vmul.f32 %v646, %v646
        %v756 = vmul.f32 %v651, %v651
        %v757 = vmul.f32 %v654, %v654
        %v758 = vmul.f32 %v659, %v659
        %v759 = vmul.f32 %v662, %v662
        %v760 = vsel %vm665, %v728, 0.0
        %v761 = vsel %vm665, %v730, 0.0
        %v762 = vadd.f32 %v760, %v761
        %v763 = vsel %vm665, %v732, 0.0
        %v764 = vadd.f32 %v762, %v763
        %v765 = vsel %vm665, %v734, 0.0
        %v766 = vadd.f32 %v764, %v765
        %v767 = vsel %vm665, %v736, 0.0
        %v768 = vadd.f32 %v766, %v767
        %v769 = vsel %vm665, %v738, 0.0
        %v770 = vadd.f32 %v768, %v769
        %v771 = vsel %vm665, %v740, 0.0
        %v772 = vadd.f32 %v770, %v771
        %v773 = vsel %vm665, %v742, 0.0
        %v774 = vadd.f32 %v772, %v773
        %v775 = vsel %vm665, %v744, 0.0
        %v776 = vadd.f32 %v774, %v775
        %v777 = vsel %vm665, %v746, 0.0
        %v778 = vadd.f32 %v776, %v777
        %v779 = vsel %vm665, %v748, 0.0
        %v780 = vadd.f32 %v778, %v779
        %v781 = vsel %vm665, %v750, 0.0
        %v782 = vadd.f32 %v780, %v781
        %v783 = vsel %vm665, %v752, 0.0
        %v784 = vadd.f32 %v782, %v783
        %v785 = vsel %vm665, %v754, 0.0
        %v786 = vadd.f32 %v784, %v785
        %v787 = vsel %vm665, %v756, 0.0
        %v788 = vadd.f32 %v786, %v787
        %v789 = vsel %vm665, %v758, 0.0
        %v790 = vadd.f32 %v788, %v789
        %v791 = vsel %vm665, %v729, 0.0
        %v792 = vsel %vm665, %v731, 0.0
        %v793 = vadd.f32 %v791, %v792
        %v794 = vsel %vm665, %v733, 0.0
        %v795 = vadd.f32 %v793, %v794
        %v796 = vsel %vm665, %v735, 0.0
        %v797 = vadd.f32 %v795, %v796
        %v798 = vsel %vm665, %v737, 0.0
        %v799 = vadd.f32 %v797, %v798
        %v800 = vsel %vm665, %v739, 0.0
        %v801 = vadd.f32 %v799, %v800
        %v802 = vsel %vm665, %v741, 0.0
        %v803 = vadd.f32 %v801, %v802
        %v804 = vsel %vm665, %v743, 0.0
        %v805 = vadd.f32 %v803, %v804
        %v806 = vsel %vm665, %v745, 0.0
        %v807 = vadd.f32 %v805, %v806
        %v808 = vsel %vm665, %v747, 0.0
        %v809 = vadd.f32 %v807, %v808
        %v810 = vsel %vm665, %v749, 0.0
        %v811 = vadd.f32 %v809, %v810
        %v812 = vsel %vm665, %v751, 0.0
        %v813 = vadd.f32 %v811, %v812
        %v814 = vsel %vm665, %v753, 0.0
        %v815 = vadd.f32 %v813, %v814
        %v816 = vsel %vm665, %v755, 0.0
        %v817 = vadd.f32 %v815, %v816
        %v818 = vsel %vm665, %v757, 0.0
        %v819 = vadd.f32 %v817, %v818
        %v820 = vsel %vm665, %v759, 0.0
        %v821 = vadd.f32 %v819, %v820
        %v822 = vsel %vm665, %v696, 0.0
        %v823 = vsel %vm665, %v727, 0.0
        %v824 = vadd.f32 %v822, %v823
        %v825 = vrot.slane %v824, 4
        %v826 = vadd.f32 %v824, %v825
        %v827 = vrot.slane %v826, 2
        %v828 = vadd.f32 %v826, %v827
        %v829 = vrot.slane %v828, 1
        %v830 = vadd.f32 %v828, %v829
        %vm831 = vcmask 57344
        %832 = vst.msk [vmem:[%s270] sm:$0x1] %vm831, %v830
        %v833 = vsel %vm665, %v790, 0.0
        %v834 = vsel %vm665, %v821, 0.0
        %v835 = vadd.f32 %v833, %v834
        %v836 = vrot.slane %v835, 4
        %v837 = vadd.f32 %v835, %v836
        %v838 = vrot.slane %v837, 2
        %v839 = vadd.f32 %v837, %v838
        %v840 = vrot.slane %v839, 1
        %v841 = vadd.f32 %v839, %v840
        %842 = vst.msk [vmem:[%s270 + $0x1] sm:$0x1] %vm831, %v841
        %vm843 = vcmp.ge.f32.partialorder %v539, 0.0
        %vm844 = vcmp.ge.f32.partialorder %v542, 0.0
        %vm845 = vcmp.ge.f32.partialorder %v547, 0.0
        %vm846 = vcmp.ge.f32.partialorder %v550, 0.0
        %vm847 = vcmp.ge.f32.partialorder %v555, 0.0
        %vm848 = vcmp.ge.f32.partialorder %v558, 0.0
        %vm849 = vcmp.ge.f32.partialorder %v563, 0.0
        %vm850 = vcmp.ge.f32.partialorder %v566, 0.0
        %vm851 = vcmp.ge.f32.partialorder %v571, 0.0
        %vm852 = vcmp.ge.f32.partialorder %v574, 0.0
        %vm853 = vcmp.ge.f32.partialorder %v579, 0.0
        %vm854 = vcmp.ge.f32.partialorder %v582, 0.0
        %vm855 = vcmp.ge.f32.partialorder %v587, 0.0
        %vm856 = vcmp.ge.f32.partialorder %v590, 0.0
        %vm857 = vcmp.ge.f32.partialorder %v595, 0.0
        %vm858 = vcmp.ge.f32.partialorder %v598, 0.0
        %vm859 = vcmp.ge.f32.partialorder %v603, 0.0
        %vm860 = vcmp.ge.f32.partialorder %v606, 0.0
        %vm861 = vcmp.ge.f32.partialorder %v611, 0.0
        %vm862 = vcmp.ge.f32.partialorder %v614, 0.0
        %vm863 = vcmp.ge.f32.partialorder %v619, 0.0
        %vm864 = vcmp.ge.f32.partialorder %v622, 0.0
        %vm865 = vcmp.ge.f32.partialorder %v627, 0.0
        %vm866 = vcmp.ge.f32.partialorder %v630, 0.0
        %vm867 = vcmp.ge.f32.partialorder %v635, 0.0
        %vm868 = vcmp.ge.f32.partialorder %v638, 0.0
        %vm869 = vcmp.ge.f32.partialorder %v643, 0.0
        %vm870 = vcmp.ge.f32.partialorder %v646, 0.0
        %vm871 = vcmp.ge.f32.partialorder %v651, 0.0
        %vm872 = vcmp.ge.f32.partialorder %v654, 0.0
        %vm873 = vcmp.ge.f32.partialorder %v659, 0.0
        %vm874 = vcmp.ge.f32.partialorder %v662, 0.0
        %v875 = vmul.f32 %v539, 0.2
        %v876 = vmul.f32 %v542, 0.2
        %v877 = vmul.f32 %v547, 0.2
        %v878 = vmul.f32 %v550, 0.2
        %v879 = vmul.f32 %v555, 0.2
        %v880 = vmul.f32 %v558, 0.2
        %v881 = vmul.f32 %v563, 0.2
        %v882 = vmul.f32 %v566, 0.2
        %v883 = vmul.f32 %v571, 0.2
        %v884 = vmul.f32 %v574, 0.2
        %v885 = vmul.f32 %v579, 0.2
        %v886 = vmul.f32 %v582, 0.2
        %v887 = vmul.f32 %v587, 0.2
        %v888 = vmul.f32 %v590, 0.2
        %v889 = vmul.f32 %v595, 0.2
        %v890 = vmul.f32 %v598, 0.2
        %v891 = vmul.f32 %v603, 0.2
        %v892 = vmul.f32 %v606, 0.2
        %v893 = vmul.f32 %v611, 0.2
        %v894 = vmul.f32 %v614, 0.2
        %v895 = vmul.f32 %v619, 0.2
        %v896 = vmul.f32 %v622, 0.2
        %v897 = vmul.f32 %v627, 0.2
        %v898 = vmul.f32 %v630, 0.2
        %v899 = vmul.f32 %v635, 0.2
        %v900 = vmul.f32 %v638, 0.2
        %v901 = vmul.f32 %v643, 0.2
        %v902 = vmul.f32 %v646, 0.2
        %v903 = vmul.f32 %v651, 0.2
        %v904 = vmul.f32 %v654, 0.2
        %v905 = vmul.f32 %v659, 0.2
        %v906 = vmul.f32 %v662, 0.2
        %v907 = vsel %vm843, %v539, %v875
        %v908 = vsel %vm844, %v542, %v876
        %v909 = vsel %vm845, %v547, %v877
        %v910 = vsel %vm846, %v550, %v878
        %v911 = vsel %vm847, %v555, %v879
        %v912 = vsel %vm848, %v558, %v880
        %v913 = vsel %vm849, %v563, %v881
        %v914 = vsel %vm850, %v566, %v882
        %v915 = vsel %vm851, %v571, %v883
        %v916 = vsel %vm852, %v574, %v884
        %v917 = vsel %vm853, %v579, %v885
        %v918 = vsel %vm854, %v582, %v886
        %v919 = vsel %vm855, %v587, %v887
        %v920 = vsel %vm856, %v590, %v888
        %v921 = vsel %vm857, %v595, %v889
        %v922 = vsel %vm858, %v598, %v890
        %v923 = vsel %vm859, %v603, %v891
        %v924 = vsel %vm860, %v606, %v892
        %v925 = vsel %vm861, %v611, %v893
        %v926 = vsel %vm862, %v614, %v894
        %v927 = vsel %vm863, %v619, %v895
        %v928 = vsel %vm864, %v622, %v896
        %v929 = vsel %vm865, %v627, %v897
        %v930 = vsel %vm866, %v630, %v898
        %v931 = vsel %vm867, %v635, %v899
        %v932 = vsel %vm868, %v638, %v900
        %v933 = vsel %vm869, %v643, %v901
        %v934 = vsel %vm870, %v646, %v902
        %v935 = vsel %vm871, %v651, %v903
        %v936 = vsel %vm872, %v654, %v904
        %v937 = vsel %vm873, %v659, %v905
        %v938 = vsel %vm874, %v662, %v906
        %v939 = vpack.c.bf16 %v908, %v907
        %v940 = vpack.c.bf16 %v910, %v909
        %v941 = vpack.c.bf16 %v912, %v911
        %v942 = vpack.c.bf16 %v914, %v913
        %v943 = vpack.c.bf16 %v916, %v915
        %v944 = vpack.c.bf16 %v918, %v917
        %v945 = vpack.c.bf16 %v920, %v919
        %v946 = vpack.c.bf16 %v922, %v921
        %v947 = vpack.c.bf16 %v924, %v923
        %v948 = vpack.c.bf16 %v926, %v925
        %v949 = vpack.c.bf16 %v928, %v927
        %v950 = vpack.c.bf16 %v930, %v929
        %v951 = vpack.c.bf16 %v932, %v931
        %v952 = vpack.c.bf16 %v934, %v933
        %v953 = vpack.c.bf16 %v936, %v935
        %v954 = vpack.c.bf16 %v938, %v937
        %v971 = vunpack.c.l.b16 %v939
        %v972 = vunpack.c.h.b16 %v939
        %v973 = vunpack.c.l.b16 %v940
        %v974 = vunpack.c.h.b16 %v940
        %v975 = vunpack.c.l.b16 %v941
        %v976 = vunpack.c.h.b16 %v941
        %v977 = vunpack.c.l.b16 %v942
        %v978 = vunpack.c.h.b16 %v942
        %v979 = vunpack.c.l.b16 %v943
        %v980 = vunpack.c.h.b16 %v943
        %v981 = vunpack.c.l.b16 %v944
        %v982 = vunpack.c.h.b16 %v944
        %v983 = vunpack.c.l.b16 %v945
        %v984 = vunpack.c.h.b16 %v945
        %v985 = vunpack.c.l.b16 %v946
        %v986 = vunpack.c.h.b16 %v946
        %v987 = vunpack.c.l.b16 %v947
        %v988 = vunpack.c.h.b16 %v947
        %v989 = vunpack.c.l.b16 %v948
        %v990 = vunpack.c.h.b16 %v948
        %v991 = vunpack.c.l.b16 %v949
        %v992 = vunpack.c.h.b16 %v949
        %v993 = vunpack.c.l.b16 %v950
        %v994 = vunpack.c.h.b16 %v950
        %v995 = vunpack.c.l.b16 %v951
        %v996 = vunpack.c.h.b16 %v951
        %v997 = vunpack.c.l.b16 %v952
        %v998 = vunpack.c.h.b16 %v952
        %v999 = vunpack.c.l.b16 %v953
        %v1000 = vunpack.c.h.b16 %v953
        %v1001 = vunpack.c.l.b16 %v954
        %v1002 = vunpack.c.h.b16 %v954
        %v1003 = vpack.c.b16 %v971, %v971
        %v1004 = vpack.c.b16 %v972, %v972
        %v1005 = vpack.c.b16 %v973, %v973
        %v1006 = vpack.c.b16 %v974, %v974
        %v1007 = vpack.c.b16 %v975, %v975
        %v1008 = vpack.c.b16 %v976, %v976
        %v1009 = vpack.c.b16 %v977, %v977
        %v1010 = vpack.c.b16 %v978, %v978
        %v1011 = vpack.c.b16 %v979, %v979
        %v1012 = vpack.c.b16 %v980, %v980
        %v1013 = vpack.c.b16 %v981, %v981
        %v1014 = vpack.c.b16 %v982, %v982
        %v1015 = vpack.c.b16 %v983, %v983
        %v1016 = vpack.c.b16 %v984, %v984
        %v1017 = vpack.c.b16 %v985, %v985
        %v1018 = vpack.c.b16 %v986, %v986
        %v1019 = vpack.c.b16 %v987, %v987
        %v1020 = vpack.c.b16 %v988, %v988
        %v1021 = vpack.c.b16 %v989, %v989
        %v1022 = vpack.c.b16 %v990, %v990
        %v1023 = vpack.c.b16 %v991, %v991
        %v1024 = vpack.c.b16 %v992, %v992
        %v1025 = vpack.c.b16 %v993, %v993
        %v1026 = vpack.c.b16 %v994, %v994
        %v1027 = vpack.c.b16 %v995, %v995
        %v1028 = vpack.c.b16 %v996, %v996
        %v1029 = vpack.c.b16 %v997, %v997
        %v1030 = vpack.c.b16 %v998, %v998
        %v1031 = vpack.c.b16 %v999, %v999
        %v1032 = vpack.c.b16 %v1000, %v1000
        %v1033 = vpack.c.b16 %v1001, %v1001
        %v1034 = vpack.c.b16 %v1002, %v1002
        %vm1067 = vcmask 60416
        %1068 = vst.msk [vmem:[%s301] sm:$0xf] %vm1067, %v1003
        %1069 = vst.msk [vmem:[%s301 + $0x4] sm:$0xf] %vm1067, %v1004
        %1070 = vst.msk [vmem:[%s301 + $0x8] sm:$0xf] %vm1067, %v1005
        %1071 = vst.msk [vmem:[%s301 + $0xc] sm:$0xf] %vm1067, %v1006
        %1072 = vst.msk [vmem:[%s301 + $0x10] sm:$0xf] %vm1067, %v1007
        %1073 = vst.msk [vmem:[%s301 + $0x14] sm:$0xf] %vm1067, %v1008
        %1074 = vst.msk [vmem:[%s301 + $0x18] sm:$0xf] %vm1067, %v1009
        %1075 = vst.msk [vmem:[%s301 + $0x1c] sm:$0xf] %vm1067, %v1010
        %1076 = vst.msk [vmem:[%s301 + $0x20] sm:$0xf] %vm1067, %v1011
        %1077 = vst.msk [vmem:[%s301 + $0x24] sm:$0xf] %vm1067, %v1012
        %1078 = vst.msk [vmem:[%s301 + $0x28] sm:$0xf] %vm1067, %v1013
        %1079 = vst.msk [vmem:[%s301 + $0x2c] sm:$0xf] %vm1067, %v1014
        %1080 = vst.msk [vmem:[%s301 + $0x30] sm:$0xf] %vm1067, %v1015
        %1081 = vst.msk [vmem:[%s301 + $0x34] sm:$0xf] %vm1067, %v1016
        %1082 = vst.msk [vmem:[%s301 + $0x38] sm:$0xf] %vm1067, %v1017
        %1083 = vst.msk [vmem:[%s301 + $0x3c] sm:$0xf] %vm1067, %v1018
        %1084 = vst.msk [vmem:[%s301 + $0x40] sm:$0xf] %vm1067, %v1019
        %1085 = vst.msk [vmem:[%s301 + $0x44] sm:$0xf] %vm1067, %v1020
        %1086 = vst.msk [vmem:[%s301 + $0x48] sm:$0xf] %vm1067, %v1021
        %1087 = vst.msk [vmem:[%s301 + $0x4c] sm:$0xf] %vm1067, %v1022
        %1088 = vst.msk [vmem:[%s301 + $0x50] sm:$0xf] %vm1067, %v1023
        %1089 = vst.msk [vmem:[%s301 + $0x54] sm:$0xf] %vm1067, %v1024
        %1090 = vst.msk [vmem:[%s301 + $0x58] sm:$0xf] %vm1067, %v1025
        %1091 = vst.msk [vmem:[%s301 + $0x5c] sm:$0xf] %vm1067, %v1026
        %1092 = vst.msk [vmem:[%s301 + $0x60] sm:$0xf] %vm1067, %v1027
        %1093 = vst.msk [vmem:[%s301 + $0x64] sm:$0xf] %vm1067, %v1028
        %1094 = vst.msk [vmem:[%s301 + $0x68] sm:$0xf] %vm1067, %v1029
        %1095 = vst.msk [vmem:[%s301 + $0x6c] sm:$0xf] %vm1067, %v1030
        %1096 = vst.msk [vmem:[%s301 + $0x70] sm:$0xf] %vm1067, %v1031
        %1097 = vst.msk [vmem:[%s301 + $0x74] sm:$0xf] %vm1067, %v1032
        %1098 = vst.msk [vmem:[%s301 + $0x78] sm:$0xf] %vm1067, %v1033
        %1099 = vst.msk [vmem:[%s301 + $0x7c] sm:$0xf] %vm1067, %v1034
        %s1100 = smul.u32 16, %s25
        %p1101 = scmp.lt.s32.totalorder %s24, 1
        %s1102 = scalar_select %p1101, %s24, 1
        %p1103 = scmp.lt.s32.totalorder %s1100, 15
        %s1104 = scalar_select %p1103, %s1100, 15
        %p1105 = scmp.lt.s32.totalorder %s26, 0
        %s1106 = scalar_select %p1105, %s26, 0
        %s1107 = smul.addr %s1104, 2
        %s1108 = sadd.s32 %s1106, %s1107
        %s1109 = smul.addr %s1102, 32
        %s1110 = sadd.s32 %s1108, %s1109
        %s1111 = smul.addr %s1110, 4
        %s1112 = scalar_lea.vmem %s3, %s1111
        %s1113 = sand.u32 %s160, 1
        %s1114 = scalar_lea.sflag [#allocation3], %s1113
        %s1115 = sand.u32 %s160, 1
        %s1116 = smul.addr %s1115, 2
        %s1117 = scalar_lea.vmem [#allocation2], %s1116
        // Predicated region
        $region33: #{_lambda_.5} parent=31 // pred_check
          %p1118 = pneg %p140
        $region34: #{_lambda_.5} parent=31 // pred_check_branch
          %1120 = sbr.rel (%p1118) target = $region36
        $region35: #{_lambda_.5} parent=31 // pred_region
          %s1121 = smul.u32 16, %s25
        $region36: #{_lambda_.5} parent=31 // pred_fallthru
          _
        // Predicated region
        $region37: #{_lambda_.5} parent=31 // pred_check
          %p1122 = pneg %p170
        $region38: #{_lambda_.5} parent=31 // pred_check_branch
          %1124 = sbr.rel (%p1122) target = $region40
        $region39: #{_lambda_.5} parent=31 // pred_region
          %s1125 = sadd.s32 %s24, %s25
          %s1127 = ssub.s32 32, 32
          %1128 = vsyncadd %s1114, %s1127
          %s1129 = sadd.s32 %s26, %s1125
          %s1130 = smul.addr %s1129, 32
          %s1131 = scalar_lea.hbm %s4, %s1130
          %s1133 = sshll.u32 %s1117, 4
          %s1134 = int_to_ptr.vmem [resolvable:$true] %s1133
          %1136 = dma.vmem_to_hbm [thread:$0]  %s1134, 32, %s1131, %s1114
        $region40: #{_lambda_.5} parent=31 // pred_fallthru
          _
      $region32: #{_lambda_.5} parent=5 // pred_fallthru
        _
      %p1137 = scmp.le.s32.totalorder 2, %s14
      // Predicated region
      $region41: #{_lambda_.5} parent=5 // pred_check
        %p1138 = pneg %p1137
      $region42: #{_lambda_.5} parent=5 // pred_check_branch
        %1140 = sbr.rel (%p1138) target = $region44
      $region43: #{_lambda_.5} parent=5 // pred_region
        %s1141 = ssub.s32 %s14, 2
        // Predicated region
        $region45: #{_lambda_.5} parent=43 // pred_check
          %p1142 = pneg %p146
        $region46: #{_lambda_.5} parent=43 // pred_check_branch
          %1144 = sbr.rel (%p1142) target = $region48
        $region47: #{_lambda_.5} parent=43 // pred_region
          %s1145 = smul.u32 16, %s28
          %p1146 = scmp.lt.s32.totalorder %s27, 1
          %s1147 = scalar_select %p1146, %s27, 1
          %p1148 = scmp.lt.s32.totalorder %s1145, 15
          %s1149 = scalar_select %p1148, %s1145, 15
          %p1150 = scmp.lt.s32.totalorder %s29, 0
          %s1151 = scalar_select %p1150, %s29, 0
          %s1152 = smul.addr %s1149, 2
          %s1153 = sadd.s32 %s1151, %s1152
          %s1154 = smul.addr %s1147, 32
          %s1155 = sadd.s32 %s1153, %s1154
          %s1156 = smul.addr %s1155, 4
          %s1157 = scalar_lea.vmem %s3, %s1156
        $region48: #{_lambda_.5} parent=43 // pred_fallthru
          _
        // Predicated region
        $region49: #{_lambda_.5} parent=43 // pred_check
          %p1158 = pneg %p176
        $region50: #{_lambda_.5} parent=43 // pred_check_branch
          %1160 = sbr.rel (%p1158) target = $region52
        $region51: #{_lambda_.5} parent=43 // pred_region
          %s1161 = sand.u32 %s161, 1
          %s1162 = scalar_lea.sflag [#allocation3], %s1161
          %s1163 = sand.u32 %s161, 1
          %s1164 = smul.addr %s1163, 2
          %s1165 = scalar_lea.vmem [#allocation2], %s1164
          %1166 = dma.done %s1162, 32
        $region52: #{_lambda_.5} parent=43 // pred_fallthru
          _
      $region44: #{_lambda_.5} parent=5 // pred_fallthru
        _
    $region6: #{_lambda_.5} parent=1 // loop_footer
      %s18 = sadd.s32 1, %s14
    $region7: #{_lambda_.5} parent=1 // loop_footer_branch
      %13 = sbr.rel target = $region3
    $region8: #{_lambda_.5} parent=1 // loop_exit
      _
    %1167 = vsyncpa [#allocation3], 1
    %s1168 = scalar_lea.sflag [#allocation3], 1
    %1169 = vsyncpa %s1168, 1

// kernel: _lambda_.6
$region0: #{_lambda_.6}
  #allocation0 [shape = 'u32[]', space=smem, size = 0x4, offset = 0x4, fixed_abs, tag = 'smem constant byte address 0x4 - core index']
  #allocation1 [shape = 'u32[144,128]{1,0:T(1,128)}', space=vmem, size = 0x12000, scoped, tag = 'internal scratch']
  %s0 = inlined_call_operand.vmem [shape: bf16[2,8,16,128], index: 0, kind: input, shape index: {}]
  %s1 = inlined_call_operand.vmem [shape: bf16[128,16], index: 1, kind: input, shape index: {}]
  %s2 = inlined_call_operand.vmem [shape: f32[1,16], index: 2, kind: input, shape index: {}]
  %s3 = inlined_call_operand.vmem [shape: bf16[2,8,8,16], index: 3, kind: output, shape index: {0}]
  %s4 = inlined_call_operand.vmem [shape: f32[2,2,16], index: 4, kind: output, shape index: {1}]
  %5 = xla_tuple %s3, %s4
  %s6 = sld [smem:[#allocation0]]
  $region53: #{_lambda_.6} parent=0
    _
  %s8 = ssub.s32 1, %s6
  %s9 = scalar_select 0, %s8, %s6
  loop: start=0, step=1, limit=4
  $region2: #{_lambda_.6} parent=0 // loop_pre_header
    _
  $region3: #{_lambda_.6} parent=0 // loop_header
    %s11 = sphi 0, %s15
    %p12 = scmp.ge.s32.totalorder %s11, 4
    %s18 = sphi 0, %s37
    %s19 = sphi 0, %s33
    %s20 = sphi 0, %s29
    %s21 = sphi 0, %s18
    %s22 = sphi 0, %s19
    %s23 = sphi 0, %s20
    %s24 = sphi 0, %s21
    %s25 = sphi 0, %s22
    %s26 = sphi 0, %s23
    %s42 = sphi 0, %s44
    %s45 = sphi 0, %s42
    %s46 = sphi 0, %s45
    %s62 = sphi 0, %s46
    %s68 = sphi 0, %s70
    %s71 = sphi 0, %s68
    %s72 = sphi 0, %s71
    %s88 = sphi 0, %s72
    %s94 = sphi 0, %s96
    %s97 = sphi 0, %s94
    %s98 = sphi 0, %s97
    %s114 = sphi 0, %s98
    %s124 = sphi 0, %s126
    %s127 = sphi 0, %s124
    %s128 = sphi 0, %s127
    %s144 = sphi 0, %s128
    %s154 = sphi 0, %s156
    %s157 = sphi 0, %s154
    %s158 = sphi 0, %s157
    %s174 = sphi 0, %s158
  $region4: #{_lambda_.6} parent=0 // loop_header_branch
    %14 = sbr.rel (%p12) target = $region8
  $region5: #{_lambda_.6} parent=0 // loop_body
    %s16 = ssub.s32 %s11, 1
    %s17 = ssub.s32 %s11, 2
    %s27 = sadd.s32 1, %s20
    %p28 = scmp.ge.s32.totalorder %s27, 1
    %s29 = scalar_select %p28, 0, %s27
    %s30 = sadd.s32 1, %s19
    %s31 = scalar_select %p28, %s30, %s19
    %p32 = scmp.ge.s32.totalorder %s31, 1
    %s33 = scalar_select %p32, 0, %s31
    %s34 = sadd.s32 1, %s18
    %s35 = scalar_select %p32, %s34, %s18
    %p36 = scmp.ge.s32.totalorder %s35, 2
    %s37 = scalar_select %p36, 0, %s35
    %s38 = ssub.s32 %s18, %s37
    %s39 = ssub.s32 %s19, %s33
    %s40 = sor.u32 %s38, %s39
    %p41 = scmp.eq.s32.totalorder %s40, 0
    %s43 = sadd.s32 %s42, 1
    %s44 = scalar_select %p41, %s42, %s43
    %p47 = pneg %p41
    %p48 = scmp.eq.s32.totalorder %s11, 1
    %p49 = por %p47, %p48
    %p50 = scmp.ne.s32.totalorder %s42, %s45
    %p51 = scmp.eq.s32.totalorder %s11, 0
    %p52 = por %p50, %p51
    %p53 = scmp.ne.s32.totalorder %s42, %s45
    %p54 = scmp.eq.s32.totalorder %s16, 1
    %p55 = por %p53, %p54
    %p56 = scmp.ne.s32.totalorder %s45, %s46
    %p57 = scmp.eq.s32.totalorder %s16, 0
    %p58 = por %p56, %p57
    %p59 = scmp.ne.s32.totalorder %s45, %s46
    %p60 = scmp.eq.s32.totalorder %s17, 1
    %p61 = por %p59, %p60
    %p63 = scmp.ne.s32.totalorder %s46, %s62
    %p64 = scmp.eq.s32.totalorder %s17, 0
    %p65 = por %p63, %p64
    %s66 = ssub.s32 %s20, %s29
    %p67 = scmp.eq.s32.totalorder %s66, 0
    %s69 = sadd.s32 %s68, 1
    %s70 = scalar_select %p67, %s68, %s69
    %p73 = pneg %p67
    %p74 = scmp.eq.s32.totalorder %s11, 1
    %p75 = por %p73, %p74
    %p76 = scmp.ne.s32.totalorder %s68, %s71
    %p77 = scmp.eq.s32.totalorder %s11, 0
    %p78 = por %p76, %p77
    %p79 = scmp.ne.s32.totalorder %s68, %s71
    %p80 = scmp.eq.s32.totalorder %s16, 1
    %p81 = por %p79, %p80
    %p82 = scmp.ne.s32.totalorder %s71, %s72
    %p83 = scmp.eq.s32.totalorder %s16, 0
    %p84 = por %p82, %p83
    %p85 = scmp.ne.s32.totalorder %s71, %s72
    %p86 = scmp.eq.s32.totalorder %s17, 1
    %p87 = por %p85, %p86
    %p89 = scmp.ne.s32.totalorder %s72, %s88
    %p90 = scmp.eq.s32.totalorder %s17, 0
    %p91 = por %p89, %p90
    %s92 = ssub.s32 %s20, %s29
    %p93 = scmp.eq.s32.totalorder %s92, 0
    %s95 = sadd.s32 %s94, 1
    %s96 = scalar_select %p93, %s94, %s95
    %p99 = pneg %p93
    %p100 = scmp.eq.s32.totalorder %s11, 1
    %p101 = por %p99, %p100
    %p102 = scmp.ne.s32.totalorder %s94, %s97
    %p103 = scmp.eq.s32.totalorder %s11, 0
    %p104 = por %p102, %p103
    %p105 = scmp.ne.s32.totalorder %s94, %s97
    %p106 = scmp.eq.s32.totalorder %s16, 1
    %p107 = por %p105, %p106
    %p108 = scmp.ne.s32.totalorder %s97, %s98
    %p109 = scmp.eq.s32.totalorder %s16, 0
    %p110 = por %p108, %p109
    %p111 = scmp.ne.s32.totalorder %s97, %s98
    %p112 = scmp.eq.s32.totalorder %s17, 1
    %p113 = por %p111, %p112
    %p115 = scmp.ne.s32.totalorder %s98, %s114
    %p116 = scmp.eq.s32.totalorder %s17, 0
    %p117 = por %p115, %p116
    %s118 = ssub.s32 %s18, %s37
    %s119 = ssub.s32 %s19, %s33
    %s120 = sor.u32 %s118, %s119
    %s121 = ssub.s32 %s20, %s29
    %s122 = sor.u32 %s120, %s121
    %p123 = scmp.eq.s32.totalorder %s122, 0
    %s125 = sadd.s32 %s124, 1
    %s126 = scalar_select %p123, %s124, %s125
    %p129 = pneg %p123
    %p130 = scmp.eq.s32.totalorder %s11, 1
    %p131 = por %p129, %p130
    %p132 = scmp.ne.s32.totalorder %s124, %s127
    %p133 = scmp.eq.s32.totalorder %s11, 0
    %p134 = por %p132, %p133
    %p135 = scmp.ne.s32.totalorder %s124, %s127
    %p136 = scmp.eq.s32.totalorder %s16, 1
    %p137 = por %p135, %p136
    %p138 = scmp.ne.s32.totalorder %s127, %s128
    %p139 = scmp.eq.s32.totalorder %s16, 0
    %p140 = por %p138, %p139
    %p141 = scmp.ne.s32.totalorder %s127, %s128
    %p142 = scmp.eq.s32.totalorder %s17, 1
    %p143 = por %p141, %p142
    %p145 = scmp.ne.s32.totalorder %s128, %s144
    %p146 = scmp.eq.s32.totalorder %s17, 0
    %p147 = por %p145, %p146
    %s148 = sadd.s32 %s18, %s19
    %s149 = sadd.s32 %s37, %s33
    %s150 = ssub.s32 %s148, %s149
    %s151 = ssub.s32 %s20, %s29
    %s152 = sor.u32 %s150, %s151
    %p153 = scmp.eq.s32.totalorder %s152, 0
    %s155 = sadd.s32 %s154, 1
    %s156 = scalar_select %p153, %s154, %s155
    %p159 = pneg %p153
    %p160 = scmp.eq.s32.totalorder %s11, 1
    %p161 = por %p159, %p160
    %p162 = scmp.ne.s32.totalorder %s154, %s157
    %p163 = scmp.eq.s32.totalorder %s11, 0
    %p164 = por %p162, %p163
    %p165 = scmp.ne.s32.totalorder %s154, %s157
    %p166 = scmp.eq.s32.totalorder %s16, 1
    %p167 = por %p165, %p166
    %p168 = scmp.ne.s32.totalorder %s157, %s158
    %p169 = scmp.eq.s32.totalorder %s16, 0
    %p170 = por %p168, %p169
    %p171 = scmp.ne.s32.totalorder %s157, %s158
    %p172 = scmp.eq.s32.totalorder %s17, 1
    %p173 = por %p171, %p172
    %p175 = scmp.ne.s32.totalorder %s158, %s174
    %p176 = scmp.eq.s32.totalorder %s17, 0
    %p177 = por %p175, %p176
    %p178 = scmp.le.s32.totalorder 1, %s11
    %p179 = scmp.lt.s32.totalorder %s11, 3
    %p180 = pnand %p178, %p179
    %p181 = pneg %p180
    // Predicated region
    $region9: #{_lambda_.6} parent=5 // pred_check
      _
    $region10: #{_lambda_.6} parent=5 // pred_check_branch
      %183 = sbr.rel (%p180) target = $region12
    $region11: #{_lambda_.6} parent=5 // pred_region
      %s184 = ssub.s32 %s11, 1
      // Predicated region
      $region13: #{_lambda_.6} parent=11 // pred_check
        %p185 = pneg %p84
      $region14: #{_lambda_.6} parent=11 // pred_check_branch
        %187 = sbr.rel (%p185) target = $region16
      $region15: #{_lambda_.6} parent=11 // pred_region
        %p188 = scmp.lt.s32.totalorder %s23, 0
        %s189 = scalar_select %p188, %s23, 0
        %s190 = smul.addr %s189, 4
        %s191 = scalar_lea.vmem %s1, %s190
      $region16: #{_lambda_.6} parent=11 // pred_fallthru
        _
      // Predicated region
      $region17: #{_lambda_.6} parent=11 // pred_check
        %p192 = pneg %p110
      $region18: #{_lambda_.6} parent=11 // pred_check_branch
        %194 = sbr.rel (%p192) target = $region20
      $region19: #{_lambda_.6} parent=11 // pred_region
        %p195 = scmp.lt.s32.totalorder %s23, 0
        %s196 = scalar_select %p195, %s23, 0
        %s197 = scalar_lea.vmem %s2, %s196
      $region20: #{_lambda_.6} parent=11 // pred_fallthru
        _
    $region12: #{_lambda_.6} parent=5 // pred_fallthru
      _
    %p198 = scmp.lt.s32.totalorder %s11, 2
    // Predicated region
    $region21: #{_lambda_.6} parent=5 // pred_check
      %p199 = pneg %p198
    $region22: #{_lambda_.6} parent=5 // pred_check_branch
      %201 = sbr.rel (%p199) target = $region24
    $region23: #{_lambda_.6} parent=5 // pred_region
      // Predicated region
      $region25: #{_lambda_.6} parent=23 // pred_check
        %p202 = pneg %p52
      $region26: #{_lambda_.6} parent=23 // pred_check_branch
        %204 = sbr.rel (%p202) target = $region28
      $region27: #{_lambda_.6} parent=23 // pred_region
        %s205 = smul.u32 8, %s19
        %p206 = scmp.lt.s32.totalorder %s18, 1
        %s207 = scalar_select %p206, %s18, 1
        %p208 = scmp.lt.s32.totalorder %s205, 7
        %s209 = scalar_select %p208, %s205, 7
        %s210 = smul.addr %s209, 2
        %s211 = smul.addr %s207, 16
        %s212 = sadd.s32 %s210, %s211
        %s213 = smul.addr %s212, 4
        %s214 = scalar_lea.vmem %s0, %s213
        %s215 = smul.u32 8, %s19
      $region28: #{_lambda_.6} parent=23 // pred_fallthru
        _
    $region24: #{_lambda_.6} parent=5 // pred_fallthru
      _
    %p216 = scmp.le.s32.totalorder 1, %s11
    %p217 = scmp.lt.s32.totalorder %s11, 3
    %p218 = pnand %p216, %p217
    %p219 = pneg %p218
    // Predicated region
    $region29: #{_lambda_.6} parent=5 // pred_check
      _
    $region30: #{_lambda_.6} parent=5 // pred_check_branch
      %221 = sbr.rel (%p218) target = $region32
    $region31: #{_lambda_.6} parent=5 // pred_region
      %s222 = ssub.s32 %s11, 1
      %s223 = smul.u32 8, %s22
      %p224 = scmp.lt.s32.totalorder %s21, 1
      %s225 = scalar_select %p224, %s21, 1
      %p226 = scmp.lt.s32.totalorder %s223, 7
      %s227 = scalar_select %p226, %s223, 7
      %s228 = smul.addr %s227, 2
      %s229 = smul.addr %s225, 16
      %s230 = sadd.s32 %s228, %s229
      %s231 = smul.addr %s230, 4
      %s232 = scalar_lea.vmem %s0, %s231
      %p233 = pneg %p58
      %p234 = pneg %p55
      %p235 = scmp.lt.s32.totalorder %s23, 0
      %s236 = scalar_select %p235, %s23, 0
      %s237 = smul.addr %s236, 4
      %s238 = scalar_lea.vmem %s1, %s237
      %p239 = pneg %p84
      %p240 = pneg %p81
      %p241 = scmp.lt.s32.totalorder %s23, 0
      %s242 = scalar_select %p241, %s23, 0
      %s243 = scalar_lea.vmem %s2, %s242
      %p244 = pneg %p110
      %p245 = pneg %p107
      %p246 = pneg %p140
      %p247 = pneg %p137
      %s248 = smul.u32 8, %s22
      %p249 = scmp.lt.s32.totalorder %s21, 1
      %s250 = scalar_select %p249, %s21, 1
      %p251 = scmp.lt.s32.totalorder %s248, 7
      %s252 = scalar_select %p251, %s248, 7
      %p253 = scmp.lt.s32.totalorder %s23, 0
      %s254 = scalar_select %p253, %s23, 0
      %s255 = sadd.s32 %s254, %s252
      %s256 = smul.addr %s250, 8
      %s257 = sadd.s32 %s255, %s256
      %s258 = smul.addr %s257, 4
      %s259 = scalar_lea.vmem %s3, %s258
      %p260 = pneg %p170
      %p261 = pneg %p167
      %s262 = sadd.s32 %s21, %s22
      %p263 = scmp.lt.s32.totalorder %s262, 1
      %s264 = scalar_select %p263, %s262, 1
      %p265 = scmp.lt.s32.totalorder %s23, 0
      %s266 = scalar_select %p265, %s23, 0
      %s267 = sadd.s32 %s266, %s264
      %s268 = smul.addr %s267, 2
      %s269 = scalar_lea.vmem %s4, %s268
      %s270 = smul.u32 8, %s22
      %p271 = scmp.lt.s32.totalorder %s21, 1
      %s272 = scalar_select %p271, %s21, 1
      %p273 = scmp.lt.s32.totalorder %s270, 7
      %s274 = scalar_select %p273, %s270, 7
      %s275 = smul.addr %s274, 2
      %s276 = smul.addr %s272, 16
      %s277 = sadd.s32 %s275, %s276
      %s278 = smul.addr %s277, 4
      %s279 = scalar_lea.vmem %s0, %s278
      %s280 = smul.u32 8, %s22
      %p281 = scmp.lt.s32.totalorder %s23, 0
      %s282 = scalar_select %p281, %s23, 0
      %s283 = smul.addr %s282, 4
      %s284 = scalar_lea.vmem %s1, %s283
      %p285 = scmp.lt.s32.totalorder %s23, 0
      %s286 = scalar_select %p285, %s23, 0
      %s287 = scalar_lea.vmem %s2, %s286
      %s288 = smul.u32 8, %s22
      %p289 = scmp.lt.s32.totalorder %s21, 1
      %s290 = scalar_select %p289, %s21, 1
      %p291 = scmp.lt.s32.totalorder %s288, 7
      %s292 = scalar_select %p291, %s288, 7
      %p293 = scmp.lt.s32.totalorder %s23, 0
      %s294 = scalar_select %p293, %s23, 0
      %s295 = sadd.s32 %s294, %s292
      %s296 = smul.addr %s290, 8
      %s297 = sadd.s32 %s295, %s296
      %s298 = smul.addr %s297, 4
      %s299 = scalar_lea.vmem %s3, %s298
      %s300 = smul.u32 8, %s22
      %s301 = sadd.s32 %s21, %s22
      %p302 = scmp.lt.s32.totalorder %s301, 1
      %s303 = scalar_select %p302, %s301, 1
      %p304 = scmp.lt.s32.totalorder %s23, 0
      %s305 = scalar_select %p304, %s23, 0
      %s306 = sadd.s32 %s305, %s303
      %s307 = smul.addr %s306, 2
      %s308 = scalar_lea.vmem %s4, %s307
      %s309 = sadd.s32 %s21, %s22
      %v311 = vld [vmem:[%s279] sm:$0xf]
      %v312 = vld [vmem:[%s279 + $0x4] sm:$0xf]
      %v313 = vld [vmem:[%s279 + $0x8] sm:$0xf]
      %v314 = vld [vmem:[%s279 + $0xc] sm:$0xf]
      %v315 = vld [vmem:[%s279 + $0x10] sm:$0xf]
      %v316 = vld [vmem:[%s279 + $0x14] sm:$0xf]
      %v317 = vld [vmem:[%s279 + $0x18] sm:$0xf]
      %v318 = vld [vmem:[%s279 + $0x1c] sm:$0xf]
      %v319 = vld [vmem:[%s279 + $0x20] sm:$0xf]
      %v320 = vld [vmem:[%s279 + $0x24] sm:$0xf]
      %v321 = vld [vmem:[%s279 + $0x28] sm:$0xf]
      %v322 = vld [vmem:[%s279 + $0x2c] sm:$0xf]
      %v323 = vld [vmem:[%s279 + $0x30] sm:$0xf]
      %v324 = vld [vmem:[%s279 + $0x34] sm:$0xf]
      %v325 = vld [vmem:[%s279 + $0x38] sm:$0xf]
      %v326 = vld [vmem:[%s279 + $0x3c] sm:$0xf]
      %v327 = vld [vmem:[%s284] sm:$0xf]
      %v328 = vld [vmem:[%s284 + $0x4] sm:$0xf]
      %v329 = vld [vmem:[%s284 + $0x8] sm:$0xf]
      %v330 = vld [vmem:[%s284 + $0xc] sm:$0xf]
      %v331 = vld [vmem:[%s284 + $0x10] sm:$0xf]
      %v332 = vld [vmem:[%s284 + $0x14] sm:$0xf]
      %v333 = vld [vmem:[%s284 + $0x18] sm:$0xf]
      %v334 = vld [vmem:[%s284 + $0x1c] sm:$0xf]
      %v335 = vld [vmem:[%s284 + $0x20] sm:$0xf]
      %v336 = vld [vmem:[%s284 + $0x24] sm:$0xf]
      %v337 = vld [vmem:[%s284 + $0x28] sm:$0xf]
      %v338 = vld [vmem:[%s284 + $0x2c] sm:$0xf]
      %v339 = vld [vmem:[%s284 + $0x30] sm:$0xf]
      %v340 = vld [vmem:[%s284 + $0x34] sm:$0xf]
      %v341 = vld [vmem:[%s284 + $0x38] sm:$0xf]
      %v342 = vld [vmem:[%s284 + $0x3c] sm:$0xf]
      %v343 = vld [vmem:[%s287] sm:$0x1]
      %v345 = vlaneseq
      %v346 = vshrl.u32 %v345, 7
      %v347 = vsub.s32 0, %v346
      %v348 = vrot.slane %v343, %v347
      %v366 = vunpack.c.l.b16 %v311
      %v367 = vunpack.c.l.b16 %v312
      %v368 = vunpack.c.l.b16 %v313
      %v369 = vunpack.c.l.b16 %v314
      %v370 = vunpack.c.l.b16 %v315
      %v371 = vunpack.c.l.b16 %v316
      %v372 = vunpack.c.l.b16 %v317
      %v373 = vunpack.c.l.b16 %v318
      %v374 = vunpack.c.l.b16 %v319
      %v375 = vunpack.c.l.b16 %v320
      %v376 = vunpack.c.l.b16 %v321
      %v377 = vunpack.c.l.b16 %v322
      %v378 = vunpack.c.l.b16 %v323
      %v379 = vunpack.c.l.b16 %v324
      %v380 = vunpack.c.l.b16 %v325
      %v381 = vunpack.c.l.b16 %v326
      %v382 = vpack.c.b16 %v367, %v366
      %v383 = vpack.c.b16 %v369, %v368
      %v384 = vpack.c.b16 %v371, %v370
      %v385 = vpack.c.b16 %v373, %v372
      %v386 = vpack.c.b16 %v375, %v374
      %v387 = vpack.c.b16 %v377, %v376
      %v388 = vpack.c.b16 %v379, %v378
      %v389 = vpack.c.b16 %v381, %v380
      %v414 = vunpack.c.l.b16 %v327
      %v415 = vunpack.c.l.b16 %v328
      %v416 = vunpack.c.l.b16 %v329
      %v417 = vunpack.c.l.b16 %v330
      %v418 = vunpack.c.l.b16 %v331
      %v419 = vunpack.c.l.b16 %v332
      %v420 = vunpack.c.l.b16 %v333
      %v421 = vunpack.c.l.b16 %v334
      %v422 = vunpack.c.l.b16 %v335
      %v423 = vunpack.c.l.b16 %v336
      %v424 = vunpack.c.l.b16 %v337
      %v425 = vunpack.c.l.b16 %v338
      %v426 = vunpack.c.l.b16 %v339
      %v427 = vunpack.c.l.b16 %v340
      %v428 = vunpack.c.l.b16 %v341
      %v429 = vunpack.c.l.b16 %v342
      %v430 = vpack.c.b16 %v415, %v414
      %v431 = vpack.c.b16 %v417, %v416
      %v432 = vpack.c.b16 %v419, %v418
      %v433 = vpack.c.b16 %v421, %v420
      %v434 = vpack.c.b16 %v423, %v422
      %v435 = vpack.c.b16 %v425, %v424
      %v436 = vpack.c.b16 %v427, %v426
      %v437 = vpack.c.b16 %v429, %v428
      %446 = vmatprep.subr.bf16.mxu0 0
      %447 = vmatpush1.bf16.msra.mxu0 %v437
      %448 = vmatprep.subr.bf16.mxu0 0
      %449 = vmatpush1.bf16.msra.mxu0 %v436
      %450 = vmatprep.subr.bf16.mxu0 0
      %451 = vmatpush1.bf16.msra.mxu0 %v435
      %452 = vmatprep.subr.bf16.mxu0 0
      %453 = vmatpush1.bf16.msra.mxu0 %v434
      %454 = vmatprep.subr.bf16.mxu0 0
      %455 = vmatpush1.bf16.msra.mxu0 %v433
      %456 = vmatprep.subr.bf16.mxu0 0
      %457 = vmatpush1.bf16.msra.mxu0 %v432
      %458 = vmatprep.subr.bf16.mxu0 0
      %459 = vmatpush1.bf16.msra.mxu0 %v431
      %460 = vmatprep.subr.bf16.mxu0 0
      %461 = vmatpush1.bf16.msra.mxu0 %v430
      %462 = vmatprep.subr.bf16.mxu0 0
      %463 = vmatpush2.bf16.msra.mxu0 0
      %464 = vmatprep.subr.bf16.mxu0 0
      %465 = vmatpush2.bf16.msra.mxu0 0
      %466 = vmatprep.subr.bf16.mxu0 0
      %467 = vmatpush2.bf16.msra.mxu0 0
      %468 = vmatprep.subr.bf16.mxu0 0
      %469 = vmatpush2.bf16.msra.mxu0 0
      %470 = vmatprep.subr.bf16.mxu0 0
      %471 = vmatpush2.bf16.msra.mxu0 0
      %472 = vmatprep.subr.bf16.mxu0 0
      %473 = vmatpush2.bf16.msra.mxu0 0
      %474 = vmatprep.subr.bf16.mxu0 0
      %475 = vmatpush2.bf16.msra.mxu0 0
      %476 = vmatprep.subr.bf16.mxu0 0
      %477 = vmatpush2.bf16.msra.mxu0 0
      %478 = vmatprep.mubr.bf16.mxu0 0
      %479 = vmatmul.mubr.bf16.gmra.mxu0 %v382
      %v480 = vpop.f32.mrf.mxu0
      %v481 = vadd.f32 %v348, %v480
      %v482 = vpop.f32.mrf.mxu0
      %v483 = vpop.f32.mrf.mxu0
      %v484 = vpop.f32.mrf.mxu0
      %485 = vmatprep.mubr.bf16.mxu0 0
      %486 = vmatmul.mubr.bf16.gmra.mxu0 %v383
      %v487 = vpop.f32.mrf.mxu0
      %v488 = vadd.f32 %v348, %v487
      %v489 = vpop.f32.mrf.mxu0
      %v490 = vpop.f32.mrf.mxu0
      %v491 = vpop.f32.mrf.mxu0
      %492 = vmatprep.mubr.bf16.mxu0 0
      %493 = vmatmul.mubr.bf16.gmra.mxu0 %v384
      %v494 = vpop.f32.mrf.mxu0
      %v495 = vadd.f32 %v348, %v494
      %v496 = vpop.f32.mrf.mxu0
      %v497 = vpop.f32.mrf.mxu0
      %v498 = vpop.f32.mrf.mxu0
      %499 = vmatprep.mubr.bf16.mxu0 0
      %500 = vmatmul.mubr.bf16.gmra.mxu0 %v385
      %v501 = vpop.f32.mrf.mxu0
      %v502 = vadd.f32 %v348, %v501
      %v503 = vpop.f32.mrf.mxu0
      %v504 = vpop.f32.mrf.mxu0
      %v505 = vpop.f32.mrf.mxu0
      %506 = vmatprep.mubr.bf16.mxu0 0
      %507 = vmatmul.mubr.bf16.gmra.mxu0 %v386
      %v508 = vpop.f32.mrf.mxu0
      %v509 = vadd.f32 %v348, %v508
      %v510 = vpop.f32.mrf.mxu0
      %v511 = vpop.f32.mrf.mxu0
      %v512 = vpop.f32.mrf.mxu0
      %513 = vmatprep.mubr.bf16.mxu0 0
      %514 = vmatmul.mubr.bf16.gmra.mxu0 %v387
      %v515 = vpop.f32.mrf.mxu0
      %v516 = vadd.f32 %v348, %v515
      %v517 = vpop.f32.mrf.mxu0
      %v518 = vpop.f32.mrf.mxu0
      %v519 = vpop.f32.mrf.mxu0
      %520 = vmatprep.mubr.bf16.mxu0 0
      %521 = vmatmul.mubr.bf16.gmra.mxu0 %v388
      %v522 = vpop.f32.mrf.mxu0
      %v523 = vadd.f32 %v348, %v522
      %v524 = vpop.f32.mrf.mxu0
      %v525 = vpop.f32.mrf.mxu0
      %v526 = vpop.f32.mrf.mxu0
      %527 = vmatprep.mubr.bf16.mxu0 0
      %528 = vmatmul.mubr.bf16.gmra.mxu0 %v389
      %v529 = vpop.f32.mrf.mxu0
      %v530 = vadd.f32 %v348, %v529
      %v531 = vpop.f32.mrf.mxu0
      %v532 = vpop.f32.mrf.mxu0
      %v533 = vpop.f32.mrf.mxu0
      %534 = vdwg.mxu0
      %vm535 = vcmask 130048
      %v536 = vsel %vm535, %v481, 0.0
      %v537 = vsel %vm535, %v488, 0.0
      %v538 = vadd.f32 %v536, %v537
      %v539 = vsel %vm535, %v495, 0.0
      %v540 = vadd.f32 %v538, %v539
      %v541 = vsel %vm535, %v502, 0.0
      %v542 = vadd.f32 %v540, %v541
      %v543 = vsel %vm535, %v509, 0.0
      %v544 = vadd.f32 %v542, %v543
      %v545 = vsel %vm535, %v516, 0.0
      %v546 = vadd.f32 %v544, %v545
      %v547 = vsel %vm535, %v523, 0.0
      %v548 = vadd.f32 %v546, %v547
      %v549 = vsel %vm535, %v530, 0.0
      %v550 = vadd.f32 %v548, %v549
      %v551 = vmul.f32 %v481, %v481
      %v552 = vmul.f32 %v488, %v488
      %v553 = vmul.f32 %v495, %v495
      %v554 = vmul.f32 %v502, %v502
      %v555 = vmul.f32 %v509, %v509
      %v556 = vmul.f32 %v516, %v516
      %v557 = vmul.f32 %v523, %v523
      %v558 = vmul.f32 %v530, %v530
      %v559 = vsel %vm535, %v551, 0.0
      %v560 = vsel %vm535, %v552, 0.0
      %v561 = vadd.f32 %v559, %v560
      %v562 = vsel %vm535, %v553, 0.0
      %v563 = vadd.f32 %v561, %v562
      %v564 = vsel %vm535, %v554, 0.0
      %v565 = vadd.f32 %v563, %v564
      %v566 = vsel %vm535, %v555, 0.0
      %v567 = vadd.f32 %v565, %v566
      %v568 = vsel %vm535, %v556, 0.0
      %v569 = vadd.f32 %v567, %v568
      %v570 = vsel %vm535, %v557, 0.0
      %v571 = vadd.f32 %v569, %v570
      %v572 = vsel %vm535, %v558, 0.0
      %v573 = vadd.f32 %v571, %v572
      %v574 = vsel %vm535, %v550, 0.0
      %v575 = vrot.slane %v574, 4
      %v576 = vadd.f32 %v574, %v575
      %v577 = vrot.slane %v576, 2
      %v578 = vadd.f32 %v576, %v577
      %v579 = vrot.slane %v578, 1
      %v580 = vadd.f32 %v578, %v579
      %vm581 = vcmask 122880
      %582 = vst.msk [vmem:[%s308] sm:$0x1] %vm581, %v580
      %v583 = vsel %vm535, %v573, 0.0
      %v584 = vrot.slane %v583, 4
      %v585 = vadd.f32 %v583, %v584
      %v586 = vrot.slane %v585, 2
      %v587 = vadd.f32 %v585, %v586
      %v588 = vrot.slane %v587, 1
      %v589 = vadd.f32 %v587, %v588
      %590 = vst.msk [vmem:[%s308 + $0x1] sm:$0x1] %vm581, %v589
      %v591 = vpack.c.bf16 %v481, %v481
      %v592 = vpack.c.bf16 %v488, %v488
      %v593 = vpack.c.bf16 %v495, %v495
      %v594 = vpack.c.bf16 %v502, %v502
      %v595 = vpack.c.bf16 %v509, %v509
      %v596 = vpack.c.bf16 %v516, %v516
      %v597 = vpack.c.bf16 %v523, %v523
      %v598 = vpack.c.bf16 %v530, %v530
      %vm599 = vcmask 125952
      %600 = vst.msk [vmem:[%s299] sm:$0xf] %vm599, %v591
      %601 = vst.msk [vmem:[%s299 + $0x4] sm:$0xf] %vm599, %v592
      %602 = vst.msk [vmem:[%s299 + $0x8] sm:$0xf] %vm599, %v593
      %603 = vst.msk [vmem:[%s299 + $0xc] sm:$0xf] %vm599, %v594
      %604 = vst.msk [vmem:[%s299 + $0x10] sm:$0xf] %vm599, %v595
      %605 = vst.msk [vmem:[%s299 + $0x14] sm:$0xf] %vm599, %v596
      %606 = vst.msk [vmem:[%s299 + $0x18] sm:$0xf] %vm599, %v597
      %607 = vst.msk [vmem:[%s299 + $0x1c] sm:$0xf] %vm599, %v598
      %s608 = smul.u32 8, %s22
      %p609 = scmp.lt.s32.totalorder %s21, 1
      %s610 = scalar_select %p609, %s21, 1
      %p611 = scmp.lt.s32.totalorder %s608, 7
      %s612 = scalar_select %p611, %s608, 7
      %p613 = scmp.lt.s32.totalorder %s23, 0
      %s614 = scalar_select %p613, %s23, 0
      %s615 = sadd.s32 %s614, %s612
      %s616 = smul.addr %s610, 8
      %s617 = sadd.s32 %s615, %s616
      %s618 = smul.addr %s617, 4
      %s619 = scalar_lea.vmem %s3, %s618
      %s620 = sadd.s32 %s21, %s22
      %p621 = scmp.lt.s32.totalorder %s620, 1
      %s622 = scalar_select %p621, %s620, 1
      %p623 = scmp.lt.s32.totalorder %s23, 0
      %s624 = scalar_select %p623, %s23, 0
      %s625 = sadd.s32 %s624, %s622
      %s626 = smul.addr %s625, 2
      %s627 = scalar_lea.vmem %s4, %s626
      // Predicated region
      $region33: #{_lambda_.6} parent=31 // pred_check
        %p628 = pneg %p137
      $region34: #{_lambda_.6} parent=31 // pred_check_branch
        %630 = sbr.rel (%p628) target = $region36
      $region35: #{_lambda_.6} parent=31 // pred_region
        %s631 = smul.u32 8, %s22
      $region36: #{_lambda_.6} parent=31 // pred_fallthru
        _
      // Predicated region
      $region37: #{_lambda_.6} parent=31 // pred_check
        %p632 = pneg %p167
      $region38: #{_lambda_.6} parent=31 // pred_check_branch
        %634 = sbr.rel (%p632) target = $region40
      $region39: #{_lambda_.6} parent=31 // pred_region
        %s635 = sadd.s32 %s21, %s22
      $region40: #{_lambda_.6} parent=31 // pred_fallthru
        _
    $region32: #{_lambda_.6} parent=5 // pred_fallthru
      _
    %p636 = scmp.le.s32.totalorder 2, %s11
    // Predicated region
    $region41: #{_lambda_.6} parent=5 // pred_check
      %p637 = pneg %p636
    $region42: #{_lambda_.6} parent=5 // pred_check_branch
      %639 = sbr.rel (%p637) target = $region44
    $region43: #{_lambda_.6} parent=5 // pred_region
      %s640 = ssub.s32 %s11, 2
      // Predicated region
      $region45: #{_lambda_.6} parent=43 // pred_check
        %p641 = pneg %p143
      $region46: #{_lambda_.6} parent=43 // pred_check_branch
        %643 = sbr.rel (%p641) target = $region48
      $region47: #{_lambda_.6} parent=43 // pred_region
        %s644 = smul.u32 8, %s25
        %p645 = scmp.lt.s32.totalorder %s24, 1
        %s646 = scalar_select %p645, %s24, 1
        %p647 = scmp.lt.s32.totalorder %s644, 7
        %s648 = scalar_select %p647, %s644, 7
        %p649 = scmp.lt.s32.totalorder %s26, 0
        %s650 = scalar_select %p649, %s26, 0
        %s651 = sadd.s32 %s650, %s648
        %s652 = smul.addr %s646, 8
        %s653 = sadd.s32 %s651, %s652
        %s654 = smul.addr %s653, 4
        %s655 = scalar_lea.vmem %s3, %s654
      $region48: #{_lambda_.6} parent=43 // pred_fallthru
        _
      // Predicated region
      $region49: #{_lambda_.6} parent=43 // pred_check
        %p656 = pneg %p173
      $region50: #{_lambda_.6} parent=43 // pred_check_branch
        %658 = sbr.rel (%p656) target = $region52
      $region51: #{_lambda_.6} parent=43 // pred_region
        %s659 = sadd.s32 %s24, %s25
        %p660 = scmp.lt.s32.totalorder %s659, 1
        %s661 = scalar_select %p660, %s659, 1
        %p662 = scmp.lt.s32.totalorder %s26, 0
        %s663 = scalar_select %p662, %s26, 0
        %s664 = sadd.s32 %s663, %s661
        %s665 = smul.addr %s664, 2
        %s666 = scalar_lea.vmem %s4, %s665
      $region52: #{_lambda_.6} parent=43 // pred_fallthru
        _
    $region44: #{_lambda_.6} parent=5 // pred_fallthru
      _
  $region6: #{_lambda_.6} parent=0 // loop_footer
    %s15 = sadd.s32 1, %s11
  $region7: #{_lambda_.6} parent=0 // loop_footer_branch
    %10 = sbr.rel target = $region3
  $region8: #{_lambda_.6} parent=0 // loop_exit
    _

// kernel: _lambda_.7
$region0: #{_lambda_.7}
  #allocation0 [shape = 'u32[]', space=smem, size = 0x4, offset = 0x4, fixed_abs, tag = 'smem constant byte address 0x4 - core index']
  #allocation1 [shape = 'u32[144,128]{1,0:T(1,128)}', space=vmem, size = 0x12000, scoped, tag = 'internal scratch']
  %s0 = inlined_call_operand.vmem [shape: bf16[2,4,16,256], index: 0, kind: input, shape index: {}]
  %s1 = inlined_call_operand.vmem [shape: bf16[256,32], index: 1, kind: input, shape index: {}]
  %s2 = inlined_call_operand.vmem [shape: f32[1,32], index: 2, kind: input, shape index: {}]
  %s3 = inlined_call_operand.vmem [shape: bf16[2,4,4,32], index: 3, kind: output, shape index: {0}]
  %s4 = inlined_call_operand.vmem [shape: f32[2,2,32], index: 4, kind: output, shape index: {1}]
  %5 = xla_tuple %s3, %s4
  %s6 = sld [smem:[#allocation0]]
  $region53: #{_lambda_.7} parent=0
    _
  %s8 = ssub.s32 1, %s6
  %s9 = scalar_select 0, %s8, %s6
  loop: start=0, step=1, limit=4
  $region2: #{_lambda_.7} parent=0 // loop_pre_header
    _
  $region3: #{_lambda_.7} parent=0 // loop_header
    %s11 = sphi 0, %s15
    %p12 = scmp.ge.s32.totalorder %s11, 4
    %s18 = sphi 0, %s37
    %s19 = sphi 0, %s33
    %s20 = sphi 0, %s29
    %s21 = sphi 0, %s18
    %s22 = sphi 0, %s19
    %s23 = sphi 0, %s20
    %s24 = sphi 0, %s21
    %s25 = sphi 0, %s22
    %s26 = sphi 0, %s23
    %s42 = sphi 0, %s44
    %s45 = sphi 0, %s42
    %s46 = sphi 0, %s45
    %s62 = sphi 0, %s46
    %s68 = sphi 0, %s70
    %s71 = sphi 0, %s68
    %s72 = sphi 0, %s71
    %s88 = sphi 0, %s72
    %s94 = sphi 0, %s96
    %s97 = sphi 0, %s94
    %s98 = sphi 0, %s97
    %s114 = sphi 0, %s98
    %s124 = sphi 0, %s126
    %s127 = sphi 0, %s124
    %s128 = sphi 0, %s127
    %s144 = sphi 0, %s128
    %s154 = sphi 0, %s156
    %s157 = sphi 0, %s154
    %s158 = sphi 0, %s157
    %s174 = sphi 0, %s158
  $region4: #{_lambda_.7} parent=0 // loop_header_branch
    %14 = sbr.rel (%p12) target = $region8
  $region5: #{_lambda_.7} parent=0 // loop_body
    %s16 = ssub.s32 %s11, 1
    %s17 = ssub.s32 %s11, 2
    %s27 = sadd.s32 1, %s20
    %p28 = scmp.ge.s32.totalorder %s27, 1
    %s29 = scalar_select %p28, 0, %s27
    %s30 = sadd.s32 1, %s19
    %s31 = scalar_select %p28, %s30, %s19
    %p32 = scmp.ge.s32.totalorder %s31, 1
    %s33 = scalar_select %p32, 0, %s31
    %s34 = sadd.s32 1, %s18
    %s35 = scalar_select %p32, %s34, %s18
    %p36 = scmp.ge.s32.totalorder %s35, 2
    %s37 = scalar_select %p36, 0, %s35
    %s38 = ssub.s32 %s18, %s37
    %s39 = ssub.s32 %s19, %s33
    %s40 = sor.u32 %s38, %s39
    %p41 = scmp.eq.s32.totalorder %s40, 0
    %s43 = sadd.s32 %s42, 1
    %s44 = scalar_select %p41, %s42, %s43
    %p47 = pneg %p41
    %p48 = scmp.eq.s32.totalorder %s11, 1
    %p49 = por %p47, %p48
    %p50 = scmp.ne.s32.totalorder %s42, %s45
    %p51 = scmp.eq.s32.totalorder %s11, 0
    %p52 = por %p50, %p51
    %p53 = scmp.ne.s32.totalorder %s42, %s45
    %p54 = scmp.eq.s32.totalorder %s16, 1
    %p55 = por %p53, %p54
    %p56 = scmp.ne.s32.totalorder %s45, %s46
    %p57 = scmp.eq.s32.totalorder %s16, 0
    %p58 = por %p56, %p57
    %p59 = scmp.ne.s32.totalorder %s45, %s46
    %p60 = scmp.eq.s32.totalorder %s17, 1
    %p61 = por %p59, %p60
    %p63 = scmp.ne.s32.totalorder %s46, %s62
    %p64 = scmp.eq.s32.totalorder %s17, 0
    %p65 = por %p63, %p64
    %s66 = ssub.s32 %s20, %s29
    %p67 = scmp.eq.s32.totalorder %s66, 0
    %s69 = sadd.s32 %s68, 1
    %s70 = scalar_select %p67, %s68, %s69
    %p73 = pneg %p67
    %p74 = scmp.eq.s32.totalorder %s11, 1
    %p75 = por %p73, %p74
    %p76 = scmp.ne.s32.totalorder %s68, %s71
    %p77 = scmp.eq.s32.totalorder %s11, 0
    %p78 = por %p76, %p77
    %p79 = scmp.ne.s32.totalorder %s68, %s71
    %p80 = scmp.eq.s32.totalorder %s16, 1
    %p81 = por %p79, %p80
    %p82 = scmp.ne.s32.totalorder %s71, %s72
    %p83 = scmp.eq.s32.totalorder %s16, 0
    %p84 = por %p82, %p83
    %p85 = scmp.ne.s32.totalorder %s71, %s72
    %p86 = scmp.eq.s32.totalorder %s17, 1
    %p87 = por %p85, %p86
    %p89 = scmp.ne.s32.totalorder %s72, %s88
    %p90 = scmp.eq.s32.totalorder %s17, 0
    %p91 = por %p89, %p90
    %s92 = ssub.s32 %s20, %s29
    %p93 = scmp.eq.s32.totalorder %s92, 0
    %s95 = sadd.s32 %s94, 1
    %s96 = scalar_select %p93, %s94, %s95
    %p99 = pneg %p93
    %p100 = scmp.eq.s32.totalorder %s11, 1
    %p101 = por %p99, %p100
    %p102 = scmp.ne.s32.totalorder %s94, %s97
    %p103 = scmp.eq.s32.totalorder %s11, 0
    %p104 = por %p102, %p103
    %p105 = scmp.ne.s32.totalorder %s94, %s97
    %p106 = scmp.eq.s32.totalorder %s16, 1
    %p107 = por %p105, %p106
    %p108 = scmp.ne.s32.totalorder %s97, %s98
    %p109 = scmp.eq.s32.totalorder %s16, 0
    %p110 = por %p108, %p109
    %p111 = scmp.ne.s32.totalorder %s97, %s98
    %p112 = scmp.eq.s32.totalorder %s17, 1
    %p113 = por %p111, %p112
    %p115 = scmp.ne.s32.totalorder %s98, %s114
    %p116 = scmp.eq.s32.totalorder %s17, 0
    %p117 = por %p115, %p116
    %s118 = ssub.s32 %s18, %s37
    %s119 = ssub.s32 %s19, %s33
    %s120 = sor.u32 %s118, %s119
    %s121 = ssub.s32 %s20, %s29
    %s122 = sor.u32 %s120, %s121
    %p123 = scmp.eq.s32.totalorder %s122, 0
    %s125 = sadd.s32 %s124, 1
    %s126 = scalar_select %p123, %s124, %s125
    %p129 = pneg %p123
    %p130 = scmp.eq.s32.totalorder %s11, 1
    %p131 = por %p129, %p130
    %p132 = scmp.ne.s32.totalorder %s124, %s127
    %p133 = scmp.eq.s32.totalorder %s11, 0
    %p134 = por %p132, %p133
    %p135 = scmp.ne.s32.totalorder %s124, %s127
    %p136 = scmp.eq.s32.totalorder %s16, 1
    %p137 = por %p135, %p136
    %p138 = scmp.ne.s32.totalorder %s127, %s128
    %p139 = scmp.eq.s32.totalorder %s16, 0
    %p140 = por %p138, %p139
    %p141 = scmp.ne.s32.totalorder %s127, %s128
    %p142 = scmp.eq.s32.totalorder %s17, 1
    %p143 = por %p141, %p142
    %p145 = scmp.ne.s32.totalorder %s128, %s144
    %p146 = scmp.eq.s32.totalorder %s17, 0
    %p147 = por %p145, %p146
    %s148 = sadd.s32 %s18, %s19
    %s149 = sadd.s32 %s37, %s33
    %s150 = ssub.s32 %s148, %s149
    %s151 = ssub.s32 %s20, %s29
    %s152 = sor.u32 %s150, %s151
    %p153 = scmp.eq.s32.totalorder %s152, 0
    %s155 = sadd.s32 %s154, 1
    %s156 = scalar_select %p153, %s154, %s155
    %p159 = pneg %p153
    %p160 = scmp.eq.s32.totalorder %s11, 1
    %p161 = por %p159, %p160
    %p162 = scmp.ne.s32.totalorder %s154, %s157
    %p163 = scmp.eq.s32.totalorder %s11, 0
    %p164 = por %p162, %p163
    %p165 = scmp.ne.s32.totalorder %s154, %s157
    %p166 = scmp.eq.s32.totalorder %s16, 1
    %p167 = por %p165, %p166
    %p168 = scmp.ne.s32.totalorder %s157, %s158
    %p169 = scmp.eq.s32.totalorder %s16, 0
    %p170 = por %p168, %p169
    %p171 = scmp.ne.s32.totalorder %s157, %s158
    %p172 = scmp.eq.s32.totalorder %s17, 1
    %p173 = por %p171, %p172
    %p175 = scmp.ne.s32.totalorder %s158, %s174
    %p176 = scmp.eq.s32.totalorder %s17, 0
    %p177 = por %p175, %p176
    %p178 = scmp.le.s32.totalorder 1, %s11
    %p179 = scmp.lt.s32.totalorder %s11, 3
    %p180 = pnand %p178, %p179
    %p181 = pneg %p180
    // Predicated region
    $region9: #{_lambda_.7} parent=5 // pred_check
      _
    $region10: #{_lambda_.7} parent=5 // pred_check_branch
      %183 = sbr.rel (%p180) target = $region12
    $region11: #{_lambda_.7} parent=5 // pred_region
      %s184 = ssub.s32 %s11, 1
      // Predicated region
      $region13: #{_lambda_.7} parent=11 // pred_check
        %p185 = pneg %p84
      $region14: #{_lambda_.7} parent=11 // pred_check_branch
        %187 = sbr.rel (%p185) target = $region16
      $region15: #{_lambda_.7} parent=11 // pred_region
        %p188 = scmp.lt.s32.totalorder %s23, 0
        %s189 = scalar_select %p188, %s23, 0
        %s190 = smul.addr %s189, 4
        %s191 = scalar_lea.vmem %s1, %s190
      $region16: #{_lambda_.7} parent=11 // pred_fallthru
        _
      // Predicated region
      $region17: #{_lambda_.7} parent=11 // pred_check
        %p192 = pneg %p110
      $region18: #{_lambda_.7} parent=11 // pred_check_branch
        %194 = sbr.rel (%p192) target = $region20
      $region19: #{_lambda_.7} parent=11 // pred_region
        %p195 = scmp.lt.s32.totalorder %s23, 0
        %s196 = scalar_select %p195, %s23, 0
        %s197 = scalar_lea.vmem %s2, %s196
      $region20: #{_lambda_.7} parent=11 // pred_fallthru
        _
    $region12: #{_lambda_.7} parent=5 // pred_fallthru
      _
    %p198 = scmp.lt.s32.totalorder %s11, 2
    // Predicated region
    $region21: #{_lambda_.7} parent=5 // pred_check
      %p199 = pneg %p198
    $region22: #{_lambda_.7} parent=5 // pred_check_branch
      %201 = sbr.rel (%p199) target = $region24
    $region23: #{_lambda_.7} parent=5 // pred_region
      // Predicated region
      $region25: #{_lambda_.7} parent=23 // pred_check
        %p202 = pneg %p52
      $region26: #{_lambda_.7} parent=23 // pred_check_branch
        %204 = sbr.rel (%p202) target = $region28
      $region27: #{_lambda_.7} parent=23 // pred_region
        %s205 = smul.u32 4, %s19
        %p206 = scmp.lt.s32.totalorder %s18, 1
        %s207 = scalar_select %p206, %s18, 1
        %p208 = scmp.lt.s32.totalorder %s205, 3
        %s209 = scalar_select %p208, %s205, 3
        %s210 = smul.addr %s209, 4
        %s211 = smul.addr %s207, 16
        %s212 = sadd.s32 %s210, %s211
        %s213 = smul.addr %s212, 4
        %s214 = scalar_lea.vmem %s0, %s213
        %s215 = smul.u32 4, %s19
      $region28: #{_lambda_.7} parent=23 // pred_fallthru
        _
    $region24: #{_lambda_.7} parent=5 // pred_fallthru
      _
    %p216 = scmp.le.s32.totalorder 1, %s11
    %p217 = scmp.lt.s32.totalorder %s11, 3
    %p218 = pnand %p216, %p217
    %p219 = pneg %p218
    // Predicated region
    $region29: #{_lambda_.7} parent=5 // pred_check
      _
    $region30: #{_lambda_.7} parent=5 // pred_check_branch
      %221 = sbr.rel (%p218) target = $region32
    $region31: #{_lambda_.7} parent=5 // pred_region
      %s222 = ssub.s32 %s11, 1
      %s223 = smul.u32 4, %s22
      %p224 = scmp.lt.s32.totalorder %s21, 1
      %s225 = scalar_select %p224, %s21, 1
      %p226 = scmp.lt.s32.totalorder %s223, 3
      %s227 = scalar_select %p226, %s223, 3
      %s228 = smul.addr %s227, 4
      %s229 = smul.addr %s225, 16
      %s230 = sadd.s32 %s228, %s229
      %s231 = smul.addr %s230, 4
      %s232 = scalar_lea.vmem %s0, %s231
      %p233 = pneg %p58
      %p234 = pneg %p55
      %p235 = scmp.lt.s32.totalorder %s23, 0
      %s236 = scalar_select %p235, %s23, 0
      %s237 = smul.addr %s236, 4
      %s238 = scalar_lea.vmem %s1, %s237
      %p239 = pneg %p84
      %p240 = pneg %p81
      %p241 = scmp.lt.s32.totalorder %s23, 0
      %s242 = scalar_select %p241, %s23, 0
      %s243 = scalar_lea.vmem %s2, %s242
      %p244 = pneg %p110
      %p245 = pneg %p107
      %p246 = pneg %p140
      %p247 = pneg %p137
      %s248 = smul.u32 4, %s22
      %p249 = scmp.lt.s32.totalorder %s21, 1
      %s250 = scalar_select %p249, %s21, 1
      %p251 = scmp.lt.s32.totalorder %s248, 3
      %s252 = scalar_select %p251, %s248, 3
      %p253 = scmp.lt.s32.totalorder %s23, 0
      %s254 = scalar_select %p253, %s23, 0
      %s255 = sadd.s32 %s254, %s252
      %s256 = smul.addr %s250, 4
      %s257 = sadd.s32 %s255, %s256
      %s258 = smul.addr %s257, 2
      %s259 = scalar_lea.vmem %s3, %s258
      %p260 = pneg %p170
      %p261 = pneg %p167
      %s262 = sadd.s32 %s21, %s22
      %p263 = scmp.lt.s32.totalorder %s262, 1
      %s264 = scalar_select %p263, %s262, 1
      %p265 = scmp.lt.s32.totalorder %s23, 0
      %s266 = scalar_select %p265, %s23, 0
      %s267 = sadd.s32 %s266, %s264
      %s268 = smul.addr %s267, 2
      %s269 = scalar_lea.vmem %s4, %s268
      %s270 = smul.u32 4, %s22
      %p271 = scmp.lt.s32.totalorder %s21, 1
      %s272 = scalar_select %p271, %s21, 1
      %p273 = scmp.lt.s32.totalorder %s270, 3
      %s274 = scalar_select %p273, %s270, 3
      %s275 = smul.addr %s274, 4
      %s276 = smul.addr %s272, 16
      %s277 = sadd.s32 %s275, %s276
      %s278 = smul.addr %s277, 4
      %s279 = scalar_lea.vmem %s0, %s278
      %s280 = smul.u32 4, %s22
      %p281 = scmp.lt.s32.totalorder %s23, 0
      %s282 = scalar_select %p281, %s23, 0
      %s283 = smul.addr %s282, 4
      %s284 = scalar_lea.vmem %s1, %s283
      %p285 = scmp.lt.s32.totalorder %s23, 0
      %s286 = scalar_select %p285, %s23, 0
      %s287 = scalar_lea.vmem %s2, %s286
      %s288 = smul.u32 4, %s22
      %p289 = scmp.lt.s32.totalorder %s21, 1
      %s290 = scalar_select %p289, %s21, 1
      %p291 = scmp.lt.s32.totalorder %s288, 3
      %s292 = scalar_select %p291, %s288, 3
      %p293 = scmp.lt.s32.totalorder %s23, 0
      %s294 = scalar_select %p293, %s23, 0
      %s295 = sadd.s32 %s294, %s292
      %s296 = smul.addr %s290, 4
      %s297 = sadd.s32 %s295, %s296
      %s298 = smul.addr %s297, 2
      %s299 = scalar_lea.vmem %s3, %s298
      %s300 = smul.u32 4, %s22
      %s301 = sadd.s32 %s21, %s22
      %p302 = scmp.lt.s32.totalorder %s301, 1
      %s303 = scalar_select %p302, %s301, 1
      %p304 = scmp.lt.s32.totalorder %s23, 0
      %s305 = scalar_select %p304, %s23, 0
      %s306 = sadd.s32 %s305, %s303
      %s307 = smul.addr %s306, 2
      %s308 = scalar_lea.vmem %s4, %s307
      %s309 = sadd.s32 %s21, %s22
      %v311 = vld [vmem:[%s279] sm:$0xff]
      %v312 = vld [vmem:[%s279 + $0x8] sm:$0xff]
      %v313 = vld [vmem:[%s279 + $0x10] sm:$0xff]
      %v314 = vld [vmem:[%s279 + $0x18] sm:$0xff]
      %v315 = vld [vmem:[%s279 + $0x20] sm:$0xff]
      %v316 = vld [vmem:[%s279 + $0x28] sm:$0xff]
      %v317 = vld [vmem:[%s279 + $0x30] sm:$0xff]
      %v318 = vld [vmem:[%s279 + $0x38] sm:$0xff]
      %v319 = vld [vmem:[%s284] sm:$0xf]
      %v320 = vld [vmem:[%s284 + $0x4] sm:$0xf]
      %v321 = vld [vmem:[%s284 + $0x8] sm:$0xf]
      %v322 = vld [vmem:[%s284 + $0xc] sm:$0xf]
      %v323 = vld [vmem:[%s284 + $0x10] sm:$0xf]
      %v324 = vld [vmem:[%s284 + $0x14] sm:$0xf]
      %v325 = vld [vmem:[%s284 + $0x18] sm:$0xf]
      %v326 = vld [vmem:[%s284 + $0x1c] sm:$0xf]
      %v327 = vld [vmem:[%s284 + $0x20] sm:$0xf]
      %v328 = vld [vmem:[%s284 + $0x24] sm:$0xf]
      %v329 = vld [vmem:[%s284 + $0x28] sm:$0xf]
      %v330 = vld [vmem:[%s284 + $0x2c] sm:$0xf]
      %v331 = vld [vmem:[%s284 + $0x30] sm:$0xf]
      %v332 = vld [vmem:[%s284 + $0x34] sm:$0xf]
      %v333 = vld [vmem:[%s284 + $0x38] sm:$0xf]
      %v334 = vld [vmem:[%s284 + $0x3c] sm:$0xf]
      %v335 = vld [vmem:[%s284 + $0x40] sm:$0xf]
      %v336 = vld [vmem:[%s284 + $0x44] sm:$0xf]
      %v337 = vld [vmem:[%s284 + $0x48] sm:$0xf]
      %v338 = vld [vmem:[%s284 + $0x4c] sm:$0xf]
      %v339 = vld [vmem:[%s284 + $0x50] sm:$0xf]
      %v340 = vld [vmem:[%s284 + $0x54] sm:$0xf]
      %v341 = vld [vmem:[%s284 + $0x58] sm:$0xf]
      %v342 = vld [vmem:[%s284 + $0x5c] sm:$0xf]
      %v343 = vld [vmem:[%s284 + $0x60] sm:$0xf]
      %v344 = vld [vmem:[%s284 + $0x64] sm:$0xf]
      %v345 = vld [vmem:[%s284 + $0x68] sm:$0xf]
      %v346 = vld [vmem:[%s284 + $0x6c] sm:$0xf]
      %v347 = vld [vmem:[%s284 + $0x70] sm:$0xf]
      %v348 = vld [vmem:[%s284 + $0x74] sm:$0xf]
      %v349 = vld [vmem:[%s284 + $0x78] sm:$0xf]
      %v350 = vld [vmem:[%s284 + $0x7c] sm:$0xf]
      %v351 = vld [vmem:[%s287] sm:$0x1]
      %v353 = vlaneseq
      %v354 = vshrl.u32 %v353, 7
      %v355 = vsub.s32 0, %v354
      %v356 = vrot.slane %v351, %v355
      %v366 = vunpack.c.l.b16 %v311
      %v367 = vunpack.c.h.b16 %v311
      %v368 = vunpack.c.l.b16 %v312
      %v369 = vunpack.c.h.b16 %v312
      %v370 = vunpack.c.l.b16 %v313
      %v371 = vunpack.c.h.b16 %v313
      %v372 = vunpack.c.l.b16 %v314
      %v373 = vunpack.c.h.b16 %v314
      %v374 = vunpack.c.l.b16 %v315
      %v375 = vunpack.c.h.b16 %v315
      %v376 = vunpack.c.l.b16 %v316
      %v377 = vunpack.c.h.b16 %v316
      %v378 = vunpack.c.l.b16 %v317
      %v379 = vunpack.c.h.b16 %v317
      %v380 = vunpack.c.l.b16 %v318
      %v381 = vunpack.c.h.b16 %v318
      %v382 = vpack.c.b16 %v368, %v366
      %v383 = vpack.c.b16 %v369, %v367
      %v384 = vpack.c.b16 %v372, %v370
      %v385 = vpack.c.b16 %v373, %v371
      %v386 = vpack.c.b16 %v376, %v374
      %v387 = vpack.c.b16 %v377, %v375
      %v388 = vpack.c.b16 %v380, %v378
      %v389 = vpack.c.b16 %v381, %v379
      %v430 = vunpack.c.l.b16 %v319
      %v431 = vunpack.c.l.b16 %v320
      %v432 = vunpack.c.l.b16 %v321
      %v433 = vunpack.c.l.b16 %v322
      %v434 = vunpack.c.l.b16 %v323
      %v435 = vunpack.c.l.b16 %v324
      %v436 = vunpack.c.l.b16 %v325
      %v437 = vunpack.c.l.b16 %v326
      %v438 = vunpack.c.l.b16 %v327
      %v439 = vunpack.c.l.b16 %v328
      %v440 = vunpack.c.l.b16 %v329
      %v441 = vunpack.c.l.b16 %v330
      %v442 = vunpack.c.l.b16 %v331
      %v443 = vunpack.c.l.b16 %v332
      %v444 = vunpack.c.l.b16 %v333
      %v445 = vunpack.c.l.b16 %v334
      %v446 = vunpack.c.l.b16 %v335
      %v447 = vunpack.c.l.b16 %v336
      %v448 = vunpack.c.l.b16 %v337
      %v449 = vunpack.c.l.b16 %v338
      %v450 = vunpack.c.l.b16 %v339
      %v451 = vunpack.c.l.b16 %v340
      %v452 = vunpack.c.l.b16 %v341
      %v453 = vunpack.c.l.b16 %v342
      %v454 = vunpack.c.l.b16 %v343
      %v455 = vunpack.c.l.b16 %v344
      %v456 = vunpack.c.l.b16 %v345
      %v457 = vunpack.c.l.b16 %v346
      %v458 = vunpack.c.l.b16 %v347
      %v459 = vunpack.c.l.b16 %v348
      %v460 = vunpack.c.l.b16 %v349
      %v461 = vunpack.c.l.b16 %v350
      %v462 = vpack.c.b16 %v431, %v430
      %v463 = vpack.c.b16 %v433, %v432
      %v464 = vpack.c.b16 %v435, %v434
      %v465 = vpack.c.b16 %v437, %v436
      %v466 = vpack.c.b16 %v439, %v438
      %v467 = vpack.c.b16 %v441, %v440
      %v468 = vpack.c.b16 %v443, %v442
      %v469 = vpack.c.b16 %v445, %v444
      %v470 = vpack.c.b16 %v447, %v446
      %v471 = vpack.c.b16 %v449, %v448
      %v472 = vpack.c.b16 %v451, %v450
      %v473 = vpack.c.b16 %v453, %v452
      %v474 = vpack.c.b16 %v455, %v454
      %v475 = vpack.c.b16 %v457, %v456
      %v476 = vpack.c.b16 %v459, %v458
      %v477 = vpack.c.b16 %v461, %v460
      %494 = vmatprep.subr.bf16.mxu0 0
      %495 = vmatpush1.bf16.msra.mxu0 %v469
      %496 = vmatprep.subr.bf16.mxu0 0
      %497 = vmatpush1.bf16.msra.mxu0 %v468
      %498 = vmatprep.subr.bf16.mxu0 0
      %499 = vmatpush1.bf16.msra.mxu0 %v467
      %500 = vmatprep.subr.bf16.mxu0 0
      %501 = vmatpush1.bf16.msra.mxu0 %v466
      %502 = vmatprep.subr.bf16.mxu0 0
      %503 = vmatpush1.bf16.msra.mxu0 %v465
      %504 = vmatprep.subr.bf16.mxu0 0
      %505 = vmatpush1.bf16.msra.mxu0 %v464
      %506 = vmatprep.subr.bf16.mxu0 0
      %507 = vmatpush1.bf16.msra.mxu0 %v463
      %508 = vmatprep.subr.bf16.mxu0 0
      %509 = vmatpush1.bf16.msra.mxu0 %v462
      %510 = vmatprep.subr.bf16.mxu0 0
      %511 = vmatpush2.bf16.msra.mxu0 %v477
      %512 = vmatprep.subr.bf16.mxu0 0
      %513 = vmatpush2.bf16.msra.mxu0 %v476
      %514 = vmatprep.subr.bf16.mxu0 0
      %515 = vmatpush2.bf16.msra.mxu0 %v475
      %516 = vmatprep.subr.bf16.mxu0 0
      %517 = vmatpush2.bf16.msra.mxu0 %v474
      %518 = vmatprep.subr.bf16.mxu0 0
      %519 = vmatpush2.bf16.msra.mxu0 %v473
      %520 = vmatprep.subr.bf16.mxu0 0
      %521 = vmatpush2.bf16.msra.mxu0 %v472
      %522 = vmatprep.subr.bf16.mxu0 0
      %523 = vmatpush2.bf16.msra.mxu0 %v471
      %524 = vmatprep.subr.bf16.mxu0 0
      %525 = vmatpush2.bf16.msra.mxu0 %v470
      %526 = vmatprep.mubr.bf16.mxu0 %v383
      %527 = vmatmul.mubr.bf16.gmra.mxu0 %v382
      %v528 = vpop.f32.mrf.mxu0
      %v529 = vadd.f32 %v356, %v528
      %v530 = vpop.f32.mrf.mxu0
      %v531 = vpop.f32.mrf.mxu0
      %v532 = vpop.f32.mrf.mxu0
      %533 = vmatprep.mubr.bf16.mxu0 %v385
      %534 = vmatmul.mubr.bf16.gmra.mxu0 %v384
      %v535 = vpop.f32.mrf.mxu0
      %v536 = vadd.f32 %v356, %v535
      %v537 = vpop.f32.mrf.mxu0
      %v538 = vpop.f32.mrf.mxu0
      %v539 = vpop.f32.mrf.mxu0
      %540 = vmatprep.mubr.bf16.mxu0 %v387
      %541 = vmatmul.mubr.bf16.gmra.mxu0 %v386
      %v542 = vpop.f32.mrf.mxu0
      %v543 = vadd.f32 %v356, %v542
      %v544 = vpop.f32.mrf.mxu0
      %v545 = vpop.f32.mrf.mxu0
      %v546 = vpop.f32.mrf.mxu0
      %547 = vmatprep.mubr.bf16.mxu0 %v389
      %548 = vmatmul.mubr.bf16.gmra.mxu0 %v388
      %v549 = vpop.f32.mrf.mxu0
      %v550 = vadd.f32 %v356, %v549
      %v551 = vpop.f32.mrf.mxu0
      %v552 = vpop.f32.mrf.mxu0
      %v553 = vpop.f32.mrf.mxu0
      %554 = vdwg.mxu0
      %vm555 = vcmask 257024
      %v556 = vsel %vm555, %v529, 0.0
      %v557 = vsel %vm555, %v536, 0.0
      %v558 = vadd.f32 %v556, %v557
      %v559 = vsel %vm555, %v543, 0.0
      %v560 = vadd.f32 %v558, %v559
      %v561 = vsel %vm555, %v550, 0.0
      %v562 = vadd.f32 %v560, %v561
      %v563 = vmul.f32 %v529, %v529
      %v564 = vmul.f32 %v536, %v536
      %v565 = vmul.f32 %v543, %v543
      %v566 = vmul.f32 %v550, %v550
      %v567 = vsel %vm555, %v563, 0.0
      %v568 = vsel %vm555, %v564, 0.0
      %v569 = vadd.f32 %v567, %v568
      %v570 = vsel %vm555, %v565, 0.0
      %v571 = vadd.f32 %v569, %v570
      %v572 = vsel %vm555, %v566, 0.0
      %v573 = vadd.f32 %v571, %v572
      %v574 = vsel %vm555, %v562, 0.0
      %v575 = vrot.slane %v574, 4
      %v576 = vadd.f32 %v574, %v575
      %v577 = vrot.slane %v576, 2
      %v578 = vadd.f32 %v576, %v577
      %v579 = vrot.slane %v578, 1
      %v580 = vadd.f32 %v578, %v579
      %vm581 = vcmask 253952
      %582 = vst.msk [vmem:[%s308] sm:$0x1] %vm581, %v580
      %v583 = vsel %vm555, %v573, 0.0
      %v584 = vrot.slane %v583, 4
      %v585 = vadd.f32 %v583, %v584
      %v586 = vrot.slane %v585, 2
      %v587 = vadd.f32 %v585, %v586
      %v588 = vrot.slane %v587, 1
      %v589 = vadd.f32 %v587, %v588
      %590 = vst.msk [vmem:[%s308 + $0x1] sm:$0x1] %vm581, %v589
      %v591 = vpack.c.bf16 %v529, %v529
      %v592 = vpack.c.bf16 %v536, %v536
      %v593 = vpack.c.bf16 %v543, %v543
      %v594 = vpack.c.bf16 %v550, %v550
      %vm595 = vcmask 254976
      %596 = vst.msk [vmem:[%s299] sm:$0x3] %vm595, %v591
      %597 = vst.msk [vmem:[%s299 + $0x2] sm:$0x3] %vm595, %v592
      %598 = vst.msk [vmem:[%s299 + $0x4] sm:$0x3] %vm595, %v593
      %599 = vst.msk [vmem:[%s299 + $0x6] sm:$0x3] %vm595, %v594
      %s600 = smul.u32 4, %s22
      %p601 = scmp.lt.s32.totalorder %s21, 1
      %s602 = scalar_select %p601, %s21, 1
      %p603 = scmp.lt.s32.totalorder %s600, 3
      %s604 = scalar_select %p603, %s600, 3
      %p605 = scmp.lt.s32.totalorder %s23, 0
      %s606 = scalar_select %p605, %s23, 0
      %s607 = sadd.s32 %s606, %s604
      %s608 = smul.addr %s602, 4
      %s609 = sadd.s32 %s607, %s608
      %s610 = smul.addr %s609, 2
      %s611 = scalar_lea.vmem %s3, %s610
      %s612 = sadd.s32 %s21, %s22
      %p613 = scmp.lt.s32.totalorder %s612, 1
      %s614 = scalar_select %p613, %s612, 1
      %p615 = scmp.lt.s32.totalorder %s23, 0
      %s616 = scalar_select %p615, %s23, 0
      %s617 = sadd.s32 %s616, %s614
      %s618 = smul.addr %s617, 2
      %s619 = scalar_lea.vmem %s4, %s618
      // Predicated region
      $region33: #{_lambda_.7} parent=31 // pred_check
        %p620 = pneg %p137
      $region34: #{_lambda_.7} parent=31 // pred_check_branch
        %622 = sbr.rel (%p620) target = $region36
      $region35: #{_lambda_.7} parent=31 // pred_region
        %s623 = smul.u32 4, %s22
      $region36: #{_lambda_.7} parent=31 // pred_fallthru
        _
      // Predicated region
      $region37: #{_lambda_.7} parent=31 // pred_check
        %p624 = pneg %p167
      $region38: #{_lambda_.7} parent=31 // pred_check_branch
        %626 = sbr.rel (%p624) target = $region40
      $region39: #{_lambda_.7} parent=31 // pred_region
        %s627 = sadd.s32 %s21, %s22
      $region40: #{_lambda_.7} parent=31 // pred_fallthru
        _
    $region32: #{_lambda_.7} parent=5 // pred_fallthru
      _
    %p628 = scmp.le.s32.totalorder 2, %s11
    // Predicated region
    $region41: #{_lambda_.7} parent=5 // pred_check
      %p629 = pneg %p628
    $region42: #{_lambda_.7} parent=5 // pred_check_branch
      %631 = sbr.rel (%p629) target = $region44
    $region43: #{_lambda_.7} parent=5 // pred_region
      %s632 = ssub.s32 %s11, 2
      // Predicated region
      $region45: #{_lambda_.7} parent=43 // pred_check
        %p633 = pneg %p143
      $region46: #{_lambda_.7} parent=43 // pred_check_branch
        %635 = sbr.rel (%p633) target = $region48
      $region47: #{_lambda_.7} parent=43 // pred_region
        %s636 = smul.u32 4, %s25
        %p637 = scmp.lt.s32.totalorder %s24, 1
        %s638 = scalar_select %p637, %s24, 1
        %p639 = scmp.lt.s32.totalorder %s636, 3
        %s640 = scalar_select %p639, %s636, 3
        %p641 = scmp.lt.s32.totalorder %s26, 0
        %s642 = scalar_select %p641, %s26, 0
        %s643 = sadd.s32 %s642, %s640
        %s644 = smul.addr %s638, 4
        %s645 = sadd.s32 %s643, %s644
        %s646 = smul.addr %s645, 2
        %s647 = scalar_lea.vmem %s3, %s646
      $region48: #{_lambda_.7} parent=43 // pred_fallthru
        _
      // Predicated region
      $region49: #{_lambda_.7} parent=43 // pred_check
        %p648 = pneg %p173
      $region50: #{_lambda_.7} parent=43 // pred_check_branch
        %650 = sbr.rel (%p648) target = $region52
      $region51: #{_lambda_.7} parent=43 // pred_region
        %s651 = sadd.s32 %s24, %s25
        %p652 = scmp.lt.s32.totalorder %s651, 1
        %s653 = scalar_select %p652, %s651, 1
        %p654 = scmp.lt.s32.totalorder %s26, 0
        %s655 = scalar_select %p654, %s26, 0
        %s656 = sadd.s32 %s655, %s653
        %s657 = smul.addr %s656, 2
        %s658 = scalar_lea.vmem %s4, %s657
      $region52: #{_lambda_.7} parent=43 // pred_fallthru
        _
    $region44: #{_lambda_.7} parent=5 // pred_fallthru
      _
  $region6: #{_lambda_.7} parent=0 // loop_footer
    %s15 = sadd.s32 1, %s11
  $region7: #{_lambda_.7} parent=0 // loop_footer_branch
    %10 = sbr.rel target = $region3
  $region8: #{_lambda_.7} parent=0 // loop_exit
    _

// kernel: _lambda_.8
$region0: #{_lambda_.8}
  #allocation0 [shape = 'u32[]', space=smem, size = 0x4, offset = 0x4, fixed_abs, tag = 'smem constant byte address 0x4 - core index']
  #allocation1 [shape = 'u32[144,128]{1,0:T(1,128)}', space=vmem, size = 0x12000, scoped, tag = 'internal scratch']
  #allocation2 [shape = 'f32[48,32]{1,0:T(8,128)}', space=vmem, size = 0x6000, scoped, tag = 'scratch operand']
  %s0 = inlined_call_operand.vmem [shape: bf16[2,6,19,32], index: 0, kind: input, shape index: {}]
  %s1 = inlined_call_operand.vmem [shape: bf16[16,32,32], index: 1, kind: input, shape index: {}]
  %s2 = inlined_call_operand.vmem [shape: f32[1,32], index: 2, kind: input, shape index: {}]
  %s3 = inlined_call_operand.vmem [shape: bf16[2,3,3,32], index: 3, kind: output, shape index: {0}]
  %s4 = inlined_call_operand.vmem [shape: f32[2,2,32], index: 4, kind: output, shape index: {1}]
  %5 = xla_tuple %s3, %s4
  %s6 = sld [smem:[#allocation0]]
  $region61: #{_lambda_.8} parent=0
    _
  %s8 = ssub.s32 1, %s6
  %s9 = scalar_select 0, %s8, %s6
  loop: start=0, step=1, limit=4
  $region2: #{_lambda_.8} parent=0 // loop_pre_header
    _
  $region3: #{_lambda_.8} parent=0 // loop_header
    %s11 = sphi 0, %s15
    %p12 = scmp.ge.s32.totalorder %s11, 4
    %s18 = sphi 0, %s37
    %s19 = sphi 0, %s33
    %s20 = sphi 0, %s29
    %s21 = sphi 0, %s18
    %s22 = sphi 0, %s19
    %s23 = sphi 0, %s20
    %s24 = sphi 0, %s21
    %s25 = sphi 0, %s22
    %s26 = sphi 0, %s23
    %s42 = sphi 0, %s44
    %s45 = sphi 0, %s42
    %s46 = sphi 0, %s45
    %s62 = sphi 0, %s46
    %s70 = sphi 0, %s72
    %s73 = sphi 0, %s70
    %s74 = sphi 0, %s73
    %s90 = sphi 0, %s74
    %s96 = sphi 0, %s98
    %s99 = sphi 0, %s96
    %s100 = sphi 0, %s99
    %s116 = sphi 0, %s100
    %s124 = sphi 0, %s126
    %s127 = sphi 0, %s124
    %s128 = sphi 0, %s127
    %s144 = sphi 0, %s128
    %s152 = sphi 0, %s154
    %s155 = sphi 0, %s152
    %s156 = sphi 0, %s155
    %s172 = sphi 0, %s156
  $region4: #{_lambda_.8} parent=0 // loop_header_branch
    %14 = sbr.rel (%p12) target = $region8
  $region5: #{_lambda_.8} parent=0 // loop_body
    %s16 = ssub.s32 %s11, 1
    %s17 = ssub.s32 %s11, 2
    %s27 = sadd.s32 1, %s20
    %p28 = scmp.ge.s32.totalorder %s27, 1
    %s29 = scalar_select %p28, 0, %s27
    %s30 = sadd.s32 1, %s19
    %s31 = scalar_select %p28, %s30, %s19
    %p32 = scmp.ge.s32.totalorder %s31, 1
    %s33 = scalar_select %p32, 0, %s31
    %s34 = sadd.s32 1, %s18
    %s35 = scalar_select %p32, %s34, %s18
    %p36 = scmp.ge.s32.totalorder %s35, 2
    %s37 = scalar_select %p36, 0, %s35
    %s38 = ssub.s32 %s18, %s37
    %s39 = ssub.s32 %s20, %s29
    %s40 = sor.u32 %s38, %s39
    %p41 = scmp.eq.s32.totalorder %s40, 0
    %s43 = sadd.s32 %s42, 1
    %s44 = scalar_select %p41, %s42, %s43
    %p47 = pneg %p41
    %p48 = scmp.eq.s32.totalorder %s11, 1
    %p49 = por %p47, %p48
    %p50 = scmp.ne.s32.totalorder %s42, %s45
    %p51 = scmp.eq.s32.totalorder %s11, 0
    %p52 = por %p50, %p51
    %p53 = scmp.ne.s32.totalorder %s42, %s45
    %p54 = scmp.eq.s32.totalorder %s16, 1
    %p55 = por %p53, %p54
    %p56 = scmp.ne.s32.totalorder %s45, %s46
    %p57 = scmp.eq.s32.totalorder %s16, 0
    %p58 = por %p56, %p57
    %p59 = scmp.ne.s32.totalorder %s45, %s46
    %p60 = scmp.eq.s32.totalorder %s17, 1
    %p61 = por %p59, %p60
    %p63 = scmp.ne.s32.totalorder %s46, %s62
    %p64 = scmp.eq.s32.totalorder %s17, 0
    %p65 = por %p63, %p64
    %s66 = ssub.s32 %s20, %s29
    %s67 = ssub.s32 %s19, %s33
    %s68 = sor.u32 %s66, %s67
    %p69 = scmp.eq.s32.totalorder %s68, 0
    %s71 = sadd.s32 %s70, 1
    %s72 = scalar_select %p69, %s70, %s71
    %p75 = pneg %p69
    %p76 = scmp.eq.s32.totalorder %s11, 1
    %p77 = por %p75, %p76
    %p78 = scmp.ne.s32.totalorder %s70, %s73
    %p79 = scmp.eq.s32.totalorder %s11, 0
    %p80 = por %p78, %p79
    %p81 = scmp.ne.s32.totalorder %s70, %s73
    %p82 = scmp.eq.s32.totalorder %s16, 1
    %p83 = por %p81, %p82
    %p84 = scmp.ne.s32.totalorder %s73, %s74
    %p85 = scmp.eq.s32.totalorder %s16, 0
    %p86 = por %p84, %p85
    %p87 = scmp.ne.s32.totalorder %s73, %s74
    %p88 = scmp.eq.s32.totalorder %s17, 1
    %p89 = por %p87, %p88
    %p91 = scmp.ne.s32.totalorder %s74, %s90
    %p92 = scmp.eq.s32.totalorder %s17, 0
    %p93 = por %p91, %p92
    %s94 = ssub.s32 %s19, %s33
    %p95 = scmp.eq.s32.totalorder %s94, 0
    %s97 = sadd.s32 %s96, 1
    %s98 = scalar_select %p95, %s96, %s97
    %p101 = pneg %p95
    %p102 = scmp.eq.s32.totalorder %s11, 1
    %p103 = por %p101, %p102
    %p104 = scmp.ne.s32.totalorder %s96, %s99
    %p105 = scmp.eq.s32.totalorder %s11, 0
    %p106 = por %p104, %p105
    %p107 = scmp.ne.s32.totalorder %s96, %s99
    %p108 = scmp.eq.s32.totalorder %s16, 1
    %p109 = por %p107, %p108
    %p110 = scmp.ne.s32.totalorder %s99, %s100
    %p111 = scmp.eq.s32.totalorder %s16, 0
    %p112 = por %p110, %p111
    %p113 = scmp.ne.s32.totalorder %s99, %s100
    %p114 = scmp.eq.s32.totalorder %s17, 1
    %p115 = por %p113, %p114
    %p117 = scmp.ne.s32.totalorder %s100, %s116
    %p118 = scmp.eq.s32.totalorder %s17, 0
    %p119 = por %p117, %p118
    %s120 = ssub.s32 %s18, %s37
    %s121 = ssub.s32 %s19, %s33
    %s122 = sor.u32 %s120, %s121
    %p123 = scmp.eq.s32.totalorder %s122, 0
    %s125 = sadd.s32 %s124, 1
    %s126 = scalar_select %p123, %s124, %s125
    %p129 = pneg %p123
    %p130 = scmp.eq.s32.totalorder %s11, 1
    %p131 = por %p129, %p130
    %p132 = scmp.ne.s32.totalorder %s124, %s127
    %p133 = scmp.eq.s32.totalorder %s11, 0
    %p134 = por %p132, %p133
    %p135 = scmp.ne.s32.totalorder %s124, %s127
    %p136 = scmp.eq.s32.totalorder %s16, 1
    %p137 = por %p135, %p136
    %p138 = scmp.ne.s32.totalorder %s127, %s128
    %p139 = scmp.eq.s32.totalorder %s16, 0
    %p140 = por %p138, %p139
    %p141 = scmp.ne.s32.totalorder %s127, %s128
    %p142 = scmp.eq.s32.totalorder %s17, 1
    %p143 = por %p141, %p142
    %p145 = scmp.ne.s32.totalorder %s128, %s144
    %p146 = scmp.eq.s32.totalorder %s17, 0
    %p147 = por %p145, %p146
    %s148 = ssub.s32 %s18, %s37
    %s149 = ssub.s32 %s19, %s33
    %s150 = sor.u32 %s148, %s149
    %p151 = scmp.eq.s32.totalorder %s150, 0
    %s153 = sadd.s32 %s152, 1
    %s154 = scalar_select %p151, %s152, %s153
    %p157 = pneg %p151
    %p158 = scmp.eq.s32.totalorder %s11, 1
    %p159 = por %p157, %p158
    %p160 = scmp.ne.s32.totalorder %s152, %s155
    %p161 = scmp.eq.s32.totalorder %s11, 0
    %p162 = por %p160, %p161
    %p163 = scmp.ne.s32.totalorder %s152, %s155
    %p164 = scmp.eq.s32.totalorder %s16, 1
    %p165 = por %p163, %p164
    %p166 = scmp.ne.s32.totalorder %s155, %s156
    %p167 = scmp.eq.s32.totalorder %s16, 0
    %p168 = por %p166, %p167
    %p169 = scmp.ne.s32.totalorder %s155, %s156
    %p170 = scmp.eq.s32.totalorder %s17, 1
    %p171 = por %p169, %p170
    %p173 = scmp.ne.s32.totalorder %s156, %s172
    %p174 = scmp.eq.s32.totalorder %s17, 0
    %p175 = por %p173, %p174
    %p176 = scmp.le.s32.totalorder 1, %s11
    %p177 = scmp.lt.s32.totalorder %s11, 3
    %p178 = pnand %p176, %p177
    %p179 = pneg %p178
    // Predicated region
    $region9: #{_lambda_.8} parent=5 // pred_check
      _
    $region10: #{_lambda_.8} parent=5 // pred_check_branch
      %181 = sbr.rel (%p178) target = $region12
    $region11: #{_lambda_.8} parent=5 // pred_region
      %s182 = ssub.s32 %s11, 1
      // Predicated region
      $region13: #{_lambda_.8} parent=11 // pred_check
        %p183 = pneg %p86
      $region14: #{_lambda_.8} parent=11 // pred_check_branch
        %185 = sbr.rel (%p183) target = $region16
      $region15: #{_lambda_.8} parent=11 // pred_region
        %s186 = smul.u32 4, %s23
        %p187 = scmp.lt.s32.totalorder %s186, 3
        %s188 = scalar_select %p187, %s186, 3
        %p189 = scmp.lt.s32.totalorder %s22, 0
        %s190 = scalar_select %p189, %s22, 0
        %s191 = sadd.s32 %s190, %s188
        %s192 = smul.addr %s191, 4
        %s193 = scalar_lea.vmem %s1, %s192
        %s194 = smul.u32 4, %s23
      $region16: #{_lambda_.8} parent=11 // pred_fallthru
        _
      // Predicated region
      $region17: #{_lambda_.8} parent=11 // pred_check
        %p195 = pneg %p112
      $region18: #{_lambda_.8} parent=11 // pred_check_branch
        %197 = sbr.rel (%p195) target = $region20
      $region19: #{_lambda_.8} parent=11 // pred_region
        %p198 = scmp.lt.s32.totalorder %s22, 0
        %s199 = scalar_select %p198, %s22, 0
        %s200 = scalar_lea.vmem %s2, %s199
      $region20: #{_lambda_.8} parent=11 // pred_fallthru
        _
    $region12: #{_lambda_.8} parent=5 // pred_fallthru
      _
    %p201 = scmp.lt.s32.totalorder %s11, 2
    // Predicated region
    $region21: #{_lambda_.8} parent=5 // pred_check
      %p202 = pneg %p201
    $region22: #{_lambda_.8} parent=5 // pred_check_branch
      %204 = sbr.rel (%p202) target = $region24
    $region23: #{_lambda_.8} parent=5 // pred_region
      // Predicated region
      $region25: #{_lambda_.8} parent=23 // pred_check
        %p205 = pneg %p52
      $region26: #{_lambda_.8} parent=23 // pred_check_branch
        %207 = sbr.rel (%p205) target = $region28
      $region27: #{_lambda_.8} parent=23 // pred_region
        %p208 = scmp.lt.s32.totalorder %s18, 1
        %s209 = scalar_select %p208, %s18, 1
        %p210 = scmp.lt.s32.totalorder %s20, 0
        %s211 = scalar_select %p210, %s20, 0
        %s212 = smul.addr %s209, 18
        %s213 = sadd.s32 %s211, %s212
        %s214 = smul.addr %s213, 4
        %s215 = scalar_lea.vmem %s0, %s214
      $region28: #{_lambda_.8} parent=23 // pred_fallthru
        _
    $region24: #{_lambda_.8} parent=5 // pred_fallthru
      _
    %p216 = scmp.le.s32.totalorder 1, %s11
    %p217 = scmp.lt.s32.totalorder %s11, 3
    %p218 = pnand %p216, %p217
    %p219 = pneg %p218
    // Predicated region
    $region29: #{_lambda_.8} parent=5 // pred_check
      _
    $region30: #{_lambda_.8} parent=5 // pred_check_branch
      %221 = sbr.rel (%p218) target = $region32
    $region31: #{_lambda_.8} parent=5 // pred_region
      %s222 = ssub.s32 %s11, 1
      %p223 = scmp.lt.s32.totalorder %s21, 1
      %s224 = scalar_select %p223, %s21, 1
      %p225 = scmp.lt.s32.totalorder %s23, 0
      %s226 = scalar_select %p225, %s23, 0
      %s227 = smul.addr %s224, 18
      %s228 = sadd.s32 %s226, %s227
      %s229 = smul.addr %s228, 4
      %s230 = scalar_lea.vmem %s0, %s229
      %p231 = pneg %p58
      %p232 = pneg %p55
      %s233 = smul.u32 4, %s23
      %p234 = scmp.lt.s32.totalorder %s233, 3
      %s235 = scalar_select %p234, %s233, 3
      %p236 = scmp.lt.s32.totalorder %s22, 0
      %s237 = scalar_select %p236, %s22, 0
      %s238 = sadd.s32 %s237, %s235
      %s239 = smul.addr %s238, 4
      %s240 = scalar_lea.vmem %s1, %s239
      %p241 = pneg %p86
      %p242 = pneg %p83
      %p243 = scmp.lt.s32.totalorder %s22, 0
      %s244 = scalar_select %p243, %s22, 0
      %s245 = scalar_lea.vmem %s2, %s244
      %p246 = pneg %p112
      %p247 = pneg %p109
      %p248 = pneg %p140
      %p249 = pneg %p137
      %p250 = scmp.lt.s32.totalorder %s21, 1
      %s251 = scalar_select %p250, %s21, 1
      %p252 = scmp.lt.s32.totalorder %s22, 0
      %s253 = scalar_select %p252, %s22, 0
      %s254 = smul.addr %s251, 3
      %s255 = sadd.s32 %s253, %s254
      %s256 = smul.addr %s255, 2
      %s257 = scalar_lea.vmem %s3, %s256
      %p258 = pneg %p168
      %p259 = pneg %p165
      %p260 = scmp.lt.s32.totalorder %s21, 1
      %s261 = scalar_select %p260, %s21, 1
      %p262 = scmp.lt.s32.totalorder %s22, 0
      %s263 = scalar_select %p262, %s22, 0
      %s264 = sadd.s32 %s263, %s261
      %s265 = smul.addr %s264, 2
      %s266 = scalar_lea.vmem %s4, %s265
      %p267 = scmp.lt.s32.totalorder %s21, 1
      %s268 = scalar_select %p267, %s21, 1
      %p269 = scmp.lt.s32.totalorder %s23, 0
      %s270 = scalar_select %p269, %s23, 0
      %s271 = smul.addr %s268, 18
      %s272 = sadd.s32 %s270, %s271
      %s273 = smul.addr %s272, 4
      %s274 = scalar_lea.vmem %s0, %s273
      %s275 = smul.u32 4, %s23
      %p276 = scmp.lt.s32.totalorder %s275, 3
      %s277 = scalar_select %p276, %s275, 3
      %p278 = scmp.lt.s32.totalorder %s22, 0
      %s279 = scalar_select %p278, %s22, 0
      %s280 = sadd.s32 %s279, %s277
      %s281 = smul.addr %s280, 4
      %s282 = scalar_lea.vmem %s1, %s281
      %s283 = smul.u32 4, %s23
      %p284 = scmp.lt.s32.totalorder %s22, 0
      %s285 = scalar_select %p284, %s22, 0
      %s286 = scalar_lea.vmem %s2, %s285
      %p287 = scmp.lt.s32.totalorder %s21, 1
      %s288 = scalar_select %p287, %s21, 1
      %p289 = scmp.lt.s32.totalorder %s22, 0
      %s290 = scalar_select %p289, %s22, 0
      %s291 = smul.addr %s288, 3
      %s292 = sadd.s32 %s290, %s291
      %s293 = smul.addr %s292, 2
      %s294 = scalar_lea.vmem %s3, %s293
      %p295 = scmp.lt.s32.totalorder %s21, 1
      %s296 = scalar_select %p295, %s21, 1
      %p297 = scmp.lt.s32.totalorder %s22, 0
      %s298 = scalar_select %p297, %s22, 0
      %s299 = sadd.s32 %s298, %s296
      %s300 = smul.addr %s299, 2
      %s301 = scalar_lea.vmem %s4, %s300
      %p303 = scmp.eq.s32.totalorder %s23, 0
      // Predicated region
      $region33: #{_lambda_.8} parent=31 // pred_check
        %p304 = pneg %p303
      $region34: #{_lambda_.8} parent=31 // pred_check_branch
        %306 = sbr.rel (%p304) target = $region36
      $region35: #{_lambda_.8} parent=31 // pred_region
        %vm307 = vcmask 261120
        %308 = vst.msk [vmem:[#allocation2] sm:$0xff] %vm307, 0.0
        %309 = vst.msk [vmem:[#allocation2 + $0x8] sm:$0xff] %vm307, 0.0
        %310 = vst.msk [vmem:[#allocation2 + $0x10] sm:$0xff] %vm307, 0.0
        %311 = vst.msk [vmem:[#allocation2 + $0x18] sm:$0xff] %vm307, 0.0
        %312 = vst.msk [vmem:[#allocation2 + $0x20] sm:$0xff] %vm307, 0.0
        %313 = vst.msk [vmem:[#allocation2 + $0x28] sm:$0xff] %vm307, 0.0
      $region36: #{_lambda_.8} parent=31 // pred_fallthru
        _
      %v314 = vld [vmem:[%s274] sm:$0xf]
      %v315 = vld [vmem:[%s274 + $0x4] sm:$0xf]
      %v316 = vld [vmem:[%s274 + $0x8] sm:$0x3]
      %v317 = vld [vmem:[%s274 + $0xc] sm:$0xf]
      %v318 = vld [vmem:[%s274 + $0x10] sm:$0xf]
      %v319 = vld [vmem:[%s274 + $0x14] sm:$0x3]
      %v320 = vld [vmem:[%s274 + $0x18] sm:$0xf]
      %v321 = vld [vmem:[%s274 + $0x1c] sm:$0xf]
      %v322 = vld [vmem:[%s274 + $0x20] sm:$0x3]
      %v323 = vld [vmem:[%s274 + $0x24] sm:$0xf]
      %v324 = vld [vmem:[%s274 + $0x28] sm:$0xf]
      %v325 = vld [vmem:[%s274 + $0x2c] sm:$0x3]
      %v326 = vld [vmem:[%s274 + $0x30] sm:$0xf]
      %v327 = vld [vmem:[%s274 + $0x34] sm:$0xf]
      %v328 = vld [vmem:[%s274 + $0x38] sm:$0x3]
      %v329 = vld [vmem:[%s274 + $0x3c] sm:$0xf]
      %v330 = vld [vmem:[%s274 + $0x40] sm:$0xf]
      %v331 = vld [vmem:[%s274 + $0x44] sm:$0x3]
      %v332 = vld [vmem:[#allocation2] sm:$0xff]
      %v333 = vld [vmem:[#allocation2 + $0x8] sm:$0xff]
      %v334 = vld [vmem:[#allocation2 + $0x10] sm:$0xff]
      %v335 = vld [vmem:[#allocation2 + $0x18] sm:$0xff]
      %v336 = vld [vmem:[#allocation2 + $0x20] sm:$0xff]
      %v337 = vld [vmem:[#allocation2 + $0x28] sm:$0xff]
      %v338 = vld [vmem:[%s282] sm:$0xf]
      %v339 = vld [vmem:[%s282 + $0x4] sm:$0xf]
      %v340 = vld [vmem:[%s282 + $0x8] sm:$0xf]
      %v341 = vld [vmem:[%s282 + $0xc] sm:$0xf]
      %v348 = vunpack.c.l.b16 %v314
      %v349 = vunpack.c.l.b16 %v315
      %v350 = vunpack.c.l.b16 %v317
      %v351 = vunpack.c.l.b16 %v318
      %v352 = vunpack.c.l.b16 %v320
      %v353 = vunpack.c.l.b16 %v321
      %v354 = vpack.c.b16 %v349, %v348
      %v355 = vpack.c.b16 %v351, %v350
      %v356 = vpack.c.b16 %v353, %v352
      %v361 = vunpack.c.l.b16 %v338
      %v362 = vunpack.c.l.b16 %v339
      %v363 = vunpack.c.l.b16 %v340
      %v364 = vunpack.c.l.b16 %v341
      %v365 = vpack.c.b16 %v362, %v361
      %v366 = vpack.c.b16 %v364, %v363
      %vm369 = vcmask 261120
      %v371 = vsel %vm369, %v354, 0
      %v374 = vsel %vm369, %v355, 0
      %v377 = vsel %vm369, %v356, 0
      %379 = vmatprep.subr.bf16.mxu0 0
      %380 = vmatpush1.bf16.msra.mxu0 0
      %381 = vmatprep.subr.bf16.mxu0 0
      %382 = vmatpush1.bf16.msra.mxu0 0
      %383 = vmatprep.subr.bf16.mxu0 0
      %384 = vmatpush1.bf16.msra.mxu0 0
      %385 = vmatprep.subr.bf16.mxu0 0
      %386 = vmatpush1.bf16.msra.mxu0 0
      %387 = vmatprep.subr.bf16.mxu0 0
      %388 = vmatpush1.bf16.msra.mxu0 0
      %389 = vmatprep.subr.bf16.mxu0 0
      %390 = vmatpush1.bf16.msra.mxu0 0
      %391 = vmatprep.subr.bf16.mxu0 0
      %392 = vmatpush1.bf16.msra.mxu0 %v366
      %393 = vmatprep.subr.bf16.mxu0 0
      %394 = vmatpush1.bf16.msra.mxu0 %v365
      %395 = vmatprep.subr.bf16.mxu0 0
      %396 = vmatpush2.bf16.msra.mxu0 0
      %397 = vmatprep.subr.bf16.mxu0 0
      %398 = vmatpush2.bf16.msra.mxu0 0
      %399 = vmatprep.subr.bf16.mxu0 0
      %400 = vmatpush2.bf16.msra.mxu0 0
      %401 = vmatprep.subr.bf16.mxu0 0
      %402 = vmatpush2.bf16.msra.mxu0 0
      %403 = vmatprep.subr.bf16.mxu0 0
      %404 = vmatpush2.bf16.msra.mxu0 0
      %405 = vmatprep.subr.bf16.mxu0 0
      %406 = vmatpush2.bf16.msra.mxu0 0
      %407 = vmatprep.subr.bf16.mxu0 0
      %408 = vmatpush2.bf16.msra.mxu0 0
      %409 = vmatprep.subr.bf16.mxu0 0
      %410 = vmatpush2.bf16.msra.mxu0 0
      %411 = vmatprep.mubr.bf16.mxu0 0
      %412 = vmatmul.mubr.bf16.gmra.mxu0 %v371
      %v413 = vpop.f32.mrf.mxu0
      %v414 = vadd.f32 0.0, %v413
      %v415 = vpop.f32.mrf.mxu0
      %v416 = vpop.f32.mrf.mxu0
      %v417 = vadd.f32 0.0, %v416
      %v418 = vpop.f32.mrf.mxu0
      %419 = vmatprep.mubr.bf16.mxu0 0
      %420 = vmatmul.mubr.bf16.gmra.mxu0 %v374
      %v421 = vpop.f32.mrf.mxu0
      %v422 = vadd.f32 0.0, %v421
      %v423 = vpop.f32.mrf.mxu0
      %v424 = vpop.f32.mrf.mxu0
      %v425 = vadd.f32 0.0, %v424
      %v426 = vpop.f32.mrf.mxu0
      %427 = vmatprep.mubr.bf16.mxu0 0
      %428 = vmatmul.mubr.bf16.gmra.mxu0 %v377
      %v429 = vpop.f32.mrf.mxu0
      %v430 = vadd.f32 0.0, %v429
      %v431 = vpop.f32.mrf.mxu0
      %v432 = vpop.f32.mrf.mxu0
      %v433 = vadd.f32 0.0, %v432
      %v434 = vpop.f32.mrf.mxu0
      %435 = vdwg.mxu0
      %v436 = vadd.f32 %v332, %v414
      %v437 = vadd.f32 %v333, %v417
      %v438 = vadd.f32 %v334, %v422
      %v439 = vadd.f32 %v335, %v425
      %v440 = vadd.f32 %v336, %v430
      %v441 = vadd.f32 %v337, %v433
      %442 = vst.msk [vmem:[#allocation2] sm:$0xff] %vm369, %v436
      %443 = vst.msk [vmem:[#allocation2 + $0x8] sm:$0xff] %vm369, %v437
      %444 = vst.msk [vmem:[#allocation2 + $0x10] sm:$0xff] %vm369, %v438
      %445 = vst.msk [vmem:[#allocation2 + $0x18] sm:$0xff] %vm369, %v439
      %446 = vst.msk [vmem:[#allocation2 + $0x20] sm:$0xff] %vm369, %v440
      %447 = vst.msk [vmem:[#allocation2 + $0x28] sm:$0xff] %vm369, %v441
      %v448 = vld [vmem:[#allocation2] sm:$0xff]
      %v449 = vld [vmem:[#allocation2 + $0x8] sm:$0xff]
      %v450 = vld [vmem:[#allocation2 + $0x10] sm:$0xff]
      %v451 = vld [vmem:[#allocation2 + $0x18] sm:$0xff]
      %v452 = vld [vmem:[#allocation2 + $0x20] sm:$0xff]
      %v453 = vld [vmem:[#allocation2 + $0x28] sm:$0xff]
      %s454 = scalar_lea.vmem %s282, 64
      %v455 = vld [vmem:[%s454] sm:$0xf]
      %v456 = vld [vmem:[%s454 + $0x4] sm:$0xf]
      %v457 = vld [vmem:[%s454 + $0x8] sm:$0xf]
      %v458 = vld [vmem:[%s454 + $0xc] sm:$0xf]
      %v461 = vunpack.c.l.b16 %v323
      %v462 = vunpack.c.l.b16 %v324
      %v463 = vpack.c.b16 %v462, %v461
      %v468 = vunpack.c.l.b16 %v455
      %v469 = vunpack.c.l.b16 %v456
      %v470 = vunpack.c.l.b16 %v457
      %v471 = vunpack.c.l.b16 %v458
      %v472 = vpack.c.b16 %v469, %v468
      %v473 = vpack.c.b16 %v471, %v470
      %v477 = vsel %vm369, %v463, 0
      %479 = vmatprep.subr.bf16.mxu0 0
      %480 = vmatpush1.bf16.msra.mxu0 0
      %481 = vmatprep.subr.bf16.mxu0 0
      %482 = vmatpush1.bf16.msra.mxu0 0
      %483 = vmatprep.subr.bf16.mxu0 0
      %484 = vmatpush1.bf16.msra.mxu0 0
      %485 = vmatprep.subr.bf16.mxu0 0
      %486 = vmatpush1.bf16.msra.mxu0 0
      %487 = vmatprep.subr.bf16.mxu0 0
      %488 = vmatpush1.bf16.msra.mxu0 0
      %489 = vmatprep.subr.bf16.mxu0 0
      %490 = vmatpush1.bf16.msra.mxu0 0
      %491 = vmatprep.subr.bf16.mxu0 0
      %492 = vmatpush1.bf16.msra.mxu0 %v473
      %493 = vmatprep.subr.bf16.mxu0 0
      %494 = vmatpush1.bf16.msra.mxu0 %v472
      %495 = vmatprep.subr.bf16.mxu0 0
      %496 = vmatpush2.bf16.msra.mxu0 0
      %497 = vmatprep.subr.bf16.mxu0 0
      %498 = vmatpush2.bf16.msra.mxu0 0
      %499 = vmatprep.subr.bf16.mxu0 0
      %500 = vmatpush2.bf16.msra.mxu0 0
      %501 = vmatprep.subr.bf16.mxu0 0
      %502 = vmatpush2.bf16.msra.mxu0 0
      %503 = vmatprep.subr.bf16.mxu0 0
      %504 = vmatpush2.bf16.msra.mxu0 0
      %505 = vmatprep.subr.bf16.mxu0 0
      %506 = vmatpush2.bf16.msra.mxu0 0
      %507 = vmatprep.subr.bf16.mxu0 0
      %508 = vmatpush2.bf16.msra.mxu0 0
      %509 = vmatprep.subr.bf16.mxu0 0
      %510 = vmatpush2.bf16.msra.mxu0 0
      %511 = vmatprep.mubr.bf16.mxu0 0
      %512 = vmatmul.mubr.bf16.gmra.mxu0 %v374
      %v513 = vpop.f32.mrf.mxu0
      %v514 = vadd.f32 0.0, %v513
      %v515 = vpop.f32.mrf.mxu0
      %v516 = vpop.f32.mrf.mxu0
      %v517 = vadd.f32 0.0, %v516
      %v518 = vpop.f32.mrf.mxu0
      %519 = vmatprep.mubr.bf16.mxu0 0
      %520 = vmatmul.mubr.bf16.gmra.mxu0 %v377
      %v521 = vpop.f32.mrf.mxu0
      %v522 = vadd.f32 0.0, %v521
      %v523 = vpop.f32.mrf.mxu0
      %v524 = vpop.f32.mrf.mxu0
      %v525 = vadd.f32 0.0, %v524
      %v526 = vpop.f32.mrf.mxu0
      %527 = vmatprep.mubr.bf16.mxu0 0
      %528 = vmatmul.mubr.bf16.gmra.mxu0 %v477
      %v529 = vpop.f32.mrf.mxu0
      %v530 = vadd.f32 0.0, %v529
      %v531 = vpop.f32.mrf.mxu0
      %v532 = vpop.f32.mrf.mxu0
      %v533 = vadd.f32 0.0, %v532
      %v534 = vpop.f32.mrf.mxu0
      %535 = vdwg.mxu0
      %v536 = vadd.f32 %v448, %v514
      %v537 = vadd.f32 %v449, %v517
      %v538 = vadd.f32 %v450, %v522
      %v539 = vadd.f32 %v451, %v525
      %v540 = vadd.f32 %v452, %v530
      %v541 = vadd.f32 %v453, %v533
      %542 = vst.msk [vmem:[#allocation2] sm:$0xff] %vm369, %v536
      %543 = vst.msk [vmem:[#allocation2 + $0x8] sm:$0xff] %vm369, %v537
      %544 = vst.msk [vmem:[#allocation2 + $0x10] sm:$0xff] %vm369, %v538
      %545 = vst.msk [vmem:[#allocation2 + $0x18] sm:$0xff] %vm369, %v539
      %546 = vst.msk [vmem:[#allocation2 + $0x20] sm:$0xff] %vm369, %v540
      %547 = vst.msk [vmem:[#allocation2 + $0x28] sm:$0xff] %vm369, %v541
      %v548 = vld [vmem:[#allocation2] sm:$0xff]
      %v549 = vld [vmem:[#allocation2 + $0x8] sm:$0xff]
      %v550 = vld [vmem:[#allocation2 + $0x10] sm:$0xff]
      %v551 = vld [vmem:[#allocation2 + $0x18] sm:$0xff]
      %v552 = vld [vmem:[#allocation2 + $0x20] sm:$0xff]
      %v553 = vld [vmem:[#allocation2 + $0x28] sm:$0xff]
      %s554 = scalar_lea.vmem %s282, 128
      %v555 = vld [vmem:[%s554] sm:$0xf]
      %v556 = vld [vmem:[%s554 + $0x4] sm:$0xf]
      %v557 = vld [vmem:[%s554 + $0x8] sm:$0xf]
      %v558 = vld [vmem:[%s554 + $0xc] sm:$0xf]
      %v561 = vunpack.c.l.b16 %v326
      %v562 = vunpack.c.l.b16 %v327
      %v563 = vpack.c.b16 %v562, %v561
      %v568 = vunpack.c.l.b16 %v555
      %v569 = vunpack.c.l.b16 %v556
      %v570 = vunpack.c.l.b16 %v557
      %v571 = vunpack.c.l.b16 %v558
      %v572 = vpack.c.b16 %v569, %v568
      %v573 = vpack.c.b16 %v571, %v570
      %v577 = vsel %vm369, %v563, 0
      %579 = vmatprep.subr.bf16.mxu0 0
      %580 = vmatpush1.bf16.msra.mxu0 0
      %581 = vmatprep.subr.bf16.mxu0 0
      %582 = vmatpush1.bf16.msra.mxu0 0
      %583 = vmatprep.subr.bf16.mxu0 0
      %584 = vmatpush1.bf16.msra.mxu0 0
      %585 = vmatprep.subr.bf16.mxu0 0
      %586 = vmatpush1.bf16.msra.mxu0 0
      %587 = vmatprep.subr.bf16.mxu0 0
      %588 = vmatpush1.bf16.msra.mxu0 0
      %589 = vmatprep.subr.bf16.mxu0 0
      %590 = vmatpush1.bf16.msra.mxu0 0
      %591 = vmatprep.subr.bf16.mxu0 0
      %592 = vmatpush1.bf16.msra.mxu0 %v573
      %593 = vmatprep.subr.bf16.mxu0 0
      %594 = vmatpush1.bf16.msra.mxu0 %v572
      %595 = vmatprep.subr.bf16.mxu0 0
      %596 = vmatpush2.bf16.msra.mxu0 0
      %597 = vmatprep.subr.bf16.mxu0 0
      %598 = vmatpush2.bf16.msra.mxu0 0
      %599 = vmatprep.subr.bf16.mxu0 0
      %600 = vmatpush2.bf16.msra.mxu0 0
      %601 = vmatprep.subr.bf16.mxu0 0
      %602 = vmatpush2.bf16.msra.mxu0 0
      %603 = vmatprep.subr.bf16.mxu0 0
      %604 = vmatpush2.bf16.msra.mxu0 0
      %605 = vmatprep.subr.bf16.mxu0 0
      %606 = vmatpush2.bf16.msra.mxu0 0
      %607 = vmatprep.subr.bf16.mxu0 0
      %608 = vmatpush2.bf16.msra.mxu0 0
      %609 = vmatprep.subr.bf16.mxu0 0
      %610 = vmatpush2.bf16.msra.mxu0 0
      %611 = vmatprep.mubr.bf16.mxu0 0
      %612 = vmatmul.mubr.bf16.gmra.mxu0 %v377
      %v613 = vpop.f32.mrf.mxu0
      %v614 = vadd.f32 0.0, %v613
      %v615 = vpop.f32.mrf.mxu0
      %v616 = vpop.f32.mrf.mxu0
      %v617 = vadd.f32 0.0, %v616
      %v618 = vpop.f32.mrf.mxu0
      %619 = vmatprep.mubr.bf16.mxu0 0
      %620 = vmatmul.mubr.bf16.gmra.mxu0 %v477
      %v621 = vpop.f32.mrf.mxu0
      %v622 = vadd.f32 0.0, %v621
      %v623 = vpop.f32.mrf.mxu0
      %v624 = vpop.f32.mrf.mxu0
      %v625 = vadd.f32 0.0, %v624
      %v626 = vpop.f32.mrf.mxu0
      %627 = vmatprep.mubr.bf16.mxu0 0
      %628 = vmatmul.mubr.bf16.gmra.mxu0 %v577
      %v629 = vpop.f32.mrf.mxu0
      %v630 = vadd.f32 0.0, %v629
      %v631 = vpop.f32.mrf.mxu0
      %v632 = vpop.f32.mrf.mxu0
      %v633 = vadd.f32 0.0, %v632
      %v634 = vpop.f32.mrf.mxu0
      %635 = vdwg.mxu0
      %v636 = vadd.f32 %v548, %v614
      %v637 = vadd.f32 %v549, %v617
      %v638 = vadd.f32 %v550, %v622
      %v639 = vadd.f32 %v551, %v625
      %v640 = vadd.f32 %v552, %v630
      %v641 = vadd.f32 %v553, %v633
      %642 = vst.msk [vmem:[#allocation2] sm:$0xff] %vm369, %v636
      %643 = vst.msk [vmem:[#allocation2 + $0x8] sm:$0xff] %vm369, %v637
      %644 = vst.msk [vmem:[#allocation2 + $0x10] sm:$0xff] %vm369, %v638
      %645 = vst.msk [vmem:[#allocation2 + $0x18] sm:$0xff] %vm369, %v639
      %646 = vst.msk [vmem:[#allocation2 + $0x20] sm:$0xff] %vm369, %v640
      %647 = vst.msk [vmem:[#allocation2 + $0x28] sm:$0xff] %vm369, %v641
      %v648 = vld [vmem:[#allocation2] sm:$0xff]
      %v649 = vld [vmem:[#allocation2 + $0x8] sm:$0xff]
      %v650 = vld [vmem:[#allocation2 + $0x10] sm:$0xff]
      %v651 = vld [vmem:[#allocation2 + $0x18] sm:$0xff]
      %v652 = vld [vmem:[#allocation2 + $0x20] sm:$0xff]
      %v653 = vld [vmem:[#allocation2 + $0x28] sm:$0xff]
      %s654 = scalar_lea.vmem %s282, 192
      %v655 = vld [vmem:[%s654] sm:$0xf]
      %v656 = vld [vmem:[%s654 + $0x4] sm:$0xf]
      %v657 = vld [vmem:[%s654 + $0x8] sm:$0xf]
      %v658 = vld [vmem:[%s654 + $0xc] sm:$0xf]
      %v661 = vunpack.c.l.b16 %v329
      %v662 = vunpack.c.l.b16 %v330
      %v663 = vpack.c.b16 %v662, %v661
      %v668 = vunpack.c.l.b16 %v655
      %v669 = vunpack.c.l.b16 %v656
      %v670 = vunpack.c.l.b16 %v657
      %v671 = vunpack.c.l.b16 %v658
      %v672 = vpack.c.b16 %v669, %v668
      %v673 = vpack.c.b16 %v671, %v670
      %v677 = vsel %vm369, %v663, 0
      %679 = vmatprep.subr.bf16.mxu0 0
      %680 = vmatpush1.bf16.msra.mxu0 0
      %681 = vmatprep.subr.bf16.mxu0 0
      %682 = vmatpush1.bf16.msra.mxu0 0
      %683 = vmatprep.subr.bf16.mxu0 0
      %684 = vmatpush1.bf16.msra.mxu0 0
      %685 = vmatprep.subr.bf16.mxu0 0
      %686 = vmatpush1.bf16.msra.mxu0 0
      %687 = vmatprep.subr.bf16.mxu0 0
      %688 = vmatpush1.bf16.msra.mxu0 0
      %689 = vmatprep.subr.bf16.mxu0 0
      %690 = vmatpush1.bf16.msra.mxu0 0
      %691 = vmatprep.subr.bf16.mxu0 0
      %692 = vmatpush1.bf16.msra.mxu0 %v673
      %693 = vmatprep.subr.bf16.mxu0 0
      %694 = vmatpush1.bf16.msra.mxu0 %v672
      %695 = vmatprep.subr.bf16.mxu0 0
      %696 = vmatpush2.bf16.msra.mxu0 0
      %697 = vmatprep.subr.bf16.mxu0 0
      %698 = vmatpush2.bf16.msra.mxu0 0
      %699 = vmatprep.subr.bf16.mxu0 0
      %700 = vmatpush2.bf16.msra.mxu0 0
      %701 = vmatprep.subr.bf16.mxu0 0
      %702 = vmatpush2.bf16.msra.mxu0 0
      %703 = vmatprep.subr.bf16.mxu0 0
      %704 = vmatpush2.bf16.msra.mxu0 0
      %705 = vmatprep.subr.bf16.mxu0 0
      %706 = vmatpush2.bf16.msra.mxu0 0
      %707 = vmatprep.subr.bf16.mxu0 0
      %708 = vmatpush2.bf16.msra.mxu0 0
      %709 = vmatprep.subr.bf16.mxu0 0
      %710 = vmatpush2.bf16.msra.mxu0 0
      %711 = vmatprep.mubr.bf16.mxu0 0
      %712 = vmatmul.mubr.bf16.gmra.mxu0 %v477
      %v713 = vpop.f32.mrf.mxu0
      %v714 = vadd.f32 0.0, %v713
      %v715 = vpop.f32.mrf.mxu0
      %v716 = vpop.f32.mrf.mxu0
      %v717 = vadd.f32 0.0, %v716
      %v718 = vpop.f32.mrf.mxu0
      %719 = vmatprep.mubr.bf16.mxu0 0
      %720 = vmatmul.mubr.bf16.gmra.mxu0 %v577
      %v721 = vpop.f32.mrf.mxu0
      %v722 = vadd.f32 0.0, %v721
      %v723 = vpop.f32.mrf.mxu0
      %v724 = vpop.f32.mrf.mxu0
      %v725 = vadd.f32 0.0, %v724
      %v726 = vpop.f32.mrf.mxu0
      %727 = vmatprep.mubr.bf16.mxu0 0
      %728 = vmatmul.mubr.bf16.gmra.mxu0 %v677
      %v729 = vpop.f32.mrf.mxu0
      %v730 = vadd.f32 0.0, %v729
      %v731 = vpop.f32.mrf.mxu0
      %v732 = vpop.f32.mrf.mxu0
      %v733 = vadd.f32 0.0, %v732
      %v734 = vpop.f32.mrf.mxu0
      %735 = vdwg.mxu0
      %v736 = vadd.f32 %v648, %v714
      %v737 = vadd.f32 %v649, %v717
      %v738 = vadd.f32 %v650, %v722
      %v739 = vadd.f32 %v651, %v725
      %v740 = vadd.f32 %v652, %v730
      %v741 = vadd.f32 %v653, %v733
      %742 = vst.msk [vmem:[#allocation2] sm:$0xff] %vm369, %v736
      %743 = vst.msk [vmem:[#allocation2 + $0x8] sm:$0xff] %vm369, %v737
      %744 = vst.msk [vmem:[#allocation2 + $0x10] sm:$0xff] %vm369, %v738
      %745 = vst.msk [vmem:[#allocation2 + $0x18] sm:$0xff] %vm369, %v739
      %746 = vst.msk [vmem:[#allocation2 + $0x20] sm:$0xff] %vm369, %v740
      %747 = vst.msk [vmem:[#allocation2 + $0x28] sm:$0xff] %vm369, %v741
      %vm748 = vsmask.f32 3328
      %vm749 = vsmask.f32 7440
      %vm750 = vmor %vm748, %vm749
      %v752 = vshrl.u32 %v314, 16
      %v754 = vrot.slane %v752, 4
      %v755 = vshll.u32 %v314, 16
      %v757 = vrot.slane %v755, 5
      %v758 = vor.u32 %v754, %v757
      %v759 = vrot.slane %v758, 4
      %v761 = vshll.u32 %v315, 16
      %v763 = vrot.slane %v761, 5
      %v764 = vsel %vm750, %v759, %v763
      %v765 = vshrl.u32 %v315, 16
      %v767 = vrot.slane %v765, 4
      %v768 = vor.u32 %v767, %v763
      %v769 = vrot.slane %v768, 4
      %v771 = vshll.u32 %v316, 16
      %v773 = vrot.slane %v771, 5
      %v774 = vsel %vm750, %v769, %v773
      %v776 = vshrl.u32 %v317, 16
      %v778 = vrot.slane %v776, 4
      %v779 = vshll.u32 %v317, 16
      %v781 = vrot.slane %v779, 5
      %v782 = vor.u32 %v778, %v781
      %v783 = vrot.slane %v782, 4
      %v785 = vshll.u32 %v318, 16
      %v787 = vrot.slane %v785, 5
      %v788 = vsel %vm750, %v783, %v787
      %v789 = vshrl.u32 %v318, 16
      %v791 = vrot.slane %v789, 4
      %v792 = vor.u32 %v791, %v787
      %v793 = vrot.slane %v792, 4
      %v795 = vshll.u32 %v319, 16
      %v797 = vrot.slane %v795, 5
      %v798 = vsel %vm750, %v793, %v797
      %v800 = vshrl.u32 %v320, 16
      %v802 = vrot.slane %v800, 4
      %v803 = vshll.u32 %v320, 16
      %v805 = vrot.slane %v803, 5
      %v806 = vor.u32 %v802, %v805
      %v807 = vrot.slane %v806, 4
      %v809 = vshll.u32 %v321, 16
      %v811 = vrot.slane %v809, 5
      %v812 = vsel %vm750, %v807, %v811
      %v813 = vshrl.u32 %v321, 16
      %v815 = vrot.slane %v813, 4
      %v816 = vor.u32 %v815, %v811
      %v817 = vrot.slane %v816, 4
      %v819 = vshll.u32 %v322, 16
      %v821 = vrot.slane %v819, 5
      %v822 = vsel %vm750, %v817, %v821
      %v823 = vld [vmem:[#allocation2] sm:$0xff]
      %v824 = vld [vmem:[#allocation2 + $0x8] sm:$0xff]
      %v825 = vld [vmem:[#allocation2 + $0x10] sm:$0xff]
      %v826 = vld [vmem:[#allocation2 + $0x18] sm:$0xff]
      %v827 = vld [vmem:[#allocation2 + $0x20] sm:$0xff]
      %v828 = vld [vmem:[#allocation2 + $0x28] sm:$0xff]
      %s829 = scalar_lea.vmem %s282, 16
      %v830 = vld [vmem:[%s829] sm:$0xf]
      %v831 = vld [vmem:[%s829 + $0x4] sm:$0xf]
      %v832 = vld [vmem:[%s829 + $0x8] sm:$0xf]
      %v833 = vld [vmem:[%s829 + $0xc] sm:$0xf]
      %v834 = vunpack.c.l.b16 %v764
      %v835 = vunpack.c.l.b16 %v774
      %v836 = vunpack.c.l.b16 %v788
      %v837 = vunpack.c.l.b16 %v798
      %v838 = vunpack.c.l.b16 %v812
      %v839 = vunpack.c.l.b16 %v822
      %v840 = vpack.c.b16 %v835, %v834
      %v841 = vpack.c.b16 %v837, %v836
      %v842 = vpack.c.b16 %v839, %v838
      %v847 = vunpack.c.l.b16 %v830
      %v848 = vunpack.c.l.b16 %v831
      %v849 = vunpack.c.l.b16 %v832
      %v850 = vunpack.c.l.b16 %v833
      %v851 = vpack.c.b16 %v848, %v847
      %v852 = vpack.c.b16 %v850, %v849
      %v856 = vsel %vm369, %v840, 0
      %v859 = vsel %vm369, %v841, 0
      %v862 = vsel %vm369, %v842, 0
      %864 = vmatprep.subr.bf16.mxu0 0
      %865 = vmatpush1.bf16.msra.mxu0 0
      %866 = vmatprep.subr.bf16.mxu0 0
      %867 = vmatpush1.bf16.msra.mxu0 0
      %868 = vmatprep.subr.bf16.mxu0 0
      %869 = vmatpush1.bf16.msra.mxu0 0
      %870 = vmatprep.subr.bf16.mxu0 0
      %871 = vmatpush1.bf16.msra.mxu0 0
      %872 = vmatprep.subr.bf16.mxu0 0
      %873 = vmatpush1.bf16.msra.mxu0 0
      %874 = vmatprep.subr.bf16.mxu0 0
      %875 = vmatpush1.bf16.msra.mxu0 0
      %876 = vmatprep.subr.bf16.mxu0 0
      %877 = vmatpush1.bf16.msra.mxu0 %v852
      %878 = vmatprep.subr.bf16.mxu0 0
      %879 = vmatpush1.bf16.msra.mxu0 %v851
      %880 = vmatprep.subr.bf16.mxu0 0
      %881 = vmatpush2.bf16.msra.mxu0 0
      %882 = vmatprep.subr.bf16.mxu0 0
      %883 = vmatpush2.bf16.msra.mxu0 0
      %884 = vmatprep.subr.bf16.mxu0 0
      %885 = vmatpush2.bf16.msra.mxu0 0
      %886 = vmatprep.subr.bf16.mxu0 0
      %887 = vmatpush2.bf16.msra.mxu0 0
      %888 = vmatprep.subr.bf16.mxu0 0
      %889 = vmatpush2.bf16.msra.mxu0 0
      %890 = vmatprep.subr.bf16.mxu0 0
      %891 = vmatpush2.bf16.msra.mxu0 0
      %892 = vmatprep.subr.bf16.mxu0 0
      %893 = vmatpush2.bf16.msra.mxu0 0
      %894 = vmatprep.subr.bf16.mxu0 0
      %895 = vmatpush2.bf16.msra.mxu0 0
      %896 = vmatprep.mubr.bf16.mxu0 0
      %897 = vmatmul.mubr.bf16.gmra.mxu0 %v856
      %v898 = vpop.f32.mrf.mxu0
      %v899 = vadd.f32 0.0, %v898
      %v900 = vpop.f32.mrf.mxu0
      %v901 = vpop.f32.mrf.mxu0
      %v902 = vadd.f32 0.0, %v901
      %v903 = vpop.f32.mrf.mxu0
      %904 = vmatprep.mubr.bf16.mxu0 0
      %905 = vmatmul.mubr.bf16.gmra.mxu0 %v859
      %v906 = vpop.f32.mrf.mxu0
      %v907 = vadd.f32 0.0, %v906
      %v908 = vpop.f32.mrf.mxu0
      %v909 = vpop.f32.mrf.mxu0
      %v910 = vadd.f32 0.0, %v909
      %v911 = vpop.f32.mrf.mxu0
      %912 = vmatprep.mubr.bf16.mxu0 0
      %913 = vmatmul.mubr.bf16.gmra.mxu0 %v862
      %v914 = vpop.f32.mrf.mxu0
      %v915 = vadd.f32 0.0, %v914
      %v916 = vpop.f32.mrf.mxu0
      %v917 = vpop.f32.mrf.mxu0
      %v918 = vadd.f32 0.0, %v917
      %v919 = vpop.f32.mrf.mxu0
      %920 = vdwg.mxu0
      %v921 = vadd.f32 %v823, %v899
      %v922 = vadd.f32 %v824, %v902
      %v923 = vadd.f32 %v825, %v907
      %v924 = vadd.f32 %v826, %v910
      %v925 = vadd.f32 %v827, %v915
      %v926 = vadd.f32 %v828, %v918
      %927 = vst.msk [vmem:[#allocation2] sm:$0xff] %vm369, %v921
      %928 = vst.msk [vmem:[#allocation2 + $0x8] sm:$0xff] %vm369, %v922
      %929 = vst.msk [vmem:[#allocation2 + $0x10] sm:$0xff] %vm369, %v923
      %930 = vst.msk [vmem:[#allocation2 + $0x18] sm:$0xff] %vm369, %v924
      %931 = vst.msk [vmem:[#allocation2 + $0x20] sm:$0xff] %vm369, %v925
      %932 = vst.msk [vmem:[#allocation2 + $0x28] sm:$0xff] %vm369, %v926
      %v934 = vshrl.u32 %v323, 16
      %v936 = vrot.slane %v934, 4
      %v937 = vshll.u32 %v323, 16
      %v939 = vrot.slane %v937, 5
      %v940 = vor.u32 %v936, %v939
      %v941 = vrot.slane %v940, 4
      %v943 = vshll.u32 %v324, 16
      %v945 = vrot.slane %v943, 5
      %v946 = vsel %vm750, %v941, %v945
      %v947 = vshrl.u32 %v324, 16
      %v949 = vrot.slane %v947, 4
      %v950 = vor.u32 %v949, %v945
      %v951 = vrot.slane %v950, 4
      %v953 = vshll.u32 %v325, 16
      %v955 = vrot.slane %v953, 5
      %v956 = vsel %vm750, %v951, %v955
      %v957 = vld [vmem:[#allocation2] sm:$0xff]
      %v958 = vld [vmem:[#allocation2 + $0x8] sm:$0xff]
      %v959 = vld [vmem:[#allocation2 + $0x10] sm:$0xff]
      %v960 = vld [vmem:[#allocation2 + $0x18] sm:$0xff]
      %v961 = vld [vmem:[#allocation2 + $0x20] sm:$0xff]
      %v962 = vld [vmem:[#allocation2 + $0x28] sm:$0xff]
      %s963 = scalar_lea.vmem %s282, 80
      %v964 = vld [vmem:[%s963] sm:$0xf]
      %v965 = vld [vmem:[%s963 + $0x4] sm:$0xf]
      %v966 = vld [vmem:[%s963 + $0x8] sm:$0xf]
      %v967 = vld [vmem:[%s963 + $0xc] sm:$0xf]
      %v968 = vunpack.c.l.b16 %v946
      %v969 = vunpack.c.l.b16 %v956
      %v970 = vpack.c.b16 %v969, %v968
      %v975 = vunpack.c.l.b16 %v964
      %v976 = vunpack.c.l.b16 %v965
      %v977 = vunpack.c.l.b16 %v966
      %v978 = vunpack.c.l.b16 %v967
      %v979 = vpack.c.b16 %v976, %v975
      %v980 = vpack.c.b16 %v978, %v977
      %v984 = vsel %vm369, %v970, 0
      %986 = vmatprep.subr.bf16.mxu0 0
      %987 = vmatpush1.bf16.msra.mxu0 0
      %988 = vmatprep.subr.bf16.mxu0 0
      %989 = vmatpush1.bf16.msra.mxu0 0
      %990 = vmatprep.subr.bf16.mxu0 0
      %991 = vmatpush1.bf16.msra.mxu0 0
      %992 = vmatprep.subr.bf16.mxu0 0
      %993 = vmatpush1.bf16.msra.mxu0 0
      %994 = vmatprep.subr.bf16.mxu0 0
      %995 = vmatpush1.bf16.msra.mxu0 0
      %996 = vmatprep.subr.bf16.mxu0 0
      %997 = vmatpush1.bf16.msra.mxu0 0
      %998 = vmatprep.subr.bf16.mxu0 0
      %999 = vmatpush1.bf16.msra.mxu0 %v980
      %1000 = vmatprep.subr.bf16.mxu0 0
      %1001 = vmatpush1.bf16.msra.mxu0 %v979
      %1002 = vmatprep.subr.bf16.mxu0 0
      %1003 = vmatpush2.bf16.msra.mxu0 0
      %1004 = vmatprep.subr.bf16.mxu0 0
      %1005 = vmatpush2.bf16.msra.mxu0 0
      %1006 = vmatprep.subr.bf16.mxu0 0
      %1007 = vmatpush2.bf16.msra.mxu0 0
      %1008 = vmatprep.subr.bf16.mxu0 0
      %1009 = vmatpush2.bf16.msra.mxu0 0
      %1010 = vmatprep.subr.bf16.mxu0 0
      %1011 = vmatpush2.bf16.msra.mxu0 0
      %1012 = vmatprep.subr.bf16.mxu0 0
      %1013 = vmatpush2.bf16.msra.mxu0 0
      %1014 = vmatprep.subr.bf16.mxu0 0
      %1015 = vmatpush2.bf16.msra.mxu0 0
      %1016 = vmatprep.subr.bf16.mxu0 0
      %1017 = vmatpush2.bf16.msra.mxu0 0
      %1018 = vmatprep.mubr.bf16.mxu0 0
      %1019 = vmatmul.mubr.bf16.gmra.mxu0 %v859
      %v1020 = vpop.f32.mrf.mxu0
      %v1021 = vadd.f32 0.0, %v1020
      %v1022 = vpop.f32.mrf.mxu0
      %v1023 = vpop.f32.mrf.mxu0
      %v1024 = vadd.f32 0.0, %v1023
      %v1025 = vpop.f32.mrf.mxu0
      %1026 = vmatprep.mubr.bf16.mxu0 0
      %1027 = vmatmul.mubr.bf16.gmra.mxu0 %v862
      %v1028 = vpop.f32.mrf.mxu0
      %v1029 = vadd.f32 0.0, %v1028
      %v1030 = vpop.f32.mrf.mxu0
      %v1031 = vpop.f32.mrf.mxu0
      %v1032 = vadd.f32 0.0, %v1031
      %v1033 = vpop.f32.mrf.mxu0
      %1034 = vmatprep.mubr.bf16.mxu0 0
      %1035 = vmatmul.mubr.bf16.gmra.mxu0 %v984
      %v1036 = vpop.f32.mrf.mxu0
      %v1037 = vadd.f32 0.0, %v1036
      %v1038 = vpop.f32.mrf.mxu0
      %v1039 = vpop.f32.mrf.mxu0
      %v1040 = vadd.f32 0.0, %v1039
      %v1041 = vpop.f32.mrf.mxu0
      %1042 = vdwg.mxu0
      %v1043 = vadd.f32 %v957, %v1021
      %v1044 = vadd.f32 %v958, %v1024
      %v1045 = vadd.f32 %v959, %v1029
      %v1046 = vadd.f32 %v960, %v1032
      %v1047 = vadd.f32 %v961, %v1037
      %v1048 = vadd.f32 %v962, %v1040
      %1049 = vst.msk [vmem:[#allocation2] sm:$0xff] %vm369, %v1043
      %1050 = vst.msk [vmem:[#allocation2 + $0x8] sm:$0xff] %vm369, %v1044
      %1051 = vst.msk [vmem:[#allocation2 + $0x10] sm:$0xff] %vm369, %v1045
      %1052 = vst.msk [vmem:[#allocation2 + $0x18] sm:$0xff] %vm369, %v1046
      %1053 = vst.msk [vmem:[#allocation2 + $0x20] sm:$0xff] %vm369, %v1047
      %1054 = vst.msk [vmem:[#allocation2 + $0x28] sm:$0xff] %vm369, %v1048
      %v1056 = vshrl.u32 %v326, 16
      %v1058 = vrot.slane %v1056, 4
      %v1059 = vshll.u32 %v326, 16
      %v1061 = vrot.slane %v1059, 5
      %v1062 = vor.u32 %v1058, %v1061
      %v1063 = vrot.slane %v1062, 4
      %v1065 = vshll.u32 %v327, 16
      %v1067 = vrot.slane %v1065, 5
      %v1068 = vsel %vm750, %v1063, %v1067
      %v1069 = vshrl.u32 %v327, 16
      %v1071 = vrot.slane %v1069, 4
      %v1072 = vor.u32 %v1071, %v1067
      %v1073 = vrot.slane %v1072, 4
      %v1075 = vshll.u32 %v328, 16
      %v1077 = vrot.slane %v1075, 5
      %v1078 = vsel %vm750, %v1073, %v1077
      %v1079 = vld [vmem:[#allocation2] sm:$0xff]
      %v1080 = vld [vmem:[#allocation2 + $0x8] sm:$0xff]
      %v1081 = vld [vmem:[#allocation2 + $0x10] sm:$0xff]
      %v1082 = vld [vmem:[#allocation2 + $0x18] sm:$0xff]
      %v1083 = vld [vmem:[#allocation2 + $0x20] sm:$0xff]
      %v1084 = vld [vmem:[#allocation2 + $0x28] sm:$0xff]
      %s1085 = scalar_lea.vmem %s282, 144
      %v1086 = vld [vmem:[%s1085] sm:$0xf]
      %v1087 = vld [vmem:[%s1085 + $0x4] sm:$0xf]
      %v1088 = vld [vmem:[%s1085 + $0x8] sm:$0xf]
      %v1089 = vld [vmem:[%s1085 + $0xc] sm:$0xf]
      %v1090 = vunpack.c.l.b16 %v1068
      %v1091 = vunpack.c.l.b16 %v1078
      %v1092 = vpack.c.b16 %v1091, %v1090
      %v1097 = vunpack.c.l.b16 %v1086
      %v1098 = vunpack.c.l.b16 %v1087
      %v1099 = vunpack.c.l.b16 %v1088
      %v1100 = vunpack.c.l.b16 %v1089
      %v1101 = vpack.c.b16 %v1098, %v1097
      %v1102 = vpack.c.b16 %v1100, %v1099
      %v1106 = vsel %vm369, %v1092, 0
      %1108 = vmatprep.subr.bf16.mxu0 0
      %1109 = vmatpush1.bf16.msra.mxu0 0
      %1110 = vmatprep.subr.bf16.mxu0 0
      %1111 = vmatpush1.bf16.msra.mxu0 0
      %1112 = vmatprep.subr.bf16.mxu0 0
      %1113 = vmatpush1.bf16.msra.mxu0 0
      %1114 = vmatprep.subr.bf16.mxu0 0
      %1115 = vmatpush1.bf16.msra.mxu0 0
      %1116 = vmatprep.subr.bf16.mxu0 0
      %1117 = vmatpush1.bf16.msra.mxu0 0
      %1118 = vmatprep.subr.bf16.mxu0 0
      %1119 = vmatpush1.bf16.msra.mxu0 0
      %1120 = vmatprep.subr.bf16.mxu0 0
      %1121 = vmatpush1.bf16.msra.mxu0 %v1102
      %1122 = vmatprep.subr.bf16.mxu0 0
      %1123 = vmatpush1.bf16.msra.mxu0 %v1101
      %1124 = vmatprep.subr.bf16.mxu0 0
      %1125 = vmatpush2.bf16.msra.mxu0 0
      %1126 = vmatprep.subr.bf16.mxu0 0
      %1127 = vmatpush2.bf16.msra.mxu0 0
      %1128 = vmatprep.subr.bf16.mxu0 0
      %1129 = vmatpush2.bf16.msra.mxu0 0
      %1130 = vmatprep.subr.bf16.mxu0 0
      %1131 = vmatpush2.bf16.msra.mxu0 0
      %1132 = vmatprep.subr.bf16.mxu0 0
      %1133 = vmatpush2.bf16.msra.mxu0 0
      %1134 = vmatprep.subr.bf16.mxu0 0
      %1135 = vmatpush2.bf16.msra.mxu0 0
      %1136 = vmatprep.subr.bf16.mxu0 0
      %1137 = vmatpush2.bf16.msra.mxu0 0
      %1138 = vmatprep.subr.bf16.mxu0 0
      %1139 = vmatpush2.bf16.msra.mxu0 0
      %1140 = vmatprep.mubr.bf16.mxu0 0
      %1141 = vmatmul.mubr.bf16.gmra.mxu0 %v862
      %v1142 = vpop.f32.mrf.mxu0
      %v1143 = vadd.f32 0.0, %v1142
      %v1144 = vpop.f32.mrf.mxu0
      %v1145 = vpop.f32.mrf.mxu0
      %v1146 = vadd.f32 0.0, %v1145
      %v1147 = vpop.f32.mrf.mxu0
      %1148 = vmatprep.mubr.bf16.mxu0 0
      %1149 = vmatmul.mubr.bf16.gmra.mxu0 %v984
      %v1150 = vpop.f32.mrf.mxu0
      %v1151 = vadd.f32 0.0, %v1150
      %v1152 = vpop.f32.mrf.mxu0
      %v1153 = vpop.f32.mrf.mxu0
      %v1154 = vadd.f32 0.0, %v1153
      %v1155 = vpop.f32.mrf.mxu0
      %1156 = vmatprep.mubr.bf16.mxu0 0
      %1157 = vmatmul.mubr.bf16.gmra.mxu0 %v1106
      %v1158 = vpop.f32.mrf.mxu0
      %v1159 = vadd.f32 0.0, %v1158
      %v1160 = vpop.f32.mrf.mxu0
      %v1161 = vpop.f32.mrf.mxu0
      %v1162 = vadd.f32 0.0, %v1161
      %v1163 = vpop.f32.mrf.mxu0
      %1164 = vdwg.mxu0
      %v1165 = vadd.f32 %v1079, %v1143
      %v1166 = vadd.f32 %v1080, %v1146
      %v1167 = vadd.f32 %v1081, %v1151
      %v1168 = vadd.f32 %v1082, %v1154
      %v1169 = vadd.f32 %v1083, %v1159
      %v1170 = vadd.f32 %v1084, %v1162
      %1171 = vst.msk [vmem:[#allocation2] sm:$0xff] %vm369, %v1165
      %1172 = vst.msk [vmem:[#allocation2 + $0x8] sm:$0xff] %vm369, %v1166
      %1173 = vst.msk [vmem:[#allocation2 + $0x10] sm:$0xff] %vm369, %v1167
      %1174 = vst.msk [vmem:[#allocation2 + $0x18] sm:$0xff] %vm369, %v1168
      %1175 = vst.msk [vmem:[#allocation2 + $0x20] sm:$0xff] %vm369, %v1169
      %1176 = vst.msk [vmem:[#allocation2 + $0x28] sm:$0xff] %vm369, %v1170
      %v1178 = vshrl.u32 %v329, 16
      %v1180 = vrot.slane %v1178, 4
      %v1181 = vshll.u32 %v329, 16
      %v1183 = vrot.slane %v1181, 5
      %v1184 = vor.u32 %v1180, %v1183
      %v1185 = vrot.slane %v1184, 4
      %v1187 = vshll.u32 %v330, 16
      %v1189 = vrot.slane %v1187, 5
      %v1190 = vsel %vm750, %v1185, %v1189
      %v1191 = vshrl.u32 %v330, 16
      %v1193 = vrot.slane %v1191, 4
      %v1194 = vor.u32 %v1193, %v1189
      %v1195 = vrot.slane %v1194, 4
      %v1197 = vshll.u32 %v331, 16
      %v1199 = vrot.slane %v1197, 5
      %v1200 = vsel %vm750, %v1195, %v1199
      %v1201 = vld [vmem:[#allocation2] sm:$0xff]
      %v1202 = vld [vmem:[#allocation2 + $0x8] sm:$0xff]
      %v1203 = vld [vmem:[#allocation2 + $0x10] sm:$0xff]
      %v1204 = vld [vmem:[#allocation2 + $0x18] sm:$0xff]
      %v1205 = vld [vmem:[#allocation2 + $0x20] sm:$0xff]
      %v1206 = vld [vmem:[#allocation2 + $0x28] sm:$0xff]
      %s1207 = scalar_lea.vmem %s282, 208
      %v1208 = vld [vmem:[%s1207] sm:$0xf]
      %v1209 = vld [vmem:[%s1207 + $0x4] sm:$0xf]
      %v1210 = vld [vmem:[%s1207 + $0x8] sm:$0xf]
      %v1211 = vld [vmem:[%s1207 + $0xc] sm:$0xf]
      %v1212 = vunpack.c.l.b16 %v1190
      %v1213 = vunpack.c.l.b16 %v1200
      %v1214 = vpack.c.b16 %v1213, %v1212
      %v1219 = vunpack.c.l.b16 %v1208
      %v1220 = vunpack.c.l.b16 %v1209
      %v1221 = vunpack.c.l.b16 %v1210
      %v1222 = vunpack.c.l.b16 %v1211
      %v1223 = vpack.c.b16 %v1220, %v1219
      %v1224 = vpack.c.b16 %v1222, %v1221
      %v1228 = vsel %vm369, %v1214, 0
      %1230 = vmatprep.subr.bf16.mxu0 0
      %1231 = vmatpush1.bf16.msra.mxu0 0
      %1232 = vmatprep.subr.bf16.mxu0 0
      %1233 = vmatpush1.bf16.msra.mxu0 0
      %1234 = vmatprep.subr.bf16.mxu0 0
      %1235 = vmatpush1.bf16.msra.mxu0 0
      %1236 = vmatprep.subr.bf16.mxu0 0
      %1237 = vmatpush1.bf16.msra.mxu0 0
      %1238 = vmatprep.subr.bf16.mxu0 0
      %1239 = vmatpush1.bf16.msra.mxu0 0
      %1240 = vmatprep.subr.bf16.mxu0 0
      %1241 = vmatpush1.bf16.msra.mxu0 0
      %1242 = vmatprep.subr.bf16.mxu0 0
      %1243 = vmatpush1.bf16.msra.mxu0 %v1224
      %1244 = vmatprep.subr.bf16.mxu0 0
      %1245 = vmatpush1.bf16.msra.mxu0 %v1223
      %1246 = vmatprep.subr.bf16.mxu0 0
      %1247 = vmatpush2.bf16.msra.mxu0 0
      %1248 = vmatprep.subr.bf16.mxu0 0
      %1249 = vmatpush2.bf16.msra.mxu0 0
      %1250 = vmatprep.subr.bf16.mxu0 0
      %1251 = vmatpush2.bf16.msra.mxu0 0
      %1252 = vmatprep.subr.bf16.mxu0 0
      %1253 = vmatpush2.bf16.msra.mxu0 0
      %1254 = vmatprep.subr.bf16.mxu0 0
      %1255 = vmatpush2.bf16.msra.mxu0 0
      %1256 = vmatprep.subr.bf16.mxu0 0
      %1257 = vmatpush2.bf16.msra.mxu0 0
      %1258 = vmatprep.subr.bf16.mxu0 0
      %1259 = vmatpush2.bf16.msra.mxu0 0
      %1260 = vmatprep.subr.bf16.mxu0 0
      %1261 = vmatpush2.bf16.msra.mxu0 0
      %1262 = vmatprep.mubr.bf16.mxu0 0
      %1263 = vmatmul.mubr.bf16.gmra.mxu0 %v984
      %v1264 = vpop.f32.mrf.mxu0
      %v1265 = vadd.f32 0.0, %v1264
      %v1266 = vpop.f32.mrf.mxu0
      %v1267 = vpop.f32.mrf.mxu0
      %v1268 = vadd.f32 0.0, %v1267
      %v1269 = vpop.f32.mrf.mxu0
      %1270 = vmatprep.mubr.bf16.mxu0 0
      %1271 = vmatmul.mubr.bf16.gmra.mxu0 %v1106
      %v1272 = vpop.f32.mrf.mxu0
      %v1273 = vadd.f32 0.0, %v1272
      %v1274 = vpop.f32.mrf.mxu0
      %v1275 = vpop.f32.mrf.mxu0
      %v1276 = vadd.f32 0.0, %v1275
      %v1277 = vpop.f32.mrf.mxu0
      %1278 = vmatprep.mubr.bf16.mxu0 0
      %1279 = vmatmul.mubr.bf16.gmra.mxu0 %v1228
      %v1280 = vpop.f32.mrf.mxu0
      %v1281 = vadd.f32 0.0, %v1280
      %v1282 = vpop.f32.mrf.mxu0
      %v1283 = vpop.f32.mrf.mxu0
      %v1284 = vadd.f32 0.0, %v1283
      %v1285 = vpop.f32.mrf.mxu0
      %1286 = vdwg.mxu0
      %v1287 = vadd.f32 %v1201, %v1265
      %v1288 = vadd.f32 %v1202, %v1268
      %v1289 = vadd.f32 %v1203, %v1273
      %v1290 = vadd.f32 %v1204, %v1276
      %v1291 = vadd.f32 %v1205, %v1281
      %v1292 = vadd.f32 %v1206, %v1284
      %1293 = vst.msk [vmem:[#allocation2] sm:$0xff] %vm369, %v1287
      %1294 = vst.msk [vmem:[#allocation2 + $0x8] sm:$0xff] %vm369, %v1288
      %1295 = vst.msk [vmem:[#allocation2 + $0x10] sm:$0xff] %vm369, %v1289
      %1296 = vst.msk [vmem:[#allocation2 + $0x18] sm:$0xff] %vm369, %v1290
      %1297 = vst.msk [vmem:[#allocation2 + $0x20] sm:$0xff] %vm369, %v1291
      %1298 = vst.msk [vmem:[#allocation2 + $0x28] sm:$0xff] %vm369, %v1292
      %vm1302 = vcmask 1042432
      %vm1303 = vcmask 1046532
      %vm1304 = vmor %vm1302, %vm1303
      %v1305 = vrot.slane %v314, 5
      %v1306 = vrot.slane %v1305, 4
      %v1307 = vrot.slane %v315, 5
      %v1308 = vsel %vm1304, %v1306, %v1307
      %v1309 = vrot.slane %v1307, 4
      %v1310 = vrot.slane %v316, 5
      %v1311 = vsel %vm1304, %v1309, %v1310
      %v1312 = vrot.slane %v317, 5
      %v1313 = vrot.slane %v1312, 4
      %v1314 = vrot.slane %v318, 5
      %v1315 = vsel %vm1304, %v1313, %v1314
      %v1316 = vrot.slane %v1314, 4
      %v1317 = vrot.slane %v319, 5
      %v1318 = vsel %vm1304, %v1316, %v1317
      %v1319 = vrot.slane %v320, 5
      %v1320 = vrot.slane %v1319, 4
      %v1321 = vrot.slane %v321, 5
      %v1322 = vsel %vm1304, %v1320, %v1321
      %v1323 = vrot.slane %v1321, 4
      %v1324 = vrot.slane %v322, 5
      %v1325 = vsel %vm1304, %v1323, %v1324
      %v1326 = vld [vmem:[#allocation2] sm:$0xff]
      %v1327 = vld [vmem:[#allocation2 + $0x8] sm:$0xff]
      %v1328 = vld [vmem:[#allocation2 + $0x10] sm:$0xff]
      %v1329 = vld [vmem:[#allocation2 + $0x18] sm:$0xff]
      %v1330 = vld [vmem:[#allocation2 + $0x20] sm:$0xff]
      %v1331 = vld [vmem:[#allocation2 + $0x28] sm:$0xff]
      %s1332 = scalar_lea.vmem %s282, 32
      %v1333 = vld [vmem:[%s1332] sm:$0xf]
      %v1334 = vld [vmem:[%s1332 + $0x4] sm:$0xf]
      %v1335 = vld [vmem:[%s1332 + $0x8] sm:$0xf]
      %v1336 = vld [vmem:[%s1332 + $0xc] sm:$0xf]
      %v1337 = vunpack.c.l.b16 %v1308
      %v1338 = vunpack.c.l.b16 %v1311
      %v1339 = vunpack.c.l.b16 %v1315
      %v1340 = vunpack.c.l.b16 %v1318
      %v1341 = vunpack.c.l.b16 %v1322
      %v1342 = vunpack.c.l.b16 %v1325
      %v1343 = vpack.c.b16 %v1338, %v1337
      %v1344 = vpack.c.b16 %v1340, %v1339
      %v1345 = vpack.c.b16 %v1342, %v1341
      %v1350 = vunpack.c.l.b16 %v1333
      %v1351 = vunpack.c.l.b16 %v1334
      %v1352 = vunpack.c.l.b16 %v1335
      %v1353 = vunpack.c.l.b16 %v1336
      %v1354 = vpack.c.b16 %v1351, %v1350
      %v1355 = vpack.c.b16 %v1353, %v1352
      %v1359 = vsel %vm369, %v1343, 0
      %v1362 = vsel %vm369, %v1344, 0
      %v1365 = vsel %vm369, %v1345, 0
      %1367 = vmatprep.subr.bf16.mxu0 0
      %1368 = vmatpush1.bf16.msra.mxu0 0
      %1369 = vmatprep.subr.bf16.mxu0 0
      %1370 = vmatpush1.bf16.msra.mxu0 0
      %1371 = vmatprep.subr.bf16.mxu0 0
      %1372 = vmatpush1.bf16.msra.mxu0 0
      %1373 = vmatprep.subr.bf16.mxu0 0
      %1374 = vmatpush1.bf16.msra.mxu0 0
      %1375 = vmatprep.subr.bf16.mxu0 0
      %1376 = vmatpush1.bf16.msra.mxu0 0
      %1377 = vmatprep.subr.bf16.mxu0 0
      %1378 = vmatpush1.bf16.msra.mxu0 0
      %1379 = vmatprep.subr.bf16.mxu0 0
      %1380 = vmatpush1.bf16.msra.mxu0 %v1355
      %1381 = vmatprep.subr.bf16.mxu0 0
      %1382 = vmatpush1.bf16.msra.mxu0 %v1354
      %1383 = vmatprep.subr.bf16.mxu0 0
      %1384 = vmatpush2.bf16.msra.mxu0 0
      %1385 = vmatprep.subr.bf16.mxu0 0
      %1386 = vmatpush2.bf16.msra.mxu0 0
      %1387 = vmatprep.subr.bf16.mxu0 0
      %1388 = vmatpush2.bf16.msra.mxu0 0
      %1389 = vmatprep.subr.bf16.mxu0 0
      %1390 = vmatpush2.bf16.msra.mxu0 0
      %1391 = vmatprep.subr.bf16.mxu0 0
      %1392 = vmatpush2.bf16.msra.mxu0 0
      %1393 = vmatprep.subr.bf16.mxu0 0
      %1394 = vmatpush2.bf16.msra.mxu0 0
      %1395 = vmatprep.subr.bf16.mxu0 0
      %1396 = vmatpush2.bf16.msra.mxu0 0
      %1397 = vmatprep.subr.bf16.mxu0 0
      %1398 = vmatpush2.bf16.msra.mxu0 0
      %1399 = vmatprep.mubr.bf16.mxu0 0
      %1400 = vmatmul.mubr.bf16.gmra.mxu0 %v1359
      %v1401 = vpop.f32.mrf.mxu0
      %v1402 = vadd.f32 0.0, %v1401
      %v1403 = vpop.f32.mrf.mxu0
      %v1404 = vpop.f32.mrf.mxu0
      %v1405 = vadd.f32 0.0, %v1404
      %v1406 = vpop.f32.mrf.mxu0
      %1407 = vmatprep.mubr.bf16.mxu0 0
      %1408 = vmatmul.mubr.bf16.gmra.mxu0 %v1362
      %v1409 = vpop.f32.mrf.mxu0
      %v1410 = vadd.f32 0.0, %v1409
      %v1411 = vpop.f32.mrf.mxu0
      %v1412 = vpop.f32.mrf.mxu0
      %v1413 = vadd.f32 0.0, %v1412
      %v1414 = vpop.f32.mrf.mxu0
      %1415 = vmatprep.mubr.bf16.mxu0 0
      %1416 = vmatmul.mubr.bf16.gmra.mxu0 %v1365
      %v1417 = vpop.f32.mrf.mxu0
      %v1418 = vadd.f32 0.0, %v1417
      %v1419 = vpop.f32.mrf.mxu0
      %v1420 = vpop.f32.mrf.mxu0
      %v1421 = vadd.f32 0.0, %v1420
      %v1422 = vpop.f32.mrf.mxu0
      %1423 = vdwg.mxu0
      %v1424 = vadd.f32 %v1326, %v1402
      %v1425 = vadd.f32 %v1327, %v1405
      %v1426 = vadd.f32 %v1328, %v1410
      %v1427 = vadd.f32 %v1329, %v1413
      %v1428 = vadd.f32 %v1330, %v1418
      %v1429 = vadd.f32 %v1331, %v1421
      %1430 = vst.msk [vmem:[#allocation2] sm:$0xff] %vm369, %v1424
      %1431 = vst.msk [vmem:[#allocation2 + $0x8] sm:$0xff] %vm369, %v1425
      %1432 = vst.msk [vmem:[#allocation2 + $0x10] sm:$0xff] %vm369, %v1426
      %1433 = vst.msk [vmem:[#allocation2 + $0x18] sm:$0xff] %vm369, %v1427
      %1434 = vst.msk [vmem:[#allocation2 + $0x20] sm:$0xff] %vm369, %v1428
      %1435 = vst.msk [vmem:[#allocation2 + $0x28] sm:$0xff] %vm369, %v1429
      %v1437 = vrot.slane %v323, 5
      %v1438 = vrot.slane %v1437, 4
      %v1439 = vrot.slane %v324, 5
      %v1440 = vsel %vm1304, %v1438, %v1439
      %v1441 = vrot.slane %v1439, 4
      %v1442 = vrot.slane %v325, 5
      %v1443 = vsel %vm1304, %v1441, %v1442
      %v1444 = vld [vmem:[#allocation2] sm:$0xff]
      %v1445 = vld [vmem:[#allocation2 + $0x8] sm:$0xff]
      %v1446 = vld [vmem:[#allocation2 + $0x10] sm:$0xff]
      %v1447 = vld [vmem:[#allocation2 + $0x18] sm:$0xff]
      %v1448 = vld [vmem:[#allocation2 + $0x20] sm:$0xff]
      %v1449 = vld [vmem:[#allocation2 + $0x28] sm:$0xff]
      %s1450 = scalar_lea.vmem %s282, 96
      %v1451 = vld [vmem:[%s1450] sm:$0xf]
      %v1452 = vld [vmem:[%s1450 + $0x4] sm:$0xf]
      %v1453 = vld [vmem:[%s1450 + $0x8] sm:$0xf]
      %v1454 = vld [vmem:[%s1450 + $0xc] sm:$0xf]
      %v1455 = vunpack.c.l.b16 %v1440
      %v1456 = vunpack.c.l.b16 %v1443
      %v1457 = vpack.c.b16 %v1456, %v1455
      %v1462 = vunpack.c.l.b16 %v1451
      %v1463 = vunpack.c.l.b16 %v1452
      %v1464 = vunpack.c.l.b16 %v1453
      %v1465 = vunpack.c.l.b16 %v1454
      %v1466 = vpack.c.b16 %v1463, %v1462
      %v1467 = vpack.c.b16 %v1465, %v1464
      %v1471 = vsel %vm369, %v1457, 0
      %1473 = vmatprep.subr.bf16.mxu0 0
      %1474 = vmatpush1.bf16.msra.mxu0 0
      %1475 = vmatprep.subr.bf16.mxu0 0
      %1476 = vmatpush1.bf16.msra.mxu0 0
      %1477 = vmatprep.subr.bf16.mxu0 0
      %1478 = vmatpush1.bf16.msra.mxu0 0
      %1479 = vmatprep.subr.bf16.mxu0 0
      %1480 = vmatpush1.bf16.msra.mxu0 0
      %1481 = vmatprep.subr.bf16.mxu0 0
      %1482 = vmatpush1.bf16.msra.mxu0 0
      %1483 = vmatprep.subr.bf16.mxu0 0
      %1484 = vmatpush1.bf16.msra.mxu0 0
      %1485 = vmatprep.subr.bf16.mxu0 0
      %1486 = vmatpush1.bf16.msra.mxu0 %v1467
      %1487 = vmatprep.subr.bf16.mxu0 0
      %1488 = vmatpush1.bf16.msra.mxu0 %v1466
      %1489 = vmatprep.subr.bf16.mxu0 0
      %1490 = vmatpush2.bf16.msra.mxu0 0
      %1491 = vmatprep.subr.bf16.mxu0 0
      %1492 = vmatpush2.bf16.msra.mxu0 0
      %1493 = vmatprep.subr.bf16.mxu0 0
      %1494 = vmatpush2.bf16.msra.mxu0 0
      %1495 = vmatprep.subr.bf16.mxu0 0
      %1496 = vmatpush2.bf16.msra.mxu0 0
      %1497 = vmatprep.subr.bf16.mxu0 0
      %1498 = vmatpush2.bf16.msra.mxu0 0
      %1499 = vmatprep.subr.bf16.mxu0 0
      %1500 = vmatpush2.bf16.msra.mxu0 0
      %1501 = vmatprep.subr.bf16.mxu0 0
      %1502 = vmatpush2.bf16.msra.mxu0 0
      %1503 = vmatprep.subr.bf16.mxu0 0
      %1504 = vmatpush2.bf16.msra.mxu0 0
      %1505 = vmatprep.mubr.bf16.mxu0 0
      %1506 = vmatmul.mubr.bf16.gmra.mxu0 %v1362
      %v1507 = vpop.f32.mrf.mxu0
      %v1508 = vadd.f32 0.0, %v1507
      %v1509 = vpop.f32.mrf.mxu0
      %v1510 = vpop.f32.mrf.mxu0
      %v1511 = vadd.f32 0.0, %v1510
      %v1512 = vpop.f32.mrf.mxu0
      %1513 = vmatprep.mubr.bf16.mxu0 0
      %1514 = vmatmul.mubr.bf16.gmra.mxu0 %v1365
      %v1515 = vpop.f32.mrf.mxu0
      %v1516 = vadd.f32 0.0, %v1515
      %v1517 = vpop.f32.mrf.mxu0
      %v1518 = vpop.f32.mrf.mxu0
      %v1519 = vadd.f32 0.0, %v1518
      %v1520 = vpop.f32.mrf.mxu0
      %1521 = vmatprep.mubr.bf16.mxu0 0
      %1522 = vmatmul.mubr.bf16.gmra.mxu0 %v1471
      %v1523 = vpop.f32.mrf.mxu0
      %v1524 = vadd.f32 0.0, %v1523
      %v1525 = vpop.f32.mrf.mxu0
      %v1526 = vpop.f32.mrf.mxu0
      %v1527 = vadd.f32 0.0, %v1526
      %v1528 = vpop.f32.mrf.mxu0
      %1529 = vdwg.mxu0
      %v1530 = vadd.f32 %v1444, %v1508
      %v1531 = vadd.f32 %v1445, %v1511
      %v1532 = vadd.f32 %v1446, %v1516
      %v1533 = vadd.f32 %v1447, %v1519
      %v1534 = vadd.f32 %v1448, %v1524
      %v1535 = vadd.f32 %v1449, %v1527
      %1536 = vst.msk [vmem:[#allocation2] sm:$0xff] %vm369, %v1530
      %1537 = vst.msk [vmem:[#allocation2 + $0x8] sm:$0xff] %vm369, %v1531
      %1538 = vst.msk [vmem:[#allocation2 + $0x10] sm:$0xff] %vm369, %v1532
      %1539 = vst.msk [vmem:[#allocation2 + $0x18] sm:$0xff] %vm369, %v1533
      %1540 = vst.msk [vmem:[#allocation2 + $0x20] sm:$0xff] %vm369, %v1534
      %1541 = vst.msk [vmem:[#allocation2 + $0x28] sm:$0xff] %vm369, %v1535
      %v1543 = vrot.slane %v326, 5
      %v1544 = vrot.slane %v1543, 4
      %v1545 = vrot.slane %v327, 5
      %v1546 = vsel %vm1304, %v1544, %v1545
      %v1547 = vrot.slane %v1545, 4
      %v1548 = vrot.slane %v328, 5
      %v1549 = vsel %vm1304, %v1547, %v1548
      %v1550 = vld [vmem:[#allocation2] sm:$0xff]
      %v1551 = vld [vmem:[#allocation2 + $0x8] sm:$0xff]
      %v1552 = vld [vmem:[#allocation2 + $0x10] sm:$0xff]
      %v1553 = vld [vmem:[#allocation2 + $0x18] sm:$0xff]
      %v1554 = vld [vmem:[#allocation2 + $0x20] sm:$0xff]
      %v1555 = vld [vmem:[#allocation2 + $0x28] sm:$0xff]
      %s1556 = scalar_lea.vmem %s282, 160
      %v1557 = vld [vmem:[%s1556] sm:$0xf]
      %v1558 = vld [vmem:[%s1556 + $0x4] sm:$0xf]
      %v1559 = vld [vmem:[%s1556 + $0x8] sm:$0xf]
      %v1560 = vld [vmem:[%s1556 + $0xc] sm:$0xf]
      %v1561 = vunpack.c.l.b16 %v1546
      %v1562 = vunpack.c.l.b16 %v1549
      %v1563 = vpack.c.b16 %v1562, %v1561
      %v1568 = vunpack.c.l.b16 %v1557
      %v1569 = vunpack.c.l.b16 %v1558
      %v1570 = vunpack.c.l.b16 %v1559
      %v1571 = vunpack.c.l.b16 %v1560
      %v1572 = vpack.c.b16 %v1569, %v1568
      %v1573 = vpack.c.b16 %v1571, %v1570
      %v1577 = vsel %vm369, %v1563, 0
      %1579 = vmatprep.subr.bf16.mxu0 0
      %1580 = vmatpush1.bf16.msra.mxu0 0
      %1581 = vmatprep.subr.bf16.mxu0 0
      %1582 = vmatpush1.bf16.msra.mxu0 0
      %1583 = vmatprep.subr.bf16.mxu0 0
      %1584 = vmatpush1.bf16.msra.mxu0 0
      %1585 = vmatprep.subr.bf16.mxu0 0
      %1586 = vmatpush1.bf16.msra.mxu0 0
      %1587 = vmatprep.subr.bf16.mxu0 0
      %1588 = vmatpush1.bf16.msra.mxu0 0
      %1589 = vmatprep.subr.bf16.mxu0 0
      %1590 = vmatpush1.bf16.msra.mxu0 0
      %1591 = vmatprep.subr.bf16.mxu0 0
      %1592 = vmatpush1.bf16.msra.mxu0 %v1573
      %1593 = vmatprep.subr.bf16.mxu0 0
      %1594 = vmatpush1.bf16.msra.mxu0 %v1572
      %1595 = vmatprep.subr.bf16.mxu0 0
      %1596 = vmatpush2.bf16.msra.mxu0 0
      %1597 = vmatprep.subr.bf16.mxu0 0
      %1598 = vmatpush2.bf16.msra.mxu0 0
      %1599 = vmatprep.subr.bf16.mxu0 0
      %1600 = vmatpush2.bf16.msra.mxu0 0
      %1601 = vmatprep.subr.bf16.mxu0 0
      %1602 = vmatpush2.bf16.msra.mxu0 0
      %1603 = vmatprep.subr.bf16.mxu0 0
      %1604 = vmatpush2.bf16.msra.mxu0 0
      %1605 = vmatprep.subr.bf16.mxu0 0
      %1606 = vmatpush2.bf16.msra.mxu0 0
      %1607 = vmatprep.subr.bf16.mxu0 0
      %1608 = vmatpush2.bf16.msra.mxu0 0
      %1609 = vmatprep.subr.bf16.mxu0 0
      %1610 = vmatpush2.bf16.msra.mxu0 0
      %1611 = vmatprep.mubr.bf16.mxu0 0
      %1612 = vmatmul.mubr.bf16.gmra.mxu0 %v1365
      %v1613 = vpop.f32.mrf.mxu0
      %v1614 = vadd.f32 0.0, %v1613
      %v1615 = vpop.f32.mrf.mxu0
      %v1616 = vpop.f32.mrf.mxu0
      %v1617 = vadd.f32 0.0, %v1616
      %v1618 = vpop.f32.mrf.mxu0
      %1619 = vmatprep.mubr.bf16.mxu0 0
      %1620 = vmatmul.mubr.bf16.gmra.mxu0 %v1471
      %v1621 = vpop.f32.mrf.mxu0
      %v1622 = vadd.f32 0.0, %v1621
      %v1623 = vpop.f32.mrf.mxu0
      %v1624 = vpop.f32.mrf.mxu0
      %v1625 = vadd.f32 0.0, %v1624
      %v1626 = vpop.f32.mrf.mxu0
      %1627 = vmatprep.mubr.bf16.mxu0 0
      %1628 = vmatmul.mubr.bf16.gmra.mxu0 %v1577
      %v1629 = vpop.f32.mrf.mxu0
      %v1630 = vadd.f32 0.0, %v1629
      %v1631 = vpop.f32.mrf.mxu0
      %v1632 = vpop.f32.mrf.mxu0
      %v1633 = vadd.f32 0.0, %v1632
      %v1634 = vpop.f32.mrf.mxu0
      %1635 = vdwg.mxu0
      %v1636 = vadd.f32 %v1550, %v1614
      %v1637 = vadd.f32 %v1551, %v1617
      %v1638 = vadd.f32 %v1552, %v1622
      %v1639 = vadd.f32 %v1553, %v1625
      %v1640 = vadd.f32 %v1554, %v1630
      %v1641 = vadd.f32 %v1555, %v1633
      %1642 = vst.msk [vmem:[#allocation2] sm:$0xff] %vm369, %v1636
      %1643 = vst.msk [vmem:[#allocation2 + $0x8] sm:$0xff] %vm369, %v1637
      %1644 = vst.msk [vmem:[#allocation2 + $0x10] sm:$0xff] %vm369, %v1638
      %1645 = vst.msk [vmem:[#allocation2 + $0x18] sm:$0xff] %vm369, %v1639
      %1646 = vst.msk [vmem:[#allocation2 + $0x20] sm:$0xff] %vm369, %v1640
      %1647 = vst.msk [vmem:[#allocation2 + $0x28] sm:$0xff] %vm369, %v1641
      %v1649 = vrot.slane %v329, 5
      %v1650 = vrot.slane %v1649, 4
      %v1651 = vrot.slane %v330, 5
      %v1652 = vsel %vm1304, %v1650, %v1651
      %v1653 = vrot.slane %v1651, 4
      %v1654 = vrot.slane %v331, 5
      %v1655 = vsel %vm1304, %v1653, %v1654
      %v1656 = vld [vmem:[#allocation2] sm:$0xff]
      %v1657 = vld [vmem:[#allocation2 + $0x8] sm:$0xff]
      %v1658 = vld [vmem:[#allocation2 + $0x10] sm:$0xff]
      %v1659 = vld [vmem:[#allocation2 + $0x18] sm:$0xff]
      %v1660 = vld [vmem:[#allocation2 + $0x20] sm:$0xff]
      %v1661 = vld [vmem:[#allocation2 + $0x28] sm:$0xff]
      %s1662 = scalar_lea.vmem %s282, 224
      %v1663 = vld [vmem:[%s1662] sm:$0xf]
      %v1664 = vld [vmem:[%s1662 + $0x4] sm:$0xf]
      %v1665 = vld [vmem:[%s1662 + $0x8] sm:$0xf]
      %v1666 = vld [vmem:[%s1662 + $0xc] sm:$0xf]
      %v1667 = vunpack.c.l.b16 %v1652
      %v1668 = vunpack.c.l.b16 %v1655
      %v1669 = vpack.c.b16 %v1668, %v1667
      %v1674 = vunpack.c.l.b16 %v1663
      %v1675 = vunpack.c.l.b16 %v1664
      %v1676 = vunpack.c.l.b16 %v1665
      %v1677 = vunpack.c.l.b16 %v1666
      %v1678 = vpack.c.b16 %v1675, %v1674
      %v1679 = vpack.c.b16 %v1677, %v1676
      %v1683 = vsel %vm369, %v1669, 0
      %1685 = vmatprep.subr.bf16.mxu0 0
      %1686 = vmatpush1.bf16.msra.mxu0 0
      %1687 = vmatprep.subr.bf16.mxu0 0
      %1688 = vmatpush1.bf16.msra.mxu0 0
      %1689 = vmatprep.subr.bf16.mxu0 0
      %1690 = vmatpush1.bf16.msra.mxu0 0
      %1691 = vmatprep.subr.bf16.mxu0 0
      %1692 = vmatpush1.bf16.msra.mxu0 0
      %1693 = vmatprep.subr.bf16.mxu0 0
      %1694 = vmatpush1.bf16.msra.mxu0 0
      %1695 = vmatprep.subr.bf16.mxu0 0
      %1696 = vmatpush1.bf16.msra.mxu0 0
      %1697 = vmatprep.subr.bf16.mxu0 0
      %1698 = vmatpush1.bf16.msra.mxu0 %v1679
      %1699 = vmatprep.subr.bf16.mxu0 0
      %1700 = vmatpush1.bf16.msra.mxu0 %v1678
      %1701 = vmatprep.subr.bf16.mxu0 0
      %1702 = vmatpush2.bf16.msra.mxu0 0
      %1703 = vmatprep.subr.bf16.mxu0 0
      %1704 = vmatpush2.bf16.msra.mxu0 0
      %1705 = vmatprep.subr.bf16.mxu0 0
      %1706 = vmatpush2.bf16.msra.mxu0 0
      %1707 = vmatprep.subr.bf16.mxu0 0
      %1708 = vmatpush2.bf16.msra.mxu0 0
      %1709 = vmatprep.subr.bf16.mxu0 0
      %1710 = vmatpush2.bf16.msra.mxu0 0
      %1711 = vmatprep.subr.bf16.mxu0 0
      %1712 = vmatpush2.bf16.msra.mxu0 0
      %1713 = vmatprep.subr.bf16.mxu0 0
      %1714 = vmatpush2.bf16.msra.mxu0 0
      %1715 = vmatprep.subr.bf16.mxu0 0
      %1716 = vmatpush2.bf16.msra.mxu0 0
      %1717 = vmatprep.mubr.bf16.mxu0 0
      %1718 = vmatmul.mubr.bf16.gmra.mxu0 %v1471
      %v1719 = vpop.f32.mrf.mxu0
      %v1720 = vadd.f32 0.0, %v1719
      %v1721 = vpop.f32.mrf.mxu0
      %v1722 = vpop.f32.mrf.mxu0
      %v1723 = vadd.f32 0.0, %v1722
      %v1724 = vpop.f32.mrf.mxu0
      %1725 = vmatprep.mubr.bf16.mxu0 0
      %1726 = vmatmul.mubr.bf16.gmra.mxu0 %v1577
      %v1727 = vpop.f32.mrf.mxu0
      %v1728 = vadd.f32 0.0, %v1727
      %v1729 = vpop.f32.mrf.mxu0
      %v1730 = vpop.f32.mrf.mxu0
      %v1731 = vadd.f32 0.0, %v1730
      %v1732 = vpop.f32.mrf.mxu0
      %1733 = vmatprep.mubr.bf16.mxu0 0
      %1734 = vmatmul.mubr.bf16.gmra.mxu0 %v1683
      %v1735 = vpop.f32.mrf.mxu0
      %v1736 = vadd.f32 0.0, %v1735
      %v1737 = vpop.f32.mrf.mxu0
      %v1738 = vpop.f32.mrf.mxu0
      %v1739 = vadd.f32 0.0, %v1738
      %v1740 = vpop.f32.mrf.mxu0
      %1741 = vdwg.mxu0
      %v1742 = vadd.f32 %v1656, %v1720
      %v1743 = vadd.f32 %v1657, %v1723
      %v1744 = vadd.f32 %v1658, %v1728
      %v1745 = vadd.f32 %v1659, %v1731
      %v1746 = vadd.f32 %v1660, %v1736
      %v1747 = vadd.f32 %v1661, %v1739
      %1748 = vst.msk [vmem:[#allocation2] sm:$0xff] %vm369, %v1742
      %1749 = vst.msk [vmem:[#allocation2 + $0x8] sm:$0xff] %vm369, %v1743
      %1750 = vst.msk [vmem:[#allocation2 + $0x10] sm:$0xff] %vm369, %v1744
      %1751 = vst.msk [vmem:[#allocation2 + $0x18] sm:$0xff] %vm369, %v1745
      %1752 = vst.msk [vmem:[#allocation2 + $0x20] sm:$0xff] %vm369, %v1746
      %1753 = vst.msk [vmem:[#allocation2 + $0x28] sm:$0xff] %vm369, %v1747
      %vm1754 = vsmask.f32 2304
      %vm1755 = vsmask.f32 6416
      %vm1756 = vmor %vm1754, %vm1755
      %v1757 = vrot.slane %v752, 5
      %v1758 = vrot.slane %v755, 6
      %v1759 = vor.u32 %v1757, %v1758
      %v1760 = vrot.slane %v1759, 4
      %v1761 = vrot.slane %v765, 5
      %v1762 = vrot.slane %v761, 6
      %v1763 = vor.u32 %v1761, %v1762
      %v1764 = vsel %vm1756, %v1760, %v1763
      %v1765 = vrot.slane %v1763, 4
      %v1766 = vshrl.u32 %v316, 16
      %v1768 = vrot.slane %v1766, 5
      %v1769 = vrot.slane %v771, 6
      %v1770 = vor.u32 %v1768, %v1769
      %v1771 = vsel %vm1756, %v1765, %v1770
      %v1772 = vrot.slane %v776, 5
      %v1773 = vrot.slane %v779, 6
      %v1774 = vor.u32 %v1772, %v1773
      %v1775 = vrot.slane %v1774, 4
      %v1776 = vrot.slane %v789, 5
      %v1777 = vrot.slane %v785, 6
      %v1778 = vor.u32 %v1776, %v1777
      %v1779 = vsel %vm1756, %v1775, %v1778
      %v1780 = vrot.slane %v1778, 4
      %v1781 = vshrl.u32 %v319, 16
      %v1783 = vrot.slane %v1781, 5
      %v1784 = vrot.slane %v795, 6
      %v1785 = vor.u32 %v1783, %v1784
      %v1786 = vsel %vm1756, %v1780, %v1785
      %v1787 = vrot.slane %v800, 5
      %v1788 = vrot.slane %v803, 6
      %v1789 = vor.u32 %v1787, %v1788
      %v1790 = vrot.slane %v1789, 4
      %v1791 = vrot.slane %v813, 5
      %v1792 = vrot.slane %v809, 6
      %v1793 = vor.u32 %v1791, %v1792
      %v1794 = vsel %vm1756, %v1790, %v1793
      %v1795 = vrot.slane %v1793, 4
      %v1796 = vshrl.u32 %v322, 16
      %v1798 = vrot.slane %v1796, 5
      %v1799 = vrot.slane %v819, 6
      %v1800 = vor.u32 %v1798, %v1799
      %v1801 = vsel %vm1756, %v1795, %v1800
      %v1802 = vld [vmem:[#allocation2] sm:$0xff]
      %v1803 = vld [vmem:[#allocation2 + $0x8] sm:$0xff]
      %v1804 = vld [vmem:[#allocation2 + $0x10] sm:$0xff]
      %v1805 = vld [vmem:[#allocation2 + $0x18] sm:$0xff]
      %v1806 = vld [vmem:[#allocation2 + $0x20] sm:$0xff]
      %v1807 = vld [vmem:[#allocation2 + $0x28] sm:$0xff]
      %s1808 = scalar_lea.vmem %s282, 48
      %v1809 = vld [vmem:[%s1808] sm:$0xf]
      %v1810 = vld [vmem:[%s1808 + $0x4] sm:$0xf]
      %v1811 = vld [vmem:[%s1808 + $0x8] sm:$0xf]
      %v1812 = vld [vmem:[%s1808 + $0xc] sm:$0xf]
      %v1813 = vunpack.c.l.b16 %v1764
      %v1814 = vunpack.c.l.b16 %v1771
      %v1815 = vunpack.c.l.b16 %v1779
      %v1816 = vunpack.c.l.b16 %v1786
      %v1817 = vunpack.c.l.b16 %v1794
      %v1818 = vunpack.c.l.b16 %v1801
      %v1819 = vpack.c.b16 %v1814, %v1813
      %v1820 = vpack.c.b16 %v1816, %v1815
      %v1821 = vpack.c.b16 %v1818, %v1817
      %v1826 = vunpack.c.l.b16 %v1809
      %v1827 = vunpack.c.l.b16 %v1810
      %v1828 = vunpack.c.l.b16 %v1811
      %v1829 = vunpack.c.l.b16 %v1812
      %v1830 = vpack.c.b16 %v1827, %v1826
      %v1831 = vpack.c.b16 %v1829, %v1828
      %v1835 = vsel %vm369, %v1819, 0
      %v1838 = vsel %vm369, %v1820, 0
      %v1841 = vsel %vm369, %v1821, 0
      %1843 = vmatprep.subr.bf16.mxu0 0
      %1844 = vmatpush1.bf16.msra.mxu0 0
      %1845 = vmatprep.subr.bf16.mxu0 0
      %1846 = vmatpush1.bf16.msra.mxu0 0
      %1847 = vmatprep.subr.bf16.mxu0 0
      %1848 = vmatpush1.bf16.msra.mxu0 0
      %1849 = vmatprep.subr.bf16.mxu0 0
      %1850 = vmatpush1.bf16.msra.mxu0 0
      %1851 = vmatprep.subr.bf16.mxu0 0
      %1852 = vmatpush1.bf16.msra.mxu0 0
      %1853 = vmatprep.subr.bf16.mxu0 0
      %1854 = vmatpush1.bf16.msra.mxu0 0
      %1855 = vmatprep.subr.bf16.mxu0 0
      %1856 = vmatpush1.bf16.msra.mxu0 %v1831
      %1857 = vmatprep.subr.bf16.mxu0 0
      %1858 = vmatpush1.bf16.msra.mxu0 %v1830
      %1859 = vmatprep.subr.bf16.mxu0 0
      %1860 = vmatpush2.bf16.msra.mxu0 0
      %1861 = vmatprep.subr.bf16.mxu0 0
      %1862 = vmatpush2.bf16.msra.mxu0 0
      %1863 = vmatprep.subr.bf16.mxu0 0
      %1864 = vmatpush2.bf16.msra.mxu0 0
      %1865 = vmatprep.subr.bf16.mxu0 0
      %1866 = vmatpush2.bf16.msra.mxu0 0
      %1867 = vmatprep.subr.bf16.mxu0 0
      %1868 = vmatpush2.bf16.msra.mxu0 0
      %1869 = vmatprep.subr.bf16.mxu0 0
      %1870 = vmatpush2.bf16.msra.mxu0 0
      %1871 = vmatprep.subr.bf16.mxu0 0
      %1872 = vmatpush2.bf16.msra.mxu0 0
      %1873 = vmatprep.subr.bf16.mxu0 0
      %1874 = vmatpush2.bf16.msra.mxu0 0
      %1875 = vmatprep.mubr.bf16.mxu0 0
      %1876 = vmatmul.mubr.bf16.gmra.mxu0 %v1835
      %v1877 = vpop.f32.mrf.mxu0
      %v1878 = vadd.f32 0.0, %v1877
      %v1879 = vpop.f32.mrf.mxu0
      %v1880 = vpop.f32.mrf.mxu0
      %v1881 = vadd.f32 0.0, %v1880
      %v1882 = vpop.f32.mrf.mxu0
      %1883 = vmatprep.mubr.bf16.mxu0 0
      %1884 = vmatmul.mubr.bf16.gmra.mxu0 %v1838
      %v1885 = vpop.f32.mrf.mxu0
      %v1886 = vadd.f32 0.0, %v1885
      %v1887 = vpop.f32.mrf.mxu0
      %v1888 = vpop.f32.mrf.mxu0
      %v1889 = vadd.f32 0.0, %v1888
      %v1890 = vpop.f32.mrf.mxu0
      %1891 = vmatprep.mubr.bf16.mxu0 0
      %1892 = vmatmul.mubr.bf16.gmra.mxu0 %v1841
      %v1893 = vpop.f32.mrf.mxu0
      %v1894 = vadd.f32 0.0, %v1893
      %v1895 = vpop.f32.mrf.mxu0
      %v1896 = vpop.f32.mrf.mxu0
      %v1897 = vadd.f32 0.0, %v1896
      %v1898 = vpop.f32.mrf.mxu0
      %1899 = vdwg.mxu0
      %v1900 = vadd.f32 %v1802, %v1878
      %v1901 = vadd.f32 %v1803, %v1881
      %v1902 = vadd.f32 %v1804, %v1886
      %v1903 = vadd.f32 %v1805, %v1889
      %v1904 = vadd.f32 %v1806, %v1894
      %v1905 = vadd.f32 %v1807, %v1897
      %1906 = vst.msk [vmem:[#allocation2] sm:$0xff] %vm369, %v1900
      %1907 = vst.msk [vmem:[#allocation2 + $0x8] sm:$0xff] %vm369, %v1901
      %1908 = vst.msk [vmem:[#allocation2 + $0x10] sm:$0xff] %vm369, %v1902
      %1909 = vst.msk [vmem:[#allocation2 + $0x18] sm:$0xff] %vm369, %v1903
      %1910 = vst.msk [vmem:[#allocation2 + $0x20] sm:$0xff] %vm369, %v1904
      %1911 = vst.msk [vmem:[#allocation2 + $0x28] sm:$0xff] %vm369, %v1905
      %v1912 = vrot.slane %v934, 5
      %v1913 = vrot.slane %v937, 6
      %v1914 = vor.u32 %v1912, %v1913
      %v1915 = vrot.slane %v1914, 4
      %v1916 = vrot.slane %v947, 5
      %v1917 = vrot.slane %v943, 6
      %v1918 = vor.u32 %v1916, %v1917
      %v1919 = vsel %vm1756, %v1915, %v1918
      %v1920 = vrot.slane %v1918, 4
      %v1921 = vshrl.u32 %v325, 16
      %v1923 = vrot.slane %v1921, 5
      %v1924 = vrot.slane %v953, 6
      %v1925 = vor.u32 %v1923, %v1924
      %v1926 = vsel %vm1756, %v1920, %v1925
      %v1927 = vld [vmem:[#allocation2] sm:$0xff]
      %v1928 = vld [vmem:[#allocation2 + $0x8] sm:$0xff]
      %v1929 = vld [vmem:[#allocation2 + $0x10] sm:$0xff]
      %v1930 = vld [vmem:[#allocation2 + $0x18] sm:$0xff]
      %v1931 = vld [vmem:[#allocation2 + $0x20] sm:$0xff]
      %v1932 = vld [vmem:[#allocation2 + $0x28] sm:$0xff]
      %s1933 = scalar_lea.vmem %s282, 112
      %v1934 = vld [vmem:[%s1933] sm:$0xf]
      %v1935 = vld [vmem:[%s1933 + $0x4] sm:$0xf]
      %v1936 = vld [vmem:[%s1933 + $0x8] sm:$0xf]
      %v1937 = vld [vmem:[%s1933 + $0xc] sm:$0xf]
      %v1938 = vunpack.c.l.b16 %v1919
      %v1939 = vunpack.c.l.b16 %v1926
      %v1940 = vpack.c.b16 %v1939, %v1938
      %v1945 = vunpack.c.l.b16 %v1934
      %v1946 = vunpack.c.l.b16 %v1935
      %v1947 = vunpack.c.l.b16 %v1936
      %v1948 = vunpack.c.l.b16 %v1937
      %v1949 = vpack.c.b16 %v1946, %v1945
      %v1950 = vpack.c.b16 %v1948, %v1947
      %v1954 = vsel %vm369, %v1940, 0
      %1956 = vmatprep.subr.bf16.mxu0 0
      %1957 = vmatpush1.bf16.msra.mxu0 0
      %1958 = vmatprep.subr.bf16.mxu0 0
      %1959 = vmatpush1.bf16.msra.mxu0 0
      %1960 = vmatprep.subr.bf16.mxu0 0
      %1961 = vmatpush1.bf16.msra.mxu0 0
      %1962 = vmatprep.subr.bf16.mxu0 0
      %1963 = vmatpush1.bf16.msra.mxu0 0
      %1964 = vmatprep.subr.bf16.mxu0 0
      %1965 = vmatpush1.bf16.msra.mxu0 0
      %1966 = vmatprep.subr.bf16.mxu0 0
      %1967 = vmatpush1.bf16.msra.mxu0 0
      %1968 = vmatprep.subr.bf16.mxu0 0
      %1969 = vmatpush1.bf16.msra.mxu0 %v1950
      %1970 = vmatprep.subr.bf16.mxu0 0
      %1971 = vmatpush1.bf16.msra.mxu0 %v1949
      %1972 = vmatprep.subr.bf16.mxu0 0
      %1973 = vmatpush2.bf16.msra.mxu0 0
      %1974 = vmatprep.subr.bf16.mxu0 0
      %1975 = vmatpush2.bf16.msra.mxu0 0
      %1976 = vmatprep.subr.bf16.mxu0 0
      %1977 = vmatpush2.bf16.msra.mxu0 0
      %1978 = vmatprep.subr.bf16.mxu0 0
      %1979 = vmatpush2.bf16.msra.mxu0 0
      %1980 = vmatprep.subr.bf16.mxu0 0
      %1981 = vmatpush2.bf16.msra.mxu0 0
      %1982 = vmatprep.subr.bf16.mxu0 0
      %1983 = vmatpush2.bf16.msra.mxu0 0
      %1984 = vmatprep.subr.bf16.mxu0 0
      %1985 = vmatpush2.bf16.msra.mxu0 0
      %1986 = vmatprep.subr.bf16.mxu0 0
      %1987 = vmatpush2.bf16.msra.mxu0 0
      %1988 = vmatprep.mubr.bf16.mxu0 0
      %1989 = vmatmul.mubr.bf16.gmra.mxu0 %v1838
      %v1990 = vpop.f32.mrf.mxu0
      %v1991 = vadd.f32 0.0, %v1990
      %v1992 = vpop.f32.mrf.mxu0
      %v1993 = vpop.f32.mrf.mxu0
      %v1994 = vadd.f32 0.0, %v1993
      %v1995 = vpop.f32.mrf.mxu0
      %1996 = vmatprep.mubr.bf16.mxu0 0
      %1997 = vmatmul.mubr.bf16.gmra.mxu0 %v1841
      %v1998 = vpop.f32.mrf.mxu0
      %v1999 = vadd.f32 0.0, %v1998
      %v2000 = vpop.f32.mrf.mxu0
      %v2001 = vpop.f32.mrf.mxu0
      %v2002 = vadd.f32 0.0, %v2001
      %v2003 = vpop.f32.mrf.mxu0
      %2004 = vmatprep.mubr.bf16.mxu0 0
      %2005 = vmatmul.mubr.bf16.gmra.mxu0 %v1954
      %v2006 = vpop.f32.mrf.mxu0
      %v2007 = vadd.f32 0.0, %v2006
      %v2008 = vpop.f32.mrf.mxu0
      %v2009 = vpop.f32.mrf.mxu0
      %v2010 = vadd.f32 0.0, %v2009
      %v2011 = vpop.f32.mrf.mxu0
      %2012 = vdwg.mxu0
      %v2013 = vadd.f32 %v1927, %v1991
      %v2014 = vadd.f32 %v1928, %v1994
      %v2015 = vadd.f32 %v1929, %v1999
      %v2016 = vadd.f32 %v1930, %v2002
      %v2017 = vadd.f32 %v1931, %v2007
      %v2018 = vadd.f32 %v1932, %v2010
      %2019 = vst.msk [vmem:[#allocation2] sm:$0xff] %vm369, %v2013
      %2020 = vst.msk [vmem:[#allocation2 + $0x8] sm:$0xff] %vm369, %v2014
      %2021 = vst.msk [vmem:[#allocation2 + $0x10] sm:$0xff] %vm369, %v2015
      %2022 = vst.msk [vmem:[#allocation2 + $0x18] sm:$0xff] %vm369, %v2016
      %2023 = vst.msk [vmem:[#allocation2 + $0x20] sm:$0xff] %vm369, %v2017
      %2024 = vst.msk [vmem:[#allocation2 + $0x28] sm:$0xff] %vm369, %v2018
      %v2025 = vrot.slane %v1056, 5
      %v2026 = vrot.slane %v1059, 6
      %v2027 = vor.u32 %v2025, %v2026
      %v2028 = vrot.slane %v2027, 4
      %v2029 = vrot.slane %v1069, 5
      %v2030 = vrot.slane %v1065, 6
      %v2031 = vor.u32 %v2029, %v2030
      %v2032 = vsel %vm1756, %v2028, %v2031
      %v2033 = vrot.slane %v2031, 4
      %v2034 = vshrl.u32 %v328, 16
      %v2036 = vrot.slane %v2034, 5
      %v2037 = vrot.slane %v1075, 6
      %v2038 = vor.u32 %v2036, %v2037
      %v2039 = vsel %vm1756, %v2033, %v2038
      %v2040 = vld [vmem:[#allocation2] sm:$0xff]
      %v2041 = vld [vmem:[#allocation2 + $0x8] sm:$0xff]
      %v2042 = vld [vmem:[#allocation2 + $0x10] sm:$0xff]
      %v2043 = vld [vmem:[#allocation2 + $0x18] sm:$0xff]
      %v2044 = vld [vmem:[#allocation2 + $0x20] sm:$0xff]
      %v2045 = vld [vmem:[#allocation2 + $0x28] sm:$0xff]
      %s2046 = scalar_lea.vmem %s282, 176
      %v2047 = vld [vmem:[%s2046] sm:$0xf]
      %v2048 = vld [vmem:[%s2046 + $0x4] sm:$0xf]
      %v2049 = vld [vmem:[%s2046 + $0x8] sm:$0xf]
      %v2050 = vld [vmem:[%s2046 + $0xc] sm:$0xf]
      %v2051 = vunpack.c.l.b16 %v2032
      %v2052 = vunpack.c.l.b16 %v2039
      %v2053 = vpack.c.b16 %v2052, %v2051
      %v2058 = vunpack.c.l.b16 %v2047
      %v2059 = vunpack.c.l.b16 %v2048
      %v2060 = vunpack.c.l.b16 %v2049
      %v2061 = vunpack.c.l.b16 %v2050
      %v2062 = vpack.c.b16 %v2059, %v2058
      %v2063 = vpack.c.b16 %v2061, %v2060
      %v2067 = vsel %vm369, %v2053, 0
      %2069 = vmatprep.subr.bf16.mxu0 0
      %2070 = vmatpush1.bf16.msra.mxu0 0
      %2071 = vmatprep.subr.bf16.mxu0 0
      %2072 = vmatpush1.bf16.msra.mxu0 0
      %2073 = vmatprep.subr.bf16.mxu0 0
      %2074 = vmatpush1.bf16.msra.mxu0 0
      %2075 = vmatprep.subr.bf16.mxu0 0
      %2076 = vmatpush1.bf16.msra.mxu0 0
      %2077 = vmatprep.subr.bf16.mxu0 0
      %2078 = vmatpush1.bf16.msra.mxu0 0
      %2079 = vmatprep.subr.bf16.mxu0 0
      %2080 = vmatpush1.bf16.msra.mxu0 0
      %2081 = vmatprep.subr.bf16.mxu0 0
      %2082 = vmatpush1.bf16.msra.mxu0 %v2063
      %2083 = vmatprep.subr.bf16.mxu0 0
      %2084 = vmatpush1.bf16.msra.mxu0 %v2062
      %2085 = vmatprep.subr.bf16.mxu0 0
      %2086 = vmatpush2.bf16.msra.mxu0 0
      %2087 = vmatprep.subr.bf16.mxu0 0
      %2088 = vmatpush2.bf16.msra.mxu0 0
      %2089 = vmatprep.subr.bf16.mxu0 0
      %2090 = vmatpush2.bf16.msra.mxu0 0
      %2091 = vmatprep.subr.bf16.mxu0 0
      %2092 = vmatpush2.bf16.msra.mxu0 0
      %2093 = vmatprep.subr.bf16.mxu0 0
      %2094 = vmatpush2.bf16.msra.mxu0 0
      %2095 = vmatprep.subr.bf16.mxu0 0
      %2096 = vmatpush2.bf16.msra.mxu0 0
      %2097 = vmatprep.subr.bf16.mxu0 0
      %2098 = vmatpush2.bf16.msra.mxu0 0
      %2099 = vmatprep.subr.bf16.mxu0 0
      %2100 = vmatpush2.bf16.msra.mxu0 0
      %2101 = vmatprep.mubr.bf16.mxu0 0
      %2102 = vmatmul.mubr.bf16.gmra.mxu0 %v1841
      %v2103 = vpop.f32.mrf.mxu0
      %v2104 = vadd.f32 0.0, %v2103
      %v2105 = vpop.f32.mrf.mxu0
      %v2106 = vpop.f32.mrf.mxu0
      %v2107 = vadd.f32 0.0, %v2106
      %v2108 = vpop.f32.mrf.mxu0
      %2109 = vmatprep.mubr.bf16.mxu0 0
      %2110 = vmatmul.mubr.bf16.gmra.mxu0 %v1954
      %v2111 = vpop.f32.mrf.mxu0
      %v2112 = vadd.f32 0.0, %v2111
      %v2113 = vpop.f32.mrf.mxu0
      %v2114 = vpop.f32.mrf.mxu0
      %v2115 = vadd.f32 0.0, %v2114
      %v2116 = vpop.f32.mrf.mxu0
      %2117 = vmatprep.mubr.bf16.mxu0 0
      %2118 = vmatmul.mubr.bf16.gmra.mxu0 %v2067
      %v2119 = vpop.f32.mrf.mxu0
      %v2120 = vadd.f32 0.0, %v2119
      %v2121 = vpop.f32.mrf.mxu0
      %v2122 = vpop.f32.mrf.mxu0
      %v2123 = vadd.f32 0.0, %v2122
      %v2124 = vpop.f32.mrf.mxu0
      %2125 = vdwg.mxu0
      %v2126 = vadd.f32 %v2040, %v2104
      %v2127 = vadd.f32 %v2041, %v2107
      %v2128 = vadd.f32 %v2042, %v2112
      %v2129 = vadd.f32 %v2043, %v2115
      %v2130 = vadd.f32 %v2044, %v2120
      %v2131 = vadd.f32 %v2045, %v2123
      %2132 = vst.msk [vmem:[#allocation2] sm:$0xff] %vm369, %v2126
      %2133 = vst.msk [vmem:[#allocation2 + $0x8] sm:$0xff] %vm369, %v2127
      %2134 = vst.msk [vmem:[#allocation2 + $0x10] sm:$0xff] %vm369, %v2128
      %2135 = vst.msk [vmem:[#allocation2 + $0x18] sm:$0xff] %vm369, %v2129
      %2136 = vst.msk [vmem:[#allocation2 + $0x20] sm:$0xff] %vm369, %v2130
      %2137 = vst.msk [vmem:[#allocation2 + $0x28] sm:$0xff] %vm369, %v2131
      %v2138 = vrot.slane %v1178, 5
      %v2139 = vrot.slane %v1181, 6
      %v2140 = vor.u32 %v2138, %v2139
      %v2141 = vrot.slane %v2140, 4
      %v2142 = vrot.slane %v1191, 5
      %v2143 = vrot.slane %v1187, 6
      %v2144 = vor.u32 %v2142, %v2143
      %v2145 = vsel %vm1756, %v2141, %v2144
      %v2146 = vrot.slane %v2144, 4
      %v2147 = vshrl.u32 %v331, 16
      %v2149 = vrot.slane %v2147, 5
      %v2150 = vrot.slane %v1197, 6
      %v2151 = vor.u32 %v2149, %v2150
      %v2152 = vsel %vm1756, %v2146, %v2151
      %v2153 = vld [vmem:[#allocation2] sm:$0xff]
      %v2154 = vld [vmem:[#allocation2 + $0x8] sm:$0xff]
      %v2155 = vld [vmem:[#allocation2 + $0x10] sm:$0xff]
      %v2156 = vld [vmem:[#allocation2 + $0x18] sm:$0xff]
      %v2157 = vld [vmem:[#allocation2 + $0x20] sm:$0xff]
      %v2158 = vld [vmem:[#allocation2 + $0x28] sm:$0xff]
      %s2159 = scalar_lea.vmem %s282, 240
      %v2160 = vld [vmem:[%s2159] sm:$0xf]
      %v2161 = vld [vmem:[%s2159 + $0x4] sm:$0xf]
      %v2162 = vld [vmem:[%s2159 + $0x8] sm:$0xf]
      %v2163 = vld [vmem:[%s2159 + $0xc] sm:$0xf]
      %v2164 = vunpack.c.l.b16 %v2145
      %v2165 = vunpack.c.l.b16 %v2152
      %v2166 = vpack.c.b16 %v2165, %v2164
      %v2171 = vunpack.c.l.b16 %v2160
      %v2172 = vunpack.c.l.b16 %v2161
      %v2173 = vunpack.c.l.b16 %v2162
      %v2174 = vunpack.c.l.b16 %v2163
      %v2175 = vpack.c.b16 %v2172, %v2171
      %v2176 = vpack.c.b16 %v2174, %v2173
      %v2180 = vsel %vm369, %v2166, 0
      %2182 = vmatprep.subr.bf16.mxu0 0
      %2183 = vmatpush1.bf16.msra.mxu0 0
      %2184 = vmatprep.subr.bf16.mxu0 0
      %2185 = vmatpush1.bf16.msra.mxu0 0
      %2186 = vmatprep.subr.bf16.mxu0 0
      %2187 = vmatpush1.bf16.msra.mxu0 0
      %2188 = vmatprep.subr.bf16.mxu0 0
      %2189 = vmatpush1.bf16.msra.mxu0 0
      %2190 = vmatprep.subr.bf16.mxu0 0
      %2191 = vmatpush1.bf16.msra.mxu0 0
      %2192 = vmatprep.subr.bf16.mxu0 0
      %2193 = vmatpush1.bf16.msra.mxu0 0
      %2194 = vmatprep.subr.bf16.mxu0 0
      %2195 = vmatpush1.bf16.msra.mxu0 %v2176
      %2196 = vmatprep.subr.bf16.mxu0 0
      %2197 = vmatpush1.bf16.msra.mxu0 %v2175
      %2198 = vmatprep.subr.bf16.mxu0 0
      %2199 = vmatpush2.bf16.msra.mxu0 0
      %2200 = vmatprep.subr.bf16.mxu0 0
      %2201 = vmatpush2.bf16.msra.mxu0 0
      %2202 = vmatprep.subr.bf16.mxu0 0
      %2203 = vmatpush2.bf16.msra.mxu0 0
      %2204 = vmatprep.subr.bf16.mxu0 0
      %2205 = vmatpush2.bf16.msra.mxu0 0
      %2206 = vmatprep.subr.bf16.mxu0 0
      %2207 = vmatpush2.bf16.msra.mxu0 0
      %2208 = vmatprep.subr.bf16.mxu0 0
      %2209 = vmatpush2.bf16.msra.mxu0 0
      %2210 = vmatprep.subr.bf16.mxu0 0
      %2211 = vmatpush2.bf16.msra.mxu0 0
      %2212 = vmatprep.subr.bf16.mxu0 0
      %2213 = vmatpush2.bf16.msra.mxu0 0
      %2214 = vmatprep.mubr.bf16.mxu0 0
      %2215 = vmatmul.mubr.bf16.gmra.mxu0 %v1954
      %v2216 = vpop.f32.mrf.mxu0
      %v2217 = vadd.f32 0.0, %v2216
      %v2218 = vpop.f32.mrf.mxu0
      %v2219 = vpop.f32.mrf.mxu0
      %v2220 = vadd.f32 0.0, %v2219
      %v2221 = vpop.f32.mrf.mxu0
      %2222 = vmatprep.mubr.bf16.mxu0 0
      %2223 = vmatmul.mubr.bf16.gmra.mxu0 %v2067
      %v2224 = vpop.f32.mrf.mxu0
      %v2225 = vadd.f32 0.0, %v2224
      %v2226 = vpop.f32.mrf.mxu0
      %v2227 = vpop.f32.mrf.mxu0
      %v2228 = vadd.f32 0.0, %v2227
      %v2229 = vpop.f32.mrf.mxu0
      %2230 = vmatprep.mubr.bf16.mxu0 0
      %2231 = vmatmul.mubr.bf16.gmra.mxu0 %v2180
      %v2232 = vpop.f32.mrf.mxu0
      %v2233 = vadd.f32 0.0, %v2232
      %v2234 = vpop.f32.mrf.mxu0
      %v2235 = vpop.f32.mrf.mxu0
      %v2236 = vadd.f32 0.0, %v2235
      %v2237 = vpop.f32.mrf.mxu0
      %2238 = vdwg.mxu0
      %v2239 = vadd.f32 %v2153, %v2217
      %v2240 = vadd.f32 %v2154, %v2220
      %v2241 = vadd.f32 %v2155, %v2225
      %v2242 = vadd.f32 %v2156, %v2228
      %v2243 = vadd.f32 %v2157, %v2233
      %v2244 = vadd.f32 %v2158, %v2236
      %2245 = vst.msk [vmem:[#allocation2] sm:$0xff] %vm369, %v2239
      %2246 = vst.msk [vmem:[#allocation2 + $0x8] sm:$0xff] %vm369, %v2240
      %2247 = vst.msk [vmem:[#allocation2 + $0x10] sm:$0xff] %vm369, %v2241
      %2248 = vst.msk [vmem:[#allocation2 + $0x18] sm:$0xff] %vm369, %v2242
      %2249 = vst.msk [vmem:[#allocation2 + $0x20] sm:$0xff] %vm369, %v2243
      %2250 = vst.msk [vmem:[#allocation2 + $0x28] sm:$0xff] %vm369, %v2244
      // Predicated region
      $region37: #{_lambda_.8} parent=31 // pred_check
        %p2251 = pneg %p303
      $region38: #{_lambda_.8} parent=31 // pred_check_branch
        %2253 = sbr.rel (%p2251) target = $region40
      $region39: #{_lambda_.8} parent=31 // pred_region
        %v2254 = vld [vmem:[#allocation2] sm:$0xff]
        %v2255 = vld [vmem:[#allocation2 + $0x10] sm:$0xff]
        %v2256 = vld [vmem:[#allocation2 + $0x20] sm:$0xff]
        %v2257 = vld [vmem:[%s286] sm:$0x1]
        %v2259 = vlaneseq
        %v2260 = vshrl.u32 %v2259, 7
        %v2261 = vsub.s32 0, %v2260
        %v2262 = vrot.slane %v2257, %v2261
        %v2264 = vadd.f32 %v2254, %v2262
        %v2265 = vadd.f32 %v2255, %v2262
        %v2266 = vadd.f32 %v2256, %v2262
        %vm2267 = vcmask 256000
        %v2268 = vsel %vm2267, %v2264, 0.0
        %v2269 = vsel %vm2267, %v2265, 0.0
        %v2270 = vadd.f32 %v2268, %v2269
        %v2271 = vsel %vm2267, %v2266, 0.0
        %v2272 = vadd.f32 %v2270, %v2271
        %v2273 = vmul.f32 %v2264, %v2264
        %v2274 = vmul.f32 %v2265, %v2265
        %v2275 = vmul.f32 %v2266, %v2266
        %v2276 = vsel %vm2267, %v2273, 0.0
        %v2277 = vsel %vm2267, %v2274, 0.0
        %v2278 = vadd.f32 %v2276, %v2277
        %v2279 = vsel %vm2267, %v2275, 0.0
        %v2280 = vadd.f32 %v2278, %v2279
        %v2281 = vsel %vm2267, %v2272, 0.0
        %v2282 = vrot.slane %v2281, 4
        %v2283 = vadd.f32 %v2281, %v2282
        %v2284 = vrot.slane %v2283, 2
        %v2285 = vadd.f32 %v2283, %v2284
        %v2286 = vrot.slane %v2285, 1
        %v2287 = vadd.f32 %v2285, %v2286
        %vm2288 = vcmask 253952
        %2289 = vst.msk [vmem:[%s301] sm:$0x1] %vm2288, %v2287
        %v2290 = vsel %vm2267, %v2280, 0.0
        %v2291 = vrot.slane %v2290, 4
        %v2292 = vadd.f32 %v2290, %v2291
        %v2293 = vrot.slane %v2292, 2
        %v2294 = vadd.f32 %v2292, %v2293
        %v2295 = vrot.slane %v2294, 1
        %v2296 = vadd.f32 %v2294, %v2295
        %2297 = vst.msk [vmem:[%s301 + $0x1] sm:$0x1] %vm2288, %v2296
        %v2298 = vpack.c.bf16 %v2264, %v2264
        %v2299 = vpack.c.bf16 %v2265, %v2265
        %v2300 = vpack.c.bf16 %v2266, %v2266
        %vm2301 = vcmask 254976
        %vm2302 = vsmask.f32 1280
        %vm2303 = vmand %vm2301, %vm2302
        %v2304 = vld [vmem:[%s294] sm:$0x3]
        %v2305 = vsel %vm2303, %v2298, %v2304
        %2306 = vst [vmem:[%s294] sm:$0x3] %v2305
        %v2307 = vld [vmem:[%s294 + $0x2] sm:$0x3]
        %v2308 = vsel %vm2303, %v2299, %v2307
        %2309 = vst [vmem:[%s294 + $0x2] sm:$0x3] %v2308
        %v2310 = vld [vmem:[%s294 + $0x4] sm:$0x3]
        %v2311 = vsel %vm2303, %v2300, %v2310
        %2312 = vst [vmem:[%s294 + $0x4] sm:$0x3] %v2311
      $region40: #{_lambda_.8} parent=31 // pred_fallthru
        _
      %p2313 = scmp.lt.s32.totalorder %s21, 1
      %s2314 = scalar_select %p2313, %s21, 1
      %p2315 = scmp.lt.s32.totalorder %s22, 0
      %s2316 = scalar_select %p2315, %s22, 0
      %s2317 = smul.addr %s2314, 3
      %s2318 = sadd.s32 %s2316, %s2317
      %s2319 = smul.addr %s2318, 2
      %s2320 = scalar_lea.vmem %s3, %s2319
      %p2321 = scmp.lt.s32.totalorder %s21, 1
      %s2322 = scalar_select %p2321, %s21, 1
      %p2323 = scmp.lt.s32.totalorder %s22, 0
      %s2324 = scalar_select %p2323, %s22, 0
      %s2325 = sadd.s32 %s2324, %s2322
      %s2326 = smul.addr %s2325, 2
      %s2327 = scalar_lea.vmem %s4, %s2326
      // Predicated region
      $region41: #{_lambda_.8} parent=31 // pred_check
        %p2328 = pneg %p137
      $region42: #{_lambda_.8} parent=31 // pred_check_branch
        %2330 = sbr.rel (%p2328) target = $region44
      $region43: #{_lambda_.8} parent=31 // pred_region
        _
      $region44: #{_lambda_.8} parent=31 // pred_fallthru
        _
      // Predicated region
      $region45: #{_lambda_.8} parent=31 // pred_check
        %p2331 = pneg %p165
      $region46: #{_lambda_.8} parent=31 // pred_check_branch
        %2333 = sbr.rel (%p2331) target = $region48
      $region47: #{_lambda_.8} parent=31 // pred_region
        _
      $region48: #{_lambda_.8} parent=31 // pred_fallthru
        _
    $region32: #{_lambda_.8} parent=5 // pred_fallthru
      _
    %p2334 = scmp.le.s32.totalorder 2, %s11
    // Predicated region
    $region49: #{_lambda_.8} parent=5 // pred_check
      %p2335 = pneg %p2334
    $region50: #{_lambda_.8} parent=5 // pred_check_branch
      %2337 = sbr.rel (%p2335) target = $region52
    $region51: #{_lambda_.8} parent=5 // pred_region
      %s2338 = ssub.s32 %s11, 2
      // Predicated region
      $region53: #{_lambda_.8} parent=51 // pred_check
        %p2339 = pneg %p143
      $region54: #{_lambda_.8} parent=51 // pred_check_branch
        %2341 = sbr.rel (%p2339) target = $region56
      $region55: #{_lambda_.8} parent=51 // pred_region
        %p2342 = scmp.lt.s32.totalorder %s24, 1
        %s2343 = scalar_select %p2342, %s24, 1
        %p2344 = scmp.lt.s32.totalorder %s25, 0
        %s2345 = scalar_select %p2344, %s25, 0
        %s2346 = smul.addr %s2343, 3
        %s2347 = sadd.s32 %s2345, %s2346
        %s2348 = smul.addr %s2347, 2
        %s2349 = scalar_lea.vmem %s3, %s2348
      $region56: #{_lambda_.8} parent=51 // pred_fallthru
        _
      // Predicated region
      $region57: #{_lambda_.8} parent=51 // pred_check
        %p2350 = pneg %p171
      $region58: #{_lambda_.8} parent=51 // pred_check_branch
        %2352 = sbr.rel (%p2350) target = $region60
      $region59: #{_lambda_.8} parent=51 // pred_region
        %p2353 = scmp.lt.s32.totalorder %s24, 1
        %s2354 = scalar_select %p2353, %s24, 1
        %p2355 = scmp.lt.s32.totalorder %s25, 0
        %s2356 = scalar_select %p2355, %s25, 0
        %s2357 = sadd.s32 %s2356, %s2354
        %s2358 = smul.addr %s2357, 2
        %s2359 = scalar_lea.vmem %s4, %s2358
      $region60: #{_lambda_.8} parent=51 // pred_fallthru
        _
    $region52: #{_lambda_.8} parent=5 // pred_fallthru
      _
  $region6: #{_lambda_.8} parent=0 // loop_footer
    %s15 = sadd.s32 1, %s11
  $region7: #{_lambda_.8} parent=0 // loop_footer_branch
    %10 = sbr.rel target = $region3
  $region8: #{_lambda_.8} parent=0 // loop_exit
    _

// kernel: _lambda_.9
$region0: #{_lambda_.9}
  #allocation0 [shape = 'u32[]', space=smem, size = 0x4, offset = 0x4, fixed_abs, tag = 'smem constant byte address 0x4 - core index']
  #allocation1 [shape = 'u32[144,128]{1,0:T(1,128)}', space=vmem, size = 0x12000, scoped, tag = 'internal scratch']
  #allocation2 [shape = 'f32[32,8]{1,0:T(8,128)}', space=vmem, size = 0x4000, scoped, tag = 'scratch operand']
  %s0 = inlined_call_operand.vmem [shape: bf16[2,5,19,32], index: 0, kind: input, shape index: {}]
  %s1 = inlined_call_operand.vmem [shape: bf16[16,32,8], index: 1, kind: input, shape index: {}]
  %s2 = inlined_call_operand.vmem [shape: f32[1,8], index: 2, kind: input, shape index: {}]
  %s3 = inlined_call_operand.vmem [shape: f32[2,2,2,8], index: 3, kind: output, shape index: {0}]
  %s4 = inlined_call_operand.hbm [shape: f32[2,2,8], index: 4, kind: output, shape index: {1}]
  %5 = xla_tuple %s3, %s4
  %s6 = sld [smem:[#allocation0]]
  $region61: #{_lambda_.9} parent=0
    _
  %s8 = ssub.s32 1, %s6
  %s9 = scalar_select 0, %s8, %s6
  $region1: #{_lambda_.9} parent=0
    #allocation3 [shape = 'u8[2048]{0}', space=vmem, size = 0x800, scoped, tag = 'output window, operand 1']
    #allocation4 [shape = 's32[2]{0}', space=sflag, size = 0x8, scoped, tag = 'scoped memory for _lambda_.9']
    %10 = vsyncpa [#allocation4], 0
    %s11 = scalar_lea.sflag [#allocation4], 1
    %12 = vsyncpa %s11, 0
    loop: start=0, step=1, limit=4
    $region2: #{_lambda_.9} parent=1 // loop_pre_header
      _
    $region3: #{_lambda_.9} parent=1 // loop_header
      %s14 = sphi 0, %s18
      %p15 = scmp.ge.s32.totalorder %s14, 4
      %s21 = sphi 0, %s40
      %s22 = sphi 0, %s36
      %s23 = sphi 0, %s32
      %s24 = sphi 0, %s21
      %s25 = sphi 0, %s22
      %s26 = sphi 0, %s23
      %s27 = sphi 0, %s24
      %s28 = sphi 0, %s25
      %s29 = sphi 0, %s26
      %s45 = sphi 0, %s47
      %s48 = sphi 0, %s45
      %s49 = sphi 0, %s48
      %s65 = sphi 0, %s49
      %s73 = sphi 0, %s75
      %s76 = sphi 0, %s73
      %s77 = sphi 0, %s76
      %s93 = sphi 0, %s77
      %s99 = sphi 0, %s101
      %s102 = sphi 0, %s99
      %s103 = sphi 0, %s102
      %s119 = sphi 0, %s103
      %s127 = sphi 0, %s129
      %s130 = sphi 0, %s127
      %s131 = sphi 0, %s130
      %s147 = sphi 0, %s131
      %s155 = sphi 0, %s157
      %s158 = sphi 0, %s155
      %s159 = sphi 0, %s158
      %s175 = sphi 0, %s159
    $region4: #{_lambda_.9} parent=1 // loop_header_branch
      %17 = sbr.rel (%p15) target = $region8
    $region5: #{_lambda_.9} parent=1 // loop_body
      %s19 = ssub.s32 %s14, 1
      %s20 = ssub.s32 %s14, 2
      %s30 = sadd.s32 1, %s23
      %p31 = scmp.ge.s32.totalorder %s30, 1
      %s32 = scalar_select %p31, 0, %s30
      %s33 = sadd.s32 1, %s22
      %s34 = scalar_select %p31, %s33, %s22
      %p35 = scmp.ge.s32.totalorder %s34, 1
      %s36 = scalar_select %p35, 0, %s34
      %s37 = sadd.s32 1, %s21
      %s38 = scalar_select %p35, %s37, %s21
      %p39 = scmp.ge.s32.totalorder %s38, 2
      %s40 = scalar_select %p39, 0, %s38
      %s41 = ssub.s32 %s21, %s40
      %s42 = ssub.s32 %s23, %s32
      %s43 = sor.u32 %s41, %s42
      %p44 = scmp.eq.s32.totalorder %s43, 0
      %s46 = sadd.s32 %s45, 1
      %s47 = scalar_select %p44, %s45, %s46
      %p50 = pneg %p44
      %p51 = scmp.eq.s32.totalorder %s14, 1
      %p52 = por %p50, %p51
      %p53 = scmp.ne.s32.totalorder %s45, %s48
      %p54 = scmp.eq.s32.totalorder %s14, 0
      %p55 = por %p53, %p54
      %p56 = scmp.ne.s32.totalorder %s45, %s48
      %p57 = scmp.eq.s32.totalorder %s19, 1
      %p58 = por %p56, %p57
      %p59 = scmp.ne.s32.totalorder %s48, %s49
      %p60 = scmp.eq.s32.totalorder %s19, 0
      %p61 = por %p59, %p60
      %p62 = scmp.ne.s32.totalorder %s48, %s49
      %p63 = scmp.eq.s32.totalorder %s20, 1
      %p64 = por %p62, %p63
      %p66 = scmp.ne.s32.totalorder %s49, %s65
      %p67 = scmp.eq.s32.totalorder %s20, 0
      %p68 = por %p66, %p67
      %s69 = ssub.s32 %s23, %s32
      %s70 = ssub.s32 %s22, %s36
      %s71 = sor.u32 %s69, %s70
      %p72 = scmp.eq.s32.totalorder %s71, 0
      %s74 = sadd.s32 %s73, 1
      %s75 = scalar_select %p72, %s73, %s74
      %p78 = pneg %p72
      %p79 = scmp.eq.s32.totalorder %s14, 1
      %p80 = por %p78, %p79
      %p81 = scmp.ne.s32.totalorder %s73, %s76
      %p82 = scmp.eq.s32.totalorder %s14, 0
      %p83 = por %p81, %p82
      %p84 = scmp.ne.s32.totalorder %s73, %s76
      %p85 = scmp.eq.s32.totalorder %s19, 1
      %p86 = por %p84, %p85
      %p87 = scmp.ne.s32.totalorder %s76, %s77
      %p88 = scmp.eq.s32.totalorder %s19, 0
      %p89 = por %p87, %p88
      %p90 = scmp.ne.s32.totalorder %s76, %s77
      %p91 = scmp.eq.s32.totalorder %s20, 1
      %p92 = por %p90, %p91
      %p94 = scmp.ne.s32.totalorder %s77, %s93
      %p95 = scmp.eq.s32.totalorder %s20, 0
      %p96 = por %p94, %p95
      %s97 = ssub.s32 %s22, %s36
      %p98 = scmp.eq.s32.totalorder %s97, 0
      %s100 = sadd.s32 %s99, 1
      %s101 = scalar_select %p98, %s99, %s100
      %p104 = pneg %p98
      %p105 = scmp.eq.s32.totalorder %s14, 1
      %p106 = por %p104, %p105
      %p107 = scmp.ne.s32.totalorder %s99, %s102
      %p108 = scmp.eq.s32.totalorder %s14, 0
      %p109 = por %p107, %p108
      %p110 = scmp.ne.s32.totalorder %s99, %s102
      %p111 = scmp.eq.s32.totalorder %s19, 1
      %p112 = por %p110, %p111
      %p113 = scmp.ne.s32.totalorder %s102, %s103
      %p114 = scmp.eq.s32.totalorder %s19, 0
      %p115 = por %p113, %p114
      %p116 = scmp.ne.s32.totalorder %s102, %s103
      %p117 = scmp.eq.s32.totalorder %s20, 1
      %p118 = por %p116, %p117
      %p120 = scmp.ne.s32.totalorder %s103, %s119
      %p121 = scmp.eq.s32.totalorder %s20, 0
      %p122 = por %p120, %p121
      %s123 = ssub.s32 %s21, %s40
      %s124 = ssub.s32 %s22, %s36
      %s125 = sor.u32 %s123, %s124
      %p126 = scmp.eq.s32.totalorder %s125, 0
      %s128 = sadd.s32 %s127, 1
      %s129 = scalar_select %p126, %s127, %s128
      %p132 = pneg %p126
      %p133 = scmp.eq.s32.totalorder %s14, 1
      %p134 = por %p132, %p133
      %p135 = scmp.ne.s32.totalorder %s127, %s130
      %p136 = scmp.eq.s32.totalorder %s14, 0
      %p137 = por %p135, %p136
      %p138 = scmp.ne.s32.totalorder %s127, %s130
      %p139 = scmp.eq.s32.totalorder %s19, 1
      %p140 = por %p138, %p139
      %p141 = scmp.ne.s32.totalorder %s130, %s131
      %p142 = scmp.eq.s32.totalorder %s19, 0
      %p143 = por %p141, %p142
      %p144 = scmp.ne.s32.totalorder %s130, %s131
      %p145 = scmp.eq.s32.totalorder %s20, 1
      %p146 = por %p144, %p145
      %p148 = scmp.ne.s32.totalorder %s131, %s147
      %p149 = scmp.eq.s32.totalorder %s20, 0
      %p150 = por %p148, %p149
      %s151 = ssub.s32 %s21, %s40
      %s152 = ssub.s32 %s22, %s36
      %s153 = sor.u32 %s151, %s152
      %p154 = scmp.eq.s32.totalorder %s153, 0
      %s156 = sadd.s32 %s155, 1
      %s157 = scalar_select %p154, %s155, %s156
      %p160 = pneg %p154
      %p161 = scmp.eq.s32.totalorder %s14, 1
      %p162 = por %p160, %p161
      %p163 = scmp.ne.s32.totalorder %s155, %s158
      %p164 = scmp.eq.s32.totalorder %s14, 0
      %p165 = por %p163, %p164
      %p166 = scmp.ne.s32.totalorder %s155, %s158
      %p167 = scmp.eq.s32.totalorder %s19, 1
      %p168 = por %p166, %p167
      %p169 = scmp.ne.s32.totalorder %s158, %s159
      %p170 = scmp.eq.s32.totalorder %s19, 0
      %p171 = por %p169, %p170
      %p172 = scmp.ne.s32.totalorder %s158, %s159
      %p173 = scmp.eq.s32.totalorder %s20, 1
      %p174 = por %p172, %p173
      %p176 = scmp.ne.s32.totalorder %s159, %s175
      %p177 = scmp.eq.s32.totalorder %s20, 0
      %p178 = por %p176, %p177
      %p179 = scmp.le.s32.totalorder 1, %s14
      %p180 = scmp.lt.s32.totalorder %s14, 3
      %p181 = pnand %p179, %p180
      %p182 = pneg %p181
      // Predicated region
      $region9: #{_lambda_.9} parent=5 // pred_check
        _
      $region10: #{_lambda_.9} parent=5 // pred_check_branch
        %184 = sbr.rel (%p181) target = $region12
      $region11: #{_lambda_.9} parent=5 // pred_region
        %s185 = ssub.s32 %s14, 1
        // Predicated region
        $region13: #{_lambda_.9} parent=11 // pred_check
          %p186 = pneg %p89
        $region14: #{_lambda_.9} parent=11 // pred_check_branch
          %188 = sbr.rel (%p186) target = $region16
        $region15: #{_lambda_.9} parent=11 // pred_region
          %s189 = smul.u32 4, %s26
          %p190 = scmp.lt.s32.totalorder %s189, 3
          %s191 = scalar_select %p190, %s189, 3
          %p192 = scmp.lt.s32.totalorder %s25, 0
          %s193 = scalar_select %p192, %s25, 0
          %s194 = sadd.s32 %s193, %s191
          %s195 = smul.addr %s194, 4
          %s196 = scalar_lea.vmem %s1, %s195
          %s197 = smul.u32 4, %s26
        $region16: #{_lambda_.9} parent=11 // pred_fallthru
          _
        // Predicated region
        $region17: #{_lambda_.9} parent=11 // pred_check
          %p198 = pneg %p115
        $region18: #{_lambda_.9} parent=11 // pred_check_branch
          %200 = sbr.rel (%p198) target = $region20
        $region19: #{_lambda_.9} parent=11 // pred_region
          %p201 = scmp.lt.s32.totalorder %s25, 0
          %s202 = scalar_select %p201, %s25, 0
          %s203 = scalar_lea.vmem %s2, %s202
        $region20: #{_lambda_.9} parent=11 // pred_fallthru
          _
      $region12: #{_lambda_.9} parent=5 // pred_fallthru
        _
      %p204 = scmp.lt.s32.totalorder %s14, 2
      // Predicated region
      $region21: #{_lambda_.9} parent=5 // pred_check
        %p205 = pneg %p204
      $region22: #{_lambda_.9} parent=5 // pred_check_branch
        %207 = sbr.rel (%p205) target = $region24
      $region23: #{_lambda_.9} parent=5 // pred_region
        // Predicated region
        $region25: #{_lambda_.9} parent=23 // pred_check
          %p208 = pneg %p55
        $region26: #{_lambda_.9} parent=23 // pred_check_branch
          %210 = sbr.rel (%p208) target = $region28
        $region27: #{_lambda_.9} parent=23 // pred_region
          %p211 = scmp.lt.s32.totalorder %s21, 1
          %s212 = scalar_select %p211, %s21, 1
          %p213 = scmp.lt.s32.totalorder %s23, 0
          %s214 = scalar_select %p213, %s23, 0
          %s215 = smul.addr %s212, 15
          %s216 = sadd.s32 %s214, %s215
          %s217 = smul.addr %s216, 4
          %s218 = scalar_lea.vmem %s0, %s217
        $region28: #{_lambda_.9} parent=23 // pred_fallthru
          _
      $region24: #{_lambda_.9} parent=5 // pred_fallthru
        _
      %p219 = scmp.le.s32.totalorder 1, %s14
      %p220 = scmp.lt.s32.totalorder %s14, 3
      %p221 = pnand %p219, %p220
      %p222 = pneg %p221
      // Predicated region
      $region29: #{_lambda_.9} parent=5 // pred_check
        _
      $region30: #{_lambda_.9} parent=5 // pred_check_branch
        %224 = sbr.rel (%p221) target = $region32
      $region31: #{_lambda_.9} parent=5 // pred_region
        %s225 = ssub.s32 %s14, 1
        %p226 = scmp.lt.s32.totalorder %s24, 1
        %s227 = scalar_select %p226, %s24, 1
        %p228 = scmp.lt.s32.totalorder %s26, 0
        %s229 = scalar_select %p228, %s26, 0
        %s230 = smul.addr %s227, 15
        %s231 = sadd.s32 %s229, %s230
        %s232 = smul.addr %s231, 4
        %s233 = scalar_lea.vmem %s0, %s232
        %p234 = pneg %p61
        %p235 = pneg %p58
        %s236 = smul.u32 4, %s26
        %p237 = scmp.lt.s32.totalorder %s236, 3
        %s238 = scalar_select %p237, %s236, 3
        %p239 = scmp.lt.s32.totalorder %s25, 0
        %s240 = scalar_select %p239, %s25, 0
        %s241 = sadd.s32 %s240, %s238
        %s242 = smul.addr %s241, 4
        %s243 = scalar_lea.vmem %s1, %s242
        %p244 = pneg %p89
        %p245 = pneg %p86
        %p246 = scmp.lt.s32.totalorder %s25, 0
        %s247 = scalar_select %p246, %s25, 0
        %s248 = scalar_lea.vmem %s2, %s247
        %p249 = pneg %p115
        %p250 = pneg %p112
        %p251 = pneg %p143
        %p252 = pneg %p140
        %p253 = scmp.lt.s32.totalorder %s24, 1
        %s254 = scalar_select %p253, %s24, 1
        %p255 = scmp.lt.s32.totalorder %s25, 0
        %s256 = scalar_select %p255, %s25, 0
        %s257 = smul.addr %s254, 2
        %s258 = sadd.s32 %s256, %s257
        %s259 = smul.addr %s258, 2
        %s260 = scalar_lea.vmem %s3, %s259
        %p261 = pneg %p171
        %p262 = pneg %p168
        %s263 = sand.u32 %s158, 1
        %s264 = scalar_lea.sflag [#allocation4], %s263
        %s265 = sand.u32 %s158, 1
        %s266 = smul.addr %s265, 2
        %s267 = scalar_lea.vmem [#allocation3], %s266
        %p268 = scmp.lt.s32.totalorder %s24, 1
        %s269 = scalar_select %p268, %s24, 1
        %p270 = scmp.lt.s32.totalorder %s26, 0
        %s271 = scalar_select %p270, %s26, 0
        %s272 = smul.addr %s269, 15
        %s273 = sadd.s32 %s271, %s272
        %s274 = smul.addr %s273, 4
        %s275 = scalar_lea.vmem %s0, %s274
        %s276 = smul.u32 4, %s26
        %p277 = scmp.lt.s32.totalorder %s276, 3
        %s278 = scalar_select %p277, %s276, 3
        %p279 = scmp.lt.s32.totalorder %s25, 0
        %s280 = scalar_select %p279, %s25, 0
        %s281 = sadd.s32 %s280, %s278
        %s282 = smul.addr %s281, 4
        %s283 = scalar_lea.vmem %s1, %s282
        %s284 = smul.u32 4, %s26
        %p285 = scmp.lt.s32.totalorder %s25, 0
        %s286 = scalar_select %p285, %s25, 0
        %s287 = scalar_lea.vmem %s2, %s286
        %p288 = scmp.lt.s32.totalorder %s24, 1
        %s289 = scalar_select %p288, %s24, 1
        %p290 = scmp.lt.s32.totalorder %s25, 0
        %s291 = scalar_select %p290, %s25, 0
        %s292 = smul.addr %s289, 2
        %s293 = sadd.s32 %s291, %s292
        %s294 = smul.addr %s293, 2
        %s295 = scalar_lea.vmem %s3, %s294
        %p297 = scmp.eq.s32.totalorder %s26, 0
        // Predicated region
        $region33: #{_lambda_.9} parent=31 // pred_check
          %p298 = pneg %p297
        $region34: #{_lambda_.9} parent=31 // pred_check_branch
          %300 = sbr.rel (%p298) target = $region36
        $region35: #{_lambda_.9} parent=31 // pred_region
          %vm301 = vcmask 64512
          %302 = vst.msk [vmem:[#allocation2] sm:$0xff] %vm301, 0.0
          %303 = vst.msk [vmem:[#allocation2 + $0x8] sm:$0xff] %vm301, 0.0
          %304 = vst.msk [vmem:[#allocation2 + $0x10] sm:$0xff] %vm301, 0.0
          %305 = vst.msk [vmem:[#allocation2 + $0x18] sm:$0xff] %vm301, 0.0
        $region36: #{_lambda_.9} parent=31 // pred_fallthru
          _
        %v306 = vld [vmem:[%s275] sm:$0xf]
        %v307 = vld [vmem:[%s275 + $0x4] sm:$0xf]
        %v308 = vld [vmem:[%s275 + $0x8] sm:$0x3]
        %v309 = vld [vmem:[%s275 + $0xc] sm:$0xf]
        %v310 = vld [vmem:[%s275 + $0x10] sm:$0xf]
        %v311 = vld [vmem:[%s275 + $0x14] sm:$0x3]
        %v312 = vld [vmem:[%s275 + $0x18] sm:$0xf]
        %v313 = vld [vmem:[%s275 + $0x1c] sm:$0xf]
        %v314 = vld [vmem:[%s275 + $0x20] sm:$0x3]
        %v315 = vld [vmem:[%s275 + $0x24] sm:$0xf]
        %v316 = vld [vmem:[%s275 + $0x28] sm:$0xf]
        %v317 = vld [vmem:[%s275 + $0x2c] sm:$0x3]
        %v318 = vld [vmem:[%s275 + $0x30] sm:$0xf]
        %v319 = vld [vmem:[%s275 + $0x34] sm:$0xf]
        %v320 = vld [vmem:[%s275 + $0x38] sm:$0x3]
        %v321 = vld [vmem:[#allocation2] sm:$0xff]
        %v322 = vld [vmem:[#allocation2 + $0x8] sm:$0xff]
        %v323 = vld [vmem:[#allocation2 + $0x10] sm:$0xff]
        %v324 = vld [vmem:[#allocation2 + $0x18] sm:$0xff]
        %v325 = vld [vmem:[%s283] sm:$0xf]
        %v326 = vld [vmem:[%s283 + $0x4] sm:$0xf]
        %v327 = vld [vmem:[%s283 + $0x8] sm:$0xf]
        %v328 = vld [vmem:[%s283 + $0xc] sm:$0xf]
        %v333 = vunpack.c.l.b16 %v306
        %v334 = vunpack.c.l.b16 %v307
        %v335 = vunpack.c.l.b16 %v309
        %v336 = vunpack.c.l.b16 %v310
        %v337 = vpack.c.b16 %v334, %v333
        %v338 = vpack.c.b16 %v336, %v335
        %v343 = vunpack.c.l.b16 %v325
        %v344 = vunpack.c.l.b16 %v326
        %v345 = vunpack.c.l.b16 %v327
        %v346 = vunpack.c.l.b16 %v328
        %v347 = vpack.c.b16 %v344, %v343
        %v348 = vpack.c.b16 %v346, %v345
        %vm351 = vcmask 261120
        %v353 = vsel %vm351, %v337, 0
        %v356 = vsel %vm351, %v338, 0
        %358 = vmatprep.subr.bf16.mxu0 0
        %359 = vmatpush1.bf16.msra.mxu0 0
        %360 = vmatprep.subr.bf16.mxu0 0
        %361 = vmatpush1.bf16.msra.mxu0 0
        %362 = vmatprep.subr.bf16.mxu0 0
        %363 = vmatpush1.bf16.msra.mxu0 0
        %364 = vmatprep.subr.bf16.mxu0 0
        %365 = vmatpush1.bf16.msra.mxu0 0
        %366 = vmatprep.subr.bf16.mxu0 0
        %367 = vmatpush1.bf16.msra.mxu0 0
        %368 = vmatprep.subr.bf16.mxu0 0
        %369 = vmatpush1.bf16.msra.mxu0 0
        %370 = vmatprep.subr.bf16.mxu0 0
        %371 = vmatpush1.bf16.msra.mxu0 %v348
        %372 = vmatprep.subr.bf16.mxu0 0
        %373 = vmatpush1.bf16.msra.mxu0 %v347
        %374 = vmatprep.subr.bf16.mxu0 0
        %375 = vmatpush2.bf16.msra.mxu0 0
        %376 = vmatprep.subr.bf16.mxu0 0
        %377 = vmatpush2.bf16.msra.mxu0 0
        %378 = vmatprep.subr.bf16.mxu0 0
        %379 = vmatpush2.bf16.msra.mxu0 0
        %380 = vmatprep.subr.bf16.mxu0 0
        %381 = vmatpush2.bf16.msra.mxu0 0
        %382 = vmatprep.subr.bf16.mxu0 0
        %383 = vmatpush2.bf16.msra.mxu0 0
        %384 = vmatprep.subr.bf16.mxu0 0
        %385 = vmatpush2.bf16.msra.mxu0 0
        %386 = vmatprep.subr.bf16.mxu0 0
        %387 = vmatpush2.bf16.msra.mxu0 0
        %388 = vmatprep.subr.bf16.mxu0 0
        %389 = vmatpush2.bf16.msra.mxu0 0
        %390 = vmatprep.mubr.bf16.mxu0 0
        %391 = vmatmul.mubr.bf16.gmra.mxu0 %v353
        %v392 = vpop.f32.mrf.mxu0
        %v393 = vadd.f32 0.0, %v392
        %v394 = vpop.f32.mrf.mxu0
        %v395 = vpop.f32.mrf.mxu0
        %v396 = vadd.f32 0.0, %v395
        %v397 = vpop.f32.mrf.mxu0
        %398 = vmatprep.mubr.bf16.mxu0 0
        %399 = vmatmul.mubr.bf16.gmra.mxu0 %v356
        %v400 = vpop.f32.mrf.mxu0
        %v401 = vadd.f32 0.0, %v400
        %v402 = vpop.f32.mrf.mxu0
        %v403 = vpop.f32.mrf.mxu0
        %v404 = vadd.f32 0.0, %v403
        %v405 = vpop.f32.mrf.mxu0
        %406 = vdwg.mxu0
        %v407 = vadd.f32 %v321, %v393
        %v408 = vadd.f32 %v322, %v396
        %v409 = vadd.f32 %v323, %v401
        %v410 = vadd.f32 %v324, %v404
        %vm411 = vcmask 64512
        %412 = vst.msk [vmem:[#allocation2] sm:$0xff] %vm411, %v407
        %413 = vst.msk [vmem:[#allocation2 + $0x8] sm:$0xff] %vm411, %v408
        %414 = vst.msk [vmem:[#allocation2 + $0x10] sm:$0xff] %vm411, %v409
        %415 = vst.msk [vmem:[#allocation2 + $0x18] sm:$0xff] %vm411, %v410
        %v416 = vld [vmem:[#allocation2] sm:$0xff]
        %v417 = vld [vmem:[#allocation2 + $0x8] sm:$0xff]
        %v418 = vld [vmem:[#allocation2 + $0x10] sm:$0xff]
        %v419 = vld [vmem:[#allocation2 + $0x18] sm:$0xff]
        %s420 = scalar_lea.vmem %s283, 64
        %v421 = vld [vmem:[%s420] sm:$0xf]
        %v422 = vld [vmem:[%s420 + $0x4] sm:$0xf]
        %v423 = vld [vmem:[%s420 + $0x8] sm:$0xf]
        %v424 = vld [vmem:[%s420 + $0xc] sm:$0xf]
        %v427 = vunpack.c.l.b16 %v312
        %v428 = vunpack.c.l.b16 %v313
        %v429 = vpack.c.b16 %v428, %v427
        %v434 = vunpack.c.l.b16 %v421
        %v435 = vunpack.c.l.b16 %v422
        %v436 = vunpack.c.l.b16 %v423
        %v437 = vunpack.c.l.b16 %v424
        %v438 = vpack.c.b16 %v435, %v434
        %v439 = vpack.c.b16 %v437, %v436
        %v443 = vsel %vm351, %v429, 0
        %445 = vmatprep.subr.bf16.mxu0 0
        %446 = vmatpush1.bf16.msra.mxu0 0
        %447 = vmatprep.subr.bf16.mxu0 0
        %448 = vmatpush1.bf16.msra.mxu0 0
        %449 = vmatprep.subr.bf16.mxu0 0
        %450 = vmatpush1.bf16.msra.mxu0 0
        %451 = vmatprep.subr.bf16.mxu0 0
        %452 = vmatpush1.bf16.msra.mxu0 0
        %453 = vmatprep.subr.bf16.mxu0 0
        %454 = vmatpush1.bf16.msra.mxu0 0
        %455 = vmatprep.subr.bf16.mxu0 0
        %456 = vmatpush1.bf16.msra.mxu0 0
        %457 = vmatprep.subr.bf16.mxu0 0
        %458 = vmatpush1.bf16.msra.mxu0 %v439
        %459 = vmatprep.subr.bf16.mxu0 0
        %460 = vmatpush1.bf16.msra.mxu0 %v438
        %461 = vmatprep.subr.bf16.mxu0 0
        %462 = vmatpush2.bf16.msra.mxu0 0
        %463 = vmatprep.subr.bf16.mxu0 0
        %464 = vmatpush2.bf16.msra.mxu0 0
        %465 = vmatprep.subr.bf16.mxu0 0
        %466 = vmatpush2.bf16.msra.mxu0 0
        %467 = vmatprep.subr.bf16.mxu0 0
        %468 = vmatpush2.bf16.msra.mxu0 0
        %469 = vmatprep.subr.bf16.mxu0 0
        %470 = vmatpush2.bf16.msra.mxu0 0
        %471 = vmatprep.subr.bf16.mxu0 0
        %472 = vmatpush2.bf16.msra.mxu0 0
        %473 = vmatprep.subr.bf16.mxu0 0
        %474 = vmatpush2.bf16.msra.mxu0 0
        %475 = vmatprep.subr.bf16.mxu0 0
        %476 = vmatpush2.bf16.msra.mxu0 0
        %477 = vmatprep.mubr.bf16.mxu0 0
        %478 = vmatmul.mubr.bf16.gmra.mxu0 %v356
        %v479 = vpop.f32.mrf.mxu0
        %v480 = vadd.f32 0.0, %v479
        %v481 = vpop.f32.mrf.mxu0
        %v482 = vpop.f32.mrf.mxu0
        %v483 = vadd.f32 0.0, %v482
        %v484 = vpop.f32.mrf.mxu0
        %485 = vmatprep.mubr.bf16.mxu0 0
        %486 = vmatmul.mubr.bf16.gmra.mxu0 %v443
        %v487 = vpop.f32.mrf.mxu0
        %v488 = vadd.f32 0.0, %v487
        %v489 = vpop.f32.mrf.mxu0
        %v490 = vpop.f32.mrf.mxu0
        %v491 = vadd.f32 0.0, %v490
        %v492 = vpop.f32.mrf.mxu0
        %493 = vdwg.mxu0
        %v494 = vadd.f32 %v416, %v480
        %v495 = vadd.f32 %v417, %v483
        %v496 = vadd.f32 %v418, %v488
        %v497 = vadd.f32 %v419, %v491
        %498 = vst.msk [vmem:[#allocation2] sm:$0xff] %vm411, %v494
        %499 = vst.msk [vmem:[#allocation2 + $0x8] sm:$0xff] %vm411, %v495
        %500 = vst.msk [vmem:[#allocation2 + $0x10] sm:$0xff] %vm411, %v496
        %501 = vst.msk [vmem:[#allocation2 + $0x18] sm:$0xff] %vm411, %v497
        %v502 = vld [vmem:[#allocation2] sm:$0xff]
        %v503 = vld [vmem:[#allocation2 + $0x8] sm:$0xff]
        %v504 = vld [vmem:[#allocation2 + $0x10] sm:$0xff]
        %v505 = vld [vmem:[#allocation2 + $0x18] sm:$0xff]
        %s506 = scalar_lea.vmem %s283, 128
        %v507 = vld [vmem:[%s506] sm:$0xf]
        %v508 = vld [vmem:[%s506 + $0x4] sm:$0xf]
        %v509 = vld [vmem:[%s506 + $0x8] sm:$0xf]
        %v510 = vld [vmem:[%s506 + $0xc] sm:$0xf]
        %v513 = vunpack.c.l.b16 %v315
        %v514 = vunpack.c.l.b16 %v316
        %v515 = vpack.c.b16 %v514, %v513
        %v520 = vunpack.c.l.b16 %v507
        %v521 = vunpack.c.l.b16 %v508
        %v522 = vunpack.c.l.b16 %v509
        %v523 = vunpack.c.l.b16 %v510
        %v524 = vpack.c.b16 %v521, %v520
        %v525 = vpack.c.b16 %v523, %v522
        %v529 = vsel %vm351, %v515, 0
        %531 = vmatprep.subr.bf16.mxu0 0
        %532 = vmatpush1.bf16.msra.mxu0 0
        %533 = vmatprep.subr.bf16.mxu0 0
        %534 = vmatpush1.bf16.msra.mxu0 0
        %535 = vmatprep.subr.bf16.mxu0 0
        %536 = vmatpush1.bf16.msra.mxu0 0
        %537 = vmatprep.subr.bf16.mxu0 0
        %538 = vmatpush1.bf16.msra.mxu0 0
        %539 = vmatprep.subr.bf16.mxu0 0
        %540 = vmatpush1.bf16.msra.mxu0 0
        %541 = vmatprep.subr.bf16.mxu0 0
        %542 = vmatpush1.bf16.msra.mxu0 0
        %543 = vmatprep.subr.bf16.mxu0 0
        %544 = vmatpush1.bf16.msra.mxu0 %v525
        %545 = vmatprep.subr.bf16.mxu0 0
        %546 = vmatpush1.bf16.msra.mxu0 %v524
        %547 = vmatprep.subr.bf16.mxu0 0
        %548 = vmatpush2.bf16.msra.mxu0 0
        %549 = vmatprep.subr.bf16.mxu0 0
        %550 = vmatpush2.bf16.msra.mxu0 0
        %551 = vmatprep.subr.bf16.mxu0 0
        %552 = vmatpush2.bf16.msra.mxu0 0
        %553 = vmatprep.subr.bf16.mxu0 0
        %554 = vmatpush2.bf16.msra.mxu0 0
        %555 = vmatprep.subr.bf16.mxu0 0
        %556 = vmatpush2.bf16.msra.mxu0 0
        %557 = vmatprep.subr.bf16.mxu0 0
        %558 = vmatpush2.bf16.msra.mxu0 0
        %559 = vmatprep.subr.bf16.mxu0 0
        %560 = vmatpush2.bf16.msra.mxu0 0
        %561 = vmatprep.subr.bf16.mxu0 0
        %562 = vmatpush2.bf16.msra.mxu0 0
        %563 = vmatprep.mubr.bf16.mxu0 0
        %564 = vmatmul.mubr.bf16.gmra.mxu0 %v443
        %v565 = vpop.f32.mrf.mxu0
        %v566 = vadd.f32 0.0, %v565
        %v567 = vpop.f32.mrf.mxu0
        %v568 = vpop.f32.mrf.mxu0
        %v569 = vadd.f32 0.0, %v568
        %v570 = vpop.f32.mrf.mxu0
        %571 = vmatprep.mubr.bf16.mxu0 0
        %572 = vmatmul.mubr.bf16.gmra.mxu0 %v529
        %v573 = vpop.f32.mrf.mxu0
        %v574 = vadd.f32 0.0, %v573
        %v575 = vpop.f32.mrf.mxu0
        %v576 = vpop.f32.mrf.mxu0
        %v577 = vadd.f32 0.0, %v576
        %v578 = vpop.f32.mrf.mxu0
        %579 = vdwg.mxu0
        %v580 = vadd.f32 %v502, %v566
        %v581 = vadd.f32 %v503, %v569
        %v582 = vadd.f32 %v504, %v574
        %v583 = vadd.f32 %v505, %v577
        %584 = vst.msk [vmem:[#allocation2] sm:$0xff] %vm411, %v580
        %585 = vst.msk [vmem:[#allocation2 + $0x8] sm:$0xff] %vm411, %v581
        %586 = vst.msk [vmem:[#allocation2 + $0x10] sm:$0xff] %vm411, %v582
        %587 = vst.msk [vmem:[#allocation2 + $0x18] sm:$0xff] %vm411, %v583
        %v588 = vld [vmem:[#allocation2] sm:$0xff]
        %v589 = vld [vmem:[#allocation2 + $0x8] sm:$0xff]
        %v590 = vld [vmem:[#allocation2 + $0x10] sm:$0xff]
        %v591 = vld [vmem:[#allocation2 + $0x18] sm:$0xff]
        %s592 = scalar_lea.vmem %s283, 192
        %v593 = vld [vmem:[%s592] sm:$0xf]
        %v594 = vld [vmem:[%s592 + $0x4] sm:$0xf]
        %v595 = vld [vmem:[%s592 + $0x8] sm:$0xf]
        %v596 = vld [vmem:[%s592 + $0xc] sm:$0xf]
        %v599 = vunpack.c.l.b16 %v318
        %v600 = vunpack.c.l.b16 %v319
        %v601 = vpack.c.b16 %v600, %v599
        %v606 = vunpack.c.l.b16 %v593
        %v607 = vunpack.c.l.b16 %v594
        %v608 = vunpack.c.l.b16 %v595
        %v609 = vunpack.c.l.b16 %v596
        %v610 = vpack.c.b16 %v607, %v606
        %v611 = vpack.c.b16 %v609, %v608
        %v615 = vsel %vm351, %v601, 0
        %617 = vmatprep.subr.bf16.mxu0 0
        %618 = vmatpush1.bf16.msra.mxu0 0
        %619 = vmatprep.subr.bf16.mxu0 0
        %620 = vmatpush1.bf16.msra.mxu0 0
        %621 = vmatprep.subr.bf16.mxu0 0
        %622 = vmatpush1.bf16.msra.mxu0 0
        %623 = vmatprep.subr.bf16.mxu0 0
        %624 = vmatpush1.bf16.msra.mxu0 0
        %625 = vmatprep.subr.bf16.mxu0 0
        %626 = vmatpush1.bf16.msra.mxu0 0
        %627 = vmatprep.subr.bf16.mxu0 0
        %628 = vmatpush1.bf16.msra.mxu0 0
        %629 = vmatprep.subr.bf16.mxu0 0
        %630 = vmatpush1.bf16.msra.mxu0 %v611
        %631 = vmatprep.subr.bf16.mxu0 0
        %632 = vmatpush1.bf16.msra.mxu0 %v610
        %633 = vmatprep.subr.bf16.mxu0 0
        %634 = vmatpush2.bf16.msra.mxu0 0
        %635 = vmatprep.subr.bf16.mxu0 0
        %636 = vmatpush2.bf16.msra.mxu0 0
        %637 = vmatprep.subr.bf16.mxu0 0
        %638 = vmatpush2.bf16.msra.mxu0 0
        %639 = vmatprep.subr.bf16.mxu0 0
        %640 = vmatpush2.bf16.msra.mxu0 0
        %641 = vmatprep.subr.bf16.mxu0 0
        %642 = vmatpush2.bf16.msra.mxu0 0
        %643 = vmatprep.subr.bf16.mxu0 0
        %644 = vmatpush2.bf16.msra.mxu0 0
        %645 = vmatprep.subr.bf16.mxu0 0
        %646 = vmatpush2.bf16.msra.mxu0 0
        %647 = vmatprep.subr.bf16.mxu0 0
        %648 = vmatpush2.bf16.msra.mxu0 0
        %649 = vmatprep.mubr.bf16.mxu0 0
        %650 = vmatmul.mubr.bf16.gmra.mxu0 %v529
        %v651 = vpop.f32.mrf.mxu0
        %v652 = vadd.f32 0.0, %v651
        %v653 = vpop.f32.mrf.mxu0
        %v654 = vpop.f32.mrf.mxu0
        %v655 = vadd.f32 0.0, %v654
        %v656 = vpop.f32.mrf.mxu0
        %657 = vmatprep.mubr.bf16.mxu0 0
        %658 = vmatmul.mubr.bf16.gmra.mxu0 %v615
        %v659 = vpop.f32.mrf.mxu0
        %v660 = vadd.f32 0.0, %v659
        %v661 = vpop.f32.mrf.mxu0
        %v662 = vpop.f32.mrf.mxu0
        %v663 = vadd.f32 0.0, %v662
        %v664 = vpop.f32.mrf.mxu0
        %665 = vdwg.mxu0
        %v666 = vadd.f32 %v588, %v652
        %v667 = vadd.f32 %v589, %v655
        %v668 = vadd.f32 %v590, %v660
        %v669 = vadd.f32 %v591, %v663
        %670 = vst.msk [vmem:[#allocation2] sm:$0xff] %vm411, %v666
        %671 = vst.msk [vmem:[#allocation2 + $0x8] sm:$0xff] %vm411, %v667
        %672 = vst.msk [vmem:[#allocation2 + $0x10] sm:$0xff] %vm411, %v668
        %673 = vst.msk [vmem:[#allocation2 + $0x18] sm:$0xff] %vm411, %v669
        %vm674 = vsmask.f32 3328
        %vm675 = vsmask.f32 7440
        %vm676 = vmor %vm674, %vm675
        %v678 = vshrl.u32 %v306, 16
        %v680 = vrot.slane %v678, 4
        %v681 = vshll.u32 %v306, 16
        %v683 = vrot.slane %v681, 5
        %v684 = vor.u32 %v680, %v683
        %v685 = vrot.slane %v684, 4
        %v687 = vshll.u32 %v307, 16
        %v689 = vrot.slane %v687, 5
        %v690 = vsel %vm676, %v685, %v689
        %v691 = vshrl.u32 %v307, 16
        %v693 = vrot.slane %v691, 4
        %v694 = vor.u32 %v693, %v689
        %v695 = vrot.slane %v694, 4
        %v697 = vshll.u32 %v308, 16
        %v699 = vrot.slane %v697, 5
        %v700 = vsel %vm676, %v695, %v699
        %v702 = vshrl.u32 %v309, 16
        %v704 = vrot.slane %v702, 4
        %v705 = vshll.u32 %v309, 16
        %v707 = vrot.slane %v705, 5
        %v708 = vor.u32 %v704, %v707
        %v709 = vrot.slane %v708, 4
        %v711 = vshll.u32 %v310, 16
        %v713 = vrot.slane %v711, 5
        %v714 = vsel %vm676, %v709, %v713
        %v715 = vshrl.u32 %v310, 16
        %v717 = vrot.slane %v715, 4
        %v718 = vor.u32 %v717, %v713
        %v719 = vrot.slane %v718, 4
        %v721 = vshll.u32 %v311, 16
        %v723 = vrot.slane %v721, 5
        %v724 = vsel %vm676, %v719, %v723
        %v725 = vld [vmem:[#allocation2] sm:$0xff]
        %v726 = vld [vmem:[#allocation2 + $0x8] sm:$0xff]
        %v727 = vld [vmem:[#allocation2 + $0x10] sm:$0xff]
        %v728 = vld [vmem:[#allocation2 + $0x18] sm:$0xff]
        %s729 = scalar_lea.vmem %s283, 16
        %v730 = vld [vmem:[%s729] sm:$0xf]
        %v731 = vld [vmem:[%s729 + $0x4] sm:$0xf]
        %v732 = vld [vmem:[%s729 + $0x8] sm:$0xf]
        %v733 = vld [vmem:[%s729 + $0xc] sm:$0xf]
        %v734 = vunpack.c.l.b16 %v690
        %v735 = vunpack.c.l.b16 %v700
        %v736 = vunpack.c.l.b16 %v714
        %v737 = vunpack.c.l.b16 %v724
        %v738 = vpack.c.b16 %v735, %v734
        %v739 = vpack.c.b16 %v737, %v736
        %v744 = vunpack.c.l.b16 %v730
        %v745 = vunpack.c.l.b16 %v731
        %v746 = vunpack.c.l.b16 %v732
        %v747 = vunpack.c.l.b16 %v733
        %v748 = vpack.c.b16 %v745, %v744
        %v749 = vpack.c.b16 %v747, %v746
        %v753 = vsel %vm351, %v738, 0
        %v756 = vsel %vm351, %v739, 0
        %758 = vmatprep.subr.bf16.mxu0 0
        %759 = vmatpush1.bf16.msra.mxu0 0
        %760 = vmatprep.subr.bf16.mxu0 0
        %761 = vmatpush1.bf16.msra.mxu0 0
        %762 = vmatprep.subr.bf16.mxu0 0
        %763 = vmatpush1.bf16.msra.mxu0 0
        %764 = vmatprep.subr.bf16.mxu0 0
        %765 = vmatpush1.bf16.msra.mxu0 0
        %766 = vmatprep.subr.bf16.mxu0 0
        %767 = vmatpush1.bf16.msra.mxu0 0
        %768 = vmatprep.subr.bf16.mxu0 0
        %769 = vmatpush1.bf16.msra.mxu0 0
        %770 = vmatprep.subr.bf16.mxu0 0
        %771 = vmatpush1.bf16.msra.mxu0 %v749
        %772 = vmatprep.subr.bf16.mxu0 0
        %773 = vmatpush1.bf16.msra.mxu0 %v748
        %774 = vmatprep.subr.bf16.mxu0 0
        %775 = vmatpush2.bf16.msra.mxu0 0
        %776 = vmatprep.subr.bf16.mxu0 0
        %777 = vmatpush2.bf16.msra.mxu0 0
        %778 = vmatprep.subr.bf16.mxu0 0
        %779 = vmatpush2.bf16.msra.mxu0 0
        %780 = vmatprep.subr.bf16.mxu0 0
        %781 = vmatpush2.bf16.msra.mxu0 0
        %782 = vmatprep.subr.bf16.mxu0 0
        %783 = vmatpush2.bf16.msra.mxu0 0
        %784 = vmatprep.subr.bf16.mxu0 0
        %785 = vmatpush2.bf16.msra.mxu0 0
        %786 = vmatprep.subr.bf16.mxu0 0
        %787 = vmatpush2.bf16.msra.mxu0 0
        %788 = vmatprep.subr.bf16.mxu0 0
        %789 = vmatpush2.bf16.msra.mxu0 0
        %790 = vmatprep.mubr.bf16.mxu0 0
        %791 = vmatmul.mubr.bf16.gmra.mxu0 %v753
        %v792 = vpop.f32.mrf.mxu0
        %v793 = vadd.f32 0.0, %v792
        %v794 = vpop.f32.mrf.mxu0
        %v795 = vpop.f32.mrf.mxu0
        %v796 = vadd.f32 0.0, %v795
        %v797 = vpop.f32.mrf.mxu0
        %798 = vmatprep.mubr.bf16.mxu0 0
        %799 = vmatmul.mubr.bf16.gmra.mxu0 %v756
        %v800 = vpop.f32.mrf.mxu0
        %v801 = vadd.f32 0.0, %v800
        %v802 = vpop.f32.mrf.mxu0
        %v803 = vpop.f32.mrf.mxu0
        %v804 = vadd.f32 0.0, %v803
        %v805 = vpop.f32.mrf.mxu0
        %806 = vdwg.mxu0
        %v807 = vadd.f32 %v725, %v793
        %v808 = vadd.f32 %v726, %v796
        %v809 = vadd.f32 %v727, %v801
        %v810 = vadd.f32 %v728, %v804
        %811 = vst.msk [vmem:[#allocation2] sm:$0xff] %vm411, %v807
        %812 = vst.msk [vmem:[#allocation2 + $0x8] sm:$0xff] %vm411, %v808
        %813 = vst.msk [vmem:[#allocation2 + $0x10] sm:$0xff] %vm411, %v809
        %814 = vst.msk [vmem:[#allocation2 + $0x18] sm:$0xff] %vm411, %v810
        %v816 = vshrl.u32 %v312, 16
        %v818 = vrot.slane %v816, 4
        %v819 = vshll.u32 %v312, 16
        %v821 = vrot.slane %v819, 5
        %v822 = vor.u32 %v818, %v821
        %v823 = vrot.slane %v822, 4
        %v825 = vshll.u32 %v313, 16
        %v827 = vrot.slane %v825, 5
        %v828 = vsel %vm676, %v823, %v827
        %v829 = vshrl.u32 %v313, 16
        %v831 = vrot.slane %v829, 4
        %v832 = vor.u32 %v831, %v827
        %v833 = vrot.slane %v832, 4
        %v835 = vshll.u32 %v314, 16
        %v837 = vrot.slane %v835, 5
        %v838 = vsel %vm676, %v833, %v837
        %v839 = vld [vmem:[#allocation2] sm:$0xff]
        %v840 = vld [vmem:[#allocation2 + $0x8] sm:$0xff]
        %v841 = vld [vmem:[#allocation2 + $0x10] sm:$0xff]
        %v842 = vld [vmem:[#allocation2 + $0x18] sm:$0xff]
        %s843 = scalar_lea.vmem %s283, 80
        %v844 = vld [vmem:[%s843] sm:$0xf]
        %v845 = vld [vmem:[%s843 + $0x4] sm:$0xf]
        %v846 = vld [vmem:[%s843 + $0x8] sm:$0xf]
        %v847 = vld [vmem:[%s843 + $0xc] sm:$0xf]
        %v848 = vunpack.c.l.b16 %v828
        %v849 = vunpack.c.l.b16 %v838
        %v850 = vpack.c.b16 %v849, %v848
        %v855 = vunpack.c.l.b16 %v844
        %v856 = vunpack.c.l.b16 %v845
        %v857 = vunpack.c.l.b16 %v846
        %v858 = vunpack.c.l.b16 %v847
        %v859 = vpack.c.b16 %v856, %v855
        %v860 = vpack.c.b16 %v858, %v857
        %v864 = vsel %vm351, %v850, 0
        %866 = vmatprep.subr.bf16.mxu0 0
        %867 = vmatpush1.bf16.msra.mxu0 0
        %868 = vmatprep.subr.bf16.mxu0 0
        %869 = vmatpush1.bf16.msra.mxu0 0
        %870 = vmatprep.subr.bf16.mxu0 0
        %871 = vmatpush1.bf16.msra.mxu0 0
        %872 = vmatprep.subr.bf16.mxu0 0
        %873 = vmatpush1.bf16.msra.mxu0 0
        %874 = vmatprep.subr.bf16.mxu0 0
        %875 = vmatpush1.bf16.msra.mxu0 0
        %876 = vmatprep.subr.bf16.mxu0 0
        %877 = vmatpush1.bf16.msra.mxu0 0
        %878 = vmatprep.subr.bf16.mxu0 0
        %879 = vmatpush1.bf16.msra.mxu0 %v860
        %880 = vmatprep.subr.bf16.mxu0 0
        %881 = vmatpush1.bf16.msra.mxu0 %v859
        %882 = vmatprep.subr.bf16.mxu0 0
        %883 = vmatpush2.bf16.msra.mxu0 0
        %884 = vmatprep.subr.bf16.mxu0 0
        %885 = vmatpush2.bf16.msra.mxu0 0
        %886 = vmatprep.subr.bf16.mxu0 0
        %887 = vmatpush2.bf16.msra.mxu0 0
        %888 = vmatprep.subr.bf16.mxu0 0
        %889 = vmatpush2.bf16.msra.mxu0 0
        %890 = vmatprep.subr.bf16.mxu0 0
        %891 = vmatpush2.bf16.msra.mxu0 0
        %892 = vmatprep.subr.bf16.mxu0 0
        %893 = vmatpush2.bf16.msra.mxu0 0
        %894 = vmatprep.subr.bf16.mxu0 0
        %895 = vmatpush2.bf16.msra.mxu0 0
        %896 = vmatprep.subr.bf16.mxu0 0
        %897 = vmatpush2.bf16.msra.mxu0 0
        %898 = vmatprep.mubr.bf16.mxu0 0
        %899 = vmatmul.mubr.bf16.gmra.mxu0 %v756
        %v900 = vpop.f32.mrf.mxu0
        %v901 = vadd.f32 0.0, %v900
        %v902 = vpop.f32.mrf.mxu0
        %v903 = vpop.f32.mrf.mxu0
        %v904 = vadd.f32 0.0, %v903
        %v905 = vpop.f32.mrf.mxu0
        %906 = vmatprep.mubr.bf16.mxu0 0
        %907 = vmatmul.mubr.bf16.gmra.mxu0 %v864
        %v908 = vpop.f32.mrf.mxu0
        %v909 = vadd.f32 0.0, %v908
        %v910 = vpop.f32.mrf.mxu0
        %v911 = vpop.f32.mrf.mxu0
        %v912 = vadd.f32 0.0, %v911
        %v913 = vpop.f32.mrf.mxu0
        %914 = vdwg.mxu0
        %v915 = vadd.f32 %v839, %v901
        %v916 = vadd.f32 %v840, %v904
        %v917 = vadd.f32 %v841, %v909
        %v918 = vadd.f32 %v842, %v912
        %919 = vst.msk [vmem:[#allocation2] sm:$0xff] %vm411, %v915
        %920 = vst.msk [vmem:[#allocation2 + $0x8] sm:$0xff] %vm411, %v916
        %921 = vst.msk [vmem:[#allocation2 + $0x10] sm:$0xff] %vm411, %v917
        %922 = vst.msk [vmem:[#allocation2 + $0x18] sm:$0xff] %vm411, %v918
        %v924 = vshrl.u32 %v315, 16
        %v926 = vrot.slane %v924, 4
        %v927 = vshll.u32 %v315, 16
        %v929 = vrot.slane %v927, 5
        %v930 = vor.u32 %v926, %v929
        %v931 = vrot.slane %v930, 4
        %v933 = vshll.u32 %v316, 16
        %v935 = vrot.slane %v933, 5
        %v936 = vsel %vm676, %v931, %v935
        %v937 = vshrl.u32 %v316, 16
        %v939 = vrot.slane %v937, 4
        %v940 = vor.u32 %v939, %v935
        %v941 = vrot.slane %v940, 4
        %v943 = vshll.u32 %v317, 16
        %v945 = vrot.slane %v943, 5
        %v946 = vsel %vm676, %v941, %v945
        %v947 = vld [vmem:[#allocation2] sm:$0xff]
        %v948 = vld [vmem:[#allocation2 + $0x8] sm:$0xff]
        %v949 = vld [vmem:[#allocation2 + $0x10] sm:$0xff]
        %v950 = vld [vmem:[#allocation2 + $0x18] sm:$0xff]
        %s951 = scalar_lea.vmem %s283, 144
        %v952 = vld [vmem:[%s951] sm:$0xf]
        %v953 = vld [vmem:[%s951 + $0x4] sm:$0xf]
        %v954 = vld [vmem:[%s951 + $0x8] sm:$0xf]
        %v955 = vld [vmem:[%s951 + $0xc] sm:$0xf]
        %v956 = vunpack.c.l.b16 %v936
        %v957 = vunpack.c.l.b16 %v946
        %v958 = vpack.c.b16 %v957, %v956
        %v963 = vunpack.c.l.b16 %v952
        %v964 = vunpack.c.l.b16 %v953
        %v965 = vunpack.c.l.b16 %v954
        %v966 = vunpack.c.l.b16 %v955
        %v967 = vpack.c.b16 %v964, %v963
        %v968 = vpack.c.b16 %v966, %v965
        %v972 = vsel %vm351, %v958, 0
        %974 = vmatprep.subr.bf16.mxu0 0
        %975 = vmatpush1.bf16.msra.mxu0 0
        %976 = vmatprep.subr.bf16.mxu0 0
        %977 = vmatpush1.bf16.msra.mxu0 0
        %978 = vmatprep.subr.bf16.mxu0 0
        %979 = vmatpush1.bf16.msra.mxu0 0
        %980 = vmatprep.subr.bf16.mxu0 0
        %981 = vmatpush1.bf16.msra.mxu0 0
        %982 = vmatprep.subr.bf16.mxu0 0
        %983 = vmatpush1.bf16.msra.mxu0 0
        %984 = vmatprep.subr.bf16.mxu0 0
        %985 = vmatpush1.bf16.msra.mxu0 0
        %986 = vmatprep.subr.bf16.mxu0 0
        %987 = vmatpush1.bf16.msra.mxu0 %v968
        %988 = vmatprep.subr.bf16.mxu0 0
        %989 = vmatpush1.bf16.msra.mxu0 %v967
        %990 = vmatprep.subr.bf16.mxu0 0
        %991 = vmatpush2.bf16.msra.mxu0 0
        %992 = vmatprep.subr.bf16.mxu0 0
        %993 = vmatpush2.bf16.msra.mxu0 0
        %994 = vmatprep.subr.bf16.mxu0 0
        %995 = vmatpush2.bf16.msra.mxu0 0
        %996 = vmatprep.subr.bf16.mxu0 0
        %997 = vmatpush2.bf16.msra.mxu0 0
        %998 = vmatprep.subr.bf16.mxu0 0
        %999 = vmatpush2.bf16.msra.mxu0 0
        %1000 = vmatprep.subr.bf16.mxu0 0
        %1001 = vmatpush2.bf16.msra.mxu0 0
        %1002 = vmatprep.subr.bf16.mxu0 0
        %1003 = vmatpush2.bf16.msra.mxu0 0
        %1004 = vmatprep.subr.bf16.mxu0 0
        %1005 = vmatpush2.bf16.msra.mxu0 0
        %1006 = vmatprep.mubr.bf16.mxu0 0
        %1007 = vmatmul.mubr.bf16.gmra.mxu0 %v864
        %v1008 = vpop.f32.mrf.mxu0
        %v1009 = vadd.f32 0.0, %v1008
        %v1010 = vpop.f32.mrf.mxu0
        %v1011 = vpop.f32.mrf.mxu0
        %v1012 = vadd.f32 0.0, %v1011
        %v1013 = vpop.f32.mrf.mxu0
        %1014 = vmatprep.mubr.bf16.mxu0 0
        %1015 = vmatmul.mubr.bf16.gmra.mxu0 %v972
        %v1016 = vpop.f32.mrf.mxu0
        %v1017 = vadd.f32 0.0, %v1016
        %v1018 = vpop.f32.mrf.mxu0
        %v1019 = vpop.f32.mrf.mxu0
        %v1020 = vadd.f32 0.0, %v1019
        %v1021 = vpop.f32.mrf.mxu0
        %1022 = vdwg.mxu0
        %v1023 = vadd.f32 %v947, %v1009
        %v1024 = vadd.f32 %v948, %v1012
        %v1025 = vadd.f32 %v949, %v1017
        %v1026 = vadd.f32 %v950, %v1020
        %1027 = vst.msk [vmem:[#allocation2] sm:$0xff] %vm411, %v1023
        %1028 = vst.msk [vmem:[#allocation2 + $0x8] sm:$0xff] %vm411, %v1024
        %1029 = vst.msk [vmem:[#allocation2 + $0x10] sm:$0xff] %vm411, %v1025
        %1030 = vst.msk [vmem:[#allocation2 + $0x18] sm:$0xff] %vm411, %v1026
        %v1032 = vshrl.u32 %v318, 16
        %v1034 = vrot.slane %v1032, 4
        %v1035 = vshll.u32 %v318, 16
        %v1037 = vrot.slane %v1035, 5
        %v1038 = vor.u32 %v1034, %v1037
        %v1039 = vrot.slane %v1038, 4
        %v1041 = vshll.u32 %v319, 16
        %v1043 = vrot.slane %v1041, 5
        %v1044 = vsel %vm676, %v1039, %v1043
        %v1045 = vshrl.u32 %v319, 16
        %v1047 = vrot.slane %v1045, 4
        %v1048 = vor.u32 %v1047, %v1043
        %v1049 = vrot.slane %v1048, 4
        %v1051 = vshll.u32 %v320, 16
        %v1053 = vrot.slane %v1051, 5
        %v1054 = vsel %vm676, %v1049, %v1053
        %v1055 = vld [vmem:[#allocation2] sm:$0xff]
        %v1056 = vld [vmem:[#allocation2 + $0x8] sm:$0xff]
        %v1057 = vld [vmem:[#allocation2 + $0x10] sm:$0xff]
        %v1058 = vld [vmem:[#allocation2 + $0x18] sm:$0xff]
        %s1059 = scalar_lea.vmem %s283, 208
        %v1060 = vld [vmem:[%s1059] sm:$0xf]
        %v1061 = vld [vmem:[%s1059 + $0x4] sm:$0xf]
        %v1062 = vld [vmem:[%s1059 + $0x8] sm:$0xf]
        %v1063 = vld [vmem:[%s1059 + $0xc] sm:$0xf]
        %v1064 = vunpack.c.l.b16 %v1044
        %v1065 = vunpack.c.l.b16 %v1054
        %v1066 = vpack.c.b16 %v1065, %v1064
        %v1071 = vunpack.c.l.b16 %v1060
        %v1072 = vunpack.c.l.b16 %v1061
        %v1073 = vunpack.c.l.b16 %v1062
        %v1074 = vunpack.c.l.b16 %v1063
        %v1075 = vpack.c.b16 %v1072, %v1071
        %v1076 = vpack.c.b16 %v1074, %v1073
        %v1080 = vsel %vm351, %v1066, 0
        %1082 = vmatprep.subr.bf16.mxu0 0
        %1083 = vmatpush1.bf16.msra.mxu0 0
        %1084 = vmatprep.subr.bf16.mxu0 0
        %1085 = vmatpush1.bf16.msra.mxu0 0
        %1086 = vmatprep.subr.bf16.mxu0 0
        %1087 = vmatpush1.bf16.msra.mxu0 0
        %1088 = vmatprep.subr.bf16.mxu0 0
        %1089 = vmatpush1.bf16.msra.mxu0 0
        %1090 = vmatprep.subr.bf16.mxu0 0
        %1091 = vmatpush1.bf16.msra.mxu0 0
        %1092 = vmatprep.subr.bf16.mxu0 0
        %1093 = vmatpush1.bf16.msra.mxu0 0
        %1094 = vmatprep.subr.bf16.mxu0 0
        %1095 = vmatpush1.bf16.msra.mxu0 %v1076
        %1096 = vmatprep.subr.bf16.mxu0 0
        %1097 = vmatpush1.bf16.msra.mxu0 %v1075
        %1098 = vmatprep.subr.bf16.mxu0 0
        %1099 = vmatpush2.bf16.msra.mxu0 0
        %1100 = vmatprep.subr.bf16.mxu0 0
        %1101 = vmatpush2.bf16.msra.mxu0 0
        %1102 = vmatprep.subr.bf16.mxu0 0
        %1103 = vmatpush2.bf16.msra.mxu0 0
        %1104 = vmatprep.subr.bf16.mxu0 0
        %1105 = vmatpush2.bf16.msra.mxu0 0
        %1106 = vmatprep.subr.bf16.mxu0 0
        %1107 = vmatpush2.bf16.msra.mxu0 0
        %1108 = vmatprep.subr.bf16.mxu0 0
        %1109 = vmatpush2.bf16.msra.mxu0 0
        %1110 = vmatprep.subr.bf16.mxu0 0
        %1111 = vmatpush2.bf16.msra.mxu0 0
        %1112 = vmatprep.subr.bf16.mxu0 0
        %1113 = vmatpush2.bf16.msra.mxu0 0
        %1114 = vmatprep.mubr.bf16.mxu0 0
        %1115 = vmatmul.mubr.bf16.gmra.mxu0 %v972
        %v1116 = vpop.f32.mrf.mxu0
        %v1117 = vadd.f32 0.0, %v1116
        %v1118 = vpop.f32.mrf.mxu0
        %v1119 = vpop.f32.mrf.mxu0
        %v1120 = vadd.f32 0.0, %v1119
        %v1121 = vpop.f32.mrf.mxu0
        %1122 = vmatprep.mubr.bf16.mxu0 0
        %1123 = vmatmul.mubr.bf16.gmra.mxu0 %v1080
        %v1124 = vpop.f32.mrf.mxu0
        %v1125 = vadd.f32 0.0, %v1124
        %v1126 = vpop.f32.mrf.mxu0
        %v1127 = vpop.f32.mrf.mxu0
        %v1128 = vadd.f32 0.0, %v1127
        %v1129 = vpop.f32.mrf.mxu0
        %1130 = vdwg.mxu0
        %v1131 = vadd.f32 %v1055, %v1117
        %v1132 = vadd.f32 %v1056, %v1120
        %v1133 = vadd.f32 %v1057, %v1125
        %v1134 = vadd.f32 %v1058, %v1128
        %1135 = vst.msk [vmem:[#allocation2] sm:$0xff] %vm411, %v1131
        %1136 = vst.msk [vmem:[#allocation2 + $0x8] sm:$0xff] %vm411, %v1132
        %1137 = vst.msk [vmem:[#allocation2 + $0x10] sm:$0xff] %vm411, %v1133
        %1138 = vst.msk [vmem:[#allocation2 + $0x18] sm:$0xff] %vm411, %v1134
        %vm1141 = vcmask 1042432
        %vm1142 = vcmask 1046532
        %vm1143 = vmor %vm1141, %vm1142
        %v1144 = vrot.slane %v306, 5
        %v1145 = vrot.slane %v1144, 4
        %v1146 = vrot.slane %v307, 5
        %v1147 = vsel %vm1143, %v1145, %v1146
        %v1148 = vrot.slane %v1146, 4
        %v1149 = vrot.slane %v308, 5
        %v1150 = vsel %vm1143, %v1148, %v1149
        %v1151 = vrot.slane %v309, 5
        %v1152 = vrot.slane %v1151, 4
        %v1153 = vrot.slane %v310, 5
        %v1154 = vsel %vm1143, %v1152, %v1153
        %v1155 = vrot.slane %v1153, 4
        %v1156 = vrot.slane %v311, 5
        %v1157 = vsel %vm1143, %v1155, %v1156
        %v1158 = vld [vmem:[#allocation2] sm:$0xff]
        %v1159 = vld [vmem:[#allocation2 + $0x8] sm:$0xff]
        %v1160 = vld [vmem:[#allocation2 + $0x10] sm:$0xff]
        %v1161 = vld [vmem:[#allocation2 + $0x18] sm:$0xff]
        %s1162 = scalar_lea.vmem %s283, 32
        %v1163 = vld [vmem:[%s1162] sm:$0xf]
        %v1164 = vld [vmem:[%s1162 + $0x4] sm:$0xf]
        %v1165 = vld [vmem:[%s1162 + $0x8] sm:$0xf]
        %v1166 = vld [vmem:[%s1162 + $0xc] sm:$0xf]
        %v1167 = vunpack.c.l.b16 %v1147
        %v1168 = vunpack.c.l.b16 %v1150
        %v1169 = vunpack.c.l.b16 %v1154
        %v1170 = vunpack.c.l.b16 %v1157
        %v1171 = vpack.c.b16 %v1168, %v1167
        %v1172 = vpack.c.b16 %v1170, %v1169
        %v1177 = vunpack.c.l.b16 %v1163
        %v1178 = vunpack.c.l.b16 %v1164
        %v1179 = vunpack.c.l.b16 %v1165
        %v1180 = vunpack.c.l.b16 %v1166
        %v1181 = vpack.c.b16 %v1178, %v1177
        %v1182 = vpack.c.b16 %v1180, %v1179
        %v1186 = vsel %vm351, %v1171, 0
        %v1189 = vsel %vm351, %v1172, 0
        %1191 = vmatprep.subr.bf16.mxu0 0
        %1192 = vmatpush1.bf16.msra.mxu0 0
        %1193 = vmatprep.subr.bf16.mxu0 0
        %1194 = vmatpush1.bf16.msra.mxu0 0
        %1195 = vmatprep.subr.bf16.mxu0 0
        %1196 = vmatpush1.bf16.msra.mxu0 0
        %1197 = vmatprep.subr.bf16.mxu0 0
        %1198 = vmatpush1.bf16.msra.mxu0 0
        %1199 = vmatprep.subr.bf16.mxu0 0
        %1200 = vmatpush1.bf16.msra.mxu0 0
        %1201 = vmatprep.subr.bf16.mxu0 0
        %1202 = vmatpush1.bf16.msra.mxu0 0
        %1203 = vmatprep.subr.bf16.mxu0 0
        %1204 = vmatpush1.bf16.msra.mxu0 %v1182
        %1205 = vmatprep.subr.bf16.mxu0 0
        %1206 = vmatpush1.bf16.msra.mxu0 %v1181
        %1207 = vmatprep.subr.bf16.mxu0 0
        %1208 = vmatpush2.bf16.msra.mxu0 0
        %1209 = vmatprep.subr.bf16.mxu0 0
        %1210 = vmatpush2.bf16.msra.mxu0 0
        %1211 = vmatprep.subr.bf16.mxu0 0
        %1212 = vmatpush2.bf16.msra.mxu0 0
        %1213 = vmatprep.subr.bf16.mxu0 0
        %1214 = vmatpush2.bf16.msra.mxu0 0
        %1215 = vmatprep.subr.bf16.mxu0 0
        %1216 = vmatpush2.bf16.msra.mxu0 0
        %1217 = vmatprep.subr.bf16.mxu0 0
        %1218 = vmatpush2.bf16.msra.mxu0 0
        %1219 = vmatprep.subr.bf16.mxu0 0
        %1220 = vmatpush2.bf16.msra.mxu0 0
        %1221 = vmatprep.subr.bf16.mxu0 0
        %1222 = vmatpush2.bf16.msra.mxu0 0
        %1223 = vmatprep.mubr.bf16.mxu0 0
        %1224 = vmatmul.mubr.bf16.gmra.mxu0 %v1186
        %v1225 = vpop.f32.mrf.mxu0
        %v1226 = vadd.f32 0.0, %v1225
        %v1227 = vpop.f32.mrf.mxu0
        %v1228 = vpop.f32.mrf.mxu0
        %v1229 = vadd.f32 0.0, %v1228
        %v1230 = vpop.f32.mrf.mxu0
        %1231 = vmatprep.mubr.bf16.mxu0 0
        %1232 = vmatmul.mubr.bf16.gmra.mxu0 %v1189
        %v1233 = vpop.f32.mrf.mxu0
        %v1234 = vadd.f32 0.0, %v1233
        %v1235 = vpop.f32.mrf.mxu0
        %v1236 = vpop.f32.mrf.mxu0
        %v1237 = vadd.f32 0.0, %v1236
        %v1238 = vpop.f32.mrf.mxu0
        %1239 = vdwg.mxu0
        %v1240 = vadd.f32 %v1158, %v1226
        %v1241 = vadd.f32 %v1159, %v1229
        %v1242 = vadd.f32 %v1160, %v1234
        %v1243 = vadd.f32 %v1161, %v1237
        %1244 = vst.msk [vmem:[#allocation2] sm:$0xff] %vm411, %v1240
        %1245 = vst.msk [vmem:[#allocation2 + $0x8] sm:$0xff] %vm411, %v1241
        %1246 = vst.msk [vmem:[#allocation2 + $0x10] sm:$0xff] %vm411, %v1242
        %1247 = vst.msk [vmem:[#allocation2 + $0x18] sm:$0xff] %vm411, %v1243
        %v1249 = vrot.slane %v312, 5
        %v1250 = vrot.slane %v1249, 4
        %v1251 = vrot.slane %v313, 5
        %v1252 = vsel %vm1143, %v1250, %v1251
        %v1253 = vrot.slane %v1251, 4
        %v1254 = vrot.slane %v314, 5
        %v1255 = vsel %vm1143, %v1253, %v1254
        %v1256 = vld [vmem:[#allocation2] sm:$0xff]
        %v1257 = vld [vmem:[#allocation2 + $0x8] sm:$0xff]
        %v1258 = vld [vmem:[#allocation2 + $0x10] sm:$0xff]
        %v1259 = vld [vmem:[#allocation2 + $0x18] sm:$0xff]
        %s1260 = scalar_lea.vmem %s283, 96
        %v1261 = vld [vmem:[%s1260] sm:$0xf]
        %v1262 = vld [vmem:[%s1260 + $0x4] sm:$0xf]
        %v1263 = vld [vmem:[%s1260 + $0x8] sm:$0xf]
        %v1264 = vld [vmem:[%s1260 + $0xc] sm:$0xf]
        %v1265 = vunpack.c.l.b16 %v1252
        %v1266 = vunpack.c.l.b16 %v1255
        %v1267 = vpack.c.b16 %v1266, %v1265
        %v1272 = vunpack.c.l.b16 %v1261
        %v1273 = vunpack.c.l.b16 %v1262
        %v1274 = vunpack.c.l.b16 %v1263
        %v1275 = vunpack.c.l.b16 %v1264
        %v1276 = vpack.c.b16 %v1273, %v1272
        %v1277 = vpack.c.b16 %v1275, %v1274
        %v1281 = vsel %vm351, %v1267, 0
        %1283 = vmatprep.subr.bf16.mxu0 0
        %1284 = vmatpush1.bf16.msra.mxu0 0
        %1285 = vmatprep.subr.bf16.mxu0 0
        %1286 = vmatpush1.bf16.msra.mxu0 0
        %1287 = vmatprep.subr.bf16.mxu0 0
        %1288 = vmatpush1.bf16.msra.mxu0 0
        %1289 = vmatprep.subr.bf16.mxu0 0
        %1290 = vmatpush1.bf16.msra.mxu0 0
        %1291 = vmatprep.subr.bf16.mxu0 0
        %1292 = vmatpush1.bf16.msra.mxu0 0
        %1293 = vmatprep.subr.bf16.mxu0 0
        %1294 = vmatpush1.bf16.msra.mxu0 0
        %1295 = vmatprep.subr.bf16.mxu0 0
        %1296 = vmatpush1.bf16.msra.mxu0 %v1277
        %1297 = vmatprep.subr.bf16.mxu0 0
        %1298 = vmatpush1.bf16.msra.mxu0 %v1276
        %1299 = vmatprep.subr.bf16.mxu0 0
        %1300 = vmatpush2.bf16.msra.mxu0 0
        %1301 = vmatprep.subr.bf16.mxu0 0
        %1302 = vmatpush2.bf16.msra.mxu0 0
        %1303 = vmatprep.subr.bf16.mxu0 0
        %1304 = vmatpush2.bf16.msra.mxu0 0
        %1305 = vmatprep.subr.bf16.mxu0 0
        %1306 = vmatpush2.bf16.msra.mxu0 0
        %1307 = vmatprep.subr.bf16.mxu0 0
        %1308 = vmatpush2.bf16.msra.mxu0 0
        %1309 = vmatprep.subr.bf16.mxu0 0
        %1310 = vmatpush2.bf16.msra.mxu0 0
        %1311 = vmatprep.subr.bf16.mxu0 0
        %1312 = vmatpush2.bf16.msra.mxu0 0
        %1313 = vmatprep.subr.bf16.mxu0 0
        %1314 = vmatpush2.bf16.msra.mxu0 0
        %1315 = vmatprep.mubr.bf16.mxu0 0
        %1316 = vmatmul.mubr.bf16.gmra.mxu0 %v1189
        %v1317 = vpop.f32.mrf.mxu0
        %v1318 = vadd.f32 0.0, %v1317
        %v1319 = vpop.f32.mrf.mxu0
        %v1320 = vpop.f32.mrf.mxu0
        %v1321 = vadd.f32 0.0, %v1320
        %v1322 = vpop.f32.mrf.mxu0
        %1323 = vmatprep.mubr.bf16.mxu0 0
        %1324 = vmatmul.mubr.bf16.gmra.mxu0 %v1281
        %v1325 = vpop.f32.mrf.mxu0
        %v1326 = vadd.f32 0.0, %v1325
        %v1327 = vpop.f32.mrf.mxu0
        %v1328 = vpop.f32.mrf.mxu0
        %v1329 = vadd.f32 0.0, %v1328
        %v1330 = vpop.f32.mrf.mxu0
        %1331 = vdwg.mxu0
        %v1332 = vadd.f32 %v1256, %v1318
        %v1333 = vadd.f32 %v1257, %v1321
        %v1334 = vadd.f32 %v1258, %v1326
        %v1335 = vadd.f32 %v1259, %v1329
        %1336 = vst.msk [vmem:[#allocation2] sm:$0xff] %vm411, %v1332
        %1337 = vst.msk [vmem:[#allocation2 + $0x8] sm:$0xff] %vm411, %v1333
        %1338 = vst.msk [vmem:[#allocation2 + $0x10] sm:$0xff] %vm411, %v1334
        %1339 = vst.msk [vmem:[#allocation2 + $0x18] sm:$0xff] %vm411, %v1335
        %v1341 = vrot.slane %v315, 5
        %v1342 = vrot.slane %v1341, 4
        %v1343 = vrot.slane %v316, 5
        %v1344 = vsel %vm1143, %v1342, %v1343
        %v1345 = vrot.slane %v1343, 4
        %v1346 = vrot.slane %v317, 5
        %v1347 = vsel %vm1143, %v1345, %v1346
        %v1348 = vld [vmem:[#allocation2] sm:$0xff]
        %v1349 = vld [vmem:[#allocation2 + $0x8] sm:$0xff]
        %v1350 = vld [vmem:[#allocation2 + $0x10] sm:$0xff]
        %v1351 = vld [vmem:[#allocation2 + $0x18] sm:$0xff]
        %s1352 = scalar_lea.vmem %s283, 160
        %v1353 = vld [vmem:[%s1352] sm:$0xf]
        %v1354 = vld [vmem:[%s1352 + $0x4] sm:$0xf]
        %v1355 = vld [vmem:[%s1352 + $0x8] sm:$0xf]
        %v1356 = vld [vmem:[%s1352 + $0xc] sm:$0xf]
        %v1357 = vunpack.c.l.b16 %v1344
        %v1358 = vunpack.c.l.b16 %v1347
        %v1359 = vpack.c.b16 %v1358, %v1357
        %v1364 = vunpack.c.l.b16 %v1353
        %v1365 = vunpack.c.l.b16 %v1354
        %v1366 = vunpack.c.l.b16 %v1355
        %v1367 = vunpack.c.l.b16 %v1356
        %v1368 = vpack.c.b16 %v1365, %v1364
        %v1369 = vpack.c.b16 %v1367, %v1366
        %v1373 = vsel %vm351, %v1359, 0
        %1375 = vmatprep.subr.bf16.mxu0 0
        %1376 = vmatpush1.bf16.msra.mxu0 0
        %1377 = vmatprep.subr.bf16.mxu0 0
        %1378 = vmatpush1.bf16.msra.mxu0 0
        %1379 = vmatprep.subr.bf16.mxu0 0
        %1380 = vmatpush1.bf16.msra.mxu0 0
        %1381 = vmatprep.subr.bf16.mxu0 0
        %1382 = vmatpush1.bf16.msra.mxu0 0
        %1383 = vmatprep.subr.bf16.mxu0 0
        %1384 = vmatpush1.bf16.msra.mxu0 0
        %1385 = vmatprep.subr.bf16.mxu0 0
        %1386 = vmatpush1.bf16.msra.mxu0 0
        %1387 = vmatprep.subr.bf16.mxu0 0
        %1388 = vmatpush1.bf16.msra.mxu0 %v1369
        %1389 = vmatprep.subr.bf16.mxu0 0
        %1390 = vmatpush1.bf16.msra.mxu0 %v1368
        %1391 = vmatprep.subr.bf16.mxu0 0
        %1392 = vmatpush2.bf16.msra.mxu0 0
        %1393 = vmatprep.subr.bf16.mxu0 0
        %1394 = vmatpush2.bf16.msra.mxu0 0
        %1395 = vmatprep.subr.bf16.mxu0 0
        %1396 = vmatpush2.bf16.msra.mxu0 0
        %1397 = vmatprep.subr.bf16.mxu0 0
        %1398 = vmatpush2.bf16.msra.mxu0 0
        %1399 = vmatprep.subr.bf16.mxu0 0
        %1400 = vmatpush2.bf16.msra.mxu0 0
        %1401 = vmatprep.subr.bf16.mxu0 0
        %1402 = vmatpush2.bf16.msra.mxu0 0
        %1403 = vmatprep.subr.bf16.mxu0 0
        %1404 = vmatpush2.bf16.msra.mxu0 0
        %1405 = vmatprep.subr.bf16.mxu0 0
        %1406 = vmatpush2.bf16.msra.mxu0 0
        %1407 = vmatprep.mubr.bf16.mxu0 0
        %1408 = vmatmul.mubr.bf16.gmra.mxu0 %v1281
        %v1409 = vpop.f32.mrf.mxu0
        %v1410 = vadd.f32 0.0, %v1409
        %v1411 = vpop.f32.mrf.mxu0
        %v1412 = vpop.f32.mrf.mxu0
        %v1413 = vadd.f32 0.0, %v1412
        %v1414 = vpop.f32.mrf.mxu0
        %1415 = vmatprep.mubr.bf16.mxu0 0
        %1416 = vmatmul.mubr.bf16.gmra.mxu0 %v1373
        %v1417 = vpop.f32.mrf.mxu0
        %v1418 = vadd.f32 0.0, %v1417
        %v1419 = vpop.f32.mrf.mxu0
        %v1420 = vpop.f32.mrf.mxu0
        %v1421 = vadd.f32 0.0, %v1420
        %v1422 = vpop.f32.mrf.mxu0
        %1423 = vdwg.mxu0
        %v1424 = vadd.f32 %v1348, %v1410
        %v1425 = vadd.f32 %v1349, %v1413
        %v1426 = vadd.f32 %v1350, %v1418
        %v1427 = vadd.f32 %v1351, %v1421
        %1428 = vst.msk [vmem:[#allocation2] sm:$0xff] %vm411, %v1424
        %1429 = vst.msk [vmem:[#allocation2 + $0x8] sm:$0xff] %vm411, %v1425
        %1430 = vst.msk [vmem:[#allocation2 + $0x10] sm:$0xff] %vm411, %v1426
        %1431 = vst.msk [vmem:[#allocation2 + $0x18] sm:$0xff] %vm411, %v1427
        %v1433 = vrot.slane %v318, 5
        %v1434 = vrot.slane %v1433, 4
        %v1435 = vrot.slane %v319, 5
        %v1436 = vsel %vm1143, %v1434, %v1435
        %v1437 = vrot.slane %v1435, 4
        %v1438 = vrot.slane %v320, 5
        %v1439 = vsel %vm1143, %v1437, %v1438
        %v1440 = vld [vmem:[#allocation2] sm:$0xff]
        %v1441 = vld [vmem:[#allocation2 + $0x8] sm:$0xff]
        %v1442 = vld [vmem:[#allocation2 + $0x10] sm:$0xff]
        %v1443 = vld [vmem:[#allocation2 + $0x18] sm:$0xff]
        %s1444 = scalar_lea.vmem %s283, 224
        %v1445 = vld [vmem:[%s1444] sm:$0xf]
        %v1446 = vld [vmem:[%s1444 + $0x4] sm:$0xf]
        %v1447 = vld [vmem:[%s1444 + $0x8] sm:$0xf]
        %v1448 = vld [vmem:[%s1444 + $0xc] sm:$0xf]
        %v1449 = vunpack.c.l.b16 %v1436
        %v1450 = vunpack.c.l.b16 %v1439
        %v1451 = vpack.c.b16 %v1450, %v1449
        %v1456 = vunpack.c.l.b16 %v1445
        %v1457 = vunpack.c.l.b16 %v1446
        %v1458 = vunpack.c.l.b16 %v1447
        %v1459 = vunpack.c.l.b16 %v1448
        %v1460 = vpack.c.b16 %v1457, %v1456
        %v1461 = vpack.c.b16 %v1459, %v1458
        %v1465 = vsel %vm351, %v1451, 0
        %1467 = vmatprep.subr.bf16.mxu0 0
        %1468 = vmatpush1.bf16.msra.mxu0 0
        %1469 = vmatprep.subr.bf16.mxu0 0
        %1470 = vmatpush1.bf16.msra.mxu0 0
        %1471 = vmatprep.subr.bf16.mxu0 0
        %1472 = vmatpush1.bf16.msra.mxu0 0
        %1473 = vmatprep.subr.bf16.mxu0 0
        %1474 = vmatpush1.bf16.msra.mxu0 0
        %1475 = vmatprep.subr.bf16.mxu0 0
        %1476 = vmatpush1.bf16.msra.mxu0 0
        %1477 = vmatprep.subr.bf16.mxu0 0
        %1478 = vmatpush1.bf16.msra.mxu0 0
        %1479 = vmatprep.subr.bf16.mxu0 0
        %1480 = vmatpush1.bf16.msra.mxu0 %v1461
        %1481 = vmatprep.subr.bf16.mxu0 0
        %1482 = vmatpush1.bf16.msra.mxu0 %v1460
        %1483 = vmatprep.subr.bf16.mxu0 0
        %1484 = vmatpush2.bf16.msra.mxu0 0
        %1485 = vmatprep.subr.bf16.mxu0 0
        %1486 = vmatpush2.bf16.msra.mxu0 0
        %1487 = vmatprep.subr.bf16.mxu0 0
        %1488 = vmatpush2.bf16.msra.mxu0 0
        %1489 = vmatprep.subr.bf16.mxu0 0
        %1490 = vmatpush2.bf16.msra.mxu0 0
        %1491 = vmatprep.subr.bf16.mxu0 0
        %1492 = vmatpush2.bf16.msra.mxu0 0
        %1493 = vmatprep.subr.bf16.mxu0 0
        %1494 = vmatpush2.bf16.msra.mxu0 0
        %1495 = vmatprep.subr.bf16.mxu0 0
        %1496 = vmatpush2.bf16.msra.mxu0 0
        %1497 = vmatprep.subr.bf16.mxu0 0
        %1498 = vmatpush2.bf16.msra.mxu0 0
        %1499 = vmatprep.mubr.bf16.mxu0 0
        %1500 = vmatmul.mubr.bf16.gmra.mxu0 %v1373
        %v1501 = vpop.f32.mrf.mxu0
        %v1502 = vadd.f32 0.0, %v1501
        %v1503 = vpop.f32.mrf.mxu0
        %v1504 = vpop.f32.mrf.mxu0
        %v1505 = vadd.f32 0.0, %v1504
        %v1506 = vpop.f32.mrf.mxu0
        %1507 = vmatprep.mubr.bf16.mxu0 0
        %1508 = vmatmul.mubr.bf16.gmra.mxu0 %v1465
        %v1509 = vpop.f32.mrf.mxu0
        %v1510 = vadd.f32 0.0, %v1509
        %v1511 = vpop.f32.mrf.mxu0
        %v1512 = vpop.f32.mrf.mxu0
        %v1513 = vadd.f32 0.0, %v1512
        %v1514 = vpop.f32.mrf.mxu0
        %1515 = vdwg.mxu0
        %v1516 = vadd.f32 %v1440, %v1502
        %v1517 = vadd.f32 %v1441, %v1505
        %v1518 = vadd.f32 %v1442, %v1510
        %v1519 = vadd.f32 %v1443, %v1513
        %1520 = vst.msk [vmem:[#allocation2] sm:$0xff] %vm411, %v1516
        %1521 = vst.msk [vmem:[#allocation2 + $0x8] sm:$0xff] %vm411, %v1517
        %1522 = vst.msk [vmem:[#allocation2 + $0x10] sm:$0xff] %vm411, %v1518
        %1523 = vst.msk [vmem:[#allocation2 + $0x18] sm:$0xff] %vm411, %v1519
        %vm1524 = vsmask.f32 2304
        %vm1525 = vsmask.f32 6416
        %vm1526 = vmor %vm1524, %vm1525
        %v1527 = vrot.slane %v678, 5
        %v1528 = vrot.slane %v681, 6
        %v1529 = vor.u32 %v1527, %v1528
        %v1530 = vrot.slane %v1529, 4
        %v1531 = vrot.slane %v691, 5
        %v1532 = vrot.slane %v687, 6
        %v1533 = vor.u32 %v1531, %v1532
        %v1534 = vsel %vm1526, %v1530, %v1533
        %v1535 = vrot.slane %v1533, 4
        %v1536 = vshrl.u32 %v308, 16
        %v1538 = vrot.slane %v1536, 5
        %v1539 = vrot.slane %v697, 6
        %v1540 = vor.u32 %v1538, %v1539
        %v1541 = vsel %vm1526, %v1535, %v1540
        %v1542 = vrot.slane %v702, 5
        %v1543 = vrot.slane %v705, 6
        %v1544 = vor.u32 %v1542, %v1543
        %v1545 = vrot.slane %v1544, 4
        %v1546 = vrot.slane %v715, 5
        %v1547 = vrot.slane %v711, 6
        %v1548 = vor.u32 %v1546, %v1547
        %v1549 = vsel %vm1526, %v1545, %v1548
        %v1550 = vrot.slane %v1548, 4
        %v1551 = vshrl.u32 %v311, 16
        %v1553 = vrot.slane %v1551, 5
        %v1554 = vrot.slane %v721, 6
        %v1555 = vor.u32 %v1553, %v1554
        %v1556 = vsel %vm1526, %v1550, %v1555
        %v1557 = vld [vmem:[#allocation2] sm:$0xff]
        %v1558 = vld [vmem:[#allocation2 + $0x8] sm:$0xff]
        %v1559 = vld [vmem:[#allocation2 + $0x10] sm:$0xff]
        %v1560 = vld [vmem:[#allocation2 + $0x18] sm:$0xff]
        %s1561 = scalar_lea.vmem %s283, 48
        %v1562 = vld [vmem:[%s1561] sm:$0xf]
        %v1563 = vld [vmem:[%s1561 + $0x4] sm:$0xf]
        %v1564 = vld [vmem:[%s1561 + $0x8] sm:$0xf]
        %v1565 = vld [vmem:[%s1561 + $0xc] sm:$0xf]
        %v1566 = vunpack.c.l.b16 %v1534
        %v1567 = vunpack.c.l.b16 %v1541
        %v1568 = vunpack.c.l.b16 %v1549
        %v1569 = vunpack.c.l.b16 %v1556
        %v1570 = vpack.c.b16 %v1567, %v1566
        %v1571 = vpack.c.b16 %v1569, %v1568
        %v1576 = vunpack.c.l.b16 %v1562
        %v1577 = vunpack.c.l.b16 %v1563
        %v1578 = vunpack.c.l.b16 %v1564
        %v1579 = vunpack.c.l.b16 %v1565
        %v1580 = vpack.c.b16 %v1577, %v1576
        %v1581 = vpack.c.b16 %v1579, %v1578
        %v1585 = vsel %vm351, %v1570, 0
        %v1588 = vsel %vm351, %v1571, 0
        %1590 = vmatprep.subr.bf16.mxu0 0
        %1591 = vmatpush1.bf16.msra.mxu0 0
        %1592 = vmatprep.subr.bf16.mxu0 0
        %1593 = vmatpush1.bf16.msra.mxu0 0
        %1594 = vmatprep.subr.bf16.mxu0 0
        %1595 = vmatpush1.bf16.msra.mxu0 0
        %1596 = vmatprep.subr.bf16.mxu0 0
        %1597 = vmatpush1.bf16.msra.mxu0 0
        %1598 = vmatprep.subr.bf16.mxu0 0
        %1599 = vmatpush1.bf16.msra.mxu0 0
        %1600 = vmatprep.subr.bf16.mxu0 0
        %1601 = vmatpush1.bf16.msra.mxu0 0
        %1602 = vmatprep.subr.bf16.mxu0 0
        %1603 = vmatpush1.bf16.msra.mxu0 %v1581
        %1604 = vmatprep.subr.bf16.mxu0 0
        %1605 = vmatpush1.bf16.msra.mxu0 %v1580
        %1606 = vmatprep.subr.bf16.mxu0 0
        %1607 = vmatpush2.bf16.msra.mxu0 0
        %1608 = vmatprep.subr.bf16.mxu0 0
        %1609 = vmatpush2.bf16.msra.mxu0 0
        %1610 = vmatprep.subr.bf16.mxu0 0
        %1611 = vmatpush2.bf16.msra.mxu0 0
        %1612 = vmatprep.subr.bf16.mxu0 0
        %1613 = vmatpush2.bf16.msra.mxu0 0
        %1614 = vmatprep.subr.bf16.mxu0 0
        %1615 = vmatpush2.bf16.msra.mxu0 0
        %1616 = vmatprep.subr.bf16.mxu0 0
        %1617 = vmatpush2.bf16.msra.mxu0 0
        %1618 = vmatprep.subr.bf16.mxu0 0
        %1619 = vmatpush2.bf16.msra.mxu0 0
        %1620 = vmatprep.subr.bf16.mxu0 0
        %1621 = vmatpush2.bf16.msra.mxu0 0
        %1622 = vmatprep.mubr.bf16.mxu0 0
        %1623 = vmatmul.mubr.bf16.gmra.mxu0 %v1585
        %v1624 = vpop.f32.mrf.mxu0
        %v1625 = vadd.f32 0.0, %v1624
        %v1626 = vpop.f32.mrf.mxu0
        %v1627 = vpop.f32.mrf.mxu0
        %v1628 = vadd.f32 0.0, %v1627
        %v1629 = vpop.f32.mrf.mxu0
        %1630 = vmatprep.mubr.bf16.mxu0 0
        %1631 = vmatmul.mubr.bf16.gmra.mxu0 %v1588
        %v1632 = vpop.f32.mrf.mxu0
        %v1633 = vadd.f32 0.0, %v1632
        %v1634 = vpop.f32.mrf.mxu0
        %v1635 = vpop.f32.mrf.mxu0
        %v1636 = vadd.f32 0.0, %v1635
        %v1637 = vpop.f32.mrf.mxu0
        %1638 = vdwg.mxu0
        %v1639 = vadd.f32 %v1557, %v1625
        %v1640 = vadd.f32 %v1558, %v1628
        %v1641 = vadd.f32 %v1559, %v1633
        %v1642 = vadd.f32 %v1560, %v1636
        %1643 = vst.msk [vmem:[#allocation2] sm:$0xff] %vm411, %v1639
        %1644 = vst.msk [vmem:[#allocation2 + $0x8] sm:$0xff] %vm411, %v1640
        %1645 = vst.msk [vmem:[#allocation2 + $0x10] sm:$0xff] %vm411, %v1641
        %1646 = vst.msk [vmem:[#allocation2 + $0x18] sm:$0xff] %vm411, %v1642
        %v1647 = vrot.slane %v816, 5
        %v1648 = vrot.slane %v819, 6
        %v1649 = vor.u32 %v1647, %v1648
        %v1650 = vrot.slane %v1649, 4
        %v1651 = vrot.slane %v829, 5
        %v1652 = vrot.slane %v825, 6
        %v1653 = vor.u32 %v1651, %v1652
        %v1654 = vsel %vm1526, %v1650, %v1653
        %v1655 = vrot.slane %v1653, 4
        %v1656 = vshrl.u32 %v314, 16
        %v1658 = vrot.slane %v1656, 5
        %v1659 = vrot.slane %v835, 6
        %v1660 = vor.u32 %v1658, %v1659
        %v1661 = vsel %vm1526, %v1655, %v1660
        %v1662 = vld [vmem:[#allocation2] sm:$0xff]
        %v1663 = vld [vmem:[#allocation2 + $0x8] sm:$0xff]
        %v1664 = vld [vmem:[#allocation2 + $0x10] sm:$0xff]
        %v1665 = vld [vmem:[#allocation2 + $0x18] sm:$0xff]
        %s1666 = scalar_lea.vmem %s283, 112
        %v1667 = vld [vmem:[%s1666] sm:$0xf]
        %v1668 = vld [vmem:[%s1666 + $0x4] sm:$0xf]
        %v1669 = vld [vmem:[%s1666 + $0x8] sm:$0xf]
        %v1670 = vld [vmem:[%s1666 + $0xc] sm:$0xf]
        %v1671 = vunpack.c.l.b16 %v1654
        %v1672 = vunpack.c.l.b16 %v1661
        %v1673 = vpack.c.b16 %v1672, %v1671
        %v1678 = vunpack.c.l.b16 %v1667
        %v1679 = vunpack.c.l.b16 %v1668
        %v1680 = vunpack.c.l.b16 %v1669
        %v1681 = vunpack.c.l.b16 %v1670
        %v1682 = vpack.c.b16 %v1679, %v1678
        %v1683 = vpack.c.b16 %v1681, %v1680
        %v1687 = vsel %vm351, %v1673, 0
        %1689 = vmatprep.subr.bf16.mxu0 0
        %1690 = vmatpush1.bf16.msra.mxu0 0
        %1691 = vmatprep.subr.bf16.mxu0 0
        %1692 = vmatpush1.bf16.msra.mxu0 0
        %1693 = vmatprep.subr.bf16.mxu0 0
        %1694 = vmatpush1.bf16.msra.mxu0 0
        %1695 = vmatprep.subr.bf16.mxu0 0
        %1696 = vmatpush1.bf16.msra.mxu0 0
        %1697 = vmatprep.subr.bf16.mxu0 0
        %1698 = vmatpush1.bf16.msra.mxu0 0
        %1699 = vmatprep.subr.bf16.mxu0 0
        %1700 = vmatpush1.bf16.msra.mxu0 0
        %1701 = vmatprep.subr.bf16.mxu0 0
        %1702 = vmatpush1.bf16.msra.mxu0 %v1683
        %1703 = vmatprep.subr.bf16.mxu0 0
        %1704 = vmatpush1.bf16.msra.mxu0 %v1682
        %1705 = vmatprep.subr.bf16.mxu0 0
        %1706 = vmatpush2.bf16.msra.mxu0 0
        %1707 = vmatprep.subr.bf16.mxu0 0
        %1708 = vmatpush2.bf16.msra.mxu0 0
        %1709 = vmatprep.subr.bf16.mxu0 0
        %1710 = vmatpush2.bf16.msra.mxu0 0
        %1711 = vmatprep.subr.bf16.mxu0 0
        %1712 = vmatpush2.bf16.msra.mxu0 0
        %1713 = vmatprep.subr.bf16.mxu0 0
        %1714 = vmatpush2.bf16.msra.mxu0 0
        %1715 = vmatprep.subr.bf16.mxu0 0
        %1716 = vmatpush2.bf16.msra.mxu0 0
        %1717 = vmatprep.subr.bf16.mxu0 0
        %1718 = vmatpush2.bf16.msra.mxu0 0
        %1719 = vmatprep.subr.bf16.mxu0 0
        %1720 = vmatpush2.bf16.msra.mxu0 0
        %1721 = vmatprep.mubr.bf16.mxu0 0
        %1722 = vmatmul.mubr.bf16.gmra.mxu0 %v1588
        %v1723 = vpop.f32.mrf.mxu0
        %v1724 = vadd.f32 0.0, %v1723
        %v1725 = vpop.f32.mrf.mxu0
        %v1726 = vpop.f32.mrf.mxu0
        %v1727 = vadd.f32 0.0, %v1726
        %v1728 = vpop.f32.mrf.mxu0
        %1729 = vmatprep.mubr.bf16.mxu0 0
        %1730 = vmatmul.mubr.bf16.gmra.mxu0 %v1687
        %v1731 = vpop.f32.mrf.mxu0
        %v1732 = vadd.f32 0.0, %v1731
        %v1733 = vpop.f32.mrf.mxu0
        %v1734 = vpop.f32.mrf.mxu0
        %v1735 = vadd.f32 0.0, %v1734
        %v1736 = vpop.f32.mrf.mxu0
        %1737 = vdwg.mxu0
        %v1738 = vadd.f32 %v1662, %v1724
        %v1739 = vadd.f32 %v1663, %v1727
        %v1740 = vadd.f32 %v1664, %v1732
        %v1741 = vadd.f32 %v1665, %v1735
        %1742 = vst.msk [vmem:[#allocation2] sm:$0xff] %vm411, %v1738
        %1743 = vst.msk [vmem:[#allocation2 + $0x8] sm:$0xff] %vm411, %v1739
        %1744 = vst.msk [vmem:[#allocation2 + $0x10] sm:$0xff] %vm411, %v1740
        %1745 = vst.msk [vmem:[#allocation2 + $0x18] sm:$0xff] %vm411, %v1741
        %v1746 = vrot.slane %v924, 5
        %v1747 = vrot.slane %v927, 6
        %v1748 = vor.u32 %v1746, %v1747
        %v1749 = vrot.slane %v1748, 4
        %v1750 = vrot.slane %v937, 5
        %v1751 = vrot.slane %v933, 6
        %v1752 = vor.u32 %v1750, %v1751
        %v1753 = vsel %vm1526, %v1749, %v1752
        %v1754 = vrot.slane %v1752, 4
        %v1755 = vshrl.u32 %v317, 16
        %v1757 = vrot.slane %v1755, 5
        %v1758 = vrot.slane %v943, 6
        %v1759 = vor.u32 %v1757, %v1758
        %v1760 = vsel %vm1526, %v1754, %v1759
        %v1761 = vld [vmem:[#allocation2] sm:$0xff]
        %v1762 = vld [vmem:[#allocation2 + $0x8] sm:$0xff]
        %v1763 = vld [vmem:[#allocation2 + $0x10] sm:$0xff]
        %v1764 = vld [vmem:[#allocation2 + $0x18] sm:$0xff]
        %s1765 = scalar_lea.vmem %s283, 176
        %v1766 = vld [vmem:[%s1765] sm:$0xf]
        %v1767 = vld [vmem:[%s1765 + $0x4] sm:$0xf]
        %v1768 = vld [vmem:[%s1765 + $0x8] sm:$0xf]
        %v1769 = vld [vmem:[%s1765 + $0xc] sm:$0xf]
        %v1770 = vunpack.c.l.b16 %v1753
        %v1771 = vunpack.c.l.b16 %v1760
        %v1772 = vpack.c.b16 %v1771, %v1770
        %v1777 = vunpack.c.l.b16 %v1766
        %v1778 = vunpack.c.l.b16 %v1767
        %v1779 = vunpack.c.l.b16 %v1768
        %v1780 = vunpack.c.l.b16 %v1769
        %v1781 = vpack.c.b16 %v1778, %v1777
        %v1782 = vpack.c.b16 %v1780, %v1779
        %v1786 = vsel %vm351, %v1772, 0
        %1788 = vmatprep.subr.bf16.mxu0 0
        %1789 = vmatpush1.bf16.msra.mxu0 0
        %1790 = vmatprep.subr.bf16.mxu0 0
        %1791 = vmatpush1.bf16.msra.mxu0 0
        %1792 = vmatprep.subr.bf16.mxu0 0
        %1793 = vmatpush1.bf16.msra.mxu0 0
        %1794 = vmatprep.subr.bf16.mxu0 0
        %1795 = vmatpush1.bf16.msra.mxu0 0
        %1796 = vmatprep.subr.bf16.mxu0 0
        %1797 = vmatpush1.bf16.msra.mxu0 0
        %1798 = vmatprep.subr.bf16.mxu0 0
        %1799 = vmatpush1.bf16.msra.mxu0 0
        %1800 = vmatprep.subr.bf16.mxu0 0
        %1801 = vmatpush1.bf16.msra.mxu0 %v1782
        %1802 = vmatprep.subr.bf16.mxu0 0
        %1803 = vmatpush1.bf16.msra.mxu0 %v1781
        %1804 = vmatprep.subr.bf16.mxu0 0
        %1805 = vmatpush2.bf16.msra.mxu0 0
        %1806 = vmatprep.subr.bf16.mxu0 0
        %1807 = vmatpush2.bf16.msra.mxu0 0
        %1808 = vmatprep.subr.bf16.mxu0 0
        %1809 = vmatpush2.bf16.msra.mxu0 0
        %1810 = vmatprep.subr.bf16.mxu0 0
        %1811 = vmatpush2.bf16.msra.mxu0 0
        %1812 = vmatprep.subr.bf16.mxu0 0
        %1813 = vmatpush2.bf16.msra.mxu0 0
        %1814 = vmatprep.subr.bf16.mxu0 0
        %1815 = vmatpush2.bf16.msra.mxu0 0
        %1816 = vmatprep.subr.bf16.mxu0 0
        %1817 = vmatpush2.bf16.msra.mxu0 0
        %1818 = vmatprep.subr.bf16.mxu0 0
        %1819 = vmatpush2.bf16.msra.mxu0 0
        %1820 = vmatprep.mubr.bf16.mxu0 0
        %1821 = vmatmul.mubr.bf16.gmra.mxu0 %v1687
        %v1822 = vpop.f32.mrf.mxu0
        %v1823 = vadd.f32 0.0, %v1822
        %v1824 = vpop.f32.mrf.mxu0
        %v1825 = vpop.f32.mrf.mxu0
        %v1826 = vadd.f32 0.0, %v1825
        %v1827 = vpop.f32.mrf.mxu0
        %1828 = vmatprep.mubr.bf16.mxu0 0
        %1829 = vmatmul.mubr.bf16.gmra.mxu0 %v1786
        %v1830 = vpop.f32.mrf.mxu0
        %v1831 = vadd.f32 0.0, %v1830
        %v1832 = vpop.f32.mrf.mxu0
        %v1833 = vpop.f32.mrf.mxu0
        %v1834 = vadd.f32 0.0, %v1833
        %v1835 = vpop.f32.mrf.mxu0
        %1836 = vdwg.mxu0
        %v1837 = vadd.f32 %v1761, %v1823
        %v1838 = vadd.f32 %v1762, %v1826
        %v1839 = vadd.f32 %v1763, %v1831
        %v1840 = vadd.f32 %v1764, %v1834
        %1841 = vst.msk [vmem:[#allocation2] sm:$0xff] %vm411, %v1837
        %1842 = vst.msk [vmem:[#allocation2 + $0x8] sm:$0xff] %vm411, %v1838
        %1843 = vst.msk [vmem:[#allocation2 + $0x10] sm:$0xff] %vm411, %v1839
        %1844 = vst.msk [vmem:[#allocation2 + $0x18] sm:$0xff] %vm411, %v1840
        %v1845 = vrot.slane %v1032, 5
        %v1846 = vrot.slane %v1035, 6
        %v1847 = vor.u32 %v1845, %v1846
        %v1848 = vrot.slane %v1847, 4
        %v1849 = vrot.slane %v1045, 5
        %v1850 = vrot.slane %v1041, 6
        %v1851 = vor.u32 %v1849, %v1850
        %v1852 = vsel %vm1526, %v1848, %v1851
        %v1853 = vrot.slane %v1851, 4
        %v1854 = vshrl.u32 %v320, 16
        %v1856 = vrot.slane %v1854, 5
        %v1857 = vrot.slane %v1051, 6
        %v1858 = vor.u32 %v1856, %v1857
        %v1859 = vsel %vm1526, %v1853, %v1858
        %v1860 = vld [vmem:[#allocation2] sm:$0xff]
        %v1861 = vld [vmem:[#allocation2 + $0x8] sm:$0xff]
        %v1862 = vld [vmem:[#allocation2 + $0x10] sm:$0xff]
        %v1863 = vld [vmem:[#allocation2 + $0x18] sm:$0xff]
        %s1864 = scalar_lea.vmem %s283, 240
        %v1865 = vld [vmem:[%s1864] sm:$0xf]
        %v1866 = vld [vmem:[%s1864 + $0x4] sm:$0xf]
        %v1867 = vld [vmem:[%s1864 + $0x8] sm:$0xf]
        %v1868 = vld [vmem:[%s1864 + $0xc] sm:$0xf]
        %v1869 = vunpack.c.l.b16 %v1852
        %v1870 = vunpack.c.l.b16 %v1859
        %v1871 = vpack.c.b16 %v1870, %v1869
        %v1876 = vunpack.c.l.b16 %v1865
        %v1877 = vunpack.c.l.b16 %v1866
        %v1878 = vunpack.c.l.b16 %v1867
        %v1879 = vunpack.c.l.b16 %v1868
        %v1880 = vpack.c.b16 %v1877, %v1876
        %v1881 = vpack.c.b16 %v1879, %v1878
        %v1885 = vsel %vm351, %v1871, 0
        %1887 = vmatprep.subr.bf16.mxu0 0
        %1888 = vmatpush1.bf16.msra.mxu0 0
        %1889 = vmatprep.subr.bf16.mxu0 0
        %1890 = vmatpush1.bf16.msra.mxu0 0
        %1891 = vmatprep.subr.bf16.mxu0 0
        %1892 = vmatpush1.bf16.msra.mxu0 0
        %1893 = vmatprep.subr.bf16.mxu0 0
        %1894 = vmatpush1.bf16.msra.mxu0 0
        %1895 = vmatprep.subr.bf16.mxu0 0
        %1896 = vmatpush1.bf16.msra.mxu0 0
        %1897 = vmatprep.subr.bf16.mxu0 0
        %1898 = vmatpush1.bf16.msra.mxu0 0
        %1899 = vmatprep.subr.bf16.mxu0 0
        %1900 = vmatpush1.bf16.msra.mxu0 %v1881
        %1901 = vmatprep.subr.bf16.mxu0 0
        %1902 = vmatpush1.bf16.msra.mxu0 %v1880
        %1903 = vmatprep.subr.bf16.mxu0 0
        %1904 = vmatpush2.bf16.msra.mxu0 0
        %1905 = vmatprep.subr.bf16.mxu0 0
        %1906 = vmatpush2.bf16.msra.mxu0 0
        %1907 = vmatprep.subr.bf16.mxu0 0
        %1908 = vmatpush2.bf16.msra.mxu0 0
        %1909 = vmatprep.subr.bf16.mxu0 0
        %1910 = vmatpush2.bf16.msra.mxu0 0
        %1911 = vmatprep.subr.bf16.mxu0 0
        %1912 = vmatpush2.bf16.msra.mxu0 0
        %1913 = vmatprep.subr.bf16.mxu0 0
        %1914 = vmatpush2.bf16.msra.mxu0 0
        %1915 = vmatprep.subr.bf16.mxu0 0
        %1916 = vmatpush2.bf16.msra.mxu0 0
        %1917 = vmatprep.subr.bf16.mxu0 0
        %1918 = vmatpush2.bf16.msra.mxu0 0
        %1919 = vmatprep.mubr.bf16.mxu0 0
        %1920 = vmatmul.mubr.bf16.gmra.mxu0 %v1786
        %v1921 = vpop.f32.mrf.mxu0
        %v1922 = vadd.f32 0.0, %v1921
        %v1923 = vpop.f32.mrf.mxu0
        %v1924 = vpop.f32.mrf.mxu0
        %v1925 = vadd.f32 0.0, %v1924
        %v1926 = vpop.f32.mrf.mxu0
        %1927 = vmatprep.mubr.bf16.mxu0 0
        %1928 = vmatmul.mubr.bf16.gmra.mxu0 %v1885
        %v1929 = vpop.f32.mrf.mxu0
        %v1930 = vadd.f32 0.0, %v1929
        %v1931 = vpop.f32.mrf.mxu0
        %v1932 = vpop.f32.mrf.mxu0
        %v1933 = vadd.f32 0.0, %v1932
        %v1934 = vpop.f32.mrf.mxu0
        %1935 = vdwg.mxu0
        %v1936 = vadd.f32 %v1860, %v1922
        %v1937 = vadd.f32 %v1861, %v1925
        %v1938 = vadd.f32 %v1862, %v1930
        %v1939 = vadd.f32 %v1863, %v1933
        %1940 = vst.msk [vmem:[#allocation2] sm:$0xff] %vm411, %v1936
        %1941 = vst.msk [vmem:[#allocation2 + $0x8] sm:$0xff] %vm411, %v1937
        %1942 = vst.msk [vmem:[#allocation2 + $0x10] sm:$0xff] %vm411, %v1938
        %1943 = vst.msk [vmem:[#allocation2 + $0x18] sm:$0xff] %vm411, %v1939
        // Predicated region
        $region37: #{_lambda_.9} parent=31 // pred_check
          %p1944 = pneg %p297
        $region38: #{_lambda_.9} parent=31 // pred_check_branch
          %1946 = sbr.rel (%p1944) target = $region40
        $region39: #{_lambda_.9} parent=31 // pred_region
          %v1947 = vld [vmem:[#allocation2] sm:$0xff]
          %v1948 = vld [vmem:[#allocation2 + $0x10] sm:$0xff]
          %v1949 = vld [vmem:[%s287] sm:$0x1]
          %v1951 = vlaneseq
          %v1952 = vshrl.u32 %v1951, 7
          %v1953 = vsub.s32 0, %v1952
          %v1954 = vrot.slane %v1949, %v1953
          %v1956 = vadd.f32 %v1947, %v1954
          %v1957 = vadd.f32 %v1948, %v1954
          %vm1958 = vcmask 58368
          %v1959 = vsel %vm1958, %v1956, 0.0
          %v1960 = vsel %vm1958, %v1957, 0.0
          %v1961 = vadd.f32 %v1959, %v1960
          %v1962 = vmul.f32 %v1956, %v1956
          %v1963 = vmul.f32 %v1957, %v1957
          %v1964 = vsel %vm1958, %v1962, 0.0
          %v1965 = vsel %vm1958, %v1963, 0.0
          %v1966 = vadd.f32 %v1964, %v1965
          %v1967 = vsel %vm1958, %v1961, 0.0
          %v1968 = vrot.slane %v1967, 4
          %v1969 = vadd.f32 %v1967, %v1968
          %v1970 = vrot.slane %v1969, 2
          %v1971 = vadd.f32 %v1969, %v1970
          %v1972 = vrot.slane %v1971, 1
          %v1973 = vadd.f32 %v1971, %v1972
          %vm1974 = vcmask 57344
          %1975 = vst.msk [vmem:[%s267] sm:$0x1] %vm1974, %v1973
          %v1976 = vsel %vm1958, %v1966, 0.0
          %v1977 = vrot.slane %v1976, 4
          %v1978 = vadd.f32 %v1976, %v1977
          %v1979 = vrot.slane %v1978, 2
          %v1980 = vadd.f32 %v1978, %v1979
          %v1981 = vrot.slane %v1980, 1
          %v1982 = vadd.f32 %v1980, %v1981
          %1983 = vst.msk [vmem:[%s267 + $0x1] sm:$0x1] %vm1974, %v1982
          %1984 = vst.msk [vmem:[%s295] sm:$0x3] %vm1958, %v1956
          %1985 = vst.msk [vmem:[%s295 + $0x2] sm:$0x3] %vm1958, %v1957
        $region40: #{_lambda_.9} parent=31 // pred_fallthru
          _
        %p1986 = scmp.lt.s32.totalorder %s24, 1
        %s1987 = scalar_select %p1986, %s24, 1
        %p1988 = scmp.lt.s32.totalorder %s25, 0
        %s1989 = scalar_select %p1988, %s25, 0
        %s1990 = smul.addr %s1987, 2
        %s1991 = sadd.s32 %s1989, %s1990
        %s1992 = smul.addr %s1991, 2
        %s1993 = scalar_lea.vmem %s3, %s1992
        %s1994 = sand.u32 %s158, 1
        %s1995 = scalar_lea.sflag [#allocation4], %s1994
        %s1996 = sand.u32 %s158, 1
        %s1997 = smul.addr %s1996, 2
        %s1998 = scalar_lea.vmem [#allocation3], %s1997
        // Predicated region
        $region41: #{_lambda_.9} parent=31 // pred_check
          %p1999 = pneg %p140
        $region42: #{_lambda_.9} parent=31 // pred_check_branch
          %2001 = sbr.rel (%p1999) target = $region44
        $region43: #{_lambda_.9} parent=31 // pred_region
          _
        $region44: #{_lambda_.9} parent=31 // pred_fallthru
          _
        // Predicated region
        $region45: #{_lambda_.9} parent=31 // pred_check
          %p2002 = pneg %p168
        $region46: #{_lambda_.9} parent=31 // pred_check_branch
          %2004 = sbr.rel (%p2002) target = $region48
        $region47: #{_lambda_.9} parent=31 // pred_region
          %s2006 = ssub.s32 32, 32
          %2007 = vsyncadd %s1995, %s2006
          %s2008 = sadd.s32 %s25, %s24
          %s2009 = smul.addr %s2008, 32
          %s2010 = scalar_lea.hbm %s4, %s2009
          %s2012 = sshll.u32 %s1998, 4
          %s2013 = int_to_ptr.vmem [resolvable:$true] %s2012
          %2015 = dma.vmem_to_hbm [thread:$0]  %s2013, 32, %s2010, %s1995
        $region48: #{_lambda_.9} parent=31 // pred_fallthru
          _
      $region32: #{_lambda_.9} parent=5 // pred_fallthru
        _
      %p2016 = scmp.le.s32.totalorder 2, %s14
      // Predicated region
      $region49: #{_lambda_.9} parent=5 // pred_check
        %p2017 = pneg %p2016
      $region50: #{_lambda_.9} parent=5 // pred_check_branch
        %2019 = sbr.rel (%p2017) target = $region52
      $region51: #{_lambda_.9} parent=5 // pred_region
        %s2020 = ssub.s32 %s14, 2
        // Predicated region
        $region53: #{_lambda_.9} parent=51 // pred_check
          %p2021 = pneg %p146
        $region54: #{_lambda_.9} parent=51 // pred_check_branch
          %2023 = sbr.rel (%p2021) target = $region56
        $region55: #{_lambda_.9} parent=51 // pred_region
          %p2024 = scmp.lt.s32.totalorder %s27, 1
          %s2025 = scalar_select %p2024, %s27, 1
          %p2026 = scmp.lt.s32.totalorder %s28, 0
          %s2027 = scalar_select %p2026, %s28, 0
          %s2028 = smul.addr %s2025, 2
          %s2029 = sadd.s32 %s2027, %s2028
          %s2030 = smul.addr %s2029, 2
          %s2031 = scalar_lea.vmem %s3, %s2030
        $region56: #{_lambda_.9} parent=51 // pred_fallthru
          _
        // Predicated region
        $region57: #{_lambda_.9} parent=51 // pred_check
          %p2032 = pneg %p174
        $region58: #{_lambda_.9} parent=51 // pred_check_branch
          %2034 = sbr.rel (%p2032) target = $region60
        $region59: #{_lambda_.9} parent=51 // pred_region
          %s2035 = sand.u32 %s159, 1
          %s2036 = scalar_lea.sflag [#allocation4], %s2035
          %s2037 = sand.u32 %s159, 1
          %s2038 = smul.addr %s2037, 2
          %s2039 = scalar_lea.vmem [#allocation3], %s2038
          %2040 = dma.done %s2036, 32
        $region60: #{_lambda_.9} parent=51 // pred_fallthru
          _
      $region52: #{_lambda_.9} parent=5 // pred_fallthru
        _
    $region6: #{_lambda_.9} parent=1 // loop_footer
      %s18 = sadd.s32 1, %s14
    $region7: #{_lambda_.9} parent=1 // loop_footer_branch
      %13 = sbr.rel target = $region3
    $region8: #{_lambda_.9} parent=1 // loop_exit
      _
    %2041 = vsyncpa [#allocation4], 1
    %s2042 = scalar_lea.sflag [#allocation4], 1
    %2043 = vsyncpa %s2042, 1

</llo_original>
